<compile_context>
chip_gen: v7x
topology: tpu7x:2x2x1
jax: 0.10.0
libtpu: 0.0.40
codegen_flags: <defaults>
</compile_context>

<pallas_src>
import math

import jax
import jax.numpy as jnp
from jax.experimental import pallas as pl
from jax.experimental.pallas import tpu as pltpu


def _make_attention_kernel(heads: int, dim_head: int, scale: float, tq: int, C: int):
    def kernel(xq_ref, xkv_ref, wq_ref, wk_ref, wv_ref, wout_ref, bout_ref, o_ref):
        f32 = jnp.float32
        bf16 = jnp.bfloat16

        xq = xq_ref[0]        # (TQ, C) bf16 — query tile of this batch item
        xkv = xkv_ref[0]      # (N,  C) bf16 — full spatial extent (keys/values)

        y_acc = jnp.zeros((tq, C), f32)          # fused output-projection accumulator

        for h in range(heads):                   # heads is small; static unroll
            # Per-head projections: leading-axis ref slices are free; bf16 MXU, f32 acc.
            q = jnp.dot(xq, wq_ref[h], preferred_element_type=f32)     # (TQ, d)
            k = jnp.dot(xkv, wk_ref[h], preferred_element_type=f32)    # (N, d)
            v = jnp.dot(xkv, wv_ref[h], preferred_element_type=f32)    # (N, d)

            # F.normalize(eps=1e-12) == x * rsqrt(max(sum(x^2), 1e-24)); rsqrt rides EUP.
            # Fold the attention scale into q (N*d multiply instead of N*N).
            q = q * (jax.lax.rsqrt(jnp.maximum(jnp.sum(q * q, -1, keepdims=True), 1e-24))
                     * scale)
            k = k * jax.lax.rsqrt(jnp.maximum(jnp.sum(k * k, -1, keepdims=True), 1e-24))

            # sim = (scale * q_hat) @ k_hat^T  -> (TQ, N), bf16 operands, f32 accumulate.
            sim = jax.lax.dot_general(
                q.astype(bf16), k.astype(bf16), (((1,), (1,)), ((), ())),
                preferred_element_type=f32)

            # Cosine logits are bounded by +scale -> constant shift, no per-row max reduce.
            p = jnp.exp(sim - scale)                                    # (TQ, N)
            rowsum = jnp.sum(p, axis=-1, keepdims=True)                 # (TQ, 1)

            # Unnormalized p @ v, then deferred normalization on the small (TQ, d) slab.
            o_h = jnp.dot(p.astype(bf16), v.astype(bf16),
                          preferred_element_type=f32)                   # (TQ, d)
            o_h = o_h * pl.reciprocal(rowsum, approx=True)

            # Fused 1x1 output conv: accumulate this head's contribution into (TQ, C).
            y_acc = y_acc + jnp.dot(o_h.astype(bf16), wout_ref[h],
                                    preferred_element_type=f32)

        o_ref[0] = (y_acc + bout_ref[...]).astype(o_ref.dtype)

    return kernel


def attention_forward(x, w_qkv, w_out, b_out, *, heads=4, dim_head=32, scale=10.0):
    """x: (B, C, H, W) NCHW.  PyTorch Conv2d(1x1) layouts:
       w_qkv: (3*heads*dim_head, C), w_out: (C, heads*dim_head), b_out: (C,).
       Returns (B, C, H, W)."""
    B, C, H, W = x.shape
    N = H * W
    hidden = heads * dim_head
    assert w_qkv.shape == (3 * hidden, C)
    assert w_out.shape == (C, hidden)
    assert b_out.shape == (C,)

    TQ = 128 if N % 128 == 0 else N
    n_q_tiles = N // TQ

    # Per-head weight blocks (sliced on the leading axis inside the kernel), pre-cast bf16.
    wq_t, wk_t, wv_t = jnp.split(w_qkv, 3, axis=0)                     # (hidden, C) each

    def heads_first(w):                                                # -> (heads, C, d)
        return jnp.transpose(w.reshape(heads, dim_head, C), (0, 2, 1)).astype(jnp.bfloat16)

    wq, wk, wv = heads_first(wq_t), heads_first(wk_t), heads_first(wv_t)
    wo = jnp.transpose(w_out, (1, 0)).reshape(heads, dim_head, C).astype(jnp.bfloat16)
    bo = b_out.reshape(1, C).astype(jnp.float32)

    # Lane-dense channels-last activations; bf16 MXU operands (transpose+cast fuse in XLA).
    x_flat = jnp.transpose(x.reshape(B, C, N), (0, 2, 1)).astype(jnp.bfloat16)   # (B, N, C)

    kernel = _make_attention_kernel(heads, dim_head, float(scale), TQ, C)

    out_flat = pl.pallas_call(
        kernel,
        out_shape=jax.ShapeDtypeStruct((B, N, C), x.dtype),
        grid=(B, n_q_tiles),
        in_specs=[
            pl.BlockSpec((1, TQ, C), lambda b, qi: (b, qi, 0)),        # query tile
            pl.BlockSpec((1, N, C), lambda b, qi: (b, 0, 0)),          # full seq for K/V
            pl.BlockSpec((heads, C, dim_head), lambda b, qi: (0, 0, 0)),   # resident Wq
            pl.BlockSpec((heads, C, dim_head), lambda b, qi: (0, 0, 0)),   # resident Wk
            pl.BlockSpec((heads, C, dim_head), lambda b, qi: (0, 0, 0)),   # resident Wv
            pl.BlockSpec((heads, dim_head, C), lambda b, qi: (0, 0, 0)),   # resident Wout
            pl.BlockSpec((1, C), lambda b, qi: (0, 0)),                    # resident bias
        ],
        out_specs=pl.BlockSpec((1, TQ, C), lambda b, qi: (b, qi, 0)),
        compiler_params=pltpu.CompilerParams(
            dimension_semantics=("parallel", "parallel"),              # megacore + pipeline
        ),
    )(x_flat, x_flat, wq, wk, wv, wo, bo)

    return jnp.transpose(out_flat, (0, 2, 1)).reshape(B, C, H, W)


def attention_reference(x, w_qkv, w_out, b_out, *, heads=4, dim_head=32, scale=10.0):
    """Pure-JAX f32 reference mirroring the PyTorch module (PyTorch weight layouts)."""
    B, C, H, W = x.shape
    N = H * W
    hidden = heads * dim_head
    xf = x.reshape(B, C, N)                                                   # (B, C, N)
    qkv = jnp.einsum('kc,bcn->bkn', w_qkv, xf, precision='highest')          # (B, 3h, N)
    q, k, v = jnp.split(qkv, 3, axis=1)

    def to_heads(t):                                                          # (B,h,d,N)
        return t.reshape(B, heads, dim_head, N)

    q, k, v = map(to_heads, (q, k, v))

    def l2n(t):
        n = jnp.sqrt(jnp.sum(t * t, axis=2, keepdims=True))
        return t / jnp.maximum(n, 1e-12)

    q, k = l2n(q), l2n(k)
    sim = jnp.einsum('bhdi,bhdj->bhij', q, k, precision='highest') * scale
    attn = jax.nn.softmax(sim, axis=-1)
    out = jnp.einsum('bhij,bhdj->bhid', attn, v, precision='highest')         # (B,h,N,d)
    out = jnp.transpose(out, (0, 1, 3, 2)).reshape(B, hidden, N)              # (B,h*d,N)
    y = jnp.einsum('ch,bhn->bcn', w_out, out, precision='highest') + b_out[None, :, None]
    return y.reshape(B, C, H, W)


if __name__ == "__main__":
    key = jax.random.PRNGKey(0)
    k_x, k_qkv, k_wo, k_bo = jax.random.split(key, 4)

    B, dim, H, W = 2, 128, 16, 16
    heads, dim_head, scale = 4, 32, 10.0
    hidden = heads * dim_head

    x = jax.random.normal(k_x, (B, dim, H, W), jnp.float32)

    # PyTorch Conv2d(1x1) default init bounds, native PyTorch weight layouts.
    bq = 1.0 / math.sqrt(dim)
    w_qkv = jax.random.uniform(k_qkv, (3 * hidden, dim), jnp.float32, -bq, bq)
    bo = 1.0 / math.sqrt(hidden)
    w_out = jax.random.uniform(k_wo, (dim, hidden), jnp.float32, -bo, bo)
    b_out = jax.random.uniform(k_bo, (dim,), jnp.float32, -bo, bo)

    out = attention_forward(x, w_qkv, w_out, b_out,
                            heads=heads, dim_head=dim_head, scale=scale)
    out = jax.block_until_ready(out)

    ref = attention_reference(x, w_qkv, w_out, b_out,
                              heads=heads, dim_head=dim_head, scale=scale)
    assert out.shape == (B, dim, H, W)
    # bf16 MXU operands + approx reciprocal (per perf review) -> looser tolerance vs the
    # f32 reference; structural bugs would produce O(1) errors and still be caught.
    assert jnp.allclose(out, ref, atol=1e-1, rtol=1e-1), \
        float(jnp.max(jnp.abs(out - ref)))

    print("KERNEL_OK")
</pallas_src>

<mosaic_0001>
module attributes {stable_mosaic.version = 11 : i64} {
  func.func @kernel(%arg0: i32, %arg1: i32, %arg2: memref<1x128x128xbf16, #tpu.memory_space<vmem>>, %arg3: memref<1x256x128xbf16, #tpu.memory_space<vmem>>, %arg4: memref<4x128x32xbf16, #tpu.memory_space<vmem>>, %arg5: memref<4x128x32xbf16, #tpu.memory_space<vmem>>, %arg6: memref<4x128x32xbf16, #tpu.memory_space<vmem>>, %arg7: memref<4x32x128xbf16, #tpu.memory_space<vmem>>, %arg8: memref<1x128xf32, #tpu.memory_space<vmem>>, %arg9: memref<1x128x128xf32, #tpu.memory_space<vmem>>) attributes {dimension_semantics = [#tpu.dimension_semantics<parallel>, #tpu.dimension_semantics<parallel>], iteration_bounds = array<i64: 2, 2>, scalar_prefetch = 0 : i64, scratch_operands = 0 : i64, tpu.core_type = #tpu.core_type<tc>, window_params = [{transform_indices = @transform_0, window_bounds = array<i64: 1, 128, 128>}, {transform_indices = @transform_1, window_bounds = array<i64: 1, 256, 128>}, {pipeline_mode = #tpu.pipeline_mode<synchronous>, transform_indices = @transform_2, window_bounds = array<i64: 4, 128, 32>}, {pipeline_mode = #tpu.pipeline_mode<synchronous>, transform_indices = @transform_3, window_bounds = array<i64: 4, 128, 32>}, {pipeline_mode = #tpu.pipeline_mode<synchronous>, transform_indices = @transform_4, window_bounds = array<i64: 4, 128, 32>}, {pipeline_mode = #tpu.pipeline_mode<synchronous>, transform_indices = @transform_5, window_bounds = array<i64: 4, 32, 128>}, {pipeline_mode = #tpu.pipeline_mode<synchronous>, transform_indices = @transform_6, window_bounds = array<i64: 1, 128>}, {transform_indices = @transform_7, window_bounds = array<i64: 1, 128, 128>}]} {
    %c0 = arith.constant 0 : index
    %c0_0 = arith.constant 0 : index
    %c0_1 = arith.constant 0 : index
    %0 = vector.load %arg2[%c0, %c0_0, %c0_1] : memref<1x128x128xbf16, #tpu.memory_space<vmem>>, vector<1x128x128xbf16>
    %1 = vector.shape_cast %0 : vector<1x128x128xbf16> to vector<128x128xbf16>
    %c0_2 = arith.constant 0 : index
    %c0_3 = arith.constant 0 : index
    %c0_4 = arith.constant 0 : index
    %2 = vector.load %arg3[%c0_2, %c0_3, %c0_4] : memref<1x256x128xbf16, #tpu.memory_space<vmem>>, vector<1x256x128xbf16>
    %3 = vector.shape_cast %2 : vector<1x256x128xbf16> to vector<256x128xbf16>
    %cst = arith.constant 0.000000e+00 : f32
    %4 = vector.broadcast %cst : f32 to vector<128x128xf32>
    %c0_5 = arith.constant 0 : index
    %c0_6 = arith.constant 0 : index
    %c0_7 = arith.constant 0 : index
    %5 = vector.load %arg4[%c0_5, %c0_6, %c0_7] : memref<4x128x32xbf16, #tpu.memory_space<vmem>>, vector<1x128x32xbf16>
    %6 = vector.shape_cast %5 : vector<1x128x32xbf16> to vector<128x32xbf16>
    %cst_8 = arith.constant dense<0.000000e+00> : vector<128x32xf32>
    %7 = tpu.matmul %1, %6, %cst_8 {dimension_numbers = #tpu.dot_dimension_numbers<[1], [0], [0], [1], [0, 0, 1, 1], [], []>} : vector<128x128xbf16>, vector<128x32xbf16>, vector<128x32xf32> -> vector<128x32xf32>
    %c0_9 = arith.constant 0 : index
    %c0_10 = arith.constant 0 : index
    %c0_11 = arith.constant 0 : index
    %8 = vector.load %arg5[%c0_9, %c0_10, %c0_11] : memref<4x128x32xbf16, #tpu.memory_space<vmem>>, vector<1x128x32xbf16>
    %9 = vector.shape_cast %8 : vector<1x128x32xbf16> to vector<128x32xbf16>
    %cst_12 = arith.constant dense<0.000000e+00> : vector<256x32xf32>
    %10 = tpu.matmul %3, %9, %cst_12 {dimension_numbers = #tpu.dot_dimension_numbers<[1], [0], [0], [1], [0, 0, 1, 1], [], []>} : vector<256x128xbf16>, vector<128x32xbf16>, vector<256x32xf32> -> vector<256x32xf32>
    %c0_13 = arith.constant 0 : index
    %c0_14 = arith.constant 0 : index
    %c0_15 = arith.constant 0 : index
    %11 = vector.load %arg6[%c0_13, %c0_14, %c0_15] : memref<4x128x32xbf16, #tpu.memory_space<vmem>>, vector<1x128x32xbf16>
    %12 = vector.shape_cast %11 : vector<1x128x32xbf16> to vector<128x32xbf16>
    %cst_16 = arith.constant dense<0.000000e+00> : vector<256x32xf32>
    %13 = tpu.matmul %3, %12, %cst_16 {dimension_numbers = #tpu.dot_dimension_numbers<[1], [0], [0], [1], [0, 0, 1, 1], [], []>} : vector<256x128xbf16>, vector<128x32xbf16>, vector<256x32xf32> -> vector<256x32xf32>
    %14 = arith.mulf %7, %7 : vector<128x32xf32>
    %cst_17 = arith.constant dense<0.000000e+00> : vector<128xf32>
    %15 = vector.multi_reduction <add>, %14, %cst_17 [1] : vector<128x32xf32> to vector<128xf32>
    %16 = vector.shape_cast %15 : vector<128xf32> to vector<128x1xf32>
    %cst_18 = arith.constant 1.000000e-24 : f32
    %17 = vector.broadcast %cst_18 : f32 to vector<128x1xf32>
    %18 = arith.maximumf %16, %17 : vector<128x1xf32>
    %19 = math.rsqrt %18 : vector<128x1xf32>
    %cst_19 = arith.constant 1.000000e+01 : f32
    %20 = vector.broadcast %cst_19 : f32 to vector<128x1xf32>
    %21 = arith.mulf %19, %20 : vector<128x1xf32>
    %22 = vector.broadcast %21 : vector<128x1xf32> to vector<128x32xf32>
    %23 = arith.mulf %7, %22 : vector<128x32xf32>
    %24 = arith.mulf %10, %10 : vector<256x32xf32>
    %cst_20 = arith.constant dense<0.000000e+00> : vector<256xf32>
    %25 = vector.multi_reduction <add>, %24, %cst_20 [1] : vector<256x32xf32> to vector<256xf32>
    %26 = vector.shape_cast %25 : vector<256xf32> to vector<256x1xf32>
    %cst_21 = arith.constant 1.000000e-24 : f32
    %27 = vector.broadcast %cst_21 : f32 to vector<256x1xf32>
    %28 = arith.maximumf %26, %27 : vector<256x1xf32>
    %29 = math.rsqrt %28 : vector<256x1xf32>
    %30 = vector.broadcast %29 : vector<256x1xf32> to vector<256x32xf32>
    %31 = arith.mulf %10, %30 : vector<256x32xf32>
    %32 = arith.truncf %23 : vector<128x32xf32> to vector<128x32xbf16>
    %33 = arith.truncf %31 : vector<256x32xf32> to vector<256x32xbf16>
    %cst_22 = arith.constant dense<0.000000e+00> : vector<128x256xf32>
    %34 = tpu.matmul %32, %33, %cst_22 {dimension_numbers = #tpu.dot_dimension_numbers<[1], [1], [0], [0], [0, 0, 1, 0], [], []>} : vector<128x32xbf16>, vector<256x32xbf16>, vector<128x256xf32> -> vector<128x256xf32>
    %cst_23 = arith.constant 1.000000e+01 : f32
    %35 = vector.broadcast %cst_23 : f32 to vector<128x256xf32>
    %36 = arith.subf %34, %35 : vector<128x256xf32>
    %37 = math.exp %36 : vector<128x256xf32>
    %cst_24 = arith.constant dense<0.000000e+00> : vector<128xf32>
    %38 = vector.multi_reduction <add>, %37, %cst_24 [1] : vector<128x256xf32> to vector<128xf32>
    %39 = vector.shape_cast %38 : vector<128xf32> to vector<128x1xf32>
    %40 = arith.truncf %37 : vector<128x256xf32> to vector<128x256xbf16>
    %41 = arith.truncf %13 : vector<256x32xf32> to vector<256x32xbf16>
    %cst_25 = arith.constant dense<0.000000e+00> : vector<128x32xf32>
    %42 = tpu.matmul %40, %41, %cst_25 {dimension_numbers = #tpu.dot_dimension_numbers<[1], [0], [0], [1], [0, 0, 1, 1], [], []>} : vector<128x256xbf16>, vector<256x32xbf16>, vector<128x32xf32> -> vector<128x32xf32>
    %43 = tpu.reciprocal %39 {approx = true} : vector<128x1xf32> -> vector<128x1xf32>
    %44 = vector.broadcast %43 : vector<128x1xf32> to vector<128x32xf32>
    %45 = arith.mulf %42, %44 : vector<128x32xf32>
    %46 = arith.truncf %45 : vector<128x32xf32> to vector<128x32xbf16>
    %c0_26 = arith.constant 0 : index
    %c0_27 = arith.constant 0 : index
    %c0_28 = arith.constant 0 : index
    %47 = vector.load %arg7[%c0_26, %c0_27, %c0_28] : memref<4x32x128xbf16, #tpu.memory_space<vmem>>, vector<1x32x128xbf16>
    %48 = vector.shape_cast %47 : vector<1x32x128xbf16> to vector<32x128xbf16>
    %cst_29 = arith.constant dense<0.000000e+00> : vector<128x128xf32>
    %49 = tpu.matmul %46, %48, %cst_29 {dimension_numbers = #tpu.dot_dimension_numbers<[1], [0], [0], [1], [0, 0, 1, 1], [], []>} : vector<128x32xbf16>, vector<32x128xbf16>, vector<128x128xf32> -> vector<128x128xf32>
    %50 = arith.addf %4, %49 : vector<128x128xf32>
    %c1 = arith.constant 1 : index
    %c0_30 = arith.constant 0 : index
    %c0_31 = arith.constant 0 : index
    %51 = vector.load %arg4[%c1, %c0_30, %c0_31] : memref<4x128x32xbf16, #tpu.memory_space<vmem>>, vector<1x128x32xbf16>
    %52 = vector.shape_cast %51 : vector<1x128x32xbf16> to vector<128x32xbf16>
    %cst_32 = arith.constant dense<0.000000e+00> : vector<128x32xf32>
    %53 = tpu.matmul %1, %52, %cst_32 {dimension_numbers = #tpu.dot_dimension_numbers<[1], [0], [0], [1], [0, 0, 1, 1], [], []>} : vector<128x128xbf16>, vector<128x32xbf16>, vector<128x32xf32> -> vector<128x32xf32>
    %c1_33 = arith.constant 1 : index
    %c0_34 = arith.constant 0 : index
    %c0_35 = arith.constant 0 : index
    %54 = vector.load %arg5[%c1_33, %c0_34, %c0_35] : memref<4x128x32xbf16, #tpu.memory_space<vmem>>, vector<1x128x32xbf16>
    %55 = vector.shape_cast %54 : vector<1x128x32xbf16> to vector<128x32xbf16>
    %cst_36 = arith.constant dense<0.000000e+00> : vector<256x32xf32>
    %56 = tpu.matmul %3, %55, %cst_36 {dimension_numbers = #tpu.dot_dimension_numbers<[1], [0], [0], [1], [0, 0, 1, 1], [], []>} : vector<256x128xbf16>, vector<128x32xbf16>, vector<256x32xf32> -> vector<256x32xf32>
    %c1_37 = arith.constant 1 : index
    %c0_38 = arith.constant 0 : index
    %c0_39 = arith.constant 0 : index
    %57 = vector.load %arg6[%c1_37, %c0_38, %c0_39] : memref<4x128x32xbf16, #tpu.memory_space<vmem>>, vector<1x128x32xbf16>
    %58 = vector.shape_cast %57 : vector<1x128x32xbf16> to vector<128x32xbf16>
    %cst_40 = arith.constant dense<0.000000e+00> : vector<256x32xf32>
    %59 = tpu.matmul %3, %58, %cst_40 {dimension_numbers = #tpu.dot_dimension_numbers<[1], [0], [0], [1], [0, 0, 1, 1], [], []>} : vector<256x128xbf16>, vector<128x32xbf16>, vector<256x32xf32> -> vector<256x32xf32>
    %60 = arith.mulf %53, %53 : vector<128x32xf32>
    %cst_41 = arith.constant dense<0.000000e+00> : vector<128xf32>
    %61 = vector.multi_reduction <add>, %60, %cst_41 [1] : vector<128x32xf32> to vector<128xf32>
    %62 = vector.shape_cast %61 : vector<128xf32> to vector<128x1xf32>
    %cst_42 = arith.constant 1.000000e-24 : f32
    %63 = vector.broadcast %cst_42 : f32 to vector<128x1xf32>
    %64 = arith.maximumf %62, %63 : vector<128x1xf32>
    %65 = math.rsqrt %64 : vector<128x1xf32>
    %cst_43 = arith.constant 1.000000e+01 : f32
    %66 = vector.broadcast %cst_43 : f32 to vector<128x1xf32>
    %67 = arith.mulf %65, %66 : vector<128x1xf32>
    %68 = vector.broadcast %67 : vector<128x1xf32> to vector<128x32xf32>
    %69 = arith.mulf %53, %68 : vector<128x32xf32>
    %70 = arith.mulf %56, %56 : vector<256x32xf32>
    %cst_44 = arith.constant dense<0.000000e+00> : vector<256xf32>
    %71 = vector.multi_reduction <add>, %70, %cst_44 [1] : vector<256x32xf32> to vector<256xf32>
    %72 = vector.shape_cast %71 : vector<256xf32> to vector<256x1xf32>
    %cst_45 = arith.constant 1.000000e-24 : f32
    %73 = vector.broadcast %cst_45 : f32 to vector<256x1xf32>
    %74 = arith.maximumf %72, %73 : vector<256x1xf32>
    %75 = math.rsqrt %74 : vector<256x1xf32>
    %76 = vector.broadcast %75 : vector<256x1xf32> to vector<256x32xf32>
    %77 = arith.mulf %56, %76 : vector<256x32xf32>
    %78 = arith.truncf %69 : vector<128x32xf32> to vector<128x32xbf16>
    %79 = arith.truncf %77 : vector<256x32xf32> to vector<256x32xbf16>
    %cst_46 = arith.constant dense<0.000000e+00> : vector<128x256xf32>
    %80 = tpu.matmul %78, %79, %cst_46 {dimension_numbers = #tpu.dot_dimension_numbers<[1], [1], [0], [0], [0, 0, 1, 0], [], []>} : vector<128x32xbf16>, vector<256x32xbf16>, vector<128x256xf32> -> vector<128x256xf32>
    %cst_47 = arith.constant 1.000000e+01 : f32
    %81 = vector.broadcast %cst_47 : f32 to vector<128x256xf32>
    %82 = arith.subf %80, %81 : vector<128x256xf32>
    %83 = math.exp %82 : vector<128x256xf32>
    %cst_48 = arith.constant dense<0.000000e+00> : vector<128xf32>
    %84 = vector.multi_reduction <add>, %83, %cst_48 [1] : vector<128x256xf32> to vector<128xf32>
    %85 = vector.shape_cast %84 : vector<128xf32> to vector<128x1xf32>
    %86 = arith.truncf %83 : vector<128x256xf32> to vector<128x256xbf16>
    %87 = arith.truncf %59 : vector<256x32xf32> to vector<256x32xbf16>
    %cst_49 = arith.constant dense<0.000000e+00> : vector<128x32xf32>
    %88 = tpu.matmul %86, %87, %cst_49 {dimension_numbers = #tpu.dot_dimension_numbers<[1], [0], [0], [1], [0, 0, 1, 1], [], []>} : vector<128x256xbf16>, vector<256x32xbf16>, vector<128x32xf32> -> vector<128x32xf32>
    %89 = tpu.reciprocal %85 {approx = true} : vector<128x1xf32> -> vector<128x1xf32>
    %90 = vector.broadcast %89 : vector<128x1xf32> to vector<128x32xf32>
    %91 = arith.mulf %88, %90 : vector<128x32xf32>
    %92 = arith.truncf %91 : vector<128x32xf32> to vector<128x32xbf16>
    %c1_50 = arith.constant 1 : index
    %c0_51 = arith.constant 0 : index
    %c0_52 = arith.constant 0 : index
    %93 = vector.load %arg7[%c1_50, %c0_51, %c0_52] : memref<4x32x128xbf16, #tpu.memory_space<vmem>>, vector<1x32x128xbf16>
    %94 = vector.shape_cast %93 : vector<1x32x128xbf16> to vector<32x128xbf16>
    %cst_53 = arith.constant dense<0.000000e+00> : vector<128x128xf32>
    %95 = tpu.matmul %92, %94, %cst_53 {dimension_numbers = #tpu.dot_dimension_numbers<[1], [0], [0], [1], [0, 0, 1, 1], [], []>} : vector<128x32xbf16>, vector<32x128xbf16>, vector<128x128xf32> -> vector<128x128xf32>
    %96 = arith.addf %50, %95 : vector<128x128xf32>
    %c2 = arith.constant 2 : index
    %c0_54 = arith.constant 0 : index
    %c0_55 = arith.constant 0 : index
    %97 = vector.load %arg4[%c2, %c0_54, %c0_55] : memref<4x128x32xbf16, #tpu.memory_space<vmem>>, vector<1x128x32xbf16>
    %98 = vector.shape_cast %97 : vector<1x128x32xbf16> to vector<128x32xbf16>
    %cst_56 = arith.constant dense<0.000000e+00> : vector<128x32xf32>
    %99 = tpu.matmul %1, %98, %cst_56 {dimension_numbers = #tpu.dot_dimension_numbers<[1], [0], [0], [1], [0, 0, 1, 1], [], []>} : vector<128x128xbf16>, vector<128x32xbf16>, vector<128x32xf32> -> vector<128x32xf32>
    %c2_57 = arith.constant 2 : index
    %c0_58 = arith.constant 0 : index
    %c0_59 = arith.constant 0 : index
    %100 = vector.load %arg5[%c2_57, %c0_58, %c0_59] : memref<4x128x32xbf16, #tpu.memory_space<vmem>>, vector<1x128x32xbf16>
    %101 = vector.shape_cast %100 : vector<1x128x32xbf16> to vector<128x32xbf16>
    %cst_60 = arith.constant dense<0.000000e+00> : vector<256x32xf32>
    %102 = tpu.matmul %3, %101, %cst_60 {dimension_numbers = #tpu.dot_dimension_numbers<[1], [0], [0], [1], [0, 0, 1, 1], [], []>} : vector<256x128xbf16>, vector<128x32xbf16>, vector<256x32xf32> -> vector<256x32xf32>
    %c2_61 = arith.constant 2 : index
    %c0_62 = arith.constant 0 : index
    %c0_63 = arith.constant 0 : index
    %103 = vector.load %arg6[%c2_61, %c0_62, %c0_63] : memref<4x128x32xbf16, #tpu.memory_space<vmem>>, vector<1x128x32xbf16>
    %104 = vector.shape_cast %103 : vector<1x128x32xbf16> to vector<128x32xbf16>
    %cst_64 = arith.constant dense<0.000000e+00> : vector<256x32xf32>
    %105 = tpu.matmul %3, %104, %cst_64 {dimension_numbers = #tpu.dot_dimension_numbers<[1], [0], [0], [1], [0, 0, 1, 1], [], []>} : vector<256x128xbf16>, vector<128x32xbf16>, vector<256x32xf32> -> vector<256x32xf32>
    %106 = arith.mulf %99, %99 : vector<128x32xf32>
    %cst_65 = arith.constant dense<0.000000e+00> : vector<128xf32>
    %107 = vector.multi_reduction <add>, %106, %cst_65 [1] : vector<128x32xf32> to vector<128xf32>
    %108 = vector.shape_cast %107 : vector<128xf32> to vector<128x1xf32>
    %cst_66 = arith.constant 1.000000e-24 : f32
    %109 = vector.broadcast %cst_66 : f32 to vector<128x1xf32>
    %110 = arith.maximumf %108, %109 : vector<128x1xf32>
    %111 = math.rsqrt %110 : vector<128x1xf32>
    %cst_67 = arith.constant 1.000000e+01 : f32
    %112 = vector.broadcast %cst_67 : f32 to vector<128x1xf32>
    %113 = arith.mulf %111, %112 : vector<128x1xf32>
    %114 = vector.broadcast %113 : vector<128x1xf32> to vector<128x32xf32>
    %115 = arith.mulf %99, %114 : vector<128x32xf32>
    %116 = arith.mulf %102, %102 : vector<256x32xf32>
    %cst_68 = arith.constant dense<0.000000e+00> : vector<256xf32>
    %117 = vector.multi_reduction <add>, %116, %cst_68 [1] : vector<256x32xf32> to vector<256xf32>
    %118 = vector.shape_cast %117 : vector<256xf32> to vector<256x1xf32>
    %cst_69 = arith.constant 1.000000e-24 : f32
    %119 = vector.broadcast %cst_69 : f32 to vector<256x1xf32>
    %120 = arith.maximumf %118, %119 : vector<256x1xf32>
    %121 = math.rsqrt %120 : vector<256x1xf32>
    %122 = vector.broadcast %121 : vector<256x1xf32> to vector<256x32xf32>
    %123 = arith.mulf %102, %122 : vector<256x32xf32>
    %124 = arith.truncf %115 : vector<128x32xf32> to vector<128x32xbf16>
    %125 = arith.truncf %123 : vector<256x32xf32> to vector<256x32xbf16>
    %cst_70 = arith.constant dense<0.000000e+00> : vector<128x256xf32>
    %126 = tpu.matmul %124, %125, %cst_70 {dimension_numbers = #tpu.dot_dimension_numbers<[1], [1], [0], [0], [0, 0, 1, 0], [], []>} : vector<128x32xbf16>, vector<256x32xbf16>, vector<128x256xf32> -> vector<128x256xf32>
    %cst_71 = arith.constant 1.000000e+01 : f32
    %127 = vector.broadcast %cst_71 : f32 to vector<128x256xf32>
    %128 = arith.subf %126, %127 : vector<128x256xf32>
    %129 = math.exp %128 : vector<128x256xf32>
    %cst_72 = arith.constant dense<0.000000e+00> : vector<128xf32>
    %130 = vector.multi_reduction <add>, %129, %cst_72 [1] : vector<128x256xf32> to vector<128xf32>
    %131 = vector.shape_cast %130 : vector<128xf32> to vector<128x1xf32>
    %132 = arith.truncf %129 : vector<128x256xf32> to vector<128x256xbf16>
    %133 = arith.truncf %105 : vector<256x32xf32> to vector<256x32xbf16>
    %cst_73 = arith.constant dense<0.000000e+00> : vector<128x32xf32>
    %134 = tpu.matmul %132, %133, %cst_73 {dimension_numbers = #tpu.dot_dimension_numbers<[1], [0], [0], [1], [0, 0, 1, 1], [], []>} : vector<128x256xbf16>, vector<256x32xbf16>, vector<128x32xf32> -> vector<128x32xf32>
    %135 = tpu.reciprocal %131 {approx = true} : vector<128x1xf32> -> vector<128x1xf32>
    %136 = vector.broadcast %135 : vector<128x1xf32> to vector<128x32xf32>
    %137 = arith.mulf %134, %136 : vector<128x32xf32>
    %138 = arith.truncf %137 : vector<128x32xf32> to vector<128x32xbf16>
    %c2_74 = arith.constant 2 : index
    %c0_75 = arith.constant 0 : index
    %c0_76 = arith.constant 0 : index
    %139 = vector.load %arg7[%c2_74, %c0_75, %c0_76] : memref<4x32x128xbf16, #tpu.memory_space<vmem>>, vector<1x32x128xbf16>
    %140 = vector.shape_cast %139 : vector<1x32x128xbf16> to vector<32x128xbf16>
    %cst_77 = arith.constant dense<0.000000e+00> : vector<128x128xf32>
    %141 = tpu.matmul %138, %140, %cst_77 {dimension_numbers = #tpu.dot_dimension_numbers<[1], [0], [0], [1], [0, 0, 1, 1], [], []>} : vector<128x32xbf16>, vector<32x128xbf16>, vector<128x128xf32> -> vector<128x128xf32>
    %142 = arith.addf %96, %141 : vector<128x128xf32>
    %c3 = arith.constant 3 : index
    %c0_78 = arith.constant 0 : index
    %c0_79 = arith.constant 0 : index
    %143 = vector.load %arg4[%c3, %c0_78, %c0_79] : memref<4x128x32xbf16, #tpu.memory_space<vmem>>, vector<1x128x32xbf16>
    %144 = vector.shape_cast %143 : vector<1x128x32xbf16> to vector<128x32xbf16>
    %cst_80 = arith.constant dense<0.000000e+00> : vector<128x32xf32>
    %145 = tpu.matmul %1, %144, %cst_80 {dimension_numbers = #tpu.dot_dimension_numbers<[1], [0], [0], [1], [0, 0, 1, 1], [], []>} : vector<128x128xbf16>, vector<128x32xbf16>, vector<128x32xf32> -> vector<128x32xf32>
    %c3_81 = arith.constant 3 : index
    %c0_82 = arith.constant 0 : index
    %c0_83 = arith.constant 0 : index
    %146 = vector.load %arg5[%c3_81, %c0_82, %c0_83] : memref<4x128x32xbf16, #tpu.memory_space<vmem>>, vector<1x128x32xbf16>
    %147 = vector.shape_cast %146 : vector<1x128x32xbf16> to vector<128x32xbf16>
    %cst_84 = arith.constant dense<0.000000e+00> : vector<256x32xf32>
    %148 = tpu.matmul %3, %147, %cst_84 {dimension_numbers = #tpu.dot_dimension_numbers<[1], [0], [0], [1], [0, 0, 1, 1], [], []>} : vector<256x128xbf16>, vector<128x32xbf16>, vector<256x32xf32> -> vector<256x32xf32>
    %c3_85 = arith.constant 3 : index
    %c0_86 = arith.constant 0 : index
    %c0_87 = arith.constant 0 : index
    %149 = vector.load %arg6[%c3_85, %c0_86, %c0_87] : memref<4x128x32xbf16, #tpu.memory_space<vmem>>, vector<1x128x32xbf16>
    %150 = vector.shape_cast %149 : vector<1x128x32xbf16> to vector<128x32xbf16>
    %cst_88 = arith.constant dense<0.000000e+00> : vector<256x32xf32>
    %151 = tpu.matmul %3, %150, %cst_88 {dimension_numbers = #tpu.dot_dimension_numbers<[1], [0], [0], [1], [0, 0, 1, 1], [], []>} : vector<256x128xbf16>, vector<128x32xbf16>, vector<256x32xf32> -> vector<256x32xf32>
    %152 = arith.mulf %145, %145 : vector<128x32xf32>
    %cst_89 = arith.constant dense<0.000000e+00> : vector<128xf32>
    %153 = vector.multi_reduction <add>, %152, %cst_89 [1] : vector<128x32xf32> to vector<128xf32>
    %154 = vector.shape_cast %153 : vector<128xf32> to vector<128x1xf32>
    %cst_90 = arith.constant 1.000000e-24 : f32
    %155 = vector.broadcast %cst_90 : f32 to vector<128x1xf32>
    %156 = arith.maximumf %154, %155 : vector<128x1xf32>
    %157 = math.rsqrt %156 : vector<128x1xf32>
    %cst_91 = arith.constant 1.000000e+01 : f32
    %158 = vector.broadcast %cst_91 : f32 to vector<128x1xf32>
    %159 = arith.mulf %157, %158 : vector<128x1xf32>
    %160 = vector.broadcast %159 : vector<128x1xf32> to vector<128x32xf32>
    %161 = arith.mulf %145, %160 : vector<128x32xf32>
    %162 = arith.mulf %148, %148 : vector<256x32xf32>
    %cst_92 = arith.constant dense<0.000000e+00> : vector<256xf32>
    %163 = vector.multi_reduction <add>, %162, %cst_92 [1] : vector<256x32xf32> to vector<256xf32>
    %164 = vector.shape_cast %163 : vector<256xf32> to vector<256x1xf32>
    %cst_93 = arith.constant 1.000000e-24 : f32
    %165 = vector.broadcast %cst_93 : f32 to vector<256x1xf32>
    %166 = arith.maximumf %164, %165 : vector<256x1xf32>
    %167 = math.rsqrt %166 : vector<256x1xf32>
    %168 = vector.broadcast %167 : vector<256x1xf32> to vector<256x32xf32>
    %169 = arith.mulf %148, %168 : vector<256x32xf32>
    %170 = arith.truncf %161 : vector<128x32xf32> to vector<128x32xbf16>
    %171 = arith.truncf %169 : vector<256x32xf32> to vector<256x32xbf16>
    %cst_94 = arith.constant dense<0.000000e+00> : vector<128x256xf32>
    %172 = tpu.matmul %170, %171, %cst_94 {dimension_numbers = #tpu.dot_dimension_numbers<[1], [1], [0], [0], [0, 0, 1, 0], [], []>} : vector<128x32xbf16>, vector<256x32xbf16>, vector<128x256xf32> -> vector<128x256xf32>
    %cst_95 = arith.constant 1.000000e+01 : f32
    %173 = vector.broadcast %cst_95 : f32 to vector<128x256xf32>
    %174 = arith.subf %172, %173 : vector<128x256xf32>
    %175 = math.exp %174 : vector<128x256xf32>
    %cst_96 = arith.constant dense<0.000000e+00> : vector<128xf32>
    %176 = vector.multi_reduction <add>, %175, %cst_96 [1] : vector<128x256xf32> to vector<128xf32>
    %177 = vector.shape_cast %176 : vector<128xf32> to vector<128x1xf32>
    %178 = arith.truncf %175 : vector<128x256xf32> to vector<128x256xbf16>
    %179 = arith.truncf %151 : vector<256x32xf32> to vector<256x32xbf16>
    %cst_97 = arith.constant dense<0.000000e+00> : vector<128x32xf32>
    %180 = tpu.matmul %178, %179, %cst_97 {dimension_numbers = #tpu.dot_dimension_numbers<[1], [0], [0], [1], [0, 0, 1, 1], [], []>} : vector<128x256xbf16>, vector<256x32xbf16>, vector<128x32xf32> -> vector<128x32xf32>
    %181 = tpu.reciprocal %177 {approx = true} : vector<128x1xf32> -> vector<128x1xf32>
    %182 = vector.broadcast %181 : vector<128x1xf32> to vector<128x32xf32>
    %183 = arith.mulf %180, %182 : vector<128x32xf32>
    %184 = arith.truncf %183 : vector<128x32xf32> to vector<128x32xbf16>
    %c3_98 = arith.constant 3 : index
    %c0_99 = arith.constant 0 : index
    %c0_100 = arith.constant 0 : index
    %185 = vector.load %arg7[%c3_98, %c0_99, %c0_100] : memref<4x32x128xbf16, #tpu.memory_space<vmem>>, vector<1x32x128xbf16>
    %186 = vector.shape_cast %185 : vector<1x32x128xbf16> to vector<32x128xbf16>
    %cst_101 = arith.constant dense<0.000000e+00> : vector<128x128xf32>
    %187 = tpu.matmul %184, %186, %cst_101 {dimension_numbers = #tpu.dot_dimension_numbers<[1], [0], [0], [1], [0, 0, 1, 1], [], []>} : vector<128x32xbf16>, vector<32x128xbf16>, vector<128x128xf32> -> vector<128x128xf32>
    %188 = arith.addf %142, %187 : vector<128x128xf32>
    %c0_102 = arith.constant 0 : index
    %c0_103 = arith.constant 0 : index
    %189 = vector.load %arg8[%c0_102, %c0_103] : memref<1x128xf32, #tpu.memory_space<vmem>>, vector<1x128xf32>
    %190 = vector.broadcast %189 : vector<1x128xf32> to vector<128x128xf32>
    %191 = arith.addf %188, %190 : vector<128x128xf32>
    %c0_104 = arith.constant 0 : index
    %c0_105 = arith.constant 0 : index
    %c0_106 = arith.constant 0 : index
    %192 = vector.load %arg9[%c0_104, %c0_105, %c0_106] : memref<1x128x128xf32, #tpu.memory_space<vmem>>, vector<1x128x128xf32>
    %193 = vector.shape_cast %192 : vector<1x128x128xf32> to vector<128x128xf32>
    %194 = vector.shape_cast %191 : vector<128x128xf32> to vector<1x128x128xf32>
    tpu.vector_store %arg9[%c0_104, %c0_105, %c0_106], %194 {strides = array<i32>} : memref<1x128x128xf32, #tpu.memory_space<vmem>>, vector<1x128x128xf32>,
    return
  }
  func.func @transform_0(%arg0: i32, %arg1: i32) -> (i32, i32, i32) {
    %c0_i32 = arith.constant 0 : i32
    %c0_i32_0 = arith.constant 0 : i32
    return %arg0, %arg1, %c0_i32 : i32, i32, i32
  }
  func.func @transform_1(%arg0: i32, %arg1: i32) -> (i32, i32, i32) {
    %c0_i32 = arith.constant 0 : i32
    %c0_i32_0 = arith.constant 0 : i32
    %c0_i32_1 = arith.constant 0 : i32
    return %arg0, %c0_i32, %c0_i32_0 : i32, i32, i32
  }
  func.func @transform_2(%arg0: i32, %arg1: i32) -> (i32, i32, i32) {
    %c0_i32 = arith.constant 0 : i32
    %c0_i32_0 = arith.constant 0 : i32
    %c0_i32_1 = arith.constant 0 : i32
    %c0_i32_2 = arith.constant 0 : i32
    return %c0_i32, %c0_i32_0, %c0_i32_1 : i32, i32, i32
  }
  func.func @transform_3(%arg0: i32, %arg1: i32) -> (i32, i32, i32) {
    %c0_i32 = arith.constant 0 : i32
    %c0_i32_0 = arith.constant 0 : i32
    %c0_i32_1 = arith.constant 0 : i32
    %c0_i32_2 = arith.constant 0 : i32
    return %c0_i32, %c0_i32_0, %c0_i32_1 : i32, i32, i32
  }
  func.func @transform_4(%arg0: i32, %arg1: i32) -> (i32, i32, i32) {
    %c0_i32 = arith.constant 0 : i32
    %c0_i32_0 = arith.constant 0 : i32
    %c0_i32_1 = arith.constant 0 : i32
    %c0_i32_2 = arith.constant 0 : i32
    return %c0_i32, %c0_i32_0, %c0_i32_1 : i32, i32, i32
  }
  func.func @transform_5(%arg0: i32, %arg1: i32) -> (i32, i32, i32) {
    %c0_i32 = arith.constant 0 : i32
    %c0_i32_0 = arith.constant 0 : i32
    %c0_i32_1 = arith.constant 0 : i32
    %c0_i32_2 = arith.constant 0 : i32
    return %c0_i32, %c0_i32_0, %c0_i32_1 : i32, i32, i32
  }
  func.func @transform_6(%arg0: i32, %arg1: i32) -> (i32, i32) {
    %c0_i32 = arith.constant 0 : i32
    %c0_i32_0 = arith.constant 0 : i32
    %c0_i32_1 = arith.constant 0 : i32
    return %c0_i32, %c0_i32_0 : i32, i32
  }
  func.func @transform_7(%arg0: i32, %arg1: i32) -> (i32, i32, i32) {
    %c0_i32 = arith.constant 0 : i32
    %c0_i32_0 = arith.constant 0 : i32
    return %arg0, %arg1, %c0_i32 : i32, i32, i32
  }
}

</mosaic_0001>

<llo_original>
// kernel: tpu_custom_call.1
$region0: #{tpu_custom_call.1}
  #allocation0 [shape = 'u32[]', space=smem, size = 0x4, offset = 0x4, fixed_abs, tag = 'smem constant byte address 0x4 - core index']
  #allocation1 [shape = 'u32[144,128]{1,0:T(1,128)}', space=vmem, size = 0x12000, scoped, tag = 'internal scratch']
  %s0 = inlined_call_operand.vmem [shape: bf16[2,256,128], index: 0, kind: input, shape index: {}]
  %s1 = inlined_call_operand.vmem [shape: bf16[2,256,128], index: 1, kind: input, shape index: {}]
  %s2 = inlined_call_operand.vmem [shape: bf16[4,128,32], index: 2, kind: input, shape index: {}]
  %s3 = inlined_call_operand.vmem [shape: bf16[4,128,32], index: 3, kind: input, shape index: {}]
  %s4 = inlined_call_operand.vmem [shape: bf16[4,128,32], index: 4, kind: input, shape index: {}]
  %s5 = inlined_call_operand.vmem [shape: bf16[4,32,128], index: 5, kind: input, shape index: {}]
  %s6 = inlined_call_operand.vmem [shape: f32[1,128], index: 6, kind: input, shape index: {}]
  %s7 = inlined_call_operand.hbm [shape: f32[2,256,128], index: 7, kind: output, shape index: {}]
  %s8 = sld [smem:[#allocation0]]
  $region61: #{tpu_custom_call.1} parent=0
    _
  %s10 = ssub.s32 1, %s8
  %s11 = scalar_select 0, %s10, %s8
  $region1: #{tpu_custom_call.1} parent=0
    #allocation2 [shape = 'u8[131072]{0}', space=vmem, size = 0x20000, scoped, tag = 'output window, operand 0']
    #allocation3 [shape = 's32[2]{0}', space=sflag, size = 0x8, scoped, tag = 'scoped memory for tpu_custom_call.1']
    %12 = vsyncpa [#allocation3], 0
    %s13 = scalar_lea.sflag [#allocation3], 1
    %14 = vsyncpa %s13, 0
    loop: start=0, step=1, limit=6
    $region2: #{tpu_custom_call.1} parent=1 // loop_pre_header
      _
    $region3: #{tpu_custom_call.1} parent=1 // loop_header
      %s16 = sphi 0, %s20
      %p17 = scmp.ge.s32.totalorder %s16, 6
      %s23 = sphi 0, %s35
      %s24 = sphi 0, %s31
      %s25 = sphi 0, %s23
      %s26 = sphi 0, %s24
      %s27 = sphi 0, %s25
      %s28 = sphi 0, %s26
      %s40 = sphi 0, %s42
      %s43 = sphi 0, %s40
      %s44 = sphi 0, %s43
      %s60 = sphi 0, %s44
      %s66 = sphi 0, %s68
      %s69 = sphi 0, %s66
      %s70 = sphi 0, %s69
      %s86 = sphi 0, %s70
      %s90 = sphi 0, %s90
      %s92 = sphi 0, %s90
      %s93 = sphi 0, %s92
      %s107 = sphi 0, %s93
      %s111 = sphi 0, %s111
      %s113 = sphi 0, %s111
      %s114 = sphi 0, %s113
      %s128 = sphi 0, %s114
      %s132 = sphi 0, %s132
      %s134 = sphi 0, %s132
      %s135 = sphi 0, %s134
      %s149 = sphi 0, %s135
      %s153 = sphi 0, %s153
      %s155 = sphi 0, %s153
      %s156 = sphi 0, %s155
      %s170 = sphi 0, %s156
      %s174 = sphi 0, %s174
      %s176 = sphi 0, %s174
      %s177 = sphi 0, %s176
      %s191 = sphi 0, %s177
      %s199 = sphi 0, %s201
      %s202 = sphi 0, %s199
      %s203 = sphi 0, %s202
      %s219 = sphi 0, %s203
    $region4: #{tpu_custom_call.1} parent=1 // loop_header_branch
      %19 = sbr.rel (%p17) target = $region8
    $region5: #{tpu_custom_call.1} parent=1 // loop_body
      %s21 = ssub.s32 %s16, 1
      %s22 = ssub.s32 %s16, 2
      %s29 = sadd.s32 1, %s24
      %p30 = scmp.ge.s32.totalorder %s29, 2
      %s31 = scalar_select %p30, 0, %s29
      %s32 = sadd.s32 1, %s23
      %s33 = scalar_select %p30, %s32, %s23
      %p34 = scmp.ge.s32.totalorder %s33, 2
      %s35 = scalar_select %p34, 0, %s33
      %s36 = ssub.s32 %s23, %s35
      %s37 = ssub.s32 %s24, %s31
      %s38 = sor.u32 %s36, %s37
      %p39 = scmp.eq.s32.totalorder %s38, 0
      %s41 = sadd.s32 %s40, 1
      %s42 = scalar_select %p39, %s40, %s41
      %p45 = pneg %p39
      %p46 = scmp.eq.s32.totalorder %s16, 3
      %p47 = por %p45, %p46
      %p48 = scmp.ne.s32.totalorder %s40, %s43
      %p49 = scmp.eq.s32.totalorder %s16, 0
      %p50 = por %p48, %p49
      %p51 = scmp.ne.s32.totalorder %s40, %s43
      %p52 = scmp.eq.s32.totalorder %s21, 3
      %p53 = por %p51, %p52
      %p54 = scmp.ne.s32.totalorder %s43, %s44
      %p55 = scmp.eq.s32.totalorder %s21, 0
      %p56 = por %p54, %p55
      %p57 = scmp.ne.s32.totalorder %s43, %s44
      %p58 = scmp.eq.s32.totalorder %s22, 3
      %p59 = por %p57, %p58
      %p61 = scmp.ne.s32.totalorder %s44, %s60
      %p62 = scmp.eq.s32.totalorder %s22, 0
      %p63 = por %p61, %p62
      %s64 = ssub.s32 %s23, %s35
      %p65 = scmp.eq.s32.totalorder %s64, 0
      %s67 = sadd.s32 %s66, 1
      %s68 = scalar_select %p65, %s66, %s67
      %p71 = pneg %p65
      %p72 = scmp.eq.s32.totalorder %s16, 3
      %p73 = por %p71, %p72
      %p74 = scmp.ne.s32.totalorder %s66, %s69
      %p75 = scmp.eq.s32.totalorder %s16, 0
      %p76 = por %p74, %p75
      %p77 = scmp.ne.s32.totalorder %s66, %s69
      %p78 = scmp.eq.s32.totalorder %s21, 3
      %p79 = por %p77, %p78
      %p80 = scmp.ne.s32.totalorder %s69, %s70
      %p81 = scmp.eq.s32.totalorder %s21, 0
      %p82 = por %p80, %p81
      %p83 = scmp.ne.s32.totalorder %s69, %s70
      %p84 = scmp.eq.s32.totalorder %s22, 3
      %p85 = por %p83, %p84
      %p87 = scmp.ne.s32.totalorder %s70, %s86
      %p88 = scmp.eq.s32.totalorder %s22, 0
      %p89 = por %p87, %p88
      %s91 = sadd.s32 %s90, 1
      %p94 = scmp.eq.s32.totalorder %s16, 3
      %p95 = scmp.ne.s32.totalorder %s90, %s92
      %p96 = scmp.eq.s32.totalorder %s16, 0
      %p97 = por %p95, %p96
      %p98 = scmp.ne.s32.totalorder %s90, %s92
      %p99 = scmp.eq.s32.totalorder %s21, 3
      %p100 = por %p98, %p99
      %p101 = scmp.ne.s32.totalorder %s92, %s93
      %p102 = scmp.eq.s32.totalorder %s21, 0
      %p103 = por %p101, %p102
      %p104 = scmp.ne.s32.totalorder %s92, %s93
      %p105 = scmp.eq.s32.totalorder %s22, 3
      %p106 = por %p104, %p105
      %p108 = scmp.ne.s32.totalorder %s93, %s107
      %p109 = scmp.eq.s32.totalorder %s22, 0
      %p110 = por %p108, %p109
      %s112 = sadd.s32 %s111, 1
      %p115 = scmp.eq.s32.totalorder %s16, 3
      %p116 = scmp.ne.s32.totalorder %s111, %s113
      %p117 = scmp.eq.s32.totalorder %s16, 0
      %p118 = por %p116, %p117
      %p119 = scmp.ne.s32.totalorder %s111, %s113
      %p120 = scmp.eq.s32.totalorder %s21, 3
      %p121 = por %p119, %p120
      %p122 = scmp.ne.s32.totalorder %s113, %s114
      %p123 = scmp.eq.s32.totalorder %s21, 0
      %p124 = por %p122, %p123
      %p125 = scmp.ne.s32.totalorder %s113, %s114
      %p126 = scmp.eq.s32.totalorder %s22, 3
      %p127 = por %p125, %p126
      %p129 = scmp.ne.s32.totalorder %s114, %s128
      %p130 = scmp.eq.s32.totalorder %s22, 0
      %p131 = por %p129, %p130
      %s133 = sadd.s32 %s132, 1
      %p136 = scmp.eq.s32.totalorder %s16, 3
      %p137 = scmp.ne.s32.totalorder %s132, %s134
      %p138 = scmp.eq.s32.totalorder %s16, 0
      %p139 = por %p137, %p138
      %p140 = scmp.ne.s32.totalorder %s132, %s134
      %p141 = scmp.eq.s32.totalorder %s21, 3
      %p142 = por %p140, %p141
      %p143 = scmp.ne.s32.totalorder %s134, %s135
      %p144 = scmp.eq.s32.totalorder %s21, 0
      %p145 = por %p143, %p144
      %p146 = scmp.ne.s32.totalorder %s134, %s135
      %p147 = scmp.eq.s32.totalorder %s22, 3
      %p148 = por %p146, %p147
      %p150 = scmp.ne.s32.totalorder %s135, %s149
      %p151 = scmp.eq.s32.totalorder %s22, 0
      %p152 = por %p150, %p151
      %s154 = sadd.s32 %s153, 1
      %p157 = scmp.eq.s32.totalorder %s16, 3
      %p158 = scmp.ne.s32.totalorder %s153, %s155
      %p159 = scmp.eq.s32.totalorder %s16, 0
      %p160 = por %p158, %p159
      %p161 = scmp.ne.s32.totalorder %s153, %s155
      %p162 = scmp.eq.s32.totalorder %s21, 3
      %p163 = por %p161, %p162
      %p164 = scmp.ne.s32.totalorder %s155, %s156
      %p165 = scmp.eq.s32.totalorder %s21, 0
      %p166 = por %p164, %p165
      %p167 = scmp.ne.s32.totalorder %s155, %s156
      %p168 = scmp.eq.s32.totalorder %s22, 3
      %p169 = por %p167, %p168
      %p171 = scmp.ne.s32.totalorder %s156, %s170
      %p172 = scmp.eq.s32.totalorder %s22, 0
      %p173 = por %p171, %p172
      %s175 = sadd.s32 %s174, 1
      %p178 = scmp.eq.s32.totalorder %s16, 3
      %p179 = scmp.ne.s32.totalorder %s174, %s176
      %p180 = scmp.eq.s32.totalorder %s16, 0
      %p181 = por %p179, %p180
      %p182 = scmp.ne.s32.totalorder %s174, %s176
      %p183 = scmp.eq.s32.totalorder %s21, 3
      %p184 = por %p182, %p183
      %p185 = scmp.ne.s32.totalorder %s176, %s177
      %p186 = scmp.eq.s32.totalorder %s21, 0
      %p187 = por %p185, %p186
      %p188 = scmp.ne.s32.totalorder %s176, %s177
      %p189 = scmp.eq.s32.totalorder %s22, 3
      %p190 = por %p188, %p189
      %p192 = scmp.ne.s32.totalorder %s177, %s191
      %p193 = scmp.eq.s32.totalorder %s22, 0
      %p194 = por %p192, %p193
      %s195 = ssub.s32 %s23, %s35
      %s196 = ssub.s32 %s24, %s31
      %s197 = sor.u32 %s195, %s196
      %p198 = scmp.eq.s32.totalorder %s197, 0
      %s200 = sadd.s32 %s199, 1
      %s201 = scalar_select %p198, %s199, %s200
      %p204 = pneg %p198
      %p205 = scmp.eq.s32.totalorder %s16, 3
      %p206 = por %p204, %p205
      %p207 = scmp.ne.s32.totalorder %s199, %s202
      %p208 = scmp.eq.s32.totalorder %s16, 0
      %p209 = por %p207, %p208
      %p210 = scmp.ne.s32.totalorder %s199, %s202
      %p211 = scmp.eq.s32.totalorder %s21, 3
      %p212 = por %p210, %p211
      %p213 = scmp.ne.s32.totalorder %s202, %s203
      %p214 = scmp.eq.s32.totalorder %s21, 0
      %p215 = por %p213, %p214
      %p216 = scmp.ne.s32.totalorder %s202, %s203
      %p217 = scmp.eq.s32.totalorder %s22, 3
      %p218 = por %p216, %p217
      %p220 = scmp.ne.s32.totalorder %s203, %s219
      %p221 = scmp.eq.s32.totalorder %s22, 0
      %p222 = por %p220, %p221
      %p223 = scmp.le.s32.totalorder 1, %s16
      %p224 = scmp.lt.s32.totalorder %s16, 5
      %p225 = pnand %p223, %p224
      %p226 = pneg %p225
      // Predicated region
      $region9: #{tpu_custom_call.1} parent=5 // pred_check
        _
      $region10: #{tpu_custom_call.1} parent=5 // pred_check_branch
        %228 = sbr.rel (%p225) target = $region12
      $region11: #{tpu_custom_call.1} parent=5 // pred_region
        %s229 = ssub.s32 %s16, 1
        // Predicated region
        $region13: #{tpu_custom_call.1} parent=11 // pred_check
          %p230 = pneg %p103
        $region14: #{tpu_custom_call.1} parent=11 // pred_check_branch
          %232 = sbr.rel (%p230) target = $region16
        $region15: #{tpu_custom_call.1} parent=11 // pred_region
          _
        $region16: #{tpu_custom_call.1} parent=11 // pred_fallthru
          _
        // Predicated region
        $region17: #{tpu_custom_call.1} parent=11 // pred_check
          %p233 = pneg %p124
        $region18: #{tpu_custom_call.1} parent=11 // pred_check_branch
          %235 = sbr.rel (%p233) target = $region20
        $region19: #{tpu_custom_call.1} parent=11 // pred_region
          _
        $region20: #{tpu_custom_call.1} parent=11 // pred_fallthru
          _
        // Predicated region
        $region21: #{tpu_custom_call.1} parent=11 // pred_check
          %p236 = pneg %p145
        $region22: #{tpu_custom_call.1} parent=11 // pred_check_branch
          %238 = sbr.rel (%p236) target = $region24
        $region23: #{tpu_custom_call.1} parent=11 // pred_region
          _
        $region24: #{tpu_custom_call.1} parent=11 // pred_fallthru
          _
        // Predicated region
        $region25: #{tpu_custom_call.1} parent=11 // pred_check
          %p239 = pneg %p166
        $region26: #{tpu_custom_call.1} parent=11 // pred_check_branch
          %241 = sbr.rel (%p239) target = $region28
        $region27: #{tpu_custom_call.1} parent=11 // pred_region
          _
        $region28: #{tpu_custom_call.1} parent=11 // pred_fallthru
          _
        // Predicated region
        $region29: #{tpu_custom_call.1} parent=11 // pred_check
          %p242 = pneg %p187
        $region30: #{tpu_custom_call.1} parent=11 // pred_check_branch
          %244 = sbr.rel (%p242) target = $region32
        $region31: #{tpu_custom_call.1} parent=11 // pred_region
          _
        $region32: #{tpu_custom_call.1} parent=11 // pred_fallthru
          _
      $region12: #{tpu_custom_call.1} parent=5 // pred_fallthru
        _
      %p245 = scmp.lt.s32.totalorder %s16, 4
      // Predicated region
      $region33: #{tpu_custom_call.1} parent=5 // pred_check
        %p246 = pneg %p245
      $region34: #{tpu_custom_call.1} parent=5 // pred_check_branch
        %248 = sbr.rel (%p246) target = $region36
      $region35: #{tpu_custom_call.1} parent=5 // pred_region
        // Predicated region
        $region37: #{tpu_custom_call.1} parent=35 // pred_check
          %p249 = pneg %p50
        $region38: #{tpu_custom_call.1} parent=35 // pred_check_branch
          %251 = sbr.rel (%p249) target = $region40
        $region39: #{tpu_custom_call.1} parent=35 // pred_region
          %s252 = smul.u32 16, %s24
          %p253 = scmp.lt.s32.totalorder %s23, 1
          %s254 = scalar_select %p253, %s23, 1
          %p255 = scmp.lt.s32.totalorder %s252, 31
          %s256 = scalar_select %p255, %s252, 31
          %s257 = smul.addr %s254, 32
          %s258 = sadd.s32 %s256, %s257
          %s259 = smul.addr %s258, 4
          %s260 = scalar_lea.vmem %s0, %s259
          %s261 = smul.u32 16, %s24
        $region40: #{tpu_custom_call.1} parent=35 // pred_fallthru
          _
        // Predicated region
        $region41: #{tpu_custom_call.1} parent=35 // pred_check
          %p262 = pneg %p76
        $region42: #{tpu_custom_call.1} parent=35 // pred_check_branch
          %264 = sbr.rel (%p262) target = $region44
        $region43: #{tpu_custom_call.1} parent=35 // pred_region
          %p265 = scmp.lt.s32.totalorder %s23, 1
          %s266 = scalar_select %p265, %s23, 1
          %s267 = smul.addr %s266, 32
          %s268 = smul.addr %s267, 4
          %s269 = scalar_lea.vmem %s1, %s268
        $region44: #{tpu_custom_call.1} parent=35 // pred_fallthru
          _
      $region36: #{tpu_custom_call.1} parent=5 // pred_fallthru
        _
      %p270 = scmp.le.s32.totalorder 1, %s16
      %p271 = scmp.lt.s32.totalorder %s16, 5
      %p272 = pnand %p270, %p271
      %p273 = pneg %p272
      // Predicated region
      $region45: #{tpu_custom_call.1} parent=5 // pred_check
        _
      $region46: #{tpu_custom_call.1} parent=5 // pred_check_branch
        %275 = sbr.rel (%p272) target = $region48
      $region47: #{tpu_custom_call.1} parent=5 // pred_region
        %s276 = ssub.s32 %s16, 1
        %s277 = smul.u32 16, %s26
        %p278 = scmp.lt.s32.totalorder %s25, 1
        %s279 = scalar_select %p278, %s25, 1
        %p280 = scmp.lt.s32.totalorder %s277, 31
        %s281 = scalar_select %p280, %s277, 31
        %s282 = smul.addr %s279, 32
        %s283 = sadd.s32 %s281, %s282
        %s284 = smul.addr %s283, 4
        %s285 = scalar_lea.vmem %s0, %s284
        %p286 = pneg %p56
        %p287 = pneg %p53
        %p288 = scmp.lt.s32.totalorder %s25, 1
        %s289 = scalar_select %p288, %s25, 1
        %s290 = smul.addr %s289, 32
        %s291 = smul.addr %s290, 4
        %s292 = scalar_lea.vmem %s1, %s291
        %p293 = pneg %p82
        %p294 = pneg %p79
        %p295 = pneg %p103
        %p296 = pneg %p100
        %p297 = pneg %p124
        %p298 = pneg %p121
        %p299 = pneg %p145
        %p300 = pneg %p142
        %p301 = pneg %p166
        %p302 = pneg %p163
        %p303 = pneg %p187
        %p304 = pneg %p184
        %p305 = pneg %p215
        %p306 = pneg %p212
        %s307 = sand.u32 %s202, 1
        %s308 = scalar_lea.sflag [#allocation3], %s307
        %s309 = sand.u32 %s202, 1
        %s310 = smul.addr %s309, 128
        %s311 = scalar_lea.vmem [#allocation2], %s310
        %s312 = smul.u32 16, %s26
        %p313 = scmp.lt.s32.totalorder %s25, 1
        %s314 = scalar_select %p313, %s25, 1
        %p315 = scmp.lt.s32.totalorder %s312, 31
        %s316 = scalar_select %p315, %s312, 31
        %s317 = smul.addr %s314, 32
        %s318 = sadd.s32 %s316, %s317
        %s319 = smul.addr %s318, 4
        %s320 = scalar_lea.vmem %s0, %s319
        %s321 = smul.u32 16, %s26
        %p322 = scmp.lt.s32.totalorder %s25, 1
        %s323 = scalar_select %p322, %s25, 1
        %s324 = smul.addr %s323, 32
        %s325 = smul.addr %s324, 4
        %s326 = scalar_lea.vmem %s1, %s325
        %s327 = smul.u32 16, %s26
        %v329 = vld [vmem:[%s320] sm:$0xf]
        %v330 = vld [vmem:[%s320 + $0x4] sm:$0xf]
        %v331 = vld [vmem:[%s320 + $0x8] sm:$0xf]
        %v332 = vld [vmem:[%s320 + $0xc] sm:$0xf]
        %v333 = vld [vmem:[%s320 + $0x10] sm:$0xf]
        %v334 = vld [vmem:[%s320 + $0x14] sm:$0xf]
        %v335 = vld [vmem:[%s320 + $0x18] sm:$0xf]
        %v336 = vld [vmem:[%s320 + $0x1c] sm:$0xf]
        %v337 = vld [vmem:[%s320 + $0x20] sm:$0xf]
        %v338 = vld [vmem:[%s320 + $0x24] sm:$0xf]
        %v339 = vld [vmem:[%s320 + $0x28] sm:$0xf]
        %v340 = vld [vmem:[%s320 + $0x2c] sm:$0xf]
        %v341 = vld [vmem:[%s320 + $0x30] sm:$0xf]
        %v342 = vld [vmem:[%s320 + $0x34] sm:$0xf]
        %v343 = vld [vmem:[%s320 + $0x38] sm:$0xf]
        %v344 = vld [vmem:[%s320 + $0x3c] sm:$0xf]
        %v345 = vld [vmem:[%s326] sm:$0xf]
        %v346 = vld [vmem:[%s326 + $0x4] sm:$0xf]
        %v347 = vld [vmem:[%s326 + $0x8] sm:$0xf]
        %v348 = vld [vmem:[%s326 + $0xc] sm:$0xf]
        %v349 = vld [vmem:[%s326 + $0x10] sm:$0xf]
        %v350 = vld [vmem:[%s326 + $0x14] sm:$0xf]
        %v351 = vld [vmem:[%s326 + $0x18] sm:$0xf]
        %v352 = vld [vmem:[%s326 + $0x1c] sm:$0xf]
        %v353 = vld [vmem:[%s326 + $0x20] sm:$0xf]
        %v354 = vld [vmem:[%s326 + $0x24] sm:$0xf]
        %v355 = vld [vmem:[%s326 + $0x28] sm:$0xf]
        %v356 = vld [vmem:[%s326 + $0x2c] sm:$0xf]
        %v357 = vld [vmem:[%s326 + $0x30] sm:$0xf]
        %v358 = vld [vmem:[%s326 + $0x34] sm:$0xf]
        %v359 = vld [vmem:[%s326 + $0x38] sm:$0xf]
        %v360 = vld [vmem:[%s326 + $0x3c] sm:$0xf]
        %v361 = vld [vmem:[%s326 + $0x40] sm:$0xf]
        %v362 = vld [vmem:[%s326 + $0x44] sm:$0xf]
        %v363 = vld [vmem:[%s326 + $0x48] sm:$0xf]
        %v364 = vld [vmem:[%s326 + $0x4c] sm:$0xf]
        %v365 = vld [vmem:[%s326 + $0x50] sm:$0xf]
        %v366 = vld [vmem:[%s326 + $0x54] sm:$0xf]
        %v367 = vld [vmem:[%s326 + $0x58] sm:$0xf]
        %v368 = vld [vmem:[%s326 + $0x5c] sm:$0xf]
        %v369 = vld [vmem:[%s326 + $0x60] sm:$0xf]
        %v370 = vld [vmem:[%s326 + $0x64] sm:$0xf]
        %v371 = vld [vmem:[%s326 + $0x68] sm:$0xf]
        %v372 = vld [vmem:[%s326 + $0x6c] sm:$0xf]
        %v373 = vld [vmem:[%s326 + $0x70] sm:$0xf]
        %v374 = vld [vmem:[%s326 + $0x74] sm:$0xf]
        %v375 = vld [vmem:[%s326 + $0x78] sm:$0xf]
        %v376 = vld [vmem:[%s326 + $0x7c] sm:$0xf]
        %v377 = vld [vmem:[%s2] sm:$0xf]
        %v378 = vld [vmem:[%s2 + $0x4] sm:$0xf]
        %v379 = vld [vmem:[%s2 + $0x8] sm:$0xf]
        %v380 = vld [vmem:[%s2 + $0xc] sm:$0xf]
        %v381 = vld [vmem:[%s2 + $0x10] sm:$0xf]
        %v382 = vld [vmem:[%s2 + $0x14] sm:$0xf]
        %v383 = vld [vmem:[%s2 + $0x18] sm:$0xf]
        %v384 = vld [vmem:[%s2 + $0x1c] sm:$0xf]
        %v385 = vld [vmem:[%s2 + $0x20] sm:$0xf]
        %v386 = vld [vmem:[%s2 + $0x24] sm:$0xf]
        %v387 = vld [vmem:[%s2 + $0x28] sm:$0xf]
        %v388 = vld [vmem:[%s2 + $0x2c] sm:$0xf]
        %v389 = vld [vmem:[%s2 + $0x30] sm:$0xf]
        %v390 = vld [vmem:[%s2 + $0x34] sm:$0xf]
        %v391 = vld [vmem:[%s2 + $0x38] sm:$0xf]
        %v392 = vld [vmem:[%s2 + $0x3c] sm:$0xf]
        %v409 = vunpack.c.l.b16 %v329
        %v410 = vunpack.c.l.b16 %v330
        %v411 = vunpack.c.l.b16 %v331
        %v412 = vunpack.c.l.b16 %v332
        %v413 = vunpack.c.l.b16 %v333
        %v414 = vunpack.c.l.b16 %v334
        %v415 = vunpack.c.l.b16 %v335
        %v416 = vunpack.c.l.b16 %v336
        %v417 = vunpack.c.l.b16 %v337
        %v418 = vunpack.c.l.b16 %v338
        %v419 = vunpack.c.l.b16 %v339
        %v420 = vunpack.c.l.b16 %v340
        %v421 = vunpack.c.l.b16 %v341
        %v422 = vunpack.c.l.b16 %v342
        %v423 = vunpack.c.l.b16 %v343
        %v424 = vunpack.c.l.b16 %v344
        %v425 = vpack.c.b16 %v410, %v409
        %v426 = vpack.c.b16 %v412, %v411
        %v427 = vpack.c.b16 %v414, %v413
        %v428 = vpack.c.b16 %v416, %v415
        %v429 = vpack.c.b16 %v418, %v417
        %v430 = vpack.c.b16 %v420, %v419
        %v431 = vpack.c.b16 %v422, %v421
        %v432 = vpack.c.b16 %v424, %v423
        %v457 = vunpack.c.l.b16 %v377
        %v458 = vunpack.c.l.b16 %v378
        %v459 = vunpack.c.l.b16 %v379
        %v460 = vunpack.c.l.b16 %v380
        %v461 = vunpack.c.l.b16 %v381
        %v462 = vunpack.c.l.b16 %v382
        %v463 = vunpack.c.l.b16 %v383
        %v464 = vunpack.c.l.b16 %v384
        %v465 = vunpack.c.l.b16 %v385
        %v466 = vunpack.c.l.b16 %v386
        %v467 = vunpack.c.l.b16 %v387
        %v468 = vunpack.c.l.b16 %v388
        %v469 = vunpack.c.l.b16 %v389
        %v470 = vunpack.c.l.b16 %v390
        %v471 = vunpack.c.l.b16 %v391
        %v472 = vunpack.c.l.b16 %v392
        %v473 = vpack.c.b16 %v458, %v457
        %v474 = vpack.c.b16 %v460, %v459
        %v475 = vpack.c.b16 %v462, %v461
        %v476 = vpack.c.b16 %v464, %v463
        %v477 = vpack.c.b16 %v466, %v465
        %v478 = vpack.c.b16 %v468, %v467
        %v479 = vpack.c.b16 %v470, %v469
        %v480 = vpack.c.b16 %v472, %v471
        %489 = vmatprep.subr.bf16.mxu0 0
        %490 = vmatpush1.bf16.msra.mxu0 %v473
        %491 = vmatprep.subr.bf16.mxu0 0
        %492 = vmatpush1.bf16.msra.mxu0 %v474
        %493 = vmatprep.subr.bf16.mxu0 0
        %494 = vmatpush1.bf16.msra.mxu0 %v475
        %495 = vmatprep.subr.bf16.mxu0 0
        %496 = vmatpush1.bf16.msra.mxu0 %v476
        %497 = vmatprep.subr.bf16.mxu0 0
        %498 = vmatpush1.bf16.msra.mxu0 %v477
        %499 = vmatprep.subr.bf16.mxu0 0
        %500 = vmatpush1.bf16.msra.mxu0 %v478
        %501 = vmatprep.subr.bf16.mxu0 0
        %502 = vmatpush1.bf16.msra.mxu0 %v479
        %503 = vmatprep.subr.bf16.mxu0 0
        %504 = vmatpush1.bf16.msra.mxu0 %v480
        %505 = vmatprep.subr.bf16.mxu0 0
        %506 = vmatpush1.bf16.msra.mxu0 0
        %507 = vmatprep.subr.bf16.mxu0 0
        %508 = vmatpush1.bf16.msra.mxu0 0
        %509 = vmatprep.subr.bf16.mxu0 0
        %510 = vmatpush1.bf16.msra.mxu0 0
        %511 = vmatprep.subr.bf16.mxu0 0
        %512 = vmatpush1.bf16.msra.mxu0 0
        %513 = vmatprep.subr.bf16.mxu0 0
        %514 = vmatpush1.bf16.msra.mxu0 0
        %515 = vmatprep.subr.bf16.mxu0 0
        %516 = vmatpush1.bf16.msra.mxu0 0
        %517 = vmatprep.subr.bf16.mxu0 0
        %518 = vmatpush1.bf16.msra.mxu0 0
        %519 = vmatprep.subr.bf16.mxu0 0
        %520 = vmatpush1.bf16.msra.mxu0 0
        %521 = vmatprep.mubr.bf16.mxu0 0
        %522 = vmatmul.mubr.bf16.gmra.mrb[0].mxu0 %v425
        %v523 = vpop.f32.mrb[0].mxu0
        %v524 = vadd.f32 0.0, %v523
        %v525 = vpop.f32.mrb[0].mxu0
        %v526 = vpop.f32.mrb[0].mxu0
        %v527 = vadd.f32 0.0, %v526
        %v528 = vpop.f32.mrb[0].mxu0
        %529 = vmatprep.mubr.bf16.mxu0 0
        %530 = vmatmul.mubr.bf16.gmra.mrb[0].mxu0 %v426
        %v531 = vpop.f32.mrb[0].mxu0
        %v532 = vadd.f32 0.0, %v531
        %v533 = vpop.f32.mrb[0].mxu0
        %v534 = vpop.f32.mrb[0].mxu0
        %v535 = vadd.f32 0.0, %v534
        %v536 = vpop.f32.mrb[0].mxu0
        %537 = vmatprep.mubr.bf16.mxu0 0
        %538 = vmatmul.mubr.bf16.gmra.mrb[0].mxu0 %v427
        %v539 = vpop.f32.mrb[0].mxu0
        %v540 = vadd.f32 0.0, %v539
        %v541 = vpop.f32.mrb[0].mxu0
        %v542 = vpop.f32.mrb[0].mxu0
        %v543 = vadd.f32 0.0, %v542
        %v544 = vpop.f32.mrb[0].mxu0
        %545 = vmatprep.mubr.bf16.mxu0 0
        %546 = vmatmul.mubr.bf16.gmra.mrb[0].mxu0 %v428
        %v547 = vpop.f32.mrb[0].mxu0
        %v548 = vadd.f32 0.0, %v547
        %v549 = vpop.f32.mrb[0].mxu0
        %v550 = vpop.f32.mrb[0].mxu0
        %v551 = vadd.f32 0.0, %v550
        %v552 = vpop.f32.mrb[0].mxu0
        %553 = vmatprep.mubr.bf16.mxu0 0
        %554 = vmatmul.mubr.bf16.gmra.mrb[0].mxu0 %v429
        %v555 = vpop.f32.mrb[0].mxu0
        %v556 = vadd.f32 0.0, %v555
        %v557 = vpop.f32.mrb[0].mxu0
        %v558 = vpop.f32.mrb[0].mxu0
        %v559 = vadd.f32 0.0, %v558
        %v560 = vpop.f32.mrb[0].mxu0
        %561 = vmatprep.mubr.bf16.mxu0 0
        %562 = vmatmul.mubr.bf16.gmra.mrb[0].mxu0 %v430
        %v563 = vpop.f32.mrb[0].mxu0
        %v564 = vadd.f32 0.0, %v563
        %v565 = vpop.f32.mrb[0].mxu0
        %v566 = vpop.f32.mrb[0].mxu0
        %v567 = vadd.f32 0.0, %v566
        %v568 = vpop.f32.mrb[0].mxu0
        %569 = vmatprep.mubr.bf16.mxu0 0
        %570 = vmatmul.mubr.bf16.gmra.mrb[0].mxu0 %v431
        %v571 = vpop.f32.mrb[0].mxu0
        %v572 = vadd.f32 0.0, %v571
        %v573 = vpop.f32.mrb[0].mxu0
        %v574 = vpop.f32.mrb[0].mxu0
        %v575 = vadd.f32 0.0, %v574
        %v576 = vpop.f32.mrb[0].mxu0
        %577 = vmatprep.mubr.bf16.mxu0 0
        %578 = vmatmul.mubr.bf16.gmra.mrb[0].mxu0 %v432
        %v579 = vpop.f32.mrb[0].mxu0
        %v580 = vadd.f32 0.0, %v579
        %v581 = vpop.f32.mrb[0].mxu0
        %v582 = vpop.f32.mrb[0].mxu0
        %v583 = vadd.f32 0.0, %v582
        %v584 = vpop.f32.mrb[0].mxu0
        %585 = vdwg.mxu0
        %v586 = vld [vmem:[%s3] sm:$0xf]
        %v587 = vld [vmem:[%s3 + $0x4] sm:$0xf]
        %v588 = vld [vmem:[%s3 + $0x8] sm:$0xf]
        %v589 = vld [vmem:[%s3 + $0xc] sm:$0xf]
        %v590 = vld [vmem:[%s3 + $0x10] sm:$0xf]
        %v591 = vld [vmem:[%s3 + $0x14] sm:$0xf]
        %v592 = vld [vmem:[%s3 + $0x18] sm:$0xf]
        %v593 = vld [vmem:[%s3 + $0x1c] sm:$0xf]
        %v594 = vld [vmem:[%s3 + $0x20] sm:$0xf]
        %v595 = vld [vmem:[%s3 + $0x24] sm:$0xf]
        %v596 = vld [vmem:[%s3 + $0x28] sm:$0xf]
        %v597 = vld [vmem:[%s3 + $0x2c] sm:$0xf]
        %v598 = vld [vmem:[%s3 + $0x30] sm:$0xf]
        %v599 = vld [vmem:[%s3 + $0x34] sm:$0xf]
        %v600 = vld [vmem:[%s3 + $0x38] sm:$0xf]
        %v601 = vld [vmem:[%s3 + $0x3c] sm:$0xf]
        %v634 = vunpack.c.l.b16 %v345
        %v635 = vunpack.c.l.b16 %v346
        %v636 = vunpack.c.l.b16 %v347
        %v637 = vunpack.c.l.b16 %v348
        %v638 = vunpack.c.l.b16 %v349
        %v639 = vunpack.c.l.b16 %v350
        %v640 = vunpack.c.l.b16 %v351
        %v641 = vunpack.c.l.b16 %v352
        %v642 = vunpack.c.l.b16 %v353
        %v643 = vunpack.c.l.b16 %v354
        %v644 = vunpack.c.l.b16 %v355
        %v645 = vunpack.c.l.b16 %v356
        %v646 = vunpack.c.l.b16 %v357
        %v647 = vunpack.c.l.b16 %v358
        %v648 = vunpack.c.l.b16 %v359
        %v649 = vunpack.c.l.b16 %v360
        %v650 = vunpack.c.l.b16 %v361
        %v651 = vunpack.c.l.b16 %v362
        %v652 = vunpack.c.l.b16 %v363
        %v653 = vunpack.c.l.b16 %v364
        %v654 = vunpack.c.l.b16 %v365
        %v655 = vunpack.c.l.b16 %v366
        %v656 = vunpack.c.l.b16 %v367
        %v657 = vunpack.c.l.b16 %v368
        %v658 = vunpack.c.l.b16 %v369
        %v659 = vunpack.c.l.b16 %v370
        %v660 = vunpack.c.l.b16 %v371
        %v661 = vunpack.c.l.b16 %v372
        %v662 = vunpack.c.l.b16 %v373
        %v663 = vunpack.c.l.b16 %v374
        %v664 = vunpack.c.l.b16 %v375
        %v665 = vunpack.c.l.b16 %v376
        %v666 = vpack.c.b16 %v635, %v634
        %v667 = vpack.c.b16 %v637, %v636
        %v668 = vpack.c.b16 %v639, %v638
        %v669 = vpack.c.b16 %v641, %v640
        %v670 = vpack.c.b16 %v643, %v642
        %v671 = vpack.c.b16 %v645, %v644
        %v672 = vpack.c.b16 %v647, %v646
        %v673 = vpack.c.b16 %v649, %v648
        %v674 = vpack.c.b16 %v651, %v650
        %v675 = vpack.c.b16 %v653, %v652
        %v676 = vpack.c.b16 %v655, %v654
        %v677 = vpack.c.b16 %v657, %v656
        %v678 = vpack.c.b16 %v659, %v658
        %v679 = vpack.c.b16 %v661, %v660
        %v680 = vpack.c.b16 %v663, %v662
        %v681 = vpack.c.b16 %v665, %v664
        %v714 = vunpack.c.l.b16 %v586
        %v715 = vunpack.c.l.b16 %v587
        %v716 = vunpack.c.l.b16 %v588
        %v717 = vunpack.c.l.b16 %v589
        %v718 = vunpack.c.l.b16 %v590
        %v719 = vunpack.c.l.b16 %v591
        %v720 = vunpack.c.l.b16 %v592
        %v721 = vunpack.c.l.b16 %v593
        %v722 = vunpack.c.l.b16 %v594
        %v723 = vunpack.c.l.b16 %v595
        %v724 = vunpack.c.l.b16 %v596
        %v725 = vunpack.c.l.b16 %v597
        %v726 = vunpack.c.l.b16 %v598
        %v727 = vunpack.c.l.b16 %v599
        %v728 = vunpack.c.l.b16 %v600
        %v729 = vunpack.c.l.b16 %v601
        %v730 = vpack.c.b16 %v715, %v714
        %v731 = vpack.c.b16 %v717, %v716
        %v732 = vpack.c.b16 %v719, %v718
        %v733 = vpack.c.b16 %v721, %v720
        %v734 = vpack.c.b16 %v723, %v722
        %v735 = vpack.c.b16 %v725, %v724
        %v736 = vpack.c.b16 %v727, %v726
        %v737 = vpack.c.b16 %v729, %v728
        %746 = vmatprep.subr.bf16.mxu0 0
        %747 = vmatpush1.bf16.msra.mxu0 %v730
        %748 = vmatprep.subr.bf16.mxu0 0
        %749 = vmatpush1.bf16.msra.mxu0 %v731
        %750 = vmatprep.subr.bf16.mxu0 0
        %751 = vmatpush1.bf16.msra.mxu0 %v732
        %752 = vmatprep.subr.bf16.mxu0 0
        %753 = vmatpush1.bf16.msra.mxu0 %v733
        %754 = vmatprep.subr.bf16.mxu0 0
        %755 = vmatpush1.bf16.msra.mxu0 %v734
        %756 = vmatprep.subr.bf16.mxu0 0
        %757 = vmatpush1.bf16.msra.mxu0 %v735
        %758 = vmatprep.subr.bf16.mxu0 0
        %759 = vmatpush1.bf16.msra.mxu0 %v736
        %760 = vmatprep.subr.bf16.mxu0 0
        %761 = vmatpush1.bf16.msra.mxu0 %v737
        %762 = vmatprep.subr.bf16.mxu0 0
        %763 = vmatpush1.bf16.msra.mxu0 0
        %764 = vmatprep.subr.bf16.mxu0 0
        %765 = vmatpush1.bf16.msra.mxu0 0
        %766 = vmatprep.subr.bf16.mxu0 0
        %767 = vmatpush1.bf16.msra.mxu0 0
        %768 = vmatprep.subr.bf16.mxu0 0
        %769 = vmatpush1.bf16.msra.mxu0 0
        %770 = vmatprep.subr.bf16.mxu0 0
        %771 = vmatpush1.bf16.msra.mxu0 0
        %772 = vmatprep.subr.bf16.mxu0 0
        %773 = vmatpush1.bf16.msra.mxu0 0
        %774 = vmatprep.subr.bf16.mxu0 0
        %775 = vmatpush1.bf16.msra.mxu0 0
        %776 = vmatprep.subr.bf16.mxu0 0
        %777 = vmatpush1.bf16.msra.mxu0 0
        %778 = vmatprep.mubr.bf16.mxu0 0
        %779 = vmatmul.mubr.bf16.gmra.mrb[0].mxu0 %v666
        %v780 = vpop.f32.mrb[0].mxu0
        %v781 = vadd.f32 0.0, %v780
        %v782 = vpop.f32.mrb[0].mxu0
        %v783 = vpop.f32.mrb[0].mxu0
        %v784 = vadd.f32 0.0, %v783
        %v785 = vpop.f32.mrb[0].mxu0
        %786 = vmatprep.mubr.bf16.mxu0 0
        %787 = vmatmul.mubr.bf16.gmra.mrb[0].mxu0 %v667
        %v788 = vpop.f32.mrb[0].mxu0
        %v789 = vadd.f32 0.0, %v788
        %v790 = vpop.f32.mrb[0].mxu0
        %v791 = vpop.f32.mrb[0].mxu0
        %v792 = vadd.f32 0.0, %v791
        %v793 = vpop.f32.mrb[0].mxu0
        %794 = vmatprep.mubr.bf16.mxu0 0
        %795 = vmatmul.mubr.bf16.gmra.mrb[0].mxu0 %v668
        %v796 = vpop.f32.mrb[0].mxu0
        %v797 = vadd.f32 0.0, %v796
        %v798 = vpop.f32.mrb[0].mxu0
        %v799 = vpop.f32.mrb[0].mxu0
        %v800 = vadd.f32 0.0, %v799
        %v801 = vpop.f32.mrb[0].mxu0
        %802 = vmatprep.mubr.bf16.mxu0 0
        %803 = vmatmul.mubr.bf16.gmra.mrb[0].mxu0 %v669
        %v804 = vpop.f32.mrb[0].mxu0
        %v805 = vadd.f32 0.0, %v804
        %v806 = vpop.f32.mrb[0].mxu0
        %v807 = vpop.f32.mrb[0].mxu0
        %v808 = vadd.f32 0.0, %v807
        %v809 = vpop.f32.mrb[0].mxu0
        %810 = vmatprep.mubr.bf16.mxu0 0
        %811 = vmatmul.mubr.bf16.gmra.mrb[0].mxu0 %v670
        %v812 = vpop.f32.mrb[0].mxu0
        %v813 = vadd.f32 0.0, %v812
        %v814 = vpop.f32.mrb[0].mxu0
        %v815 = vpop.f32.mrb[0].mxu0
        %v816 = vadd.f32 0.0, %v815
        %v817 = vpop.f32.mrb[0].mxu0
        %818 = vmatprep.mubr.bf16.mxu0 0
        %819 = vmatmul.mubr.bf16.gmra.mrb[0].mxu0 %v671
        %v820 = vpop.f32.mrb[0].mxu0
        %v821 = vadd.f32 0.0, %v820
        %v822 = vpop.f32.mrb[0].mxu0
        %v823 = vpop.f32.mrb[0].mxu0
        %v824 = vadd.f32 0.0, %v823
        %v825 = vpop.f32.mrb[0].mxu0
        %826 = vmatprep.mubr.bf16.mxu0 0
        %827 = vmatmul.mubr.bf16.gmra.mrb[0].mxu0 %v672
        %v828 = vpop.f32.mrb[0].mxu0
        %v829 = vadd.f32 0.0, %v828
        %v830 = vpop.f32.mrb[0].mxu0
        %v831 = vpop.f32.mrb[0].mxu0
        %v832 = vadd.f32 0.0, %v831
        %v833 = vpop.f32.mrb[0].mxu0
        %834 = vmatprep.mubr.bf16.mxu0 0
        %835 = vmatmul.mubr.bf16.gmra.mrb[0].mxu0 %v673
        %v836 = vpop.f32.mrb[0].mxu0
        %v837 = vadd.f32 0.0, %v836
        %v838 = vpop.f32.mrb[0].mxu0
        %v839 = vpop.f32.mrb[0].mxu0
        %v840 = vadd.f32 0.0, %v839
        %v841 = vpop.f32.mrb[0].mxu0
        %842 = vmatprep.mubr.bf16.mxu0 0
        %843 = vmatmul.mubr.bf16.gmra.mrb[0].mxu0 %v674
        %v844 = vpop.f32.mrb[0].mxu0
        %v845 = vadd.f32 0.0, %v844
        %v846 = vpop.f32.mrb[0].mxu0
        %v847 = vpop.f32.mrb[0].mxu0
        %v848 = vadd.f32 0.0, %v847
        %v849 = vpop.f32.mrb[0].mxu0
        %850 = vmatprep.mubr.bf16.mxu0 0
        %851 = vmatmul.mubr.bf16.gmra.mrb[0].mxu0 %v675
        %v852 = vpop.f32.mrb[0].mxu0
        %v853 = vadd.f32 0.0, %v852
        %v854 = vpop.f32.mrb[0].mxu0
        %v855 = vpop.f32.mrb[0].mxu0
        %v856 = vadd.f32 0.0, %v855
        %v857 = vpop.f32.mrb[0].mxu0
        %858 = vmatprep.mubr.bf16.mxu0 0
        %859 = vmatmul.mubr.bf16.gmra.mrb[0].mxu0 %v676
        %v860 = vpop.f32.mrb[0].mxu0
        %v861 = vadd.f32 0.0, %v860
        %v862 = vpop.f32.mrb[0].mxu0
        %v863 = vpop.f32.mrb[0].mxu0
        %v864 = vadd.f32 0.0, %v863
        %v865 = vpop.f32.mrb[0].mxu0
        %866 = vmatprep.mubr.bf16.mxu0 0
        %867 = vmatmul.mubr.bf16.gmra.mrb[0].mxu0 %v677
        %v868 = vpop.f32.mrb[0].mxu0
        %v869 = vadd.f32 0.0, %v868
        %v870 = vpop.f32.mrb[0].mxu0
        %v871 = vpop.f32.mrb[0].mxu0
        %v872 = vadd.f32 0.0, %v871
        %v873 = vpop.f32.mrb[0].mxu0
        %874 = vmatprep.mubr.bf16.mxu0 0
        %875 = vmatmul.mubr.bf16.gmra.mrb[0].mxu0 %v678
        %v876 = vpop.f32.mrb[0].mxu0
        %v877 = vadd.f32 0.0, %v876
        %v878 = vpop.f32.mrb[0].mxu0
        %v879 = vpop.f32.mrb[0].mxu0
        %v880 = vadd.f32 0.0, %v879
        %v881 = vpop.f32.mrb[0].mxu0
        %882 = vmatprep.mubr.bf16.mxu0 0
        %883 = vmatmul.mubr.bf16.gmra.mrb[0].mxu0 %v679
        %v884 = vpop.f32.mrb[0].mxu0
        %v885 = vadd.f32 0.0, %v884
        %v886 = vpop.f32.mrb[0].mxu0
        %v887 = vpop.f32.mrb[0].mxu0
        %v888 = vadd.f32 0.0, %v887
        %v889 = vpop.f32.mrb[0].mxu0
        %890 = vmatprep.mubr.bf16.mxu0 0
        %891 = vmatmul.mubr.bf16.gmra.mrb[0].mxu0 %v680
        %v892 = vpop.f32.mrb[0].mxu0
        %v893 = vadd.f32 0.0, %v892
        %v894 = vpop.f32.mrb[0].mxu0
        %v895 = vpop.f32.mrb[0].mxu0
        %v896 = vadd.f32 0.0, %v895
        %v897 = vpop.f32.mrb[0].mxu0
        %898 = vmatprep.mubr.bf16.mxu0 0
        %899 = vmatmul.mubr.bf16.gmra.mrb[0].mxu0 %v681
        %v900 = vpop.f32.mrb[0].mxu0
        %v901 = vadd.f32 0.0, %v900
        %v902 = vpop.f32.mrb[0].mxu0
        %v903 = vpop.f32.mrb[0].mxu0
        %v904 = vadd.f32 0.0, %v903
        %v905 = vpop.f32.mrb[0].mxu0
        %906 = vdwg.mxu0
        %v907 = vld [vmem:[%s4] sm:$0xf]
        %v908 = vld [vmem:[%s4 + $0x4] sm:$0xf]
        %v909 = vld [vmem:[%s4 + $0x8] sm:$0xf]
        %v910 = vld [vmem:[%s4 + $0xc] sm:$0xf]
        %v911 = vld [vmem:[%s4 + $0x10] sm:$0xf]
        %v912 = vld [vmem:[%s4 + $0x14] sm:$0xf]
        %v913 = vld [vmem:[%s4 + $0x18] sm:$0xf]
        %v914 = vld [vmem:[%s4 + $0x1c] sm:$0xf]
        %v915 = vld [vmem:[%s4 + $0x20] sm:$0xf]
        %v916 = vld [vmem:[%s4 + $0x24] sm:$0xf]
        %v917 = vld [vmem:[%s4 + $0x28] sm:$0xf]
        %v918 = vld [vmem:[%s4 + $0x2c] sm:$0xf]
        %v919 = vld [vmem:[%s4 + $0x30] sm:$0xf]
        %v920 = vld [vmem:[%s4 + $0x34] sm:$0xf]
        %v921 = vld [vmem:[%s4 + $0x38] sm:$0xf]
        %v922 = vld [vmem:[%s4 + $0x3c] sm:$0xf]
        %v939 = vunpack.c.l.b16 %v907
        %v940 = vunpack.c.l.b16 %v908
        %v941 = vunpack.c.l.b16 %v909
        %v942 = vunpack.c.l.b16 %v910
        %v943 = vunpack.c.l.b16 %v911
        %v944 = vunpack.c.l.b16 %v912
        %v945 = vunpack.c.l.b16 %v913
        %v946 = vunpack.c.l.b16 %v914
        %v947 = vunpack.c.l.b16 %v915
        %v948 = vunpack.c.l.b16 %v916
        %v949 = vunpack.c.l.b16 %v917
        %v950 = vunpack.c.l.b16 %v918
        %v951 = vunpack.c.l.b16 %v919
        %v952 = vunpack.c.l.b16 %v920
        %v953 = vunpack.c.l.b16 %v921
        %v954 = vunpack.c.l.b16 %v922
        %v955 = vpack.c.b16 %v940, %v939
        %v956 = vpack.c.b16 %v942, %v941
        %v957 = vpack.c.b16 %v944, %v943
        %v958 = vpack.c.b16 %v946, %v945
        %v959 = vpack.c.b16 %v948, %v947
        %v960 = vpack.c.b16 %v950, %v949
        %v961 = vpack.c.b16 %v952, %v951
        %v962 = vpack.c.b16 %v954, %v953
        %971 = vmatprep.subr.bf16.mxu0 0
        %972 = vmatpush1.bf16.msra.mxu0 %v955
        %973 = vmatprep.subr.bf16.mxu0 0
        %974 = vmatpush1.bf16.msra.mxu0 %v956
        %975 = vmatprep.subr.bf16.mxu0 0
        %976 = vmatpush1.bf16.msra.mxu0 %v957
        %977 = vmatprep.subr.bf16.mxu0 0
        %978 = vmatpush1.bf16.msra.mxu0 %v958
        %979 = vmatprep.subr.bf16.mxu0 0
        %980 = vmatpush1.bf16.msra.mxu0 %v959
        %981 = vmatprep.subr.bf16.mxu0 0
        %982 = vmatpush1.bf16.msra.mxu0 %v960
        %983 = vmatprep.subr.bf16.mxu0 0
        %984 = vmatpush1.bf16.msra.mxu0 %v961
        %985 = vmatprep.subr.bf16.mxu0 0
        %986 = vmatpush1.bf16.msra.mxu0 %v962
        %987 = vmatprep.subr.bf16.mxu0 0
        %988 = vmatpush1.bf16.msra.mxu0 0
        %989 = vmatprep.subr.bf16.mxu0 0
        %990 = vmatpush1.bf16.msra.mxu0 0
        %991 = vmatprep.subr.bf16.mxu0 0
        %992 = vmatpush1.bf16.msra.mxu0 0
        %993 = vmatprep.subr.bf16.mxu0 0
        %994 = vmatpush1.bf16.msra.mxu0 0
        %995 = vmatprep.subr.bf16.mxu0 0
        %996 = vmatpush1.bf16.msra.mxu0 0
        %997 = vmatprep.subr.bf16.mxu0 0
        %998 = vmatpush1.bf16.msra.mxu0 0
        %999 = vmatprep.subr.bf16.mxu0 0
        %1000 = vmatpush1.bf16.msra.mxu0 0
        %1001 = vmatprep.subr.bf16.mxu0 0
        %1002 = vmatpush1.bf16.msra.mxu0 0
        %1003 = vmatprep.mubr.bf16.mxu0 0
        %1004 = vmatmul.mubr.bf16.gmra.mrb[0].mxu0 %v666
        %v1005 = vpop.f32.mrb[0].mxu0
        %v1006 = vadd.f32 0.0, %v1005
        %v1007 = vpop.f32.mrb[0].mxu0
        %v1008 = vpop.f32.mrb[0].mxu0
        %v1009 = vadd.f32 0.0, %v1008
        %v1010 = vpop.f32.mrb[0].mxu0
        %1011 = vmatprep.mubr.bf16.mxu0 0
        %1012 = vmatmul.mubr.bf16.gmra.mrb[0].mxu0 %v667
        %v1013 = vpop.f32.mrb[0].mxu0
        %v1014 = vadd.f32 0.0, %v1013
        %v1015 = vpop.f32.mrb[0].mxu0
        %v1016 = vpop.f32.mrb[0].mxu0
        %v1017 = vadd.f32 0.0, %v1016
        %v1018 = vpop.f32.mrb[0].mxu0
        %1019 = vmatprep.mubr.bf16.mxu0 0
        %1020 = vmatmul.mubr.bf16.gmra.mrb[0].mxu0 %v668
        %v1021 = vpop.f32.mrb[0].mxu0
        %v1022 = vadd.f32 0.0, %v1021
        %v1023 = vpop.f32.mrb[0].mxu0
        %v1024 = vpop.f32.mrb[0].mxu0
        %v1025 = vadd.f32 0.0, %v1024
        %v1026 = vpop.f32.mrb[0].mxu0
        %1027 = vmatprep.mubr.bf16.mxu0 0
        %1028 = vmatmul.mubr.bf16.gmra.mrb[0].mxu0 %v669
        %v1029 = vpop.f32.mrb[0].mxu0
        %v1030 = vadd.f32 0.0, %v1029
        %v1031 = vpop.f32.mrb[0].mxu0
        %v1032 = vpop.f32.mrb[0].mxu0
        %v1033 = vadd.f32 0.0, %v1032
        %v1034 = vpop.f32.mrb[0].mxu0
        %1035 = vmatprep.mubr.bf16.mxu0 0
        %1036 = vmatmul.mubr.bf16.gmra.mrb[0].mxu0 %v670
        %v1037 = vpop.f32.mrb[0].mxu0
        %v1038 = vadd.f32 0.0, %v1037
        %v1039 = vpop.f32.mrb[0].mxu0
        %v1040 = vpop.f32.mrb[0].mxu0
        %v1041 = vadd.f32 0.0, %v1040
        %v1042 = vpop.f32.mrb[0].mxu0
        %1043 = vmatprep.mubr.bf16.mxu0 0
        %1044 = vmatmul.mubr.bf16.gmra.mrb[0].mxu0 %v671
        %v1045 = vpop.f32.mrb[0].mxu0
        %v1046 = vadd.f32 0.0, %v1045
        %v1047 = vpop.f32.mrb[0].mxu0
        %v1048 = vpop.f32.mrb[0].mxu0
        %v1049 = vadd.f32 0.0, %v1048
        %v1050 = vpop.f32.mrb[0].mxu0
        %1051 = vmatprep.mubr.bf16.mxu0 0
        %1052 = vmatmul.mubr.bf16.gmra.mrb[0].mxu0 %v672
        %v1053 = vpop.f32.mrb[0].mxu0
        %v1054 = vadd.f32 0.0, %v1053
        %v1055 = vpop.f32.mrb[0].mxu0
        %v1056 = vpop.f32.mrb[0].mxu0
        %v1057 = vadd.f32 0.0, %v1056
        %v1058 = vpop.f32.mrb[0].mxu0
        %1059 = vmatprep.mubr.bf16.mxu0 0
        %1060 = vmatmul.mubr.bf16.gmra.mrb[0].mxu0 %v673
        %v1061 = vpop.f32.mrb[0].mxu0
        %v1062 = vadd.f32 0.0, %v1061
        %v1063 = vpop.f32.mrb[0].mxu0
        %v1064 = vpop.f32.mrb[0].mxu0
        %v1065 = vadd.f32 0.0, %v1064
        %v1066 = vpop.f32.mrb[0].mxu0
        %1067 = vmatprep.mubr.bf16.mxu0 0
        %1068 = vmatmul.mubr.bf16.gmra.mrb[0].mxu0 %v674
        %v1069 = vpop.f32.mrb[0].mxu0
        %v1070 = vadd.f32 0.0, %v1069
        %v1071 = vpop.f32.mrb[0].mxu0
        %v1072 = vpop.f32.mrb[0].mxu0
        %v1073 = vadd.f32 0.0, %v1072
        %v1074 = vpop.f32.mrb[0].mxu0
        %1075 = vmatprep.mubr.bf16.mxu0 0
        %1076 = vmatmul.mubr.bf16.gmra.mrb[0].mxu0 %v675
        %v1077 = vpop.f32.mrb[0].mxu0
        %v1078 = vadd.f32 0.0, %v1077
        %v1079 = vpop.f32.mrb[0].mxu0
        %v1080 = vpop.f32.mrb[0].mxu0
        %v1081 = vadd.f32 0.0, %v1080
        %v1082 = vpop.f32.mrb[0].mxu0
        %1083 = vmatprep.mubr.bf16.mxu0 0
        %1084 = vmatmul.mubr.bf16.gmra.mrb[0].mxu0 %v676
        %v1085 = vpop.f32.mrb[0].mxu0
        %v1086 = vadd.f32 0.0, %v1085
        %v1087 = vpop.f32.mrb[0].mxu0
        %v1088 = vpop.f32.mrb[0].mxu0
        %v1089 = vadd.f32 0.0, %v1088
        %v1090 = vpop.f32.mrb[0].mxu0
        %1091 = vmatprep.mubr.bf16.mxu0 0
        %1092 = vmatmul.mubr.bf16.gmra.mrb[0].mxu0 %v677
        %v1093 = vpop.f32.mrb[0].mxu0
        %v1094 = vadd.f32 0.0, %v1093
        %v1095 = vpop.f32.mrb[0].mxu0
        %v1096 = vpop.f32.mrb[0].mxu0
        %v1097 = vadd.f32 0.0, %v1096
        %v1098 = vpop.f32.mrb[0].mxu0
        %1099 = vmatprep.mubr.bf16.mxu0 0
        %1100 = vmatmul.mubr.bf16.gmra.mrb[0].mxu0 %v678
        %v1101 = vpop.f32.mrb[0].mxu0
        %v1102 = vadd.f32 0.0, %v1101
        %v1103 = vpop.f32.mrb[0].mxu0
        %v1104 = vpop.f32.mrb[0].mxu0
        %v1105 = vadd.f32 0.0, %v1104
        %v1106 = vpop.f32.mrb[0].mxu0
        %1107 = vmatprep.mubr.bf16.mxu0 0
        %1108 = vmatmul.mubr.bf16.gmra.mrb[0].mxu0 %v679
        %v1109 = vpop.f32.mrb[0].mxu0
        %v1110 = vadd.f32 0.0, %v1109
        %v1111 = vpop.f32.mrb[0].mxu0
        %v1112 = vpop.f32.mrb[0].mxu0
        %v1113 = vadd.f32 0.0, %v1112
        %v1114 = vpop.f32.mrb[0].mxu0
        %1115 = vmatprep.mubr.bf16.mxu0 0
        %1116 = vmatmul.mubr.bf16.gmra.mrb[0].mxu0 %v680
        %v1117 = vpop.f32.mrb[0].mxu0
        %v1118 = vadd.f32 0.0, %v1117
        %v1119 = vpop.f32.mrb[0].mxu0
        %v1120 = vpop.f32.mrb[0].mxu0
        %v1121 = vadd.f32 0.0, %v1120
        %v1122 = vpop.f32.mrb[0].mxu0
        %1123 = vmatprep.mubr.bf16.mxu0 0
        %1124 = vmatmul.mubr.bf16.gmra.mrb[0].mxu0 %v681
        %v1125 = vpop.f32.mrb[0].mxu0
        %v1126 = vadd.f32 0.0, %v1125
        %v1127 = vpop.f32.mrb[0].mxu0
        %v1128 = vpop.f32.mrb[0].mxu0
        %v1129 = vadd.f32 0.0, %v1128
        %v1130 = vpop.f32.mrb[0].mxu0
        %1131 = vdwg.mxu0
        %v1132 = vmul.f32 %v524, %v524
        %v1133 = vmul.f32 %v527, %v527
        %v1134 = vmul.f32 %v532, %v532
        %v1135 = vmul.f32 %v535, %v535
        %v1136 = vmul.f32 %v540, %v540
        %v1137 = vmul.f32 %v543, %v543
        %v1138 = vmul.f32 %v548, %v548
        %v1139 = vmul.f32 %v551, %v551
        %v1140 = vmul.f32 %v556, %v556
        %v1141 = vmul.f32 %v559, %v559
        %v1142 = vmul.f32 %v564, %v564
        %v1143 = vmul.f32 %v567, %v567
        %v1144 = vmul.f32 %v572, %v572
        %v1145 = vmul.f32 %v575, %v575
        %v1146 = vmul.f32 %v580, %v580
        %v1147 = vmul.f32 %v583, %v583
        %vm1148 = vcmask 261120
        %v1149 = vsel %vm1148, %v1132, 0.0
        %1150 = vadd.xlane.f32.xlu0 %v1149
        %v1151 = vpop.xlane.xlu0 %1150
        %v1152 = vsel %vm1148, %v1133, 0.0
        %1153 = vadd.xlane.f32.xlu0 %v1152
        %v1154 = vpop.xlane.xlu0 %1153
        %v1155 = vsel %vm1148, %v1134, 0.0
        %1156 = vadd.xlane.f32.xlu0 %v1155
        %v1157 = vpop.xlane.xlu0 %1156
        %v1158 = vsel %vm1148, %v1135, 0.0
        %1159 = vadd.xlane.f32.xlu0 %v1158
        %v1160 = vpop.xlane.xlu0 %1159
        %v1161 = vsel %vm1148, %v1136, 0.0
        %1162 = vadd.xlane.f32.xlu0 %v1161
        %v1163 = vpop.xlane.xlu0 %1162
        %v1164 = vsel %vm1148, %v1137, 0.0
        %1165 = vadd.xlane.f32.xlu0 %v1164
        %v1166 = vpop.xlane.xlu0 %1165
        %v1167 = vsel %vm1148, %v1138, 0.0
        %1168 = vadd.xlane.f32.xlu0 %v1167
        %v1169 = vpop.xlane.xlu0 %1168
        %v1170 = vsel %vm1148, %v1139, 0.0
        %1171 = vadd.xlane.f32.xlu0 %v1170
        %v1172 = vpop.xlane.xlu0 %1171
        %v1173 = vsel %vm1148, %v1140, 0.0
        %1174 = vadd.xlane.f32.xlu0 %v1173
        %v1175 = vpop.xlane.xlu0 %1174
        %v1176 = vsel %vm1148, %v1141, 0.0
        %1177 = vadd.xlane.f32.xlu0 %v1176
        %v1178 = vpop.xlane.xlu0 %1177
        %v1179 = vsel %vm1148, %v1142, 0.0
        %1180 = vadd.xlane.f32.xlu0 %v1179
        %v1181 = vpop.xlane.xlu0 %1180
        %v1182 = vsel %vm1148, %v1143, 0.0
        %1183 = vadd.xlane.f32.xlu0 %v1182
        %v1184 = vpop.xlane.xlu0 %1183
        %v1185 = vsel %vm1148, %v1144, 0.0
        %1186 = vadd.xlane.f32.xlu0 %v1185
        %v1187 = vpop.xlane.xlu0 %1186
        %v1188 = vsel %vm1148, %v1145, 0.0
        %1189 = vadd.xlane.f32.xlu0 %v1188
        %v1190 = vpop.xlane.xlu0 %1189
        %v1191 = vsel %vm1148, %v1146, 0.0
        %1192 = vadd.xlane.f32.xlu0 %v1191
        %v1193 = vpop.xlane.xlu0 %1192
        %v1194 = vsel %vm1148, %v1147, 0.0
        %1195 = vadd.xlane.f32.xlu0 %v1194
        %v1196 = vpop.xlane.xlu0 %1195
        %v1197 = vmax.f32 %v1151, 1e-24
        %v1198 = vmax.f32 %v1154, 1e-24
        %v1199 = vmax.f32 %v1157, 1e-24
        %v1200 = vmax.f32 %v1160, 1e-24
        %v1201 = vmax.f32 %v1163, 1e-24
        %v1202 = vmax.f32 %v1166, 1e-24
        %v1203 = vmax.f32 %v1169, 1e-24
        %v1204 = vmax.f32 %v1172, 1e-24
        %v1205 = vmax.f32 %v1175, 1e-24
        %v1206 = vmax.f32 %v1178, 1e-24
        %v1207 = vmax.f32 %v1181, 1e-24
        %v1208 = vmax.f32 %v1184, 1e-24
        %v1209 = vmax.f32 %v1187, 1e-24
        %v1210 = vmax.f32 %v1190, 1e-24
        %v1211 = vmax.f32 %v1193, 1e-24
        %v1212 = vmax.f32 %v1196, 1e-24
        %v1213 = vrsqrt.pop %v1197
        %v1214 = vrsqrt.pop %v1198
        %v1215 = vrsqrt.pop %v1199
        %v1216 = vrsqrt.pop %v1200
        %v1217 = vrsqrt.pop %v1201
        %v1218 = vrsqrt.pop %v1202
        %v1219 = vrsqrt.pop %v1203
        %v1220 = vrsqrt.pop %v1204
        %v1221 = vrsqrt.pop %v1205
        %v1222 = vrsqrt.pop %v1206
        %v1223 = vrsqrt.pop %v1207
        %v1224 = vrsqrt.pop %v1208
        %v1225 = vrsqrt.pop %v1209
        %v1226 = vrsqrt.pop %v1210
        %v1227 = vrsqrt.pop %v1211
        %v1228 = vrsqrt.pop %v1212
        %v1229 = vmul.f32 %v1213, 10.0
        %v1230 = vmul.f32 %v1214, 10.0
        %v1231 = vmul.f32 %v1215, 10.0
        %v1232 = vmul.f32 %v1216, 10.0
        %v1233 = vmul.f32 %v1217, 10.0
        %v1234 = vmul.f32 %v1218, 10.0
        %v1235 = vmul.f32 %v1219, 10.0
        %v1236 = vmul.f32 %v1220, 10.0
        %v1237 = vmul.f32 %v1221, 10.0
        %v1238 = vmul.f32 %v1222, 10.0
        %v1239 = vmul.f32 %v1223, 10.0
        %v1240 = vmul.f32 %v1224, 10.0
        %v1241 = vmul.f32 %v1225, 10.0
        %v1242 = vmul.f32 %v1226, 10.0
        %v1243 = vmul.f32 %v1227, 10.0
        %v1244 = vmul.f32 %v1228, 10.0
        %v1245 = vmul.f32 %v524, %v1229
        %v1246 = vmul.f32 %v527, %v1230
        %v1247 = vmul.f32 %v532, %v1231
        %v1248 = vmul.f32 %v535, %v1232
        %v1249 = vmul.f32 %v540, %v1233
        %v1250 = vmul.f32 %v543, %v1234
        %v1251 = vmul.f32 %v548, %v1235
        %v1252 = vmul.f32 %v551, %v1236
        %v1253 = vmul.f32 %v556, %v1237
        %v1254 = vmul.f32 %v559, %v1238
        %v1255 = vmul.f32 %v564, %v1239
        %v1256 = vmul.f32 %v567, %v1240
        %v1257 = vmul.f32 %v572, %v1241
        %v1258 = vmul.f32 %v575, %v1242
        %v1259 = vmul.f32 %v580, %v1243
        %v1260 = vmul.f32 %v583, %v1244
        %v1261 = vmul.f32 %v781, %v781
        %v1262 = vmul.f32 %v784, %v784
        %v1263 = vmul.f32 %v789, %v789
        %v1264 = vmul.f32 %v792, %v792
        %v1265 = vmul.f32 %v797, %v797
        %v1266 = vmul.f32 %v800, %v800
        %v1267 = vmul.f32 %v805, %v805
        %v1268 = vmul.f32 %v808, %v808
        %v1269 = vmul.f32 %v813, %v813
        %v1270 = vmul.f32 %v816, %v816
        %v1271 = vmul.f32 %v821, %v821
        %v1272 = vmul.f32 %v824, %v824
        %v1273 = vmul.f32 %v829, %v829
        %v1274 = vmul.f32 %v832, %v832
        %v1275 = vmul.f32 %v837, %v837
        %v1276 = vmul.f32 %v840, %v840
        %v1277 = vmul.f32 %v845, %v845
        %v1278 = vmul.f32 %v848, %v848
        %v1279 = vmul.f32 %v853, %v853
        %v1280 = vmul.f32 %v856, %v856
        %v1281 = vmul.f32 %v861, %v861
        %v1282 = vmul.f32 %v864, %v864
        %v1283 = vmul.f32 %v869, %v869
        %v1284 = vmul.f32 %v872, %v872
        %v1285 = vmul.f32 %v877, %v877
        %v1286 = vmul.f32 %v880, %v880
        %v1287 = vmul.f32 %v885, %v885
        %v1288 = vmul.f32 %v888, %v888
        %v1289 = vmul.f32 %v893, %v893
        %v1290 = vmul.f32 %v896, %v896
        %v1291 = vmul.f32 %v901, %v901
        %v1292 = vmul.f32 %v904, %v904
        %v1293 = vsel %vm1148, %v1261, 0.0
        %1294 = vadd.xlane.f32.xlu0 %v1293
        %v1295 = vpop.xlane.xlu0 %1294
        %v1296 = vsel %vm1148, %v1262, 0.0
        %1297 = vadd.xlane.f32.xlu0 %v1296
        %v1298 = vpop.xlane.xlu0 %1297
        %v1299 = vsel %vm1148, %v1263, 0.0
        %1300 = vadd.xlane.f32.xlu0 %v1299
        %v1301 = vpop.xlane.xlu0 %1300
        %v1302 = vsel %vm1148, %v1264, 0.0
        %1303 = vadd.xlane.f32.xlu0 %v1302
        %v1304 = vpop.xlane.xlu0 %1303
        %v1305 = vsel %vm1148, %v1265, 0.0
        %1306 = vadd.xlane.f32.xlu0 %v1305
        %v1307 = vpop.xlane.xlu0 %1306
        %v1308 = vsel %vm1148, %v1266, 0.0
        %1309 = vadd.xlane.f32.xlu0 %v1308
        %v1310 = vpop.xlane.xlu0 %1309
        %v1311 = vsel %vm1148, %v1267, 0.0
        %1312 = vadd.xlane.f32.xlu0 %v1311
        %v1313 = vpop.xlane.xlu0 %1312
        %v1314 = vsel %vm1148, %v1268, 0.0
        %1315 = vadd.xlane.f32.xlu0 %v1314
        %v1316 = vpop.xlane.xlu0 %1315
        %v1317 = vsel %vm1148, %v1269, 0.0
        %1318 = vadd.xlane.f32.xlu0 %v1317
        %v1319 = vpop.xlane.xlu0 %1318
        %v1320 = vsel %vm1148, %v1270, 0.0
        %1321 = vadd.xlane.f32.xlu0 %v1320
        %v1322 = vpop.xlane.xlu0 %1321
        %v1323 = vsel %vm1148, %v1271, 0.0
        %1324 = vadd.xlane.f32.xlu0 %v1323
        %v1325 = vpop.xlane.xlu0 %1324
        %v1326 = vsel %vm1148, %v1272, 0.0
        %1327 = vadd.xlane.f32.xlu0 %v1326
        %v1328 = vpop.xlane.xlu0 %1327
        %v1329 = vsel %vm1148, %v1273, 0.0
        %1330 = vadd.xlane.f32.xlu0 %v1329
        %v1331 = vpop.xlane.xlu0 %1330
        %v1332 = vsel %vm1148, %v1274, 0.0
        %1333 = vadd.xlane.f32.xlu0 %v1332
        %v1334 = vpop.xlane.xlu0 %1333
        %v1335 = vsel %vm1148, %v1275, 0.0
        %1336 = vadd.xlane.f32.xlu0 %v1335
        %v1337 = vpop.xlane.xlu0 %1336
        %v1338 = vsel %vm1148, %v1276, 0.0
        %1339 = vadd.xlane.f32.xlu0 %v1338
        %v1340 = vpop.xlane.xlu0 %1339
        %v1341 = vsel %vm1148, %v1277, 0.0
        %1342 = vadd.xlane.f32.xlu0 %v1341
        %v1343 = vpop.xlane.xlu0 %1342
        %v1344 = vsel %vm1148, %v1278, 0.0
        %1345 = vadd.xlane.f32.xlu0 %v1344
        %v1346 = vpop.xlane.xlu0 %1345
        %v1347 = vsel %vm1148, %v1279, 0.0
        %1348 = vadd.xlane.f32.xlu0 %v1347
        %v1349 = vpop.xlane.xlu0 %1348
        %v1350 = vsel %vm1148, %v1280, 0.0
        %1351 = vadd.xlane.f32.xlu0 %v1350
        %v1352 = vpop.xlane.xlu0 %1351
        %v1353 = vsel %vm1148, %v1281, 0.0
        %1354 = vadd.xlane.f32.xlu0 %v1353
        %v1355 = vpop.xlane.xlu0 %1354
        %v1356 = vsel %vm1148, %v1282, 0.0
        %1357 = vadd.xlane.f32.xlu0 %v1356
        %v1358 = vpop.xlane.xlu0 %1357
        %v1359 = vsel %vm1148, %v1283, 0.0
        %1360 = vadd.xlane.f32.xlu0 %v1359
        %v1361 = vpop.xlane.xlu0 %1360
        %v1362 = vsel %vm1148, %v1284, 0.0
        %1363 = vadd.xlane.f32.xlu0 %v1362
        %v1364 = vpop.xlane.xlu0 %1363
        %v1365 = vsel %vm1148, %v1285, 0.0
        %1366 = vadd.xlane.f32.xlu0 %v1365
        %v1367 = vpop.xlane.xlu0 %1366
        %v1368 = vsel %vm1148, %v1286, 0.0
        %1369 = vadd.xlane.f32.xlu0 %v1368
        %v1370 = vpop.xlane.xlu0 %1369
        %v1371 = vsel %vm1148, %v1287, 0.0
        %1372 = vadd.xlane.f32.xlu0 %v1371
        %v1373 = vpop.xlane.xlu0 %1372
        %v1374 = vsel %vm1148, %v1288, 0.0
        %1375 = vadd.xlane.f32.xlu0 %v1374
        %v1376 = vpop.xlane.xlu0 %1375
        %v1377 = vsel %vm1148, %v1289, 0.0
        %1378 = vadd.xlane.f32.xlu0 %v1377
        %v1379 = vpop.xlane.xlu0 %1378
        %v1380 = vsel %vm1148, %v1290, 0.0
        %1381 = vadd.xlane.f32.xlu0 %v1380
        %v1382 = vpop.xlane.xlu0 %1381
        %v1383 = vsel %vm1148, %v1291, 0.0
        %1384 = vadd.xlane.f32.xlu0 %v1383
        %v1385 = vpop.xlane.xlu0 %1384
        %v1386 = vsel %vm1148, %v1292, 0.0
        %1387 = vadd.xlane.f32.xlu0 %v1386
        %v1388 = vpop.xlane.xlu0 %1387
        %v1389 = vmax.f32 %v1295, 1e-24
        %v1390 = vmax.f32 %v1298, 1e-24
        %v1391 = vmax.f32 %v1301, 1e-24
        %v1392 = vmax.f32 %v1304, 1e-24
        %v1393 = vmax.f32 %v1307, 1e-24
        %v1394 = vmax.f32 %v1310, 1e-24
        %v1395 = vmax.f32 %v1313, 1e-24
        %v1396 = vmax.f32 %v1316, 1e-24
        %v1397 = vmax.f32 %v1319, 1e-24
        %v1398 = vmax.f32 %v1322, 1e-24
        %v1399 = vmax.f32 %v1325, 1e-24
        %v1400 = vmax.f32 %v1328, 1e-24
        %v1401 = vmax.f32 %v1331, 1e-24
        %v1402 = vmax.f32 %v1334, 1e-24
        %v1403 = vmax.f32 %v1337, 1e-24
        %v1404 = vmax.f32 %v1340, 1e-24
        %v1405 = vmax.f32 %v1343, 1e-24
        %v1406 = vmax.f32 %v1346, 1e-24
        %v1407 = vmax.f32 %v1349, 1e-24
        %v1408 = vmax.f32 %v1352, 1e-24
        %v1409 = vmax.f32 %v1355, 1e-24
        %v1410 = vmax.f32 %v1358, 1e-24
        %v1411 = vmax.f32 %v1361, 1e-24
        %v1412 = vmax.f32 %v1364, 1e-24
        %v1413 = vmax.f32 %v1367, 1e-24
        %v1414 = vmax.f32 %v1370, 1e-24
        %v1415 = vmax.f32 %v1373, 1e-24
        %v1416 = vmax.f32 %v1376, 1e-24
        %v1417 = vmax.f32 %v1379, 1e-24
        %v1418 = vmax.f32 %v1382, 1e-24
        %v1419 = vmax.f32 %v1385, 1e-24
        %v1420 = vmax.f32 %v1388, 1e-24
        %v1421 = vrsqrt.pop %v1389
        %v1422 = vrsqrt.pop %v1390
        %v1423 = vrsqrt.pop %v1391
        %v1424 = vrsqrt.pop %v1392
        %v1425 = vrsqrt.pop %v1393
        %v1426 = vrsqrt.pop %v1394
        %v1427 = vrsqrt.pop %v1395
        %v1428 = vrsqrt.pop %v1396
        %v1429 = vrsqrt.pop %v1397
        %v1430 = vrsqrt.pop %v1398
        %v1431 = vrsqrt.pop %v1399
        %v1432 = vrsqrt.pop %v1400
        %v1433 = vrsqrt.pop %v1401
        %v1434 = vrsqrt.pop %v1402
        %v1435 = vrsqrt.pop %v1403
        %v1436 = vrsqrt.pop %v1404
        %v1437 = vrsqrt.pop %v1405
        %v1438 = vrsqrt.pop %v1406
        %v1439 = vrsqrt.pop %v1407
        %v1440 = vrsqrt.pop %v1408
        %v1441 = vrsqrt.pop %v1409
        %v1442 = vrsqrt.pop %v1410
        %v1443 = vrsqrt.pop %v1411
        %v1444 = vrsqrt.pop %v1412
        %v1445 = vrsqrt.pop %v1413
        %v1446 = vrsqrt.pop %v1414
        %v1447 = vrsqrt.pop %v1415
        %v1448 = vrsqrt.pop %v1416
        %v1449 = vrsqrt.pop %v1417
        %v1450 = vrsqrt.pop %v1418
        %v1451 = vrsqrt.pop %v1419
        %v1452 = vrsqrt.pop %v1420
        %v1453 = vmul.f32 %v781, %v1421
        %v1454 = vmul.f32 %v784, %v1422
        %v1455 = vmul.f32 %v789, %v1423
        %v1456 = vmul.f32 %v792, %v1424
        %v1457 = vmul.f32 %v797, %v1425
        %v1458 = vmul.f32 %v800, %v1426
        %v1459 = vmul.f32 %v805, %v1427
        %v1460 = vmul.f32 %v808, %v1428
        %v1461 = vmul.f32 %v813, %v1429
        %v1462 = vmul.f32 %v816, %v1430
        %v1463 = vmul.f32 %v821, %v1431
        %v1464 = vmul.f32 %v824, %v1432
        %v1465 = vmul.f32 %v829, %v1433
        %v1466 = vmul.f32 %v832, %v1434
        %v1467 = vmul.f32 %v837, %v1435
        %v1468 = vmul.f32 %v840, %v1436
        %v1469 = vmul.f32 %v845, %v1437
        %v1470 = vmul.f32 %v848, %v1438
        %v1471 = vmul.f32 %v853, %v1439
        %v1472 = vmul.f32 %v856, %v1440
        %v1473 = vmul.f32 %v861, %v1441
        %v1474 = vmul.f32 %v864, %v1442
        %v1475 = vmul.f32 %v869, %v1443
        %v1476 = vmul.f32 %v872, %v1444
        %v1477 = vmul.f32 %v877, %v1445
        %v1478 = vmul.f32 %v880, %v1446
        %v1479 = vmul.f32 %v885, %v1447
        %v1480 = vmul.f32 %v888, %v1448
        %v1481 = vmul.f32 %v893, %v1449
        %v1482 = vmul.f32 %v896, %v1450
        %v1483 = vmul.f32 %v901, %v1451
        %v1484 = vmul.f32 %v904, %v1452
        %v1485 = vpack.c.bf16 %v1246, %v1245
        %v1486 = vpack.c.bf16 %v1248, %v1247
        %v1487 = vpack.c.bf16 %v1250, %v1249
        %v1488 = vpack.c.bf16 %v1252, %v1251
        %v1489 = vpack.c.bf16 %v1254, %v1253
        %v1490 = vpack.c.bf16 %v1256, %v1255
        %v1491 = vpack.c.bf16 %v1258, %v1257
        %v1492 = vpack.c.bf16 %v1260, %v1259
        %v1493 = vpack.c.bf16 %v1454, %v1453
        %v1494 = vpack.c.bf16 %v1456, %v1455
        %v1495 = vpack.c.bf16 %v1458, %v1457
        %v1496 = vpack.c.bf16 %v1460, %v1459
        %v1497 = vpack.c.bf16 %v1462, %v1461
        %v1498 = vpack.c.bf16 %v1464, %v1463
        %v1499 = vpack.c.bf16 %v1466, %v1465
        %v1500 = vpack.c.bf16 %v1468, %v1467
        %v1501 = vpack.c.bf16 %v1470, %v1469
        %v1502 = vpack.c.bf16 %v1472, %v1471
        %v1503 = vpack.c.bf16 %v1474, %v1473
        %v1504 = vpack.c.bf16 %v1476, %v1475
        %v1505 = vpack.c.bf16 %v1478, %v1477
        %v1506 = vpack.c.bf16 %v1480, %v1479
        %v1507 = vpack.c.bf16 %v1482, %v1481
        %v1508 = vpack.c.bf16 %v1484, %v1483
        %v1510 = vsel %vm1148, %v1485, 0
        %v1513 = vsel %vm1148, %v1486, 0
        %v1516 = vsel %vm1148, %v1487, 0
        %v1519 = vsel %vm1148, %v1488, 0
        %v1522 = vsel %vm1148, %v1489, 0
        %v1525 = vsel %vm1148, %v1490, 0
        %v1528 = vsel %vm1148, %v1491, 0
        %v1531 = vsel %vm1148, %v1492, 0
        %v1534 = vsel %vm1148, %v1493, 0
        %v1537 = vsel %vm1148, %v1494, 0
        %v1540 = vsel %vm1148, %v1495, 0
        %v1543 = vsel %vm1148, %v1496, 0
        %v1546 = vsel %vm1148, %v1497, 0
        %v1549 = vsel %vm1148, %v1498, 0
        %v1552 = vsel %vm1148, %v1499, 0
        %v1555 = vsel %vm1148, %v1500, 0
        %v1558 = vsel %vm1148, %v1501, 0
        %v1561 = vsel %vm1148, %v1502, 0
        %v1564 = vsel %vm1148, %v1503, 0
        %v1567 = vsel %vm1148, %v1504, 0
        %v1570 = vsel %vm1148, %v1505, 0
        %v1573 = vsel %vm1148, %v1506, 0
        %v1576 = vsel %vm1148, %v1507, 0
        %v1579 = vsel %vm1148, %v1508, 0
        %1581 = vmatprep.subr.bf16.mxu0 0
        %1582 = vmatpush1.bf16.xpose.msra.mxu0 %v1534
        %1583 = vmatprep.subr.bf16.mxu0 0
        %1584 = vmatpush1.bf16.xpose.msra.mxu0 %v1537
        %1585 = vmatprep.subr.bf16.mxu0 0
        %1586 = vmatpush1.bf16.xpose.msra.mxu0 %v1540
        %1587 = vmatprep.subr.bf16.mxu0 0
        %1588 = vmatpush1.bf16.xpose.msra.mxu0 %v1543
        %1589 = vmatprep.subr.bf16.mxu0 0
        %1590 = vmatpush1.bf16.xpose.msra.mxu0 %v1546
        %1591 = vmatprep.subr.bf16.mxu0 0
        %1592 = vmatpush1.bf16.xpose.msra.mxu0 %v1549
        %1593 = vmatprep.subr.bf16.mxu0 0
        %1594 = vmatpush1.bf16.xpose.msra.mxu0 %v1552
        %1595 = vmatprep.subr.bf16.mxu0 0
        %1596 = vmatpush1.bf16.xpose.msra.mxu0 %v1555
        %1597 = vmatprep.subr.bf16.mxu0 0
        %1598 = vmatpush1.bf16.xpose.msra.mxu0 %v1558
        %1599 = vmatprep.subr.bf16.mxu0 0
        %1600 = vmatpush1.bf16.xpose.msra.mxu0 %v1561
        %1601 = vmatprep.subr.bf16.mxu0 0
        %1602 = vmatpush1.bf16.xpose.msra.mxu0 %v1564
        %1603 = vmatprep.subr.bf16.mxu0 0
        %1604 = vmatpush1.bf16.xpose.msra.mxu0 %v1567
        %1605 = vmatprep.subr.bf16.mxu0 0
        %1606 = vmatpush1.bf16.xpose.msra.mxu0 %v1570
        %1607 = vmatprep.subr.bf16.mxu0 0
        %1608 = vmatpush1.bf16.xpose.msra.mxu0 %v1573
        %1609 = vmatprep.subr.bf16.mxu0 0
        %1610 = vmatpush1.bf16.xpose.msra.mxu0 %v1576
        %1611 = vmatprep.subr.bf16.mxu0 0
        %1612 = vmatpush1.bf16.xpose.msra.mxu0 %v1579
        %1613 = vmatprep.mubr.bf16.mxu0 0
        %1614 = vmatmul.mubr.bf16.gmra.mrb[0].mxu0 %v1510
        %v1615 = vpop.f32.mrb[0].mxu0
        %v1616 = vadd.f32 0.0, %v1615
        %v1617 = vpop.f32.mrb[0].mxu0
        %v1618 = vadd.f32 0.0, %v1617
        %v1619 = vpop.f32.mrb[0].mxu0
        %v1620 = vadd.f32 0.0, %v1619
        %v1621 = vpop.f32.mrb[0].mxu0
        %v1622 = vadd.f32 0.0, %v1621
        %1623 = vmatprep.mubr.bf16.mxu0 0
        %1624 = vmatmul.mubr.bf16.gmra.mrb[0].mxu0 %v1513
        %v1625 = vpop.f32.mrb[0].mxu0
        %v1626 = vadd.f32 0.0, %v1625
        %v1627 = vpop.f32.mrb[0].mxu0
        %v1628 = vadd.f32 0.0, %v1627
        %v1629 = vpop.f32.mrb[0].mxu0
        %v1630 = vadd.f32 0.0, %v1629
        %v1631 = vpop.f32.mrb[0].mxu0
        %v1632 = vadd.f32 0.0, %v1631
        %1633 = vmatprep.mubr.bf16.mxu0 0
        %1634 = vmatmul.mubr.bf16.gmra.mrb[0].mxu0 %v1516
        %v1635 = vpop.f32.mrb[0].mxu0
        %v1636 = vadd.f32 0.0, %v1635
        %v1637 = vpop.f32.mrb[0].mxu0
        %v1638 = vadd.f32 0.0, %v1637
        %v1639 = vpop.f32.mrb[0].mxu0
        %v1640 = vadd.f32 0.0, %v1639
        %v1641 = vpop.f32.mrb[0].mxu0
        %v1642 = vadd.f32 0.0, %v1641
        %1643 = vmatprep.mubr.bf16.mxu0 0
        %1644 = vmatmul.mubr.bf16.gmra.mrb[0].mxu0 %v1519
        %v1645 = vpop.f32.mrb[0].mxu0
        %v1646 = vadd.f32 0.0, %v1645
        %v1647 = vpop.f32.mrb[0].mxu0
        %v1648 = vadd.f32 0.0, %v1647
        %v1649 = vpop.f32.mrb[0].mxu0
        %v1650 = vadd.f32 0.0, %v1649
        %v1651 = vpop.f32.mrb[0].mxu0
        %v1652 = vadd.f32 0.0, %v1651
        %1653 = vmatprep.mubr.bf16.mxu0 0
        %1654 = vmatmul.mubr.bf16.gmra.mrb[0].mxu0 %v1522
        %v1655 = vpop.f32.mrb[0].mxu0
        %v1656 = vadd.f32 0.0, %v1655
        %v1657 = vpop.f32.mrb[0].mxu0
        %v1658 = vadd.f32 0.0, %v1657
        %v1659 = vpop.f32.mrb[0].mxu0
        %v1660 = vadd.f32 0.0, %v1659
        %v1661 = vpop.f32.mrb[0].mxu0
        %v1662 = vadd.f32 0.0, %v1661
        %1663 = vmatprep.mubr.bf16.mxu0 0
        %1664 = vmatmul.mubr.bf16.gmra.mrb[0].mxu0 %v1525
        %v1665 = vpop.f32.mrb[0].mxu0
        %v1666 = vadd.f32 0.0, %v1665
        %v1667 = vpop.f32.mrb[0].mxu0
        %v1668 = vadd.f32 0.0, %v1667
        %v1669 = vpop.f32.mrb[0].mxu0
        %v1670 = vadd.f32 0.0, %v1669
        %v1671 = vpop.f32.mrb[0].mxu0
        %v1672 = vadd.f32 0.0, %v1671
        %1673 = vmatprep.mubr.bf16.mxu0 0
        %1674 = vmatmul.mubr.bf16.gmra.mrb[0].mxu0 %v1528
        %v1675 = vpop.f32.mrb[0].mxu0
        %v1676 = vadd.f32 0.0, %v1675
        %v1677 = vpop.f32.mrb[0].mxu0
        %v1678 = vadd.f32 0.0, %v1677
        %v1679 = vpop.f32.mrb[0].mxu0
        %v1680 = vadd.f32 0.0, %v1679
        %v1681 = vpop.f32.mrb[0].mxu0
        %v1682 = vadd.f32 0.0, %v1681
        %1683 = vmatprep.mubr.bf16.mxu0 0
        %1684 = vmatmul.mubr.bf16.gmra.mrb[0].mxu0 %v1531
        %v1685 = vpop.f32.mrb[0].mxu0
        %v1686 = vadd.f32 0.0, %v1685
        %v1687 = vpop.f32.mrb[0].mxu0
        %v1688 = vadd.f32 0.0, %v1687
        %v1689 = vpop.f32.mrb[0].mxu0
        %v1690 = vadd.f32 0.0, %v1689
        %v1691 = vpop.f32.mrb[0].mxu0
        %v1692 = vadd.f32 0.0, %v1691
        %1693 = vdwg.mxu0
        %v1694 = vsub.f32 %v1616, 10.0
        %v1695 = vsub.f32 %v1618, 10.0
        %v1696 = vsub.f32 %v1620, 10.0
        %v1697 = vsub.f32 %v1622, 10.0
        %v1698 = vsub.f32 %v1626, 10.0
        %v1699 = vsub.f32 %v1628, 10.0
        %v1700 = vsub.f32 %v1630, 10.0
        %v1701 = vsub.f32 %v1632, 10.0
        %v1702 = vsub.f32 %v1636, 10.0
        %v1703 = vsub.f32 %v1638, 10.0
        %v1704 = vsub.f32 %v1640, 10.0
        %v1705 = vsub.f32 %v1642, 10.0
        %v1706 = vsub.f32 %v1646, 10.0
        %v1707 = vsub.f32 %v1648, 10.0
        %v1708 = vsub.f32 %v1650, 10.0
        %v1709 = vsub.f32 %v1652, 10.0
        %v1710 = vsub.f32 %v1656, 10.0
        %v1711 = vsub.f32 %v1658, 10.0
        %v1712 = vsub.f32 %v1660, 10.0
        %v1713 = vsub.f32 %v1662, 10.0
        %v1714 = vsub.f32 %v1666, 10.0
        %v1715 = vsub.f32 %v1668, 10.0
        %v1716 = vsub.f32 %v1670, 10.0
        %v1717 = vsub.f32 %v1672, 10.0
        %v1718 = vsub.f32 %v1676, 10.0
        %v1719 = vsub.f32 %v1678, 10.0
        %v1720 = vsub.f32 %v1680, 10.0
        %v1721 = vsub.f32 %v1682, 10.0
        %v1722 = vsub.f32 %v1686, 10.0
        %v1723 = vsub.f32 %v1688, 10.0
        %v1724 = vsub.f32 %v1690, 10.0
        %v1725 = vsub.f32 %v1692, 10.0
        %v1726 = vmul.f32 %v1694, 1.442695
        %v1727 = vpow.pop %v1726
        %v1728 = vmul.f32 %v1695, 1.442695
        %v1729 = vpow.pop %v1728
        %v1730 = vmul.f32 %v1696, 1.442695
        %v1731 = vpow.pop %v1730
        %v1732 = vmul.f32 %v1697, 1.442695
        %v1733 = vpow.pop %v1732
        %v1734 = vmul.f32 %v1698, 1.442695
        %v1735 = vpow.pop %v1734
        %v1736 = vmul.f32 %v1699, 1.442695
        %v1737 = vpow.pop %v1736
        %v1738 = vmul.f32 %v1700, 1.442695
        %v1739 = vpow.pop %v1738
        %v1740 = vmul.f32 %v1701, 1.442695
        %v1741 = vpow.pop %v1740
        %v1742 = vmul.f32 %v1702, 1.442695
        %v1743 = vpow.pop %v1742
        %v1744 = vmul.f32 %v1703, 1.442695
        %v1745 = vpow.pop %v1744
        %v1746 = vmul.f32 %v1704, 1.442695
        %v1747 = vpow.pop %v1746
        %v1748 = vmul.f32 %v1705, 1.442695
        %v1749 = vpow.pop %v1748
        %v1750 = vmul.f32 %v1706, 1.442695
        %v1751 = vpow.pop %v1750
        %v1752 = vmul.f32 %v1707, 1.442695
        %v1753 = vpow.pop %v1752
        %v1754 = vmul.f32 %v1708, 1.442695
        %v1755 = vpow.pop %v1754
        %v1756 = vmul.f32 %v1709, 1.442695
        %v1757 = vpow.pop %v1756
        %v1758 = vmul.f32 %v1710, 1.442695
        %v1759 = vpow.pop %v1758
        %v1760 = vmul.f32 %v1711, 1.442695
        %v1761 = vpow.pop %v1760
        %v1762 = vmul.f32 %v1712, 1.442695
        %v1763 = vpow.pop %v1762
        %v1764 = vmul.f32 %v1713, 1.442695
        %v1765 = vpow.pop %v1764
        %v1766 = vmul.f32 %v1714, 1.442695
        %v1767 = vpow.pop %v1766
        %v1768 = vmul.f32 %v1715, 1.442695
        %v1769 = vpow.pop %v1768
        %v1770 = vmul.f32 %v1716, 1.442695
        %v1771 = vpow.pop %v1770
        %v1772 = vmul.f32 %v1717, 1.442695
        %v1773 = vpow.pop %v1772
        %v1774 = vmul.f32 %v1718, 1.442695
        %v1775 = vpow.pop %v1774
        %v1776 = vmul.f32 %v1719, 1.442695
        %v1777 = vpow.pop %v1776
        %v1778 = vmul.f32 %v1720, 1.442695
        %v1779 = vpow.pop %v1778
        %v1780 = vmul.f32 %v1721, 1.442695
        %v1781 = vpow.pop %v1780
        %v1782 = vmul.f32 %v1722, 1.442695
        %v1783 = vpow.pop %v1782
        %v1784 = vmul.f32 %v1723, 1.442695
        %v1785 = vpow.pop %v1784
        %v1786 = vmul.f32 %v1724, 1.442695
        %v1787 = vpow.pop %v1786
        %v1788 = vmul.f32 %v1725, 1.442695
        %v1789 = vpow.pop %v1788
        %v1790 = vadd.f32 %v1727, %v1729
        %1791 = vadd.xlane.f32.xlu0 %v1790
        %v1792 = vpop.xlane.xlu0 %1791
        %v1793 = vadd.f32 %v1731, %v1733
        %1794 = vadd.xlane.f32.xlu0 %v1793
        %v1795 = vpop.xlane.xlu0 %1794
        %v1796 = vadd.f32 %v1735, %v1737
        %1797 = vadd.xlane.f32.xlu0 %v1796
        %v1798 = vpop.xlane.xlu0 %1797
        %v1799 = vadd.f32 %v1739, %v1741
        %1800 = vadd.xlane.f32.xlu0 %v1799
        %v1801 = vpop.xlane.xlu0 %1800
        %v1802 = vadd.f32 %v1743, %v1745
        %1803 = vadd.xlane.f32.xlu0 %v1802
        %v1804 = vpop.xlane.xlu0 %1803
        %v1805 = vadd.f32 %v1747, %v1749
        %1806 = vadd.xlane.f32.xlu0 %v1805
        %v1807 = vpop.xlane.xlu0 %1806
        %v1808 = vadd.f32 %v1751, %v1753
        %1809 = vadd.xlane.f32.xlu0 %v1808
        %v1810 = vpop.xlane.xlu0 %1809
        %v1811 = vadd.f32 %v1755, %v1757
        %1812 = vadd.xlane.f32.xlu0 %v1811
        %v1813 = vpop.xlane.xlu0 %1812
        %v1814 = vadd.f32 %v1759, %v1761
        %1815 = vadd.xlane.f32.xlu0 %v1814
        %v1816 = vpop.xlane.xlu0 %1815
        %v1817 = vadd.f32 %v1763, %v1765
        %1818 = vadd.xlane.f32.xlu0 %v1817
        %v1819 = vpop.xlane.xlu0 %1818
        %v1820 = vadd.f32 %v1767, %v1769
        %1821 = vadd.xlane.f32.xlu0 %v1820
        %v1822 = vpop.xlane.xlu0 %1821
        %v1823 = vadd.f32 %v1771, %v1773
        %1824 = vadd.xlane.f32.xlu0 %v1823
        %v1825 = vpop.xlane.xlu0 %1824
        %v1826 = vadd.f32 %v1775, %v1777
        %1827 = vadd.xlane.f32.xlu0 %v1826
        %v1828 = vpop.xlane.xlu0 %1827
        %v1829 = vadd.f32 %v1779, %v1781
        %1830 = vadd.xlane.f32.xlu0 %v1829
        %v1831 = vpop.xlane.xlu0 %1830
        %v1832 = vadd.f32 %v1783, %v1785
        %1833 = vadd.xlane.f32.xlu0 %v1832
        %v1834 = vpop.xlane.xlu0 %1833
        %v1835 = vadd.f32 %v1787, %v1789
        %1836 = vadd.xlane.f32.xlu0 %v1835
        %v1837 = vpop.xlane.xlu0 %1836
        %v1838 = vpack.c.bf16 %v1731, %v1727
        %v1839 = vpack.c.bf16 %v1733, %v1729
        %v1840 = vpack.c.bf16 %v1739, %v1735
        %v1841 = vpack.c.bf16 %v1741, %v1737
        %v1842 = vpack.c.bf16 %v1747, %v1743
        %v1843 = vpack.c.bf16 %v1749, %v1745
        %v1844 = vpack.c.bf16 %v1755, %v1751
        %v1845 = vpack.c.bf16 %v1757, %v1753
        %v1846 = vpack.c.bf16 %v1763, %v1759
        %v1847 = vpack.c.bf16 %v1765, %v1761
        %v1848 = vpack.c.bf16 %v1771, %v1767
        %v1849 = vpack.c.bf16 %v1773, %v1769
        %v1850 = vpack.c.bf16 %v1779, %v1775
        %v1851 = vpack.c.bf16 %v1781, %v1777
        %v1852 = vpack.c.bf16 %v1787, %v1783
        %v1853 = vpack.c.bf16 %v1789, %v1785
        %v1854 = vpack.c.bf16 %v1009, %v1006
        %v1855 = vpack.c.bf16 %v1017, %v1014
        %v1856 = vpack.c.bf16 %v1025, %v1022
        %v1857 = vpack.c.bf16 %v1033, %v1030
        %v1858 = vpack.c.bf16 %v1041, %v1038
        %v1859 = vpack.c.bf16 %v1049, %v1046
        %v1860 = vpack.c.bf16 %v1057, %v1054
        %v1861 = vpack.c.bf16 %v1065, %v1062
        %v1862 = vpack.c.bf16 %v1073, %v1070
        %v1863 = vpack.c.bf16 %v1081, %v1078
        %v1864 = vpack.c.bf16 %v1089, %v1086
        %v1865 = vpack.c.bf16 %v1097, %v1094
        %v1866 = vpack.c.bf16 %v1105, %v1102
        %v1867 = vpack.c.bf16 %v1113, %v1110
        %v1868 = vpack.c.bf16 %v1121, %v1118
        %v1869 = vpack.c.bf16 %v1129, %v1126
        %1870 = vmatprep.subr.bf16.mxu0 0
        %1871 = vmatpush1.bf16.msra.mxu0 %v1854
        %1872 = vmatprep.subr.bf16.mxu0 0
        %1873 = vmatpush1.bf16.msra.mxu0 %v1855
        %1874 = vmatprep.subr.bf16.mxu0 0
        %1875 = vmatpush1.bf16.msra.mxu0 %v1856
        %1876 = vmatprep.subr.bf16.mxu0 0
        %1877 = vmatpush1.bf16.msra.mxu0 %v1857
        %1878 = vmatprep.subr.bf16.mxu0 0
        %1879 = vmatpush1.bf16.msra.mxu0 %v1858
        %1880 = vmatprep.subr.bf16.mxu0 0
        %1881 = vmatpush1.bf16.msra.mxu0 %v1859
        %1882 = vmatprep.subr.bf16.mxu0 0
        %1883 = vmatpush1.bf16.msra.mxu0 %v1860
        %1884 = vmatprep.subr.bf16.mxu0 0
        %1885 = vmatpush1.bf16.msra.mxu0 %v1861
        %1886 = vmatprep.subr.bf16.mxu0 0
        %1887 = vmatpush1.bf16.msra.mxu0 %v1862
        %1888 = vmatprep.subr.bf16.mxu0 0
        %1889 = vmatpush1.bf16.msra.mxu0 %v1863
        %1890 = vmatprep.subr.bf16.mxu0 0
        %1891 = vmatpush1.bf16.msra.mxu0 %v1864
        %1892 = vmatprep.subr.bf16.mxu0 0
        %1893 = vmatpush1.bf16.msra.mxu0 %v1865
        %1894 = vmatprep.subr.bf16.mxu0 0
        %1895 = vmatpush1.bf16.msra.mxu0 %v1866
        %1896 = vmatprep.subr.bf16.mxu0 0
        %1897 = vmatpush1.bf16.msra.mxu0 %v1867
        %1898 = vmatprep.subr.bf16.mxu0 0
        %1899 = vmatpush1.bf16.msra.mxu0 %v1868
        %1900 = vmatprep.subr.bf16.mxu0 0
        %1901 = vmatpush1.bf16.msra.mxu0 %v1869
        %1902 = vmatprep.mubr.bf16.mxu0 %v1839
        %1903 = vmatmul.mubr.bf16.gmra.mrb[0].mxu0 %v1838
        %v1904 = vpop.f32.mrb[0].mxu0
        %v1905 = vadd.f32 0.0, %v1904
        %v1906 = vpop.f32.mrb[0].mxu0
        %v1907 = vpop.f32.mrb[0].mxu0
        %v1908 = vadd.f32 0.0, %v1907
        %v1909 = vpop.f32.mrb[0].mxu0
        %1910 = vmatprep.mubr.bf16.mxu0 %v1841
        %1911 = vmatmul.mubr.bf16.gmra.mrb[0].mxu0 %v1840
        %v1912 = vpop.f32.mrb[0].mxu0
        %v1913 = vadd.f32 0.0, %v1912
        %v1914 = vpop.f32.mrb[0].mxu0
        %v1915 = vpop.f32.mrb[0].mxu0
        %v1916 = vadd.f32 0.0, %v1915
        %v1917 = vpop.f32.mrb[0].mxu0
        %1918 = vmatprep.mubr.bf16.mxu0 %v1843
        %1919 = vmatmul.mubr.bf16.gmra.mrb[0].mxu0 %v1842
        %v1920 = vpop.f32.mrb[0].mxu0
        %v1921 = vadd.f32 0.0, %v1920
        %v1922 = vpop.f32.mrb[0].mxu0
        %v1923 = vpop.f32.mrb[0].mxu0
        %v1924 = vadd.f32 0.0, %v1923
        %v1925 = vpop.f32.mrb[0].mxu0
        %1926 = vmatprep.mubr.bf16.mxu0 %v1845
        %1927 = vmatmul.mubr.bf16.gmra.mrb[0].mxu0 %v1844
        %v1928 = vpop.f32.mrb[0].mxu0
        %v1929 = vadd.f32 0.0, %v1928
        %v1930 = vpop.f32.mrb[0].mxu0
        %v1931 = vpop.f32.mrb[0].mxu0
        %v1932 = vadd.f32 0.0, %v1931
        %v1933 = vpop.f32.mrb[0].mxu0
        %1934 = vmatprep.mubr.bf16.mxu0 %v1847
        %1935 = vmatmul.mubr.bf16.gmra.mrb[0].mxu0 %v1846
        %v1936 = vpop.f32.mrb[0].mxu0
        %v1937 = vadd.f32 0.0, %v1936
        %v1938 = vpop.f32.mrb[0].mxu0
        %v1939 = vpop.f32.mrb[0].mxu0
        %v1940 = vadd.f32 0.0, %v1939
        %v1941 = vpop.f32.mrb[0].mxu0
        %1942 = vmatprep.mubr.bf16.mxu0 %v1849
        %1943 = vmatmul.mubr.bf16.gmra.mrb[0].mxu0 %v1848
        %v1944 = vpop.f32.mrb[0].mxu0
        %v1945 = vadd.f32 0.0, %v1944
        %v1946 = vpop.f32.mrb[0].mxu0
        %v1947 = vpop.f32.mrb[0].mxu0
        %v1948 = vadd.f32 0.0, %v1947
        %v1949 = vpop.f32.mrb[0].mxu0
        %1950 = vmatprep.mubr.bf16.mxu0 %v1851
        %1951 = vmatmul.mubr.bf16.gmra.mrb[0].mxu0 %v1850
        %v1952 = vpop.f32.mrb[0].mxu0
        %v1953 = vadd.f32 0.0, %v1952
        %v1954 = vpop.f32.mrb[0].mxu0
        %v1955 = vpop.f32.mrb[0].mxu0
        %v1956 = vadd.f32 0.0, %v1955
        %v1957 = vpop.f32.mrb[0].mxu0
        %1958 = vmatprep.mubr.bf16.mxu0 %v1853
        %1959 = vmatmul.mubr.bf16.gmra.mrb[0].mxu0 %v1852
        %v1960 = vpop.f32.mrb[0].mxu0
        %v1961 = vadd.f32 0.0, %v1960
        %v1962 = vpop.f32.mrb[0].mxu0
        %v1963 = vpop.f32.mrb[0].mxu0
        %v1964 = vadd.f32 0.0, %v1963
        %v1965 = vpop.f32.mrb[0].mxu0
        %1966 = vdwg.mxu0
        %v1967 = vrcp.pop %v1792
        %v1968 = vrcp.pop %v1795
        %v1969 = vrcp.pop %v1798
        %v1970 = vrcp.pop %v1801
        %v1971 = vrcp.pop %v1804
        %v1972 = vrcp.pop %v1807
        %v1973 = vrcp.pop %v1810
        %v1974 = vrcp.pop %v1813
        %v1975 = vrcp.pop %v1816
        %v1976 = vrcp.pop %v1819
        %v1977 = vrcp.pop %v1822
        %v1978 = vrcp.pop %v1825
        %v1979 = vrcp.pop %v1828
        %v1980 = vrcp.pop %v1831
        %v1981 = vrcp.pop %v1834
        %v1982 = vrcp.pop %v1837
        %v1983 = vmul.f32 %v1905, %v1967
        %v1984 = vmul.f32 %v1908, %v1968
        %v1985 = vmul.f32 %v1913, %v1969
        %v1986 = vmul.f32 %v1916, %v1970
        %v1987 = vmul.f32 %v1921, %v1971
        %v1988 = vmul.f32 %v1924, %v1972
        %v1989 = vmul.f32 %v1929, %v1973
        %v1990 = vmul.f32 %v1932, %v1974
        %v1991 = vmul.f32 %v1937, %v1975
        %v1992 = vmul.f32 %v1940, %v1976
        %v1993 = vmul.f32 %v1945, %v1977
        %v1994 = vmul.f32 %v1948, %v1978
        %v1995 = vmul.f32 %v1953, %v1979
        %v1996 = vmul.f32 %v1956, %v1980
        %v1997 = vmul.f32 %v1961, %v1981
        %v1998 = vmul.f32 %v1964, %v1982
        %v1999 = vpack.c.bf16 %v1984, %v1983
        %v2000 = vpack.c.bf16 %v1986, %v1985
        %v2001 = vpack.c.bf16 %v1988, %v1987
        %v2002 = vpack.c.bf16 %v1990, %v1989
        %v2003 = vpack.c.bf16 %v1992, %v1991
        %v2004 = vpack.c.bf16 %v1994, %v1993
        %v2005 = vpack.c.bf16 %v1996, %v1995
        %v2006 = vpack.c.bf16 %v1998, %v1997
        %v2007 = vld [vmem:[%s5] sm:$0xf]
        %v2008 = vld [vmem:[%s5 + $0x4] sm:$0xf]
        %v2009 = vld [vmem:[%s5 + $0x8] sm:$0xf]
        %v2010 = vld [vmem:[%s5 + $0xc] sm:$0xf]
        %s2011 = scalar_lea.vmem %s2, 64
        %v2012 = vld [vmem:[%s2011] sm:$0xf]
        %v2013 = vld [vmem:[%s2011 + $0x4] sm:$0xf]
        %v2014 = vld [vmem:[%s2011 + $0x8] sm:$0xf]
        %v2015 = vld [vmem:[%s2011 + $0xc] sm:$0xf]
        %v2016 = vld [vmem:[%s2011 + $0x10] sm:$0xf]
        %v2017 = vld [vmem:[%s2011 + $0x14] sm:$0xf]
        %v2018 = vld [vmem:[%s2011 + $0x18] sm:$0xf]
        %v2019 = vld [vmem:[%s2011 + $0x1c] sm:$0xf]
        %v2020 = vld [vmem:[%s2011 + $0x20] sm:$0xf]
        %v2021 = vld [vmem:[%s2011 + $0x24] sm:$0xf]
        %v2022 = vld [vmem:[%s2011 + $0x28] sm:$0xf]
        %v2023 = vld [vmem:[%s2011 + $0x2c] sm:$0xf]
        %v2024 = vld [vmem:[%s2011 + $0x30] sm:$0xf]
        %v2025 = vld [vmem:[%s2011 + $0x34] sm:$0xf]
        %v2026 = vld [vmem:[%s2011 + $0x38] sm:$0xf]
        %v2027 = vld [vmem:[%s2011 + $0x3c] sm:$0xf]
        %v2044 = vunpack.c.l.b16 %v2012
        %v2045 = vunpack.c.l.b16 %v2013
        %v2046 = vunpack.c.l.b16 %v2014
        %v2047 = vunpack.c.l.b16 %v2015
        %v2048 = vunpack.c.l.b16 %v2016
        %v2049 = vunpack.c.l.b16 %v2017
        %v2050 = vunpack.c.l.b16 %v2018
        %v2051 = vunpack.c.l.b16 %v2019
        %v2052 = vunpack.c.l.b16 %v2020
        %v2053 = vunpack.c.l.b16 %v2021
        %v2054 = vunpack.c.l.b16 %v2022
        %v2055 = vunpack.c.l.b16 %v2023
        %v2056 = vunpack.c.l.b16 %v2024
        %v2057 = vunpack.c.l.b16 %v2025
        %v2058 = vunpack.c.l.b16 %v2026
        %v2059 = vunpack.c.l.b16 %v2027
        %v2060 = vpack.c.b16 %v2045, %v2044
        %v2061 = vpack.c.b16 %v2047, %v2046
        %v2062 = vpack.c.b16 %v2049, %v2048
        %v2063 = vpack.c.b16 %v2051, %v2050
        %v2064 = vpack.c.b16 %v2053, %v2052
        %v2065 = vpack.c.b16 %v2055, %v2054
        %v2066 = vpack.c.b16 %v2057, %v2056
        %v2067 = vpack.c.b16 %v2059, %v2058
        %2076 = vmatprep.subr.bf16.mxu0 0
        %2077 = vmatpush1.bf16.msra.mxu0 %v2060
        %2078 = vmatprep.subr.bf16.mxu0 0
        %2079 = vmatpush1.bf16.msra.mxu0 %v2061
        %2080 = vmatprep.subr.bf16.mxu0 0
        %2081 = vmatpush1.bf16.msra.mxu0 %v2062
        %2082 = vmatprep.subr.bf16.mxu0 0
        %2083 = vmatpush1.bf16.msra.mxu0 %v2063
        %2084 = vmatprep.subr.bf16.mxu0 0
        %2085 = vmatpush1.bf16.msra.mxu0 %v2064
        %2086 = vmatprep.subr.bf16.mxu0 0
        %2087 = vmatpush1.bf16.msra.mxu0 %v2065
        %2088 = vmatprep.subr.bf16.mxu0 0
        %2089 = vmatpush1.bf16.msra.mxu0 %v2066
        %2090 = vmatprep.subr.bf16.mxu0 0
        %2091 = vmatpush1.bf16.msra.mxu0 %v2067
        %2092 = vmatprep.subr.bf16.mxu0 0
        %2093 = vmatpush1.bf16.msra.mxu0 0
        %2094 = vmatprep.subr.bf16.mxu0 0
        %2095 = vmatpush1.bf16.msra.mxu0 0
        %2096 = vmatprep.subr.bf16.mxu0 0
        %2097 = vmatpush1.bf16.msra.mxu0 0
        %2098 = vmatprep.subr.bf16.mxu0 0
        %2099 = vmatpush1.bf16.msra.mxu0 0
        %2100 = vmatprep.subr.bf16.mxu0 0
        %2101 = vmatpush1.bf16.msra.mxu0 0
        %2102 = vmatprep.subr.bf16.mxu0 0
        %2103 = vmatpush1.bf16.msra.mxu0 0
        %2104 = vmatprep.subr.bf16.mxu0 0
        %2105 = vmatpush1.bf16.msra.mxu0 0
        %2106 = vmatprep.subr.bf16.mxu0 0
        %2107 = vmatpush1.bf16.msra.mxu0 0
        %2108 = vmatprep.mubr.bf16.mxu0 0
        %2109 = vmatmul.mubr.bf16.gmra.mrb[0].mxu0 %v425
        %v2110 = vpop.f32.mrb[0].mxu0
        %v2111 = vadd.f32 0.0, %v2110
        %v2112 = vpop.f32.mrb[0].mxu0
        %v2113 = vpop.f32.mrb[0].mxu0
        %v2114 = vadd.f32 0.0, %v2113
        %v2115 = vpop.f32.mrb[0].mxu0
        %2116 = vmatprep.mubr.bf16.mxu0 0
        %2117 = vmatmul.mubr.bf16.gmra.mrb[0].mxu0 %v426
        %v2118 = vpop.f32.mrb[0].mxu0
        %v2119 = vadd.f32 0.0, %v2118
        %v2120 = vpop.f32.mrb[0].mxu0
        %v2121 = vpop.f32.mrb[0].mxu0
        %v2122 = vadd.f32 0.0, %v2121
        %v2123 = vpop.f32.mrb[0].mxu0
        %2124 = vmatprep.mubr.bf16.mxu0 0
        %2125 = vmatmul.mubr.bf16.gmra.mrb[0].mxu0 %v427
        %v2126 = vpop.f32.mrb[0].mxu0
        %v2127 = vadd.f32 0.0, %v2126
        %v2128 = vpop.f32.mrb[0].mxu0
        %v2129 = vpop.f32.mrb[0].mxu0
        %v2130 = vadd.f32 0.0, %v2129
        %v2131 = vpop.f32.mrb[0].mxu0
        %2132 = vmatprep.mubr.bf16.mxu0 0
        %2133 = vmatmul.mubr.bf16.gmra.mrb[0].mxu0 %v428
        %v2134 = vpop.f32.mrb[0].mxu0
        %v2135 = vadd.f32 0.0, %v2134
        %v2136 = vpop.f32.mrb[0].mxu0
        %v2137 = vpop.f32.mrb[0].mxu0
        %v2138 = vadd.f32 0.0, %v2137
        %v2139 = vpop.f32.mrb[0].mxu0
        %2140 = vmatprep.mubr.bf16.mxu0 0
        %2141 = vmatmul.mubr.bf16.gmra.mrb[0].mxu0 %v429
        %v2142 = vpop.f32.mrb[0].mxu0
        %v2143 = vadd.f32 0.0, %v2142
        %v2144 = vpop.f32.mrb[0].mxu0
        %v2145 = vpop.f32.mrb[0].mxu0
        %v2146 = vadd.f32 0.0, %v2145
        %v2147 = vpop.f32.mrb[0].mxu0
        %2148 = vmatprep.mubr.bf16.mxu0 0
        %2149 = vmatmul.mubr.bf16.gmra.mrb[0].mxu0 %v430
        %v2150 = vpop.f32.mrb[0].mxu0
        %v2151 = vadd.f32 0.0, %v2150
        %v2152 = vpop.f32.mrb[0].mxu0
        %v2153 = vpop.f32.mrb[0].mxu0
        %v2154 = vadd.f32 0.0, %v2153
        %v2155 = vpop.f32.mrb[0].mxu0
        %2156 = vmatprep.mubr.bf16.mxu0 0
        %2157 = vmatmul.mubr.bf16.gmra.mrb[0].mxu0 %v431
        %v2158 = vpop.f32.mrb[0].mxu0
        %v2159 = vadd.f32 0.0, %v2158
        %v2160 = vpop.f32.mrb[0].mxu0
        %v2161 = vpop.f32.mrb[0].mxu0
        %v2162 = vadd.f32 0.0, %v2161
        %v2163 = vpop.f32.mrb[0].mxu0
        %2164 = vmatprep.mubr.bf16.mxu0 0
        %2165 = vmatmul.mubr.bf16.gmra.mrb[0].mxu0 %v432
        %v2166 = vpop.f32.mrb[0].mxu0
        %v2167 = vadd.f32 0.0, %v2166
        %v2168 = vpop.f32.mrb[0].mxu0
        %v2169 = vpop.f32.mrb[0].mxu0
        %v2170 = vadd.f32 0.0, %v2169
        %v2171 = vpop.f32.mrb[0].mxu0
        %2172 = vdwg.mxu0
        %s2173 = scalar_lea.vmem %s3, 64
        %v2174 = vld [vmem:[%s2173] sm:$0xf]
        %v2175 = vld [vmem:[%s2173 + $0x4] sm:$0xf]
        %v2176 = vld [vmem:[%s2173 + $0x8] sm:$0xf]
        %v2177 = vld [vmem:[%s2173 + $0xc] sm:$0xf]
        %v2178 = vld [vmem:[%s2173 + $0x10] sm:$0xf]
        %v2179 = vld [vmem:[%s2173 + $0x14] sm:$0xf]
        %v2180 = vld [vmem:[%s2173 + $0x18] sm:$0xf]
        %v2181 = vld [vmem:[%s2173 + $0x1c] sm:$0xf]
        %v2182 = vld [vmem:[%s2173 + $0x20] sm:$0xf]
        %v2183 = vld [vmem:[%s2173 + $0x24] sm:$0xf]
        %v2184 = vld [vmem:[%s2173 + $0x28] sm:$0xf]
        %v2185 = vld [vmem:[%s2173 + $0x2c] sm:$0xf]
        %v2186 = vld [vmem:[%s2173 + $0x30] sm:$0xf]
        %v2187 = vld [vmem:[%s2173 + $0x34] sm:$0xf]
        %v2188 = vld [vmem:[%s2173 + $0x38] sm:$0xf]
        %v2189 = vld [vmem:[%s2173 + $0x3c] sm:$0xf]
        %v2206 = vunpack.c.l.b16 %v2174
        %v2207 = vunpack.c.l.b16 %v2175
        %v2208 = vunpack.c.l.b16 %v2176
        %v2209 = vunpack.c.l.b16 %v2177
        %v2210 = vunpack.c.l.b16 %v2178
        %v2211 = vunpack.c.l.b16 %v2179
        %v2212 = vunpack.c.l.b16 %v2180
        %v2213 = vunpack.c.l.b16 %v2181
        %v2214 = vunpack.c.l.b16 %v2182
        %v2215 = vunpack.c.l.b16 %v2183
        %v2216 = vunpack.c.l.b16 %v2184
        %v2217 = vunpack.c.l.b16 %v2185
        %v2218 = vunpack.c.l.b16 %v2186
        %v2219 = vunpack.c.l.b16 %v2187
        %v2220 = vunpack.c.l.b16 %v2188
        %v2221 = vunpack.c.l.b16 %v2189
        %v2222 = vpack.c.b16 %v2207, %v2206
        %v2223 = vpack.c.b16 %v2209, %v2208
        %v2224 = vpack.c.b16 %v2211, %v2210
        %v2225 = vpack.c.b16 %v2213, %v2212
        %v2226 = vpack.c.b16 %v2215, %v2214
        %v2227 = vpack.c.b16 %v2217, %v2216
        %v2228 = vpack.c.b16 %v2219, %v2218
        %v2229 = vpack.c.b16 %v2221, %v2220
        %2238 = vmatprep.subr.bf16.mxu0 0
        %2239 = vmatpush1.bf16.msra.mxu0 %v2222
        %2240 = vmatprep.subr.bf16.mxu0 0
        %2241 = vmatpush1.bf16.msra.mxu0 %v2223
        %2242 = vmatprep.subr.bf16.mxu0 0
        %2243 = vmatpush1.bf16.msra.mxu0 %v2224
        %2244 = vmatprep.subr.bf16.mxu0 0
        %2245 = vmatpush1.bf16.msra.mxu0 %v2225
        %2246 = vmatprep.subr.bf16.mxu0 0
        %2247 = vmatpush1.bf16.msra.mxu0 %v2226
        %2248 = vmatprep.subr.bf16.mxu0 0
        %2249 = vmatpush1.bf16.msra.mxu0 %v2227
        %2250 = vmatprep.subr.bf16.mxu0 0
        %2251 = vmatpush1.bf16.msra.mxu0 %v2228
        %2252 = vmatprep.subr.bf16.mxu0 0
        %2253 = vmatpush1.bf16.msra.mxu0 %v2229
        %2254 = vmatprep.subr.bf16.mxu0 0
        %2255 = vmatpush1.bf16.msra.mxu0 0
        %2256 = vmatprep.subr.bf16.mxu0 0
        %2257 = vmatpush1.bf16.msra.mxu0 0
        %2258 = vmatprep.subr.bf16.mxu0 0
        %2259 = vmatpush1.bf16.msra.mxu0 0
        %2260 = vmatprep.subr.bf16.mxu0 0
        %2261 = vmatpush1.bf16.msra.mxu0 0
        %2262 = vmatprep.subr.bf16.mxu0 0
        %2263 = vmatpush1.bf16.msra.mxu0 0
        %2264 = vmatprep.subr.bf16.mxu0 0
        %2265 = vmatpush1.bf16.msra.mxu0 0
        %2266 = vmatprep.subr.bf16.mxu0 0
        %2267 = vmatpush1.bf16.msra.mxu0 0
        %2268 = vmatprep.subr.bf16.mxu0 0
        %2269 = vmatpush1.bf16.msra.mxu0 0
        %2270 = vmatprep.mubr.bf16.mxu0 0
        %2271 = vmatmul.mubr.bf16.gmra.mrb[0].mxu0 %v666
        %v2272 = vpop.f32.mrb[0].mxu0
        %v2273 = vadd.f32 0.0, %v2272
        %v2274 = vpop.f32.mrb[0].mxu0
        %v2275 = vpop.f32.mrb[0].mxu0
        %v2276 = vadd.f32 0.0, %v2275
        %v2277 = vpop.f32.mrb[0].mxu0
        %2278 = vmatprep.mubr.bf16.mxu0 0
        %2279 = vmatmul.mubr.bf16.gmra.mrb[0].mxu0 %v667
        %v2280 = vpop.f32.mrb[0].mxu0
        %v2281 = vadd.f32 0.0, %v2280
        %v2282 = vpop.f32.mrb[0].mxu0
        %v2283 = vpop.f32.mrb[0].mxu0
        %v2284 = vadd.f32 0.0, %v2283
        %v2285 = vpop.f32.mrb[0].mxu0
        %2286 = vmatprep.mubr.bf16.mxu0 0
        %2287 = vmatmul.mubr.bf16.gmra.mrb[0].mxu0 %v668
        %v2288 = vpop.f32.mrb[0].mxu0
        %v2289 = vadd.f32 0.0, %v2288
        %v2290 = vpop.f32.mrb[0].mxu0
        %v2291 = vpop.f32.mrb[0].mxu0
        %v2292 = vadd.f32 0.0, %v2291
        %v2293 = vpop.f32.mrb[0].mxu0
        %2294 = vmatprep.mubr.bf16.mxu0 0
        %2295 = vmatmul.mubr.bf16.gmra.mrb[0].mxu0 %v669
        %v2296 = vpop.f32.mrb[0].mxu0
        %v2297 = vadd.f32 0.0, %v2296
        %v2298 = vpop.f32.mrb[0].mxu0
        %v2299 = vpop.f32.mrb[0].mxu0
        %v2300 = vadd.f32 0.0, %v2299
        %v2301 = vpop.f32.mrb[0].mxu0
        %2302 = vmatprep.mubr.bf16.mxu0 0
        %2303 = vmatmul.mubr.bf16.gmra.mrb[0].mxu0 %v670
        %v2304 = vpop.f32.mrb[0].mxu0
        %v2305 = vadd.f32 0.0, %v2304
        %v2306 = vpop.f32.mrb[0].mxu0
        %v2307 = vpop.f32.mrb[0].mxu0
        %v2308 = vadd.f32 0.0, %v2307
        %v2309 = vpop.f32.mrb[0].mxu0
        %2310 = vmatprep.mubr.bf16.mxu0 0
        %2311 = vmatmul.mubr.bf16.gmra.mrb[0].mxu0 %v671
        %v2312 = vpop.f32.mrb[0].mxu0
        %v2313 = vadd.f32 0.0, %v2312
        %v2314 = vpop.f32.mrb[0].mxu0
        %v2315 = vpop.f32.mrb[0].mxu0
        %v2316 = vadd.f32 0.0, %v2315
        %v2317 = vpop.f32.mrb[0].mxu0
        %2318 = vmatprep.mubr.bf16.mxu0 0
        %2319 = vmatmul.mubr.bf16.gmra.mrb[0].mxu0 %v672
        %v2320 = vpop.f32.mrb[0].mxu0
        %v2321 = vadd.f32 0.0, %v2320
        %v2322 = vpop.f32.mrb[0].mxu0
        %v2323 = vpop.f32.mrb[0].mxu0
        %v2324 = vadd.f32 0.0, %v2323
        %v2325 = vpop.f32.mrb[0].mxu0
        %2326 = vmatprep.mubr.bf16.mxu0 0
        %2327 = vmatmul.mubr.bf16.gmra.mrb[0].mxu0 %v673
        %v2328 = vpop.f32.mrb[0].mxu0
        %v2329 = vadd.f32 0.0, %v2328
        %v2330 = vpop.f32.mrb[0].mxu0
        %v2331 = vpop.f32.mrb[0].mxu0
        %v2332 = vadd.f32 0.0, %v2331
        %v2333 = vpop.f32.mrb[0].mxu0
        %2334 = vmatprep.mubr.bf16.mxu0 0
        %2335 = vmatmul.mubr.bf16.gmra.mrb[0].mxu0 %v674
        %v2336 = vpop.f32.mrb[0].mxu0
        %v2337 = vadd.f32 0.0, %v2336
        %v2338 = vpop.f32.mrb[0].mxu0
        %v2339 = vpop.f32.mrb[0].mxu0
        %v2340 = vadd.f32 0.0, %v2339
        %v2341 = vpop.f32.mrb[0].mxu0
        %2342 = vmatprep.mubr.bf16.mxu0 0
        %2343 = vmatmul.mubr.bf16.gmra.mrb[0].mxu0 %v675
        %v2344 = vpop.f32.mrb[0].mxu0
        %v2345 = vadd.f32 0.0, %v2344
        %v2346 = vpop.f32.mrb[0].mxu0
        %v2347 = vpop.f32.mrb[0].mxu0
        %v2348 = vadd.f32 0.0, %v2347
        %v2349 = vpop.f32.mrb[0].mxu0
        %2350 = vmatprep.mubr.bf16.mxu0 0
        %2351 = vmatmul.mubr.bf16.gmra.mrb[0].mxu0 %v676
        %v2352 = vpop.f32.mrb[0].mxu0
        %v2353 = vadd.f32 0.0, %v2352
        %v2354 = vpop.f32.mrb[0].mxu0
        %v2355 = vpop.f32.mrb[0].mxu0
        %v2356 = vadd.f32 0.0, %v2355
        %v2357 = vpop.f32.mrb[0].mxu0
        %2358 = vmatprep.mubr.bf16.mxu0 0
        %2359 = vmatmul.mubr.bf16.gmra.mrb[0].mxu0 %v677
        %v2360 = vpop.f32.mrb[0].mxu0
        %v2361 = vadd.f32 0.0, %v2360
        %v2362 = vpop.f32.mrb[0].mxu0
        %v2363 = vpop.f32.mrb[0].mxu0
        %v2364 = vadd.f32 0.0, %v2363
        %v2365 = vpop.f32.mrb[0].mxu0
        %2366 = vmatprep.mubr.bf16.mxu0 0
        %2367 = vmatmul.mubr.bf16.gmra.mrb[0].mxu0 %v678
        %v2368 = vpop.f32.mrb[0].mxu0
        %v2369 = vadd.f32 0.0, %v2368
        %v2370 = vpop.f32.mrb[0].mxu0
        %v2371 = vpop.f32.mrb[0].mxu0
        %v2372 = vadd.f32 0.0, %v2371
        %v2373 = vpop.f32.mrb[0].mxu0
        %2374 = vmatprep.mubr.bf16.mxu0 0
        %2375 = vmatmul.mubr.bf16.gmra.mrb[0].mxu0 %v679
        %v2376 = vpop.f32.mrb[0].mxu0
        %v2377 = vadd.f32 0.0, %v2376
        %v2378 = vpop.f32.mrb[0].mxu0
        %v2379 = vpop.f32.mrb[0].mxu0
        %v2380 = vadd.f32 0.0, %v2379
        %v2381 = vpop.f32.mrb[0].mxu0
        %2382 = vmatprep.mubr.bf16.mxu0 0
        %2383 = vmatmul.mubr.bf16.gmra.mrb[0].mxu0 %v680
        %v2384 = vpop.f32.mrb[0].mxu0
        %v2385 = vadd.f32 0.0, %v2384
        %v2386 = vpop.f32.mrb[0].mxu0
        %v2387 = vpop.f32.mrb[0].mxu0
        %v2388 = vadd.f32 0.0, %v2387
        %v2389 = vpop.f32.mrb[0].mxu0
        %2390 = vmatprep.mubr.bf16.mxu0 0
        %2391 = vmatmul.mubr.bf16.gmra.mrb[0].mxu0 %v681
        %v2392 = vpop.f32.mrb[0].mxu0
        %v2393 = vadd.f32 0.0, %v2392
        %v2394 = vpop.f32.mrb[0].mxu0
        %v2395 = vpop.f32.mrb[0].mxu0
        %v2396 = vadd.f32 0.0, %v2395
        %v2397 = vpop.f32.mrb[0].mxu0
        %2398 = vdwg.mxu0
        %s2399 = scalar_lea.vmem %s4, 64
        %v2400 = vld [vmem:[%s2399] sm:$0xf]
        %v2401 = vld [vmem:[%s2399 + $0x4] sm:$0xf]
        %v2402 = vld [vmem:[%s2399 + $0x8] sm:$0xf]
        %v2403 = vld [vmem:[%s2399 + $0xc] sm:$0xf]
        %v2404 = vld [vmem:[%s2399 + $0x10] sm:$0xf]
        %v2405 = vld [vmem:[%s2399 + $0x14] sm:$0xf]
        %v2406 = vld [vmem:[%s2399 + $0x18] sm:$0xf]
        %v2407 = vld [vmem:[%s2399 + $0x1c] sm:$0xf]
        %v2408 = vld [vmem:[%s2399 + $0x20] sm:$0xf]
        %v2409 = vld [vmem:[%s2399 + $0x24] sm:$0xf]
        %v2410 = vld [vmem:[%s2399 + $0x28] sm:$0xf]
        %v2411 = vld [vmem:[%s2399 + $0x2c] sm:$0xf]
        %v2412 = vld [vmem:[%s2399 + $0x30] sm:$0xf]
        %v2413 = vld [vmem:[%s2399 + $0x34] sm:$0xf]
        %v2414 = vld [vmem:[%s2399 + $0x38] sm:$0xf]
        %v2415 = vld [vmem:[%s2399 + $0x3c] sm:$0xf]
        %v2432 = vunpack.c.l.b16 %v2400
        %v2433 = vunpack.c.l.b16 %v2401
        %v2434 = vunpack.c.l.b16 %v2402
        %v2435 = vunpack.c.l.b16 %v2403
        %v2436 = vunpack.c.l.b16 %v2404
        %v2437 = vunpack.c.l.b16 %v2405
        %v2438 = vunpack.c.l.b16 %v2406
        %v2439 = vunpack.c.l.b16 %v2407
        %v2440 = vunpack.c.l.b16 %v2408
        %v2441 = vunpack.c.l.b16 %v2409
        %v2442 = vunpack.c.l.b16 %v2410
        %v2443 = vunpack.c.l.b16 %v2411
        %v2444 = vunpack.c.l.b16 %v2412
        %v2445 = vunpack.c.l.b16 %v2413
        %v2446 = vunpack.c.l.b16 %v2414
        %v2447 = vunpack.c.l.b16 %v2415
        %v2448 = vpack.c.b16 %v2433, %v2432
        %v2449 = vpack.c.b16 %v2435, %v2434
        %v2450 = vpack.c.b16 %v2437, %v2436
        %v2451 = vpack.c.b16 %v2439, %v2438
        %v2452 = vpack.c.b16 %v2441, %v2440
        %v2453 = vpack.c.b16 %v2443, %v2442
        %v2454 = vpack.c.b16 %v2445, %v2444
        %v2455 = vpack.c.b16 %v2447, %v2446
        %2464 = vmatprep.subr.bf16.mxu0 0
        %2465 = vmatpush1.bf16.msra.mxu0 %v2448
        %2466 = vmatprep.subr.bf16.mxu0 0
        %2467 = vmatpush1.bf16.msra.mxu0 %v2449
        %2468 = vmatprep.subr.bf16.mxu0 0
        %2469 = vmatpush1.bf16.msra.mxu0 %v2450
        %2470 = vmatprep.subr.bf16.mxu0 0
        %2471 = vmatpush1.bf16.msra.mxu0 %v2451
        %2472 = vmatprep.subr.bf16.mxu0 0
        %2473 = vmatpush1.bf16.msra.mxu0 %v2452
        %2474 = vmatprep.subr.bf16.mxu0 0
        %2475 = vmatpush1.bf16.msra.mxu0 %v2453
        %2476 = vmatprep.subr.bf16.mxu0 0
        %2477 = vmatpush1.bf16.msra.mxu0 %v2454
        %2478 = vmatprep.subr.bf16.mxu0 0
        %2479 = vmatpush1.bf16.msra.mxu0 %v2455
        %2480 = vmatprep.subr.bf16.mxu0 0
        %2481 = vmatpush1.bf16.msra.mxu0 0
        %2482 = vmatprep.subr.bf16.mxu0 0
        %2483 = vmatpush1.bf16.msra.mxu0 0
        %2484 = vmatprep.subr.bf16.mxu0 0
        %2485 = vmatpush1.bf16.msra.mxu0 0
        %2486 = vmatprep.subr.bf16.mxu0 0
        %2487 = vmatpush1.bf16.msra.mxu0 0
        %2488 = vmatprep.subr.bf16.mxu0 0
        %2489 = vmatpush1.bf16.msra.mxu0 0
        %2490 = vmatprep.subr.bf16.mxu0 0
        %2491 = vmatpush1.bf16.msra.mxu0 0
        %2492 = vmatprep.subr.bf16.mxu0 0
        %2493 = vmatpush1.bf16.msra.mxu0 0
        %2494 = vmatprep.subr.bf16.mxu0 0
        %2495 = vmatpush1.bf16.msra.mxu0 0
        %2496 = vmatprep.mubr.bf16.mxu0 0
        %2497 = vmatmul.mubr.bf16.gmra.mrb[0].mxu0 %v666
        %v2498 = vpop.f32.mrb[0].mxu0
        %v2499 = vadd.f32 0.0, %v2498
        %v2500 = vpop.f32.mrb[0].mxu0
        %v2501 = vpop.f32.mrb[0].mxu0
        %v2502 = vadd.f32 0.0, %v2501
        %v2503 = vpop.f32.mrb[0].mxu0
        %2504 = vmatprep.mubr.bf16.mxu0 0
        %2505 = vmatmul.mubr.bf16.gmra.mrb[0].mxu0 %v667
        %v2506 = vpop.f32.mrb[0].mxu0
        %v2507 = vadd.f32 0.0, %v2506
        %v2508 = vpop.f32.mrb[0].mxu0
        %v2509 = vpop.f32.mrb[0].mxu0
        %v2510 = vadd.f32 0.0, %v2509
        %v2511 = vpop.f32.mrb[0].mxu0
        %2512 = vmatprep.mubr.bf16.mxu0 0
        %2513 = vmatmul.mubr.bf16.gmra.mrb[0].mxu0 %v668
        %v2514 = vpop.f32.mrb[0].mxu0
        %v2515 = vadd.f32 0.0, %v2514
        %v2516 = vpop.f32.mrb[0].mxu0
        %v2517 = vpop.f32.mrb[0].mxu0
        %v2518 = vadd.f32 0.0, %v2517
        %v2519 = vpop.f32.mrb[0].mxu0
        %2520 = vmatprep.mubr.bf16.mxu0 0
        %2521 = vmatmul.mubr.bf16.gmra.mrb[0].mxu0 %v669
        %v2522 = vpop.f32.mrb[0].mxu0
        %v2523 = vadd.f32 0.0, %v2522
        %v2524 = vpop.f32.mrb[0].mxu0
        %v2525 = vpop.f32.mrb[0].mxu0
        %v2526 = vadd.f32 0.0, %v2525
        %v2527 = vpop.f32.mrb[0].mxu0
        %2528 = vmatprep.mubr.bf16.mxu0 0
        %2529 = vmatmul.mubr.bf16.gmra.mrb[0].mxu0 %v670
        %v2530 = vpop.f32.mrb[0].mxu0
        %v2531 = vadd.f32 0.0, %v2530
        %v2532 = vpop.f32.mrb[0].mxu0
        %v2533 = vpop.f32.mrb[0].mxu0
        %v2534 = vadd.f32 0.0, %v2533
        %v2535 = vpop.f32.mrb[0].mxu0
        %2536 = vmatprep.mubr.bf16.mxu0 0
        %2537 = vmatmul.mubr.bf16.gmra.mrb[0].mxu0 %v671
        %v2538 = vpop.f32.mrb[0].mxu0
        %v2539 = vadd.f32 0.0, %v2538
        %v2540 = vpop.f32.mrb[0].mxu0
        %v2541 = vpop.f32.mrb[0].mxu0
        %v2542 = vadd.f32 0.0, %v2541
        %v2543 = vpop.f32.mrb[0].mxu0
        %2544 = vmatprep.mubr.bf16.mxu0 0
        %2545 = vmatmul.mubr.bf16.gmra.mrb[0].mxu0 %v672
        %v2546 = vpop.f32.mrb[0].mxu0
        %v2547 = vadd.f32 0.0, %v2546
        %v2548 = vpop.f32.mrb[0].mxu0
        %v2549 = vpop.f32.mrb[0].mxu0
        %v2550 = vadd.f32 0.0, %v2549
        %v2551 = vpop.f32.mrb[0].mxu0
        %2552 = vmatprep.mubr.bf16.mxu0 0
        %2553 = vmatmul.mubr.bf16.gmra.mrb[0].mxu0 %v673
        %v2554 = vpop.f32.mrb[0].mxu0
        %v2555 = vadd.f32 0.0, %v2554
        %v2556 = vpop.f32.mrb[0].mxu0
        %v2557 = vpop.f32.mrb[0].mxu0
        %v2558 = vadd.f32 0.0, %v2557
        %v2559 = vpop.f32.mrb[0].mxu0
        %2560 = vmatprep.mubr.bf16.mxu0 0
        %2561 = vmatmul.mubr.bf16.gmra.mrb[0].mxu0 %v674
        %v2562 = vpop.f32.mrb[0].mxu0
        %v2563 = vadd.f32 0.0, %v2562
        %v2564 = vpop.f32.mrb[0].mxu0
        %v2565 = vpop.f32.mrb[0].mxu0
        %v2566 = vadd.f32 0.0, %v2565
        %v2567 = vpop.f32.mrb[0].mxu0
        %2568 = vmatprep.mubr.bf16.mxu0 0
        %2569 = vmatmul.mubr.bf16.gmra.mrb[0].mxu0 %v675
        %v2570 = vpop.f32.mrb[0].mxu0
        %v2571 = vadd.f32 0.0, %v2570
        %v2572 = vpop.f32.mrb[0].mxu0
        %v2573 = vpop.f32.mrb[0].mxu0
        %v2574 = vadd.f32 0.0, %v2573
        %v2575 = vpop.f32.mrb[0].mxu0
        %2576 = vmatprep.mubr.bf16.mxu0 0
        %2577 = vmatmul.mubr.bf16.gmra.mrb[0].mxu0 %v676
        %v2578 = vpop.f32.mrb[0].mxu0
        %v2579 = vadd.f32 0.0, %v2578
        %v2580 = vpop.f32.mrb[0].mxu0
        %v2581 = vpop.f32.mrb[0].mxu0
        %v2582 = vadd.f32 0.0, %v2581
        %v2583 = vpop.f32.mrb[0].mxu0
        %2584 = vmatprep.mubr.bf16.mxu0 0
        %2585 = vmatmul.mubr.bf16.gmra.mrb[0].mxu0 %v677
        %v2586 = vpop.f32.mrb[0].mxu0
        %v2587 = vadd.f32 0.0, %v2586
        %v2588 = vpop.f32.mrb[0].mxu0
        %v2589 = vpop.f32.mrb[0].mxu0
        %v2590 = vadd.f32 0.0, %v2589
        %v2591 = vpop.f32.mrb[0].mxu0
        %2592 = vmatprep.mubr.bf16.mxu0 0
        %2593 = vmatmul.mubr.bf16.gmra.mrb[0].mxu0 %v678
        %v2594 = vpop.f32.mrb[0].mxu0
        %v2595 = vadd.f32 0.0, %v2594
        %v2596 = vpop.f32.mrb[0].mxu0
        %v2597 = vpop.f32.mrb[0].mxu0
        %v2598 = vadd.f32 0.0, %v2597
        %v2599 = vpop.f32.mrb[0].mxu0
        %2600 = vmatprep.mubr.bf16.mxu0 0
        %2601 = vmatmul.mubr.bf16.gmra.mrb[0].mxu0 %v679
        %v2602 = vpop.f32.mrb[0].mxu0
        %v2603 = vadd.f32 0.0, %v2602
        %v2604 = vpop.f32.mrb[0].mxu0
        %v2605 = vpop.f32.mrb[0].mxu0
        %v2606 = vadd.f32 0.0, %v2605
        %v2607 = vpop.f32.mrb[0].mxu0
        %2608 = vmatprep.mubr.bf16.mxu0 0
        %2609 = vmatmul.mubr.bf16.gmra.mrb[0].mxu0 %v680
        %v2610 = vpop.f32.mrb[0].mxu0
        %v2611 = vadd.f32 0.0, %v2610
        %v2612 = vpop.f32.mrb[0].mxu0
        %v2613 = vpop.f32.mrb[0].mxu0
        %v2614 = vadd.f32 0.0, %v2613
        %v2615 = vpop.f32.mrb[0].mxu0
        %2616 = vmatprep.mubr.bf16.mxu0 0
        %2617 = vmatmul.mubr.bf16.gmra.mrb[0].mxu0 %v681
        %v2618 = vpop.f32.mrb[0].mxu0
        %v2619 = vadd.f32 0.0, %v2618
        %v2620 = vpop.f32.mrb[0].mxu0
        %v2621 = vpop.f32.mrb[0].mxu0
        %v2622 = vadd.f32 0.0, %v2621
        %v2623 = vpop.f32.mrb[0].mxu0
        %2624 = vdwg.mxu0
        %v2625 = vmul.f32 %v2111, %v2111
        %v2626 = vmul.f32 %v2114, %v2114
        %v2627 = vmul.f32 %v2119, %v2119
        %v2628 = vmul.f32 %v2122, %v2122
        %v2629 = vmul.f32 %v2127, %v2127
        %v2630 = vmul.f32 %v2130, %v2130
        %v2631 = vmul.f32 %v2135, %v2135
        %v2632 = vmul.f32 %v2138, %v2138
        %v2633 = vmul.f32 %v2143, %v2143
        %v2634 = vmul.f32 %v2146, %v2146
        %v2635 = vmul.f32 %v2151, %v2151
        %v2636 = vmul.f32 %v2154, %v2154
        %v2637 = vmul.f32 %v2159, %v2159
        %v2638 = vmul.f32 %v2162, %v2162
        %v2639 = vmul.f32 %v2167, %v2167
        %v2640 = vmul.f32 %v2170, %v2170
        %v2641 = vsel %vm1148, %v2625, 0.0
        %2642 = vadd.xlane.f32.xlu0 %v2641
        %v2643 = vpop.xlane.xlu0 %2642
        %v2644 = vsel %vm1148, %v2626, 0.0
        %2645 = vadd.xlane.f32.xlu0 %v2644
        %v2646 = vpop.xlane.xlu0 %2645
        %v2647 = vsel %vm1148, %v2627, 0.0
        %2648 = vadd.xlane.f32.xlu0 %v2647
        %v2649 = vpop.xlane.xlu0 %2648
        %v2650 = vsel %vm1148, %v2628, 0.0
        %2651 = vadd.xlane.f32.xlu0 %v2650
        %v2652 = vpop.xlane.xlu0 %2651
        %v2653 = vsel %vm1148, %v2629, 0.0
        %2654 = vadd.xlane.f32.xlu0 %v2653
        %v2655 = vpop.xlane.xlu0 %2654
        %v2656 = vsel %vm1148, %v2630, 0.0
        %2657 = vadd.xlane.f32.xlu0 %v2656
        %v2658 = vpop.xlane.xlu0 %2657
        %v2659 = vsel %vm1148, %v2631, 0.0
        %2660 = vadd.xlane.f32.xlu0 %v2659
        %v2661 = vpop.xlane.xlu0 %2660
        %v2662 = vsel %vm1148, %v2632, 0.0
        %2663 = vadd.xlane.f32.xlu0 %v2662
        %v2664 = vpop.xlane.xlu0 %2663
        %v2665 = vsel %vm1148, %v2633, 0.0
        %2666 = vadd.xlane.f32.xlu0 %v2665
        %v2667 = vpop.xlane.xlu0 %2666
        %v2668 = vsel %vm1148, %v2634, 0.0
        %2669 = vadd.xlane.f32.xlu0 %v2668
        %v2670 = vpop.xlane.xlu0 %2669
        %v2671 = vsel %vm1148, %v2635, 0.0
        %2672 = vadd.xlane.f32.xlu0 %v2671
        %v2673 = vpop.xlane.xlu0 %2672
        %v2674 = vsel %vm1148, %v2636, 0.0
        %2675 = vadd.xlane.f32.xlu0 %v2674
        %v2676 = vpop.xlane.xlu0 %2675
        %v2677 = vsel %vm1148, %v2637, 0.0
        %2678 = vadd.xlane.f32.xlu0 %v2677
        %v2679 = vpop.xlane.xlu0 %2678
        %v2680 = vsel %vm1148, %v2638, 0.0
        %2681 = vadd.xlane.f32.xlu0 %v2680
        %v2682 = vpop.xlane.xlu0 %2681
        %v2683 = vsel %vm1148, %v2639, 0.0
        %2684 = vadd.xlane.f32.xlu0 %v2683
        %v2685 = vpop.xlane.xlu0 %2684
        %v2686 = vsel %vm1148, %v2640, 0.0
        %2687 = vadd.xlane.f32.xlu0 %v2686
        %v2688 = vpop.xlane.xlu0 %2687
        %v2689 = vmax.f32 %v2643, 1e-24
        %v2690 = vmax.f32 %v2646, 1e-24
        %v2691 = vmax.f32 %v2649, 1e-24
        %v2692 = vmax.f32 %v2652, 1e-24
        %v2693 = vmax.f32 %v2655, 1e-24
        %v2694 = vmax.f32 %v2658, 1e-24
        %v2695 = vmax.f32 %v2661, 1e-24
        %v2696 = vmax.f32 %v2664, 1e-24
        %v2697 = vmax.f32 %v2667, 1e-24
        %v2698 = vmax.f32 %v2670, 1e-24
        %v2699 = vmax.f32 %v2673, 1e-24
        %v2700 = vmax.f32 %v2676, 1e-24
        %v2701 = vmax.f32 %v2679, 1e-24
        %v2702 = vmax.f32 %v2682, 1e-24
        %v2703 = vmax.f32 %v2685, 1e-24
        %v2704 = vmax.f32 %v2688, 1e-24
        %v2705 = vrsqrt.pop %v2689
        %v2706 = vrsqrt.pop %v2690
        %v2707 = vrsqrt.pop %v2691
        %v2708 = vrsqrt.pop %v2692
        %v2709 = vrsqrt.pop %v2693
        %v2710 = vrsqrt.pop %v2694
        %v2711 = vrsqrt.pop %v2695
        %v2712 = vrsqrt.pop %v2696
        %v2713 = vrsqrt.pop %v2697
        %v2714 = vrsqrt.pop %v2698
        %v2715 = vrsqrt.pop %v2699
        %v2716 = vrsqrt.pop %v2700
        %v2717 = vrsqrt.pop %v2701
        %v2718 = vrsqrt.pop %v2702
        %v2719 = vrsqrt.pop %v2703
        %v2720 = vrsqrt.pop %v2704
        %v2721 = vmul.f32 %v2705, 10.0
        %v2722 = vmul.f32 %v2706, 10.0
        %v2723 = vmul.f32 %v2707, 10.0
        %v2724 = vmul.f32 %v2708, 10.0
        %v2725 = vmul.f32 %v2709, 10.0
        %v2726 = vmul.f32 %v2710, 10.0
        %v2727 = vmul.f32 %v2711, 10.0
        %v2728 = vmul.f32 %v2712, 10.0
        %v2729 = vmul.f32 %v2713, 10.0
        %v2730 = vmul.f32 %v2714, 10.0
        %v2731 = vmul.f32 %v2715, 10.0
        %v2732 = vmul.f32 %v2716, 10.0
        %v2733 = vmul.f32 %v2717, 10.0
        %v2734 = vmul.f32 %v2718, 10.0
        %v2735 = vmul.f32 %v2719, 10.0
        %v2736 = vmul.f32 %v2720, 10.0
        %v2737 = vmul.f32 %v2111, %v2721
        %v2738 = vmul.f32 %v2114, %v2722
        %v2739 = vmul.f32 %v2119, %v2723
        %v2740 = vmul.f32 %v2122, %v2724
        %v2741 = vmul.f32 %v2127, %v2725
        %v2742 = vmul.f32 %v2130, %v2726
        %v2743 = vmul.f32 %v2135, %v2727
        %v2744 = vmul.f32 %v2138, %v2728
        %v2745 = vmul.f32 %v2143, %v2729
        %v2746 = vmul.f32 %v2146, %v2730
        %v2747 = vmul.f32 %v2151, %v2731
        %v2748 = vmul.f32 %v2154, %v2732
        %v2749 = vmul.f32 %v2159, %v2733
        %v2750 = vmul.f32 %v2162, %v2734
        %v2751 = vmul.f32 %v2167, %v2735
        %v2752 = vmul.f32 %v2170, %v2736
        %v2753 = vmul.f32 %v2273, %v2273
        %v2754 = vmul.f32 %v2276, %v2276
        %v2755 = vmul.f32 %v2281, %v2281
        %v2756 = vmul.f32 %v2284, %v2284
        %v2757 = vmul.f32 %v2289, %v2289
        %v2758 = vmul.f32 %v2292, %v2292
        %v2759 = vmul.f32 %v2297, %v2297
        %v2760 = vmul.f32 %v2300, %v2300
        %v2761 = vmul.f32 %v2305, %v2305
        %v2762 = vmul.f32 %v2308, %v2308
        %v2763 = vmul.f32 %v2313, %v2313
        %v2764 = vmul.f32 %v2316, %v2316
        %v2765 = vmul.f32 %v2321, %v2321
        %v2766 = vmul.f32 %v2324, %v2324
        %v2767 = vmul.f32 %v2329, %v2329
        %v2768 = vmul.f32 %v2332, %v2332
        %v2769 = vmul.f32 %v2337, %v2337
        %v2770 = vmul.f32 %v2340, %v2340
        %v2771 = vmul.f32 %v2345, %v2345
        %v2772 = vmul.f32 %v2348, %v2348
        %v2773 = vmul.f32 %v2353, %v2353
        %v2774 = vmul.f32 %v2356, %v2356
        %v2775 = vmul.f32 %v2361, %v2361
        %v2776 = vmul.f32 %v2364, %v2364
        %v2777 = vmul.f32 %v2369, %v2369
        %v2778 = vmul.f32 %v2372, %v2372
        %v2779 = vmul.f32 %v2377, %v2377
        %v2780 = vmul.f32 %v2380, %v2380
        %v2781 = vmul.f32 %v2385, %v2385
        %v2782 = vmul.f32 %v2388, %v2388
        %v2783 = vmul.f32 %v2393, %v2393
        %v2784 = vmul.f32 %v2396, %v2396
        %v2785 = vsel %vm1148, %v2753, 0.0
        %2786 = vadd.xlane.f32.xlu0 %v2785
        %v2787 = vpop.xlane.xlu0 %2786
        %v2788 = vsel %vm1148, %v2754, 0.0
        %2789 = vadd.xlane.f32.xlu0 %v2788
        %v2790 = vpop.xlane.xlu0 %2789
        %v2791 = vsel %vm1148, %v2755, 0.0
        %2792 = vadd.xlane.f32.xlu0 %v2791
        %v2793 = vpop.xlane.xlu0 %2792
        %v2794 = vsel %vm1148, %v2756, 0.0
        %2795 = vadd.xlane.f32.xlu0 %v2794
        %v2796 = vpop.xlane.xlu0 %2795
        %v2797 = vsel %vm1148, %v2757, 0.0
        %2798 = vadd.xlane.f32.xlu0 %v2797
        %v2799 = vpop.xlane.xlu0 %2798
        %v2800 = vsel %vm1148, %v2758, 0.0
        %2801 = vadd.xlane.f32.xlu0 %v2800
        %v2802 = vpop.xlane.xlu0 %2801
        %v2803 = vsel %vm1148, %v2759, 0.0
        %2804 = vadd.xlane.f32.xlu0 %v2803
        %v2805 = vpop.xlane.xlu0 %2804
        %v2806 = vsel %vm1148, %v2760, 0.0
        %2807 = vadd.xlane.f32.xlu0 %v2806
        %v2808 = vpop.xlane.xlu0 %2807
        %v2809 = vsel %vm1148, %v2761, 0.0
        %2810 = vadd.xlane.f32.xlu0 %v2809
        %v2811 = vpop.xlane.xlu0 %2810
        %v2812 = vsel %vm1148, %v2762, 0.0
        %2813 = vadd.xlane.f32.xlu0 %v2812
        %v2814 = vpop.xlane.xlu0 %2813
        %v2815 = vsel %vm1148, %v2763, 0.0
        %2816 = vadd.xlane.f32.xlu0 %v2815
        %v2817 = vpop.xlane.xlu0 %2816
        %v2818 = vsel %vm1148, %v2764, 0.0
        %2819 = vadd.xlane.f32.xlu0 %v2818
        %v2820 = vpop.xlane.xlu0 %2819
        %v2821 = vsel %vm1148, %v2765, 0.0
        %2822 = vadd.xlane.f32.xlu0 %v2821
        %v2823 = vpop.xlane.xlu0 %2822
        %v2824 = vsel %vm1148, %v2766, 0.0
        %2825 = vadd.xlane.f32.xlu0 %v2824
        %v2826 = vpop.xlane.xlu0 %2825
        %v2827 = vsel %vm1148, %v2767, 0.0
        %2828 = vadd.xlane.f32.xlu0 %v2827
        %v2829 = vpop.xlane.xlu0 %2828
        %v2830 = vsel %vm1148, %v2768, 0.0
        %2831 = vadd.xlane.f32.xlu0 %v2830
        %v2832 = vpop.xlane.xlu0 %2831
        %v2833 = vsel %vm1148, %v2769, 0.0
        %2834 = vadd.xlane.f32.xlu0 %v2833
        %v2835 = vpop.xlane.xlu0 %2834
        %v2836 = vsel %vm1148, %v2770, 0.0
        %2837 = vadd.xlane.f32.xlu0 %v2836
        %v2838 = vpop.xlane.xlu0 %2837
        %v2839 = vsel %vm1148, %v2771, 0.0
        %2840 = vadd.xlane.f32.xlu0 %v2839
        %v2841 = vpop.xlane.xlu0 %2840
        %v2842 = vsel %vm1148, %v2772, 0.0
        %2843 = vadd.xlane.f32.xlu0 %v2842
        %v2844 = vpop.xlane.xlu0 %2843
        %v2845 = vsel %vm1148, %v2773, 0.0
        %2846 = vadd.xlane.f32.xlu0 %v2845
        %v2847 = vpop.xlane.xlu0 %2846
        %v2848 = vsel %vm1148, %v2774, 0.0
        %2849 = vadd.xlane.f32.xlu0 %v2848
        %v2850 = vpop.xlane.xlu0 %2849
        %v2851 = vsel %vm1148, %v2775, 0.0
        %2852 = vadd.xlane.f32.xlu0 %v2851
        %v2853 = vpop.xlane.xlu0 %2852
        %v2854 = vsel %vm1148, %v2776, 0.0
        %2855 = vadd.xlane.f32.xlu0 %v2854
        %v2856 = vpop.xlane.xlu0 %2855
        %v2857 = vsel %vm1148, %v2777, 0.0
        %2858 = vadd.xlane.f32.xlu0 %v2857
        %v2859 = vpop.xlane.xlu0 %2858
        %v2860 = vsel %vm1148, %v2778, 0.0
        %2861 = vadd.xlane.f32.xlu0 %v2860
        %v2862 = vpop.xlane.xlu0 %2861
        %v2863 = vsel %vm1148, %v2779, 0.0
        %2864 = vadd.xlane.f32.xlu0 %v2863
        %v2865 = vpop.xlane.xlu0 %2864
        %v2866 = vsel %vm1148, %v2780, 0.0
        %2867 = vadd.xlane.f32.xlu0 %v2866
        %v2868 = vpop.xlane.xlu0 %2867
        %v2869 = vsel %vm1148, %v2781, 0.0
        %2870 = vadd.xlane.f32.xlu0 %v2869
        %v2871 = vpop.xlane.xlu0 %2870
        %v2872 = vsel %vm1148, %v2782, 0.0
        %2873 = vadd.xlane.f32.xlu0 %v2872
        %v2874 = vpop.xlane.xlu0 %2873
        %v2875 = vsel %vm1148, %v2783, 0.0
        %2876 = vadd.xlane.f32.xlu0 %v2875
        %v2877 = vpop.xlane.xlu0 %2876
        %v2878 = vsel %vm1148, %v2784, 0.0
        %2879 = vadd.xlane.f32.xlu0 %v2878
        %v2880 = vpop.xlane.xlu0 %2879
        %v2881 = vmax.f32 %v2787, 1e-24
        %v2882 = vmax.f32 %v2790, 1e-24
        %v2883 = vmax.f32 %v2793, 1e-24
        %v2884 = vmax.f32 %v2796, 1e-24
        %v2885 = vmax.f32 %v2799, 1e-24
        %v2886 = vmax.f32 %v2802, 1e-24
        %v2887 = vmax.f32 %v2805, 1e-24
        %v2888 = vmax.f32 %v2808, 1e-24
        %v2889 = vmax.f32 %v2811, 1e-24
        %v2890 = vmax.f32 %v2814, 1e-24
        %v2891 = vmax.f32 %v2817, 1e-24
        %v2892 = vmax.f32 %v2820, 1e-24
        %v2893 = vmax.f32 %v2823, 1e-24
        %v2894 = vmax.f32 %v2826, 1e-24
        %v2895 = vmax.f32 %v2829, 1e-24
        %v2896 = vmax.f32 %v2832, 1e-24
        %v2897 = vmax.f32 %v2835, 1e-24
        %v2898 = vmax.f32 %v2838, 1e-24
        %v2899 = vmax.f32 %v2841, 1e-24
        %v2900 = vmax.f32 %v2844, 1e-24
        %v2901 = vmax.f32 %v2847, 1e-24
        %v2902 = vmax.f32 %v2850, 1e-24
        %v2903 = vmax.f32 %v2853, 1e-24
        %v2904 = vmax.f32 %v2856, 1e-24
        %v2905 = vmax.f32 %v2859, 1e-24
        %v2906 = vmax.f32 %v2862, 1e-24
        %v2907 = vmax.f32 %v2865, 1e-24
        %v2908 = vmax.f32 %v2868, 1e-24
        %v2909 = vmax.f32 %v2871, 1e-24
        %v2910 = vmax.f32 %v2874, 1e-24
        %v2911 = vmax.f32 %v2877, 1e-24
        %v2912 = vmax.f32 %v2880, 1e-24
        %v2913 = vrsqrt.pop %v2881
        %v2914 = vrsqrt.pop %v2882
        %v2915 = vrsqrt.pop %v2883
        %v2916 = vrsqrt.pop %v2884
        %v2917 = vrsqrt.pop %v2885
        %v2918 = vrsqrt.pop %v2886
        %v2919 = vrsqrt.pop %v2887
        %v2920 = vrsqrt.pop %v2888
        %v2921 = vrsqrt.pop %v2889
        %v2922 = vrsqrt.pop %v2890
        %v2923 = vrsqrt.pop %v2891
        %v2924 = vrsqrt.pop %v2892
        %v2925 = vrsqrt.pop %v2893
        %v2926 = vrsqrt.pop %v2894
        %v2927 = vrsqrt.pop %v2895
        %v2928 = vrsqrt.pop %v2896
        %v2929 = vrsqrt.pop %v2897
        %v2930 = vrsqrt.pop %v2898
        %v2931 = vrsqrt.pop %v2899
        %v2932 = vrsqrt.pop %v2900
        %v2933 = vrsqrt.pop %v2901
        %v2934 = vrsqrt.pop %v2902
        %v2935 = vrsqrt.pop %v2903
        %v2936 = vrsqrt.pop %v2904
        %v2937 = vrsqrt.pop %v2905
        %v2938 = vrsqrt.pop %v2906
        %v2939 = vrsqrt.pop %v2907
        %v2940 = vrsqrt.pop %v2908
        %v2941 = vrsqrt.pop %v2909
        %v2942 = vrsqrt.pop %v2910
        %v2943 = vrsqrt.pop %v2911
        %v2944 = vrsqrt.pop %v2912
        %v2945 = vmul.f32 %v2273, %v2913
        %v2946 = vmul.f32 %v2276, %v2914
        %v2947 = vmul.f32 %v2281, %v2915
        %v2948 = vmul.f32 %v2284, %v2916
        %v2949 = vmul.f32 %v2289, %v2917
        %v2950 = vmul.f32 %v2292, %v2918
        %v2951 = vmul.f32 %v2297, %v2919
        %v2952 = vmul.f32 %v2300, %v2920
        %v2953 = vmul.f32 %v2305, %v2921
        %v2954 = vmul.f32 %v2308, %v2922
        %v2955 = vmul.f32 %v2313, %v2923
        %v2956 = vmul.f32 %v2316, %v2924
        %v2957 = vmul.f32 %v2321, %v2925
        %v2958 = vmul.f32 %v2324, %v2926
        %v2959 = vmul.f32 %v2329, %v2927
        %v2960 = vmul.f32 %v2332, %v2928
        %v2961 = vmul.f32 %v2337, %v2929
        %v2962 = vmul.f32 %v2340, %v2930
        %v2963 = vmul.f32 %v2345, %v2931
        %v2964 = vmul.f32 %v2348, %v2932
        %v2965 = vmul.f32 %v2353, %v2933
        %v2966 = vmul.f32 %v2356, %v2934
        %v2967 = vmul.f32 %v2361, %v2935
        %v2968 = vmul.f32 %v2364, %v2936
        %v2969 = vmul.f32 %v2369, %v2937
        %v2970 = vmul.f32 %v2372, %v2938
        %v2971 = vmul.f32 %v2377, %v2939
        %v2972 = vmul.f32 %v2380, %v2940
        %v2973 = vmul.f32 %v2385, %v2941
        %v2974 = vmul.f32 %v2388, %v2942
        %v2975 = vmul.f32 %v2393, %v2943
        %v2976 = vmul.f32 %v2396, %v2944
        %v2977 = vpack.c.bf16 %v2738, %v2737
        %v2978 = vpack.c.bf16 %v2740, %v2739
        %v2979 = vpack.c.bf16 %v2742, %v2741
        %v2980 = vpack.c.bf16 %v2744, %v2743
        %v2981 = vpack.c.bf16 %v2746, %v2745
        %v2982 = vpack.c.bf16 %v2748, %v2747
        %v2983 = vpack.c.bf16 %v2750, %v2749
        %v2984 = vpack.c.bf16 %v2752, %v2751
        %v2985 = vpack.c.bf16 %v2946, %v2945
        %v2986 = vpack.c.bf16 %v2948, %v2947
        %v2987 = vpack.c.bf16 %v2950, %v2949
        %v2988 = vpack.c.bf16 %v2952, %v2951
        %v2989 = vpack.c.bf16 %v2954, %v2953
        %v2990 = vpack.c.bf16 %v2956, %v2955
        %v2991 = vpack.c.bf16 %v2958, %v2957
        %v2992 = vpack.c.bf16 %v2960, %v2959
        %v2993 = vpack.c.bf16 %v2962, %v2961
        %v2994 = vpack.c.bf16 %v2964, %v2963
        %v2995 = vpack.c.bf16 %v2966, %v2965
        %v2996 = vpack.c.bf16 %v2968, %v2967
        %v2997 = vpack.c.bf16 %v2970, %v2969
        %v2998 = vpack.c.bf16 %v2972, %v2971
        %v2999 = vpack.c.bf16 %v2974, %v2973
        %v3000 = vpack.c.bf16 %v2976, %v2975
        %v3002 = vsel %vm1148, %v2977, 0
        %v3005 = vsel %vm1148, %v2978, 0
        %v3008 = vsel %vm1148, %v2979, 0
        %v3011 = vsel %vm1148, %v2980, 0
        %v3014 = vsel %vm1148, %v2981, 0
        %v3017 = vsel %vm1148, %v2982, 0
        %v3020 = vsel %vm1148, %v2983, 0
        %v3023 = vsel %vm1148, %v2984, 0
        %v3026 = vsel %vm1148, %v2985, 0
        %v3029 = vsel %vm1148, %v2986, 0
        %v3032 = vsel %vm1148, %v2987, 0
        %v3035 = vsel %vm1148, %v2988, 0
        %v3038 = vsel %vm1148, %v2989, 0
        %v3041 = vsel %vm1148, %v2990, 0
        %v3044 = vsel %vm1148, %v2991, 0
        %v3047 = vsel %vm1148, %v2992, 0
        %v3050 = vsel %vm1148, %v2993, 0
        %v3053 = vsel %vm1148, %v2994, 0
        %v3056 = vsel %vm1148, %v2995, 0
        %v3059 = vsel %vm1148, %v2996, 0
        %v3062 = vsel %vm1148, %v2997, 0
        %v3065 = vsel %vm1148, %v2998, 0
        %v3068 = vsel %vm1148, %v2999, 0
        %v3071 = vsel %vm1148, %v3000, 0
        %3073 = vmatprep.subr.bf16.mxu0 0
        %3074 = vmatpush1.bf16.xpose.msra.mxu0 %v3026
        %3075 = vmatprep.subr.bf16.mxu0 0
        %3076 = vmatpush1.bf16.xpose.msra.mxu0 %v3029
        %3077 = vmatprep.subr.bf16.mxu0 0
        %3078 = vmatpush1.bf16.xpose.msra.mxu0 %v3032
        %3079 = vmatprep.subr.bf16.mxu0 0
        %3080 = vmatpush1.bf16.xpose.msra.mxu0 %v3035
        %3081 = vmatprep.subr.bf16.mxu0 0
        %3082 = vmatpush1.bf16.xpose.msra.mxu0 %v3038
        %3083 = vmatprep.subr.bf16.mxu0 0
        %3084 = vmatpush1.bf16.xpose.msra.mxu0 %v3041
        %3085 = vmatprep.subr.bf16.mxu0 0
        %3086 = vmatpush1.bf16.xpose.msra.mxu0 %v3044
        %3087 = vmatprep.subr.bf16.mxu0 0
        %3088 = vmatpush1.bf16.xpose.msra.mxu0 %v3047
        %3089 = vmatprep.subr.bf16.mxu0 0
        %3090 = vmatpush1.bf16.xpose.msra.mxu0 %v3050
        %3091 = vmatprep.subr.bf16.mxu0 0
        %3092 = vmatpush1.bf16.xpose.msra.mxu0 %v3053
        %3093 = vmatprep.subr.bf16.mxu0 0
        %3094 = vmatpush1.bf16.xpose.msra.mxu0 %v3056
        %3095 = vmatprep.subr.bf16.mxu0 0
        %3096 = vmatpush1.bf16.xpose.msra.mxu0 %v3059
        %3097 = vmatprep.subr.bf16.mxu0 0
        %3098 = vmatpush1.bf16.xpose.msra.mxu0 %v3062
        %3099 = vmatprep.subr.bf16.mxu0 0
        %3100 = vmatpush1.bf16.xpose.msra.mxu0 %v3065
        %3101 = vmatprep.subr.bf16.mxu0 0
        %3102 = vmatpush1.bf16.xpose.msra.mxu0 %v3068
        %3103 = vmatprep.subr.bf16.mxu0 0
        %3104 = vmatpush1.bf16.xpose.msra.mxu0 %v3071
        %3105 = vmatprep.mubr.bf16.mxu0 0
        %3106 = vmatmul.mubr.bf16.gmra.mrb[0].mxu0 %v3002
        %v3107 = vpop.f32.mrb[0].mxu0
        %v3108 = vadd.f32 0.0, %v3107
        %v3109 = vpop.f32.mrb[0].mxu0
        %v3110 = vadd.f32 0.0, %v3109
        %v3111 = vpop.f32.mrb[0].mxu0
        %v3112 = vadd.f32 0.0, %v3111
        %v3113 = vpop.f32.mrb[0].mxu0
        %v3114 = vadd.f32 0.0, %v3113
        %3115 = vmatprep.mubr.bf16.mxu0 0
        %3116 = vmatmul.mubr.bf16.gmra.mrb[0].mxu0 %v3005
        %v3117 = vpop.f32.mrb[0].mxu0
        %v3118 = vadd.f32 0.0, %v3117
        %v3119 = vpop.f32.mrb[0].mxu0
        %v3120 = vadd.f32 0.0, %v3119
        %v3121 = vpop.f32.mrb[0].mxu0
        %v3122 = vadd.f32 0.0, %v3121
        %v3123 = vpop.f32.mrb[0].mxu0
        %v3124 = vadd.f32 0.0, %v3123
        %3125 = vmatprep.mubr.bf16.mxu0 0
        %3126 = vmatmul.mubr.bf16.gmra.mrb[0].mxu0 %v3008
        %v3127 = vpop.f32.mrb[0].mxu0
        %v3128 = vadd.f32 0.0, %v3127
        %v3129 = vpop.f32.mrb[0].mxu0
        %v3130 = vadd.f32 0.0, %v3129
        %v3131 = vpop.f32.mrb[0].mxu0
        %v3132 = vadd.f32 0.0, %v3131
        %v3133 = vpop.f32.mrb[0].mxu0
        %v3134 = vadd.f32 0.0, %v3133
        %3135 = vmatprep.mubr.bf16.mxu0 0
        %3136 = vmatmul.mubr.bf16.gmra.mrb[0].mxu0 %v3011
        %v3137 = vpop.f32.mrb[0].mxu0
        %v3138 = vadd.f32 0.0, %v3137
        %v3139 = vpop.f32.mrb[0].mxu0
        %v3140 = vadd.f32 0.0, %v3139
        %v3141 = vpop.f32.mrb[0].mxu0
        %v3142 = vadd.f32 0.0, %v3141
        %v3143 = vpop.f32.mrb[0].mxu0
        %v3144 = vadd.f32 0.0, %v3143
        %3145 = vmatprep.mubr.bf16.mxu0 0
        %3146 = vmatmul.mubr.bf16.gmra.mrb[0].mxu0 %v3014
        %v3147 = vpop.f32.mrb[0].mxu0
        %v3148 = vadd.f32 0.0, %v3147
        %v3149 = vpop.f32.mrb[0].mxu0
        %v3150 = vadd.f32 0.0, %v3149
        %v3151 = vpop.f32.mrb[0].mxu0
        %v3152 = vadd.f32 0.0, %v3151
        %v3153 = vpop.f32.mrb[0].mxu0
        %v3154 = vadd.f32 0.0, %v3153
        %3155 = vmatprep.mubr.bf16.mxu0 0
        %3156 = vmatmul.mubr.bf16.gmra.mrb[0].mxu0 %v3017
        %v3157 = vpop.f32.mrb[0].mxu0
        %v3158 = vadd.f32 0.0, %v3157
        %v3159 = vpop.f32.mrb[0].mxu0
        %v3160 = vadd.f32 0.0, %v3159
        %v3161 = vpop.f32.mrb[0].mxu0
        %v3162 = vadd.f32 0.0, %v3161
        %v3163 = vpop.f32.mrb[0].mxu0
        %v3164 = vadd.f32 0.0, %v3163
        %3165 = vmatprep.mubr.bf16.mxu0 0
        %3166 = vmatmul.mubr.bf16.gmra.mrb[0].mxu0 %v3020
        %v3167 = vpop.f32.mrb[0].mxu0
        %v3168 = vadd.f32 0.0, %v3167
        %v3169 = vpop.f32.mrb[0].mxu0
        %v3170 = vadd.f32 0.0, %v3169
        %v3171 = vpop.f32.mrb[0].mxu0
        %v3172 = vadd.f32 0.0, %v3171
        %v3173 = vpop.f32.mrb[0].mxu0
        %v3174 = vadd.f32 0.0, %v3173
        %3175 = vmatprep.mubr.bf16.mxu0 0
        %3176 = vmatmul.mubr.bf16.gmra.mrb[0].mxu0 %v3023
        %v3177 = vpop.f32.mrb[0].mxu0
        %v3178 = vadd.f32 0.0, %v3177
        %v3179 = vpop.f32.mrb[0].mxu0
        %v3180 = vadd.f32 0.0, %v3179
        %v3181 = vpop.f32.mrb[0].mxu0
        %v3182 = vadd.f32 0.0, %v3181
        %v3183 = vpop.f32.mrb[0].mxu0
        %v3184 = vadd.f32 0.0, %v3183
        %3185 = vdwg.mxu0
        %v3186 = vsub.f32 %v3108, 10.0
        %v3187 = vsub.f32 %v3110, 10.0
        %v3188 = vsub.f32 %v3112, 10.0
        %v3189 = vsub.f32 %v3114, 10.0
        %v3190 = vsub.f32 %v3118, 10.0
        %v3191 = vsub.f32 %v3120, 10.0
        %v3192 = vsub.f32 %v3122, 10.0
        %v3193 = vsub.f32 %v3124, 10.0
        %v3194 = vsub.f32 %v3128, 10.0
        %v3195 = vsub.f32 %v3130, 10.0
        %v3196 = vsub.f32 %v3132, 10.0
        %v3197 = vsub.f32 %v3134, 10.0
        %v3198 = vsub.f32 %v3138, 10.0
        %v3199 = vsub.f32 %v3140, 10.0
        %v3200 = vsub.f32 %v3142, 10.0
        %v3201 = vsub.f32 %v3144, 10.0
        %v3202 = vsub.f32 %v3148, 10.0
        %v3203 = vsub.f32 %v3150, 10.0
        %v3204 = vsub.f32 %v3152, 10.0
        %v3205 = vsub.f32 %v3154, 10.0
        %v3206 = vsub.f32 %v3158, 10.0
        %v3207 = vsub.f32 %v3160, 10.0
        %v3208 = vsub.f32 %v3162, 10.0
        %v3209 = vsub.f32 %v3164, 10.0
        %v3210 = vsub.f32 %v3168, 10.0
        %v3211 = vsub.f32 %v3170, 10.0
        %v3212 = vsub.f32 %v3172, 10.0
        %v3213 = vsub.f32 %v3174, 10.0
        %v3214 = vsub.f32 %v3178, 10.0
        %v3215 = vsub.f32 %v3180, 10.0
        %v3216 = vsub.f32 %v3182, 10.0
        %v3217 = vsub.f32 %v3184, 10.0
        %v3218 = vmul.f32 %v3186, 1.442695
        %v3219 = vpow.pop %v3218
        %v3220 = vmul.f32 %v3187, 1.442695
        %v3221 = vpow.pop %v3220
        %v3222 = vmul.f32 %v3188, 1.442695
        %v3223 = vpow.pop %v3222
        %v3224 = vmul.f32 %v3189, 1.442695
        %v3225 = vpow.pop %v3224
        %v3226 = vmul.f32 %v3190, 1.442695
        %v3227 = vpow.pop %v3226
        %v3228 = vmul.f32 %v3191, 1.442695
        %v3229 = vpow.pop %v3228
        %v3230 = vmul.f32 %v3192, 1.442695
        %v3231 = vpow.pop %v3230
        %v3232 = vmul.f32 %v3193, 1.442695
        %v3233 = vpow.pop %v3232
        %v3234 = vmul.f32 %v3194, 1.442695
        %v3235 = vpow.pop %v3234
        %v3236 = vmul.f32 %v3195, 1.442695
        %v3237 = vpow.pop %v3236
        %v3238 = vmul.f32 %v3196, 1.442695
        %v3239 = vpow.pop %v3238
        %v3240 = vmul.f32 %v3197, 1.442695
        %v3241 = vpow.pop %v3240
        %v3242 = vmul.f32 %v3198, 1.442695
        %v3243 = vpow.pop %v3242
        %v3244 = vmul.f32 %v3199, 1.442695
        %v3245 = vpow.pop %v3244
        %v3246 = vmul.f32 %v3200, 1.442695
        %v3247 = vpow.pop %v3246
        %v3248 = vmul.f32 %v3201, 1.442695
        %v3249 = vpow.pop %v3248
        %v3250 = vmul.f32 %v3202, 1.442695
        %v3251 = vpow.pop %v3250
        %v3252 = vmul.f32 %v3203, 1.442695
        %v3253 = vpow.pop %v3252
        %v3254 = vmul.f32 %v3204, 1.442695
        %v3255 = vpow.pop %v3254
        %v3256 = vmul.f32 %v3205, 1.442695
        %v3257 = vpow.pop %v3256
        %v3258 = vmul.f32 %v3206, 1.442695
        %v3259 = vpow.pop %v3258
        %v3260 = vmul.f32 %v3207, 1.442695
        %v3261 = vpow.pop %v3260
        %v3262 = vmul.f32 %v3208, 1.442695
        %v3263 = vpow.pop %v3262
        %v3264 = vmul.f32 %v3209, 1.442695
        %v3265 = vpow.pop %v3264
        %v3266 = vmul.f32 %v3210, 1.442695
        %v3267 = vpow.pop %v3266
        %v3268 = vmul.f32 %v3211, 1.442695
        %v3269 = vpow.pop %v3268
        %v3270 = vmul.f32 %v3212, 1.442695
        %v3271 = vpow.pop %v3270
        %v3272 = vmul.f32 %v3213, 1.442695
        %v3273 = vpow.pop %v3272
        %v3274 = vmul.f32 %v3214, 1.442695
        %v3275 = vpow.pop %v3274
        %v3276 = vmul.f32 %v3215, 1.442695
        %v3277 = vpow.pop %v3276
        %v3278 = vmul.f32 %v3216, 1.442695
        %v3279 = vpow.pop %v3278
        %v3280 = vmul.f32 %v3217, 1.442695
        %v3281 = vpow.pop %v3280
        %v3282 = vadd.f32 %v3219, %v3221
        %3283 = vadd.xlane.f32.xlu0 %v3282
        %v3284 = vpop.xlane.xlu0 %3283
        %v3285 = vadd.f32 %v3223, %v3225
        %3286 = vadd.xlane.f32.xlu0 %v3285
        %v3287 = vpop.xlane.xlu0 %3286
        %v3288 = vadd.f32 %v3227, %v3229
        %3289 = vadd.xlane.f32.xlu0 %v3288
        %v3290 = vpop.xlane.xlu0 %3289
        %v3291 = vadd.f32 %v3231, %v3233
        %3292 = vadd.xlane.f32.xlu0 %v3291
        %v3293 = vpop.xlane.xlu0 %3292
        %v3294 = vadd.f32 %v3235, %v3237
        %3295 = vadd.xlane.f32.xlu0 %v3294
        %v3296 = vpop.xlane.xlu0 %3295
        %v3297 = vadd.f32 %v3239, %v3241
        %3298 = vadd.xlane.f32.xlu0 %v3297
        %v3299 = vpop.xlane.xlu0 %3298
        %v3300 = vadd.f32 %v3243, %v3245
        %3301 = vadd.xlane.f32.xlu0 %v3300
        %v3302 = vpop.xlane.xlu0 %3301
        %v3303 = vadd.f32 %v3247, %v3249
        %3304 = vadd.xlane.f32.xlu0 %v3303
        %v3305 = vpop.xlane.xlu0 %3304
        %v3306 = vadd.f32 %v3251, %v3253
        %3307 = vadd.xlane.f32.xlu0 %v3306
        %v3308 = vpop.xlane.xlu0 %3307
        %v3309 = vadd.f32 %v3255, %v3257
        %3310 = vadd.xlane.f32.xlu0 %v3309
        %v3311 = vpop.xlane.xlu0 %3310
        %v3312 = vadd.f32 %v3259, %v3261
        %3313 = vadd.xlane.f32.xlu0 %v3312
        %v3314 = vpop.xlane.xlu0 %3313
        %v3315 = vadd.f32 %v3263, %v3265
        %3316 = vadd.xlane.f32.xlu0 %v3315
        %v3317 = vpop.xlane.xlu0 %3316
        %v3318 = vadd.f32 %v3267, %v3269
        %3319 = vadd.xlane.f32.xlu0 %v3318
        %v3320 = vpop.xlane.xlu0 %3319
        %v3321 = vadd.f32 %v3271, %v3273
        %3322 = vadd.xlane.f32.xlu0 %v3321
        %v3323 = vpop.xlane.xlu0 %3322
        %v3324 = vadd.f32 %v3275, %v3277
        %3325 = vadd.xlane.f32.xlu0 %v3324
        %v3326 = vpop.xlane.xlu0 %3325
        %v3327 = vadd.f32 %v3279, %v3281
        %3328 = vadd.xlane.f32.xlu0 %v3327
        %v3329 = vpop.xlane.xlu0 %3328
        %v3330 = vpack.c.bf16 %v3223, %v3219
        %v3331 = vpack.c.bf16 %v3225, %v3221
        %v3332 = vpack.c.bf16 %v3231, %v3227
        %v3333 = vpack.c.bf16 %v3233, %v3229
        %v3334 = vpack.c.bf16 %v3239, %v3235
        %v3335 = vpack.c.bf16 %v3241, %v3237
        %v3336 = vpack.c.bf16 %v3247, %v3243
        %v3337 = vpack.c.bf16 %v3249, %v3245
        %v3338 = vpack.c.bf16 %v3255, %v3251
        %v3339 = vpack.c.bf16 %v3257, %v3253
        %v3340 = vpack.c.bf16 %v3263, %v3259
        %v3341 = vpack.c.bf16 %v3265, %v3261
        %v3342 = vpack.c.bf16 %v3271, %v3267
        %v3343 = vpack.c.bf16 %v3273, %v3269
        %v3344 = vpack.c.bf16 %v3279, %v3275
        %v3345 = vpack.c.bf16 %v3281, %v3277
        %v3346 = vpack.c.bf16 %v2502, %v2499
        %v3347 = vpack.c.bf16 %v2510, %v2507
        %v3348 = vpack.c.bf16 %v2518, %v2515
        %v3349 = vpack.c.bf16 %v2526, %v2523
        %v3350 = vpack.c.bf16 %v2534, %v2531
        %v3351 = vpack.c.bf16 %v2542, %v2539
        %v3352 = vpack.c.bf16 %v2550, %v2547
        %v3353 = vpack.c.bf16 %v2558, %v2555
        %v3354 = vpack.c.bf16 %v2566, %v2563
        %v3355 = vpack.c.bf16 %v2574, %v2571
        %v3356 = vpack.c.bf16 %v2582, %v2579
        %v3357 = vpack.c.bf16 %v2590, %v2587
        %v3358 = vpack.c.bf16 %v2598, %v2595
        %v3359 = vpack.c.bf16 %v2606, %v2603
        %v3360 = vpack.c.bf16 %v2614, %v2611
        %v3361 = vpack.c.bf16 %v2622, %v2619
        %3362 = vmatprep.subr.bf16.mxu0 0
        %3363 = vmatpush1.bf16.msra.mxu0 %v3346
        %3364 = vmatprep.subr.bf16.mxu0 0
        %3365 = vmatpush1.bf16.msra.mxu0 %v3347
        %3366 = vmatprep.subr.bf16.mxu0 0
        %3367 = vmatpush1.bf16.msra.mxu0 %v3348
        %3368 = vmatprep.subr.bf16.mxu0 0
        %3369 = vmatpush1.bf16.msra.mxu0 %v3349
        %3370 = vmatprep.subr.bf16.mxu0 0
        %3371 = vmatpush1.bf16.msra.mxu0 %v3350
        %3372 = vmatprep.subr.bf16.mxu0 0
        %3373 = vmatpush1.bf16.msra.mxu0 %v3351
        %3374 = vmatprep.subr.bf16.mxu0 0
        %3375 = vmatpush1.bf16.msra.mxu0 %v3352
        %3376 = vmatprep.subr.bf16.mxu0 0
        %3377 = vmatpush1.bf16.msra.mxu0 %v3353
        %3378 = vmatprep.subr.bf16.mxu0 0
        %3379 = vmatpush1.bf16.msra.mxu0 %v3354
        %3380 = vmatprep.subr.bf16.mxu0 0
        %3381 = vmatpush1.bf16.msra.mxu0 %v3355
        %3382 = vmatprep.subr.bf16.mxu0 0
        %3383 = vmatpush1.bf16.msra.mxu0 %v3356
        %3384 = vmatprep.subr.bf16.mxu0 0
        %3385 = vmatpush1.bf16.msra.mxu0 %v3357
        %3386 = vmatprep.subr.bf16.mxu0 0
        %3387 = vmatpush1.bf16.msra.mxu0 %v3358
        %3388 = vmatprep.subr.bf16.mxu0 0
        %3389 = vmatpush1.bf16.msra.mxu0 %v3359
        %3390 = vmatprep.subr.bf16.mxu0 0
        %3391 = vmatpush1.bf16.msra.mxu0 %v3360
        %3392 = vmatprep.subr.bf16.mxu0 0
        %3393 = vmatpush1.bf16.msra.mxu0 %v3361
        %3394 = vmatprep.mubr.bf16.mxu0 %v3331
        %3395 = vmatmul.mubr.bf16.gmra.mrb[0].mxu0 %v3330
        %v3396 = vpop.f32.mrb[0].mxu0
        %v3397 = vadd.f32 0.0, %v3396
        %v3398 = vpop.f32.mrb[0].mxu0
        %v3399 = vpop.f32.mrb[0].mxu0
        %v3400 = vadd.f32 0.0, %v3399
        %v3401 = vpop.f32.mrb[0].mxu0
        %3402 = vmatprep.mubr.bf16.mxu0 %v3333
        %3403 = vmatmul.mubr.bf16.gmra.mrb[0].mxu0 %v3332
        %v3404 = vpop.f32.mrb[0].mxu0
        %v3405 = vadd.f32 0.0, %v3404
        %v3406 = vpop.f32.mrb[0].mxu0
        %v3407 = vpop.f32.mrb[0].mxu0
        %v3408 = vadd.f32 0.0, %v3407
        %v3409 = vpop.f32.mrb[0].mxu0
        %3410 = vmatprep.mubr.bf16.mxu0 %v3335
        %3411 = vmatmul.mubr.bf16.gmra.mrb[0].mxu0 %v3334
        %v3412 = vpop.f32.mrb[0].mxu0
        %v3413 = vadd.f32 0.0, %v3412
        %v3414 = vpop.f32.mrb[0].mxu0
        %v3415 = vpop.f32.mrb[0].mxu0
        %v3416 = vadd.f32 0.0, %v3415
        %v3417 = vpop.f32.mrb[0].mxu0
        %3418 = vmatprep.mubr.bf16.mxu0 %v3337
        %3419 = vmatmul.mubr.bf16.gmra.mrb[0].mxu0 %v3336
        %v3420 = vpop.f32.mrb[0].mxu0
        %v3421 = vadd.f32 0.0, %v3420
        %v3422 = vpop.f32.mrb[0].mxu0
        %v3423 = vpop.f32.mrb[0].mxu0
        %v3424 = vadd.f32 0.0, %v3423
        %v3425 = vpop.f32.mrb[0].mxu0
        %3426 = vmatprep.mubr.bf16.mxu0 %v3339
        %3427 = vmatmul.mubr.bf16.gmra.mrb[0].mxu0 %v3338
        %v3428 = vpop.f32.mrb[0].mxu0
        %v3429 = vadd.f32 0.0, %v3428
        %v3430 = vpop.f32.mrb[0].mxu0
        %v3431 = vpop.f32.mrb[0].mxu0
        %v3432 = vadd.f32 0.0, %v3431
        %v3433 = vpop.f32.mrb[0].mxu0
        %3434 = vmatprep.mubr.bf16.mxu0 %v3341
        %3435 = vmatmul.mubr.bf16.gmra.mrb[0].mxu0 %v3340
        %v3436 = vpop.f32.mrb[0].mxu0
        %v3437 = vadd.f32 0.0, %v3436
        %v3438 = vpop.f32.mrb[0].mxu0
        %v3439 = vpop.f32.mrb[0].mxu0
        %v3440 = vadd.f32 0.0, %v3439
        %v3441 = vpop.f32.mrb[0].mxu0
        %3442 = vmatprep.mubr.bf16.mxu0 %v3343
        %3443 = vmatmul.mubr.bf16.gmra.mrb[0].mxu0 %v3342
        %v3444 = vpop.f32.mrb[0].mxu0
        %v3445 = vadd.f32 0.0, %v3444
        %v3446 = vpop.f32.mrb[0].mxu0
        %v3447 = vpop.f32.mrb[0].mxu0
        %v3448 = vadd.f32 0.0, %v3447
        %v3449 = vpop.f32.mrb[0].mxu0
        %3450 = vmatprep.mubr.bf16.mxu0 %v3345
        %3451 = vmatmul.mubr.bf16.gmra.mrb[0].mxu0 %v3344
        %v3452 = vpop.f32.mrb[0].mxu0
        %v3453 = vadd.f32 0.0, %v3452
        %v3454 = vpop.f32.mrb[0].mxu0
        %v3455 = vpop.f32.mrb[0].mxu0
        %v3456 = vadd.f32 0.0, %v3455
        %v3457 = vpop.f32.mrb[0].mxu0
        %3458 = vdwg.mxu0
        %v3459 = vrcp.pop %v3284
        %v3460 = vrcp.pop %v3287
        %v3461 = vrcp.pop %v3290
        %v3462 = vrcp.pop %v3293
        %v3463 = vrcp.pop %v3296
        %v3464 = vrcp.pop %v3299
        %v3465 = vrcp.pop %v3302
        %v3466 = vrcp.pop %v3305
        %v3467 = vrcp.pop %v3308
        %v3468 = vrcp.pop %v3311
        %v3469 = vrcp.pop %v3314
        %v3470 = vrcp.pop %v3317
        %v3471 = vrcp.pop %v3320
        %v3472 = vrcp.pop %v3323
        %v3473 = vrcp.pop %v3326
        %v3474 = vrcp.pop %v3329
        %v3475 = vmul.f32 %v3397, %v3459
        %v3476 = vmul.f32 %v3400, %v3460
        %v3477 = vmul.f32 %v3405, %v3461
        %v3478 = vmul.f32 %v3408, %v3462
        %v3479 = vmul.f32 %v3413, %v3463
        %v3480 = vmul.f32 %v3416, %v3464
        %v3481 = vmul.f32 %v3421, %v3465
        %v3482 = vmul.f32 %v3424, %v3466
        %v3483 = vmul.f32 %v3429, %v3467
        %v3484 = vmul.f32 %v3432, %v3468
        %v3485 = vmul.f32 %v3437, %v3469
        %v3486 = vmul.f32 %v3440, %v3470
        %v3487 = vmul.f32 %v3445, %v3471
        %v3488 = vmul.f32 %v3448, %v3472
        %v3489 = vmul.f32 %v3453, %v3473
        %v3490 = vmul.f32 %v3456, %v3474
        %v3491 = vpack.c.bf16 %v3476, %v3475
        %v3492 = vpack.c.bf16 %v3478, %v3477
        %v3493 = vpack.c.bf16 %v3480, %v3479
        %v3494 = vpack.c.bf16 %v3482, %v3481
        %v3495 = vpack.c.bf16 %v3484, %v3483
        %v3496 = vpack.c.bf16 %v3486, %v3485
        %v3497 = vpack.c.bf16 %v3488, %v3487
        %v3498 = vpack.c.bf16 %v3490, %v3489
        %s3499 = scalar_lea.vmem %s5, 16
        %v3500 = vld [vmem:[%s3499] sm:$0xf]
        %v3501 = vld [vmem:[%s3499 + $0x4] sm:$0xf]
        %v3502 = vld [vmem:[%s3499 + $0x8] sm:$0xf]
        %v3503 = vld [vmem:[%s3499 + $0xc] sm:$0xf]
        %v3508 = vunpack.c.l.b16 %v3500
        %v3509 = vunpack.c.l.b16 %v3501
        %v3510 = vunpack.c.l.b16 %v3502
        %v3511 = vunpack.c.l.b16 %v3503
        %v3512 = vpack.c.b16 %v3509, %v3508
        %v3513 = vpack.c.b16 %v3511, %v3510
        %v3517 = vsel %vm1148, %v3491, 0
        %v3520 = vsel %vm1148, %v3492, 0
        %v3523 = vsel %vm1148, %v3493, 0
        %v3526 = vsel %vm1148, %v3494, 0
        %v3529 = vsel %vm1148, %v3495, 0
        %v3532 = vsel %vm1148, %v3496, 0
        %v3535 = vsel %vm1148, %v3497, 0
        %v3538 = vsel %vm1148, %v3498, 0
        %3540 = vmatprep.subr.bf16.mxu0 0
        %3541 = vmatpush1.bf16.msra.mxu0 %v3512
        %3542 = vmatprep.subr.bf16.mxu0 0
        %3543 = vmatpush1.bf16.msra.mxu0 %v3513
        %3544 = vmatprep.subr.bf16.mxu0 0
        %3545 = vmatpush1.bf16.msra.mxu0 0
        %3546 = vmatprep.subr.bf16.mxu0 0
        %3547 = vmatpush1.bf16.msra.mxu0 0
        %3548 = vmatprep.subr.bf16.mxu0 0
        %3549 = vmatpush1.bf16.msra.mxu0 0
        %3550 = vmatprep.subr.bf16.mxu0 0
        %3551 = vmatpush1.bf16.msra.mxu0 0
        %3552 = vmatprep.subr.bf16.mxu0 0
        %3553 = vmatpush1.bf16.msra.mxu0 0
        %3554 = vmatprep.subr.bf16.mxu0 0
        %3555 = vmatpush1.bf16.msra.mxu0 0
        %3556 = vmatprep.subr.bf16.mxu0 0
        %3557 = vmatpush1.bf16.msra.mxu0 0
        %3558 = vmatprep.subr.bf16.mxu0 0
        %3559 = vmatpush1.bf16.msra.mxu0 0
        %3560 = vmatprep.subr.bf16.mxu0 0
        %3561 = vmatpush1.bf16.msra.mxu0 0
        %3562 = vmatprep.subr.bf16.mxu0 0
        %3563 = vmatpush1.bf16.msra.mxu0 0
        %3564 = vmatprep.subr.bf16.mxu0 0
        %3565 = vmatpush1.bf16.msra.mxu0 0
        %3566 = vmatprep.subr.bf16.mxu0 0
        %3567 = vmatpush1.bf16.msra.mxu0 0
        %3568 = vmatprep.subr.bf16.mxu0 0
        %3569 = vmatpush1.bf16.msra.mxu0 0
        %3570 = vmatprep.subr.bf16.mxu0 0
        %3571 = vmatpush1.bf16.msra.mxu0 0
        %3572 = vmatprep.mubr.bf16.mxu0 0
        %3573 = vmatmul.mubr.bf16.gmra.mrb[0].mxu0 %v3517
        %v3574 = vpop.f32.mrb[0].mxu0
        %v3575 = vadd.f32 0.0, %v3574
        %v3576 = vpop.f32.mrb[0].mxu0
        %v3577 = vpop.f32.mrb[0].mxu0
        %v3578 = vadd.f32 0.0, %v3577
        %v3579 = vpop.f32.mrb[0].mxu0
        %3580 = vmatprep.mubr.bf16.mxu0 0
        %3581 = vmatmul.mubr.bf16.gmra.mrb[0].mxu0 %v3520
        %v3582 = vpop.f32.mrb[0].mxu0
        %v3583 = vadd.f32 0.0, %v3582
        %v3584 = vpop.f32.mrb[0].mxu0
        %v3585 = vpop.f32.mrb[0].mxu0
        %v3586 = vadd.f32 0.0, %v3585
        %v3587 = vpop.f32.mrb[0].mxu0
        %3588 = vmatprep.mubr.bf16.mxu0 0
        %3589 = vmatmul.mubr.bf16.gmra.mrb[0].mxu0 %v3523
        %v3590 = vpop.f32.mrb[0].mxu0
        %v3591 = vadd.f32 0.0, %v3590
        %v3592 = vpop.f32.mrb[0].mxu0
        %v3593 = vpop.f32.mrb[0].mxu0
        %v3594 = vadd.f32 0.0, %v3593
        %v3595 = vpop.f32.mrb[0].mxu0
        %3596 = vmatprep.mubr.bf16.mxu0 0
        %3597 = vmatmul.mubr.bf16.gmra.mrb[0].mxu0 %v3526
        %v3598 = vpop.f32.mrb[0].mxu0
        %v3599 = vadd.f32 0.0, %v3598
        %v3600 = vpop.f32.mrb[0].mxu0
        %v3601 = vpop.f32.mrb[0].mxu0
        %v3602 = vadd.f32 0.0, %v3601
        %v3603 = vpop.f32.mrb[0].mxu0
        %3604 = vmatprep.mubr.bf16.mxu0 0
        %3605 = vmatmul.mubr.bf16.gmra.mrb[0].mxu0 %v3529
        %v3606 = vpop.f32.mrb[0].mxu0
        %v3607 = vadd.f32 0.0, %v3606
        %v3608 = vpop.f32.mrb[0].mxu0
        %v3609 = vpop.f32.mrb[0].mxu0
        %v3610 = vadd.f32 0.0, %v3609
        %v3611 = vpop.f32.mrb[0].mxu0
        %3612 = vmatprep.mubr.bf16.mxu0 0
        %3613 = vmatmul.mubr.bf16.gmra.mrb[0].mxu0 %v3532
        %v3614 = vpop.f32.mrb[0].mxu0
        %v3615 = vadd.f32 0.0, %v3614
        %v3616 = vpop.f32.mrb[0].mxu0
        %v3617 = vpop.f32.mrb[0].mxu0
        %v3618 = vadd.f32 0.0, %v3617
        %v3619 = vpop.f32.mrb[0].mxu0
        %3620 = vmatprep.mubr.bf16.mxu0 0
        %3621 = vmatmul.mubr.bf16.gmra.mrb[0].mxu0 %v3535
        %v3622 = vpop.f32.mrb[0].mxu0
        %v3623 = vadd.f32 0.0, %v3622
        %v3624 = vpop.f32.mrb[0].mxu0
        %v3625 = vpop.f32.mrb[0].mxu0
        %v3626 = vadd.f32 0.0, %v3625
        %v3627 = vpop.f32.mrb[0].mxu0
        %3628 = vmatprep.mubr.bf16.mxu0 0
        %3629 = vmatmul.mubr.bf16.gmra.mrb[0].mxu0 %v3538
        %v3630 = vpop.f32.mrb[0].mxu0
        %v3631 = vadd.f32 0.0, %v3630
        %v3632 = vpop.f32.mrb[0].mxu0
        %v3633 = vpop.f32.mrb[0].mxu0
        %v3634 = vadd.f32 0.0, %v3633
        %v3635 = vpop.f32.mrb[0].mxu0
        %3636 = vdwg.mxu0
        %v3641 = vunpack.c.l.b16 %v2007
        %v3642 = vunpack.c.l.b16 %v2008
        %v3643 = vunpack.c.l.b16 %v2009
        %v3644 = vunpack.c.l.b16 %v2010
        %v3645 = vpack.c.b16 %v3642, %v3641
        %v3646 = vpack.c.b16 %v3644, %v3643
        %v3650 = vsel %vm1148, %v1999, 0
        %v3653 = vsel %vm1148, %v2000, 0
        %v3656 = vsel %vm1148, %v2001, 0
        %v3659 = vsel %vm1148, %v2002, 0
        %v3662 = vsel %vm1148, %v2003, 0
        %v3665 = vsel %vm1148, %v2004, 0
        %v3668 = vsel %vm1148, %v2005, 0
        %v3671 = vsel %vm1148, %v2006, 0
        %3673 = vmatprep.subr.bf16.mxu0 0
        %3674 = vmatpush1.bf16.msra.mxu0 %v3645
        %3675 = vmatprep.subr.bf16.mxu0 0
        %3676 = vmatpush1.bf16.msra.mxu0 %v3646
        %3677 = vmatprep.subr.bf16.mxu0 0
        %3678 = vmatpush1.bf16.msra.mxu0 0
        %3679 = vmatprep.subr.bf16.mxu0 0
        %3680 = vmatpush1.bf16.msra.mxu0 0
        %3681 = vmatprep.subr.bf16.mxu0 0
        %3682 = vmatpush1.bf16.msra.mxu0 0
        %3683 = vmatprep.subr.bf16.mxu0 0
        %3684 = vmatpush1.bf16.msra.mxu0 0
        %3685 = vmatprep.subr.bf16.mxu0 0
        %3686 = vmatpush1.bf16.msra.mxu0 0
        %3687 = vmatprep.subr.bf16.mxu0 0
        %3688 = vmatpush1.bf16.msra.mxu0 0
        %3689 = vmatprep.subr.bf16.mxu0 0
        %3690 = vmatpush1.bf16.msra.mxu0 0
        %3691 = vmatprep.subr.bf16.mxu0 0
        %3692 = vmatpush1.bf16.msra.mxu0 0
        %3693 = vmatprep.subr.bf16.mxu0 0
        %3694 = vmatpush1.bf16.msra.mxu0 0
        %3695 = vmatprep.subr.bf16.mxu0 0
        %3696 = vmatpush1.bf16.msra.mxu0 0
        %3697 = vmatprep.subr.bf16.mxu0 0
        %3698 = vmatpush1.bf16.msra.mxu0 0
        %3699 = vmatprep.subr.bf16.mxu0 0
        %3700 = vmatpush1.bf16.msra.mxu0 0
        %3701 = vmatprep.subr.bf16.mxu0 0
        %3702 = vmatpush1.bf16.msra.mxu0 0
        %3703 = vmatprep.subr.bf16.mxu0 0
        %3704 = vmatpush1.bf16.msra.mxu0 0
        %3705 = vmatprep.mubr.bf16.mxu0 0
        %3706 = vmatmul.mubr.bf16.gmra.mrb[0].mxu0 %v3650
        %v3707 = vpop.f32.mrb[0].mxu0
        %v3708 = vadd.f32 %v3575, %v3707
        %v3709 = vpop.f32.mrb[0].mxu0
        %v3710 = vpop.f32.mrb[0].mxu0
        %v3711 = vadd.f32 %v3578, %v3710
        %v3712 = vpop.f32.mrb[0].mxu0
        %3713 = vmatprep.mubr.bf16.mxu0 0
        %3714 = vmatmul.mubr.bf16.gmra.mrb[0].mxu0 %v3653
        %v3715 = vpop.f32.mrb[0].mxu0
        %v3716 = vadd.f32 %v3583, %v3715
        %v3717 = vpop.f32.mrb[0].mxu0
        %v3718 = vpop.f32.mrb[0].mxu0
        %v3719 = vadd.f32 %v3586, %v3718
        %v3720 = vpop.f32.mrb[0].mxu0
        %3721 = vmatprep.mubr.bf16.mxu0 0
        %3722 = vmatmul.mubr.bf16.gmra.mrb[0].mxu0 %v3656
        %v3723 = vpop.f32.mrb[0].mxu0
        %v3724 = vadd.f32 %v3591, %v3723
        %v3725 = vpop.f32.mrb[0].mxu0
        %v3726 = vpop.f32.mrb[0].mxu0
        %v3727 = vadd.f32 %v3594, %v3726
        %v3728 = vpop.f32.mrb[0].mxu0
        %3729 = vmatprep.mubr.bf16.mxu0 0
        %3730 = vmatmul.mubr.bf16.gmra.mrb[0].mxu0 %v3659
        %v3731 = vpop.f32.mrb[0].mxu0
        %v3732 = vadd.f32 %v3599, %v3731
        %v3733 = vpop.f32.mrb[0].mxu0
        %v3734 = vpop.f32.mrb[0].mxu0
        %v3735 = vadd.f32 %v3602, %v3734
        %v3736 = vpop.f32.mrb[0].mxu0
        %3737 = vmatprep.mubr.bf16.mxu0 0
        %3738 = vmatmul.mubr.bf16.gmra.mrb[0].mxu0 %v3662
        %v3739 = vpop.f32.mrb[0].mxu0
        %v3740 = vadd.f32 %v3607, %v3739
        %v3741 = vpop.f32.mrb[0].mxu0
        %v3742 = vpop.f32.mrb[0].mxu0
        %v3743 = vadd.f32 %v3610, %v3742
        %v3744 = vpop.f32.mrb[0].mxu0
        %3745 = vmatprep.mubr.bf16.mxu0 0
        %3746 = vmatmul.mubr.bf16.gmra.mrb[0].mxu0 %v3665
        %v3747 = vpop.f32.mrb[0].mxu0
        %v3748 = vadd.f32 %v3615, %v3747
        %v3749 = vpop.f32.mrb[0].mxu0
        %v3750 = vpop.f32.mrb[0].mxu0
        %v3751 = vadd.f32 %v3618, %v3750
        %v3752 = vpop.f32.mrb[0].mxu0
        %3753 = vmatprep.mubr.bf16.mxu0 0
        %3754 = vmatmul.mubr.bf16.gmra.mrb[0].mxu0 %v3668
        %v3755 = vpop.f32.mrb[0].mxu0
        %v3756 = vadd.f32 %v3623, %v3755
        %v3757 = vpop.f32.mrb[0].mxu0
        %v3758 = vpop.f32.mrb[0].mxu0
        %v3759 = vadd.f32 %v3626, %v3758
        %v3760 = vpop.f32.mrb[0].mxu0
        %3761 = vmatprep.mubr.bf16.mxu0 0
        %3762 = vmatmul.mubr.bf16.gmra.mrb[0].mxu0 %v3671
        %v3763 = vpop.f32.mrb[0].mxu0
        %v3764 = vadd.f32 %v3631, %v3763
        %v3765 = vpop.f32.mrb[0].mxu0
        %v3766 = vpop.f32.mrb[0].mxu0
        %v3767 = vadd.f32 %v3634, %v3766
        %v3768 = vpop.f32.mrb[0].mxu0
        %3769 = vdwg.mxu0
        %s3770 = scalar_lea.vmem %s2, 128
        %v3771 = vld [vmem:[%s3770] sm:$0xf]
        %v3772 = vld [vmem:[%s3770 + $0x4] sm:$0xf]
        %v3773 = vld [vmem:[%s3770 + $0x8] sm:$0xf]
        %v3774 = vld [vmem:[%s3770 + $0xc] sm:$0xf]
        %v3775 = vld [vmem:[%s3770 + $0x10] sm:$0xf]
        %v3776 = vld [vmem:[%s3770 + $0x14] sm:$0xf]
        %v3777 = vld [vmem:[%s3770 + $0x18] sm:$0xf]
        %v3778 = vld [vmem:[%s3770 + $0x1c] sm:$0xf]
        %v3779 = vld [vmem:[%s3770 + $0x20] sm:$0xf]
        %v3780 = vld [vmem:[%s3770 + $0x24] sm:$0xf]
        %v3781 = vld [vmem:[%s3770 + $0x28] sm:$0xf]
        %v3782 = vld [vmem:[%s3770 + $0x2c] sm:$0xf]
        %v3783 = vld [vmem:[%s3770 + $0x30] sm:$0xf]
        %v3784 = vld [vmem:[%s3770 + $0x34] sm:$0xf]
        %v3785 = vld [vmem:[%s3770 + $0x38] sm:$0xf]
        %v3786 = vld [vmem:[%s3770 + $0x3c] sm:$0xf]
        %v3803 = vunpack.c.l.b16 %v3771
        %v3804 = vunpack.c.l.b16 %v3772
        %v3805 = vunpack.c.l.b16 %v3773
        %v3806 = vunpack.c.l.b16 %v3774
        %v3807 = vunpack.c.l.b16 %v3775
        %v3808 = vunpack.c.l.b16 %v3776
        %v3809 = vunpack.c.l.b16 %v3777
        %v3810 = vunpack.c.l.b16 %v3778
        %v3811 = vunpack.c.l.b16 %v3779
        %v3812 = vunpack.c.l.b16 %v3780
        %v3813 = vunpack.c.l.b16 %v3781
        %v3814 = vunpack.c.l.b16 %v3782
        %v3815 = vunpack.c.l.b16 %v3783
        %v3816 = vunpack.c.l.b16 %v3784
        %v3817 = vunpack.c.l.b16 %v3785
        %v3818 = vunpack.c.l.b16 %v3786
        %v3819 = vpack.c.b16 %v3804, %v3803
        %v3820 = vpack.c.b16 %v3806, %v3805
        %v3821 = vpack.c.b16 %v3808, %v3807
        %v3822 = vpack.c.b16 %v3810, %v3809
        %v3823 = vpack.c.b16 %v3812, %v3811
        %v3824 = vpack.c.b16 %v3814, %v3813
        %v3825 = vpack.c.b16 %v3816, %v3815
        %v3826 = vpack.c.b16 %v3818, %v3817
        %3835 = vmatprep.subr.bf16.mxu0 0
        %3836 = vmatpush1.bf16.msra.mxu0 %v3819
        %3837 = vmatprep.subr.bf16.mxu0 0
        %3838 = vmatpush1.bf16.msra.mxu0 %v3820
        %3839 = vmatprep.subr.bf16.mxu0 0
        %3840 = vmatpush1.bf16.msra.mxu0 %v3821
        %3841 = vmatprep.subr.bf16.mxu0 0
        %3842 = vmatpush1.bf16.msra.mxu0 %v3822
        %3843 = vmatprep.subr.bf16.mxu0 0
        %3844 = vmatpush1.bf16.msra.mxu0 %v3823
        %3845 = vmatprep.subr.bf16.mxu0 0
        %3846 = vmatpush1.bf16.msra.mxu0 %v3824
        %3847 = vmatprep.subr.bf16.mxu0 0
        %3848 = vmatpush1.bf16.msra.mxu0 %v3825
        %3849 = vmatprep.subr.bf16.mxu0 0
        %3850 = vmatpush1.bf16.msra.mxu0 %v3826
        %3851 = vmatprep.subr.bf16.mxu0 0
        %3852 = vmatpush1.bf16.msra.mxu0 0
        %3853 = vmatprep.subr.bf16.mxu0 0
        %3854 = vmatpush1.bf16.msra.mxu0 0
        %3855 = vmatprep.subr.bf16.mxu0 0
        %3856 = vmatpush1.bf16.msra.mxu0 0
        %3857 = vmatprep.subr.bf16.mxu0 0
        %3858 = vmatpush1.bf16.msra.mxu0 0
        %3859 = vmatprep.subr.bf16.mxu0 0
        %3860 = vmatpush1.bf16.msra.mxu0 0
        %3861 = vmatprep.subr.bf16.mxu0 0
        %3862 = vmatpush1.bf16.msra.mxu0 0
        %3863 = vmatprep.subr.bf16.mxu0 0
        %3864 = vmatpush1.bf16.msra.mxu0 0
        %3865 = vmatprep.subr.bf16.mxu0 0
        %3866 = vmatpush1.bf16.msra.mxu0 0
        %3867 = vmatprep.mubr.bf16.mxu0 0
        %3868 = vmatmul.mubr.bf16.gmra.mrb[0].mxu0 %v425
        %v3869 = vpop.f32.mrb[0].mxu0
        %v3870 = vadd.f32 0.0, %v3869
        %v3871 = vpop.f32.mrb[0].mxu0
        %v3872 = vpop.f32.mrb[0].mxu0
        %v3873 = vadd.f32 0.0, %v3872
        %v3874 = vpop.f32.mrb[0].mxu0
        %3875 = vmatprep.mubr.bf16.mxu0 0
        %3876 = vmatmul.mubr.bf16.gmra.mrb[0].mxu0 %v426
        %v3877 = vpop.f32.mrb[0].mxu0
        %v3878 = vadd.f32 0.0, %v3877
        %v3879 = vpop.f32.mrb[0].mxu0
        %v3880 = vpop.f32.mrb[0].mxu0
        %v3881 = vadd.f32 0.0, %v3880
        %v3882 = vpop.f32.mrb[0].mxu0
        %3883 = vmatprep.mubr.bf16.mxu0 0
        %3884 = vmatmul.mubr.bf16.gmra.mrb[0].mxu0 %v427
        %v3885 = vpop.f32.mrb[0].mxu0
        %v3886 = vadd.f32 0.0, %v3885
        %v3887 = vpop.f32.mrb[0].mxu0
        %v3888 = vpop.f32.mrb[0].mxu0
        %v3889 = vadd.f32 0.0, %v3888
        %v3890 = vpop.f32.mrb[0].mxu0
        %3891 = vmatprep.mubr.bf16.mxu0 0
        %3892 = vmatmul.mubr.bf16.gmra.mrb[0].mxu0 %v428
        %v3893 = vpop.f32.mrb[0].mxu0
        %v3894 = vadd.f32 0.0, %v3893
        %v3895 = vpop.f32.mrb[0].mxu0
        %v3896 = vpop.f32.mrb[0].mxu0
        %v3897 = vadd.f32 0.0, %v3896
        %v3898 = vpop.f32.mrb[0].mxu0
        %3899 = vmatprep.mubr.bf16.mxu0 0
        %3900 = vmatmul.mubr.bf16.gmra.mrb[0].mxu0 %v429
        %v3901 = vpop.f32.mrb[0].mxu0
        %v3902 = vadd.f32 0.0, %v3901
        %v3903 = vpop.f32.mrb[0].mxu0
        %v3904 = vpop.f32.mrb[0].mxu0
        %v3905 = vadd.f32 0.0, %v3904
        %v3906 = vpop.f32.mrb[0].mxu0
        %3907 = vmatprep.mubr.bf16.mxu0 0
        %3908 = vmatmul.mubr.bf16.gmra.mrb[0].mxu0 %v430
        %v3909 = vpop.f32.mrb[0].mxu0
        %v3910 = vadd.f32 0.0, %v3909
        %v3911 = vpop.f32.mrb[0].mxu0
        %v3912 = vpop.f32.mrb[0].mxu0
        %v3913 = vadd.f32 0.0, %v3912
        %v3914 = vpop.f32.mrb[0].mxu0
        %3915 = vmatprep.mubr.bf16.mxu0 0
        %3916 = vmatmul.mubr.bf16.gmra.mrb[0].mxu0 %v431
        %v3917 = vpop.f32.mrb[0].mxu0
        %v3918 = vadd.f32 0.0, %v3917
        %v3919 = vpop.f32.mrb[0].mxu0
        %v3920 = vpop.f32.mrb[0].mxu0
        %v3921 = vadd.f32 0.0, %v3920
        %v3922 = vpop.f32.mrb[0].mxu0
        %3923 = vmatprep.mubr.bf16.mxu0 0
        %3924 = vmatmul.mubr.bf16.gmra.mrb[0].mxu0 %v432
        %v3925 = vpop.f32.mrb[0].mxu0
        %v3926 = vadd.f32 0.0, %v3925
        %v3927 = vpop.f32.mrb[0].mxu0
        %v3928 = vpop.f32.mrb[0].mxu0
        %v3929 = vadd.f32 0.0, %v3928
        %v3930 = vpop.f32.mrb[0].mxu0
        %3931 = vdwg.mxu0
        %s3932 = scalar_lea.vmem %s3, 128
        %v3933 = vld [vmem:[%s3932] sm:$0xf]
        %v3934 = vld [vmem:[%s3932 + $0x4] sm:$0xf]
        %v3935 = vld [vmem:[%s3932 + $0x8] sm:$0xf]
        %v3936 = vld [vmem:[%s3932 + $0xc] sm:$0xf]
        %v3937 = vld [vmem:[%s3932 + $0x10] sm:$0xf]
        %v3938 = vld [vmem:[%s3932 + $0x14] sm:$0xf]
        %v3939 = vld [vmem:[%s3932 + $0x18] sm:$0xf]
        %v3940 = vld [vmem:[%s3932 + $0x1c] sm:$0xf]
        %v3941 = vld [vmem:[%s3932 + $0x20] sm:$0xf]
        %v3942 = vld [vmem:[%s3932 + $0x24] sm:$0xf]
        %v3943 = vld [vmem:[%s3932 + $0x28] sm:$0xf]
        %v3944 = vld [vmem:[%s3932 + $0x2c] sm:$0xf]
        %v3945 = vld [vmem:[%s3932 + $0x30] sm:$0xf]
        %v3946 = vld [vmem:[%s3932 + $0x34] sm:$0xf]
        %v3947 = vld [vmem:[%s3932 + $0x38] sm:$0xf]
        %v3948 = vld [vmem:[%s3932 + $0x3c] sm:$0xf]
        %v3965 = vunpack.c.l.b16 %v3933
        %v3966 = vunpack.c.l.b16 %v3934
        %v3967 = vunpack.c.l.b16 %v3935
        %v3968 = vunpack.c.l.b16 %v3936
        %v3969 = vunpack.c.l.b16 %v3937
        %v3970 = vunpack.c.l.b16 %v3938
        %v3971 = vunpack.c.l.b16 %v3939
        %v3972 = vunpack.c.l.b16 %v3940
        %v3973 = vunpack.c.l.b16 %v3941
        %v3974 = vunpack.c.l.b16 %v3942
        %v3975 = vunpack.c.l.b16 %v3943
        %v3976 = vunpack.c.l.b16 %v3944
        %v3977 = vunpack.c.l.b16 %v3945
        %v3978 = vunpack.c.l.b16 %v3946
        %v3979 = vunpack.c.l.b16 %v3947
        %v3980 = vunpack.c.l.b16 %v3948
        %v3981 = vpack.c.b16 %v3966, %v3965
        %v3982 = vpack.c.b16 %v3968, %v3967
        %v3983 = vpack.c.b16 %v3970, %v3969
        %v3984 = vpack.c.b16 %v3972, %v3971
        %v3985 = vpack.c.b16 %v3974, %v3973
        %v3986 = vpack.c.b16 %v3976, %v3975
        %v3987 = vpack.c.b16 %v3978, %v3977
        %v3988 = vpack.c.b16 %v3980, %v3979
        %3997 = vmatprep.subr.bf16.mxu0 0
        %3998 = vmatpush1.bf16.msra.mxu0 %v3981
        %3999 = vmatprep.subr.bf16.mxu0 0
        %4000 = vmatpush1.bf16.msra.mxu0 %v3982
        %4001 = vmatprep.subr.bf16.mxu0 0
        %4002 = vmatpush1.bf16.msra.mxu0 %v3983
        %4003 = vmatprep.subr.bf16.mxu0 0
        %4004 = vmatpush1.bf16.msra.mxu0 %v3984
        %4005 = vmatprep.subr.bf16.mxu0 0
        %4006 = vmatpush1.bf16.msra.mxu0 %v3985
        %4007 = vmatprep.subr.bf16.mxu0 0
        %4008 = vmatpush1.bf16.msra.mxu0 %v3986
        %4009 = vmatprep.subr.bf16.mxu0 0
        %4010 = vmatpush1.bf16.msra.mxu0 %v3987
        %4011 = vmatprep.subr.bf16.mxu0 0
        %4012 = vmatpush1.bf16.msra.mxu0 %v3988
        %4013 = vmatprep.subr.bf16.mxu0 0
        %4014 = vmatpush1.bf16.msra.mxu0 0
        %4015 = vmatprep.subr.bf16.mxu0 0
        %4016 = vmatpush1.bf16.msra.mxu0 0
        %4017 = vmatprep.subr.bf16.mxu0 0
        %4018 = vmatpush1.bf16.msra.mxu0 0
        %4019 = vmatprep.subr.bf16.mxu0 0
        %4020 = vmatpush1.bf16.msra.mxu0 0
        %4021 = vmatprep.subr.bf16.mxu0 0
        %4022 = vmatpush1.bf16.msra.mxu0 0
        %4023 = vmatprep.subr.bf16.mxu0 0
        %4024 = vmatpush1.bf16.msra.mxu0 0
        %4025 = vmatprep.subr.bf16.mxu0 0
        %4026 = vmatpush1.bf16.msra.mxu0 0
        %4027 = vmatprep.subr.bf16.mxu0 0
        %4028 = vmatpush1.bf16.msra.mxu0 0
        %4029 = vmatprep.mubr.bf16.mxu0 0
        %4030 = vmatmul.mubr.bf16.gmra.mrb[0].mxu0 %v666
        %v4031 = vpop.f32.mrb[0].mxu0
        %v4032 = vadd.f32 0.0, %v4031
        %v4033 = vpop.f32.mrb[0].mxu0
        %v4034 = vpop.f32.mrb[0].mxu0
        %v4035 = vadd.f32 0.0, %v4034
        %v4036 = vpop.f32.mrb[0].mxu0
        %4037 = vmatprep.mubr.bf16.mxu0 0
        %4038 = vmatmul.mubr.bf16.gmra.mrb[0].mxu0 %v667
        %v4039 = vpop.f32.mrb[0].mxu0
        %v4040 = vadd.f32 0.0, %v4039
        %v4041 = vpop.f32.mrb[0].mxu0
        %v4042 = vpop.f32.mrb[0].mxu0
        %v4043 = vadd.f32 0.0, %v4042
        %v4044 = vpop.f32.mrb[0].mxu0
        %4045 = vmatprep.mubr.bf16.mxu0 0
        %4046 = vmatmul.mubr.bf16.gmra.mrb[0].mxu0 %v668
        %v4047 = vpop.f32.mrb[0].mxu0
        %v4048 = vadd.f32 0.0, %v4047
        %v4049 = vpop.f32.mrb[0].mxu0
        %v4050 = vpop.f32.mrb[0].mxu0
        %v4051 = vadd.f32 0.0, %v4050
        %v4052 = vpop.f32.mrb[0].mxu0
        %4053 = vmatprep.mubr.bf16.mxu0 0
        %4054 = vmatmul.mubr.bf16.gmra.mrb[0].mxu0 %v669
        %v4055 = vpop.f32.mrb[0].mxu0
        %v4056 = vadd.f32 0.0, %v4055
        %v4057 = vpop.f32.mrb[0].mxu0
        %v4058 = vpop.f32.mrb[0].mxu0
        %v4059 = vadd.f32 0.0, %v4058
        %v4060 = vpop.f32.mrb[0].mxu0
        %4061 = vmatprep.mubr.bf16.mxu0 0
        %4062 = vmatmul.mubr.bf16.gmra.mrb[0].mxu0 %v670
        %v4063 = vpop.f32.mrb[0].mxu0
        %v4064 = vadd.f32 0.0, %v4063
        %v4065 = vpop.f32.mrb[0].mxu0
        %v4066 = vpop.f32.mrb[0].mxu0
        %v4067 = vadd.f32 0.0, %v4066
        %v4068 = vpop.f32.mrb[0].mxu0
        %4069 = vmatprep.mubr.bf16.mxu0 0
        %4070 = vmatmul.mubr.bf16.gmra.mrb[0].mxu0 %v671
        %v4071 = vpop.f32.mrb[0].mxu0
        %v4072 = vadd.f32 0.0, %v4071
        %v4073 = vpop.f32.mrb[0].mxu0
        %v4074 = vpop.f32.mrb[0].mxu0
        %v4075 = vadd.f32 0.0, %v4074
        %v4076 = vpop.f32.mrb[0].mxu0
        %4077 = vmatprep.mubr.bf16.mxu0 0
        %4078 = vmatmul.mubr.bf16.gmra.mrb[0].mxu0 %v672
        %v4079 = vpop.f32.mrb[0].mxu0
        %v4080 = vadd.f32 0.0, %v4079
        %v4081 = vpop.f32.mrb[0].mxu0
        %v4082 = vpop.f32.mrb[0].mxu0
        %v4083 = vadd.f32 0.0, %v4082
        %v4084 = vpop.f32.mrb[0].mxu0
        %4085 = vmatprep.mubr.bf16.mxu0 0
        %4086 = vmatmul.mubr.bf16.gmra.mrb[0].mxu0 %v673
        %v4087 = vpop.f32.mrb[0].mxu0
        %v4088 = vadd.f32 0.0, %v4087
        %v4089 = vpop.f32.mrb[0].mxu0
        %v4090 = vpop.f32.mrb[0].mxu0
        %v4091 = vadd.f32 0.0, %v4090
        %v4092 = vpop.f32.mrb[0].mxu0
        %4093 = vmatprep.mubr.bf16.mxu0 0
        %4094 = vmatmul.mubr.bf16.gmra.mrb[0].mxu0 %v674
        %v4095 = vpop.f32.mrb[0].mxu0
        %v4096 = vadd.f32 0.0, %v4095
        %v4097 = vpop.f32.mrb[0].mxu0
        %v4098 = vpop.f32.mrb[0].mxu0
        %v4099 = vadd.f32 0.0, %v4098
        %v4100 = vpop.f32.mrb[0].mxu0
        %4101 = vmatprep.mubr.bf16.mxu0 0
        %4102 = vmatmul.mubr.bf16.gmra.mrb[0].mxu0 %v675
        %v4103 = vpop.f32.mrb[0].mxu0
        %v4104 = vadd.f32 0.0, %v4103
        %v4105 = vpop.f32.mrb[0].mxu0
        %v4106 = vpop.f32.mrb[0].mxu0
        %v4107 = vadd.f32 0.0, %v4106
        %v4108 = vpop.f32.mrb[0].mxu0
        %4109 = vmatprep.mubr.bf16.mxu0 0
        %4110 = vmatmul.mubr.bf16.gmra.mrb[0].mxu0 %v676
        %v4111 = vpop.f32.mrb[0].mxu0
        %v4112 = vadd.f32 0.0, %v4111
        %v4113 = vpop.f32.mrb[0].mxu0
        %v4114 = vpop.f32.mrb[0].mxu0
        %v4115 = vadd.f32 0.0, %v4114
        %v4116 = vpop.f32.mrb[0].mxu0
        %4117 = vmatprep.mubr.bf16.mxu0 0
        %4118 = vmatmul.mubr.bf16.gmra.mrb[0].mxu0 %v677
        %v4119 = vpop.f32.mrb[0].mxu0
        %v4120 = vadd.f32 0.0, %v4119
        %v4121 = vpop.f32.mrb[0].mxu0
        %v4122 = vpop.f32.mrb[0].mxu0
        %v4123 = vadd.f32 0.0, %v4122
        %v4124 = vpop.f32.mrb[0].mxu0
        %4125 = vmatprep.mubr.bf16.mxu0 0
        %4126 = vmatmul.mubr.bf16.gmra.mrb[0].mxu0 %v678
        %v4127 = vpop.f32.mrb[0].mxu0
        %v4128 = vadd.f32 0.0, %v4127
        %v4129 = vpop.f32.mrb[0].mxu0
        %v4130 = vpop.f32.mrb[0].mxu0
        %v4131 = vadd.f32 0.0, %v4130
        %v4132 = vpop.f32.mrb[0].mxu0
        %4133 = vmatprep.mubr.bf16.mxu0 0
        %4134 = vmatmul.mubr.bf16.gmra.mrb[0].mxu0 %v679
        %v4135 = vpop.f32.mrb[0].mxu0
        %v4136 = vadd.f32 0.0, %v4135
        %v4137 = vpop.f32.mrb[0].mxu0
        %v4138 = vpop.f32.mrb[0].mxu0
        %v4139 = vadd.f32 0.0, %v4138
        %v4140 = vpop.f32.mrb[0].mxu0
        %4141 = vmatprep.mubr.bf16.mxu0 0
        %4142 = vmatmul.mubr.bf16.gmra.mrb[0].mxu0 %v680
        %v4143 = vpop.f32.mrb[0].mxu0
        %v4144 = vadd.f32 0.0, %v4143
        %v4145 = vpop.f32.mrb[0].mxu0
        %v4146 = vpop.f32.mrb[0].mxu0
        %v4147 = vadd.f32 0.0, %v4146
        %v4148 = vpop.f32.mrb[0].mxu0
        %4149 = vmatprep.mubr.bf16.mxu0 0
        %4150 = vmatmul.mubr.bf16.gmra.mrb[0].mxu0 %v681
        %v4151 = vpop.f32.mrb[0].mxu0
        %v4152 = vadd.f32 0.0, %v4151
        %v4153 = vpop.f32.mrb[0].mxu0
        %v4154 = vpop.f32.mrb[0].mxu0
        %v4155 = vadd.f32 0.0, %v4154
        %v4156 = vpop.f32.mrb[0].mxu0
        %4157 = vdwg.mxu0
        %s4158 = scalar_lea.vmem %s4, 128
        %v4159 = vld [vmem:[%s4158] sm:$0xf]
        %v4160 = vld [vmem:[%s4158 + $0x4] sm:$0xf]
        %v4161 = vld [vmem:[%s4158 + $0x8] sm:$0xf]
        %v4162 = vld [vmem:[%s4158 + $0xc] sm:$0xf]
        %v4163 = vld [vmem:[%s4158 + $0x10] sm:$0xf]
        %v4164 = vld [vmem:[%s4158 + $0x14] sm:$0xf]
        %v4165 = vld [vmem:[%s4158 + $0x18] sm:$0xf]
        %v4166 = vld [vmem:[%s4158 + $0x1c] sm:$0xf]
        %v4167 = vld [vmem:[%s4158 + $0x20] sm:$0xf]
        %v4168 = vld [vmem:[%s4158 + $0x24] sm:$0xf]
        %v4169 = vld [vmem:[%s4158 + $0x28] sm:$0xf]
        %v4170 = vld [vmem:[%s4158 + $0x2c] sm:$0xf]
        %v4171 = vld [vmem:[%s4158 + $0x30] sm:$0xf]
        %v4172 = vld [vmem:[%s4158 + $0x34] sm:$0xf]
        %v4173 = vld [vmem:[%s4158 + $0x38] sm:$0xf]
        %v4174 = vld [vmem:[%s4158 + $0x3c] sm:$0xf]
        %v4191 = vunpack.c.l.b16 %v4159
        %v4192 = vunpack.c.l.b16 %v4160
        %v4193 = vunpack.c.l.b16 %v4161
        %v4194 = vunpack.c.l.b16 %v4162
        %v4195 = vunpack.c.l.b16 %v4163
        %v4196 = vunpack.c.l.b16 %v4164
        %v4197 = vunpack.c.l.b16 %v4165
        %v4198 = vunpack.c.l.b16 %v4166
        %v4199 = vunpack.c.l.b16 %v4167
        %v4200 = vunpack.c.l.b16 %v4168
        %v4201 = vunpack.c.l.b16 %v4169
        %v4202 = vunpack.c.l.b16 %v4170
        %v4203 = vunpack.c.l.b16 %v4171
        %v4204 = vunpack.c.l.b16 %v4172
        %v4205 = vunpack.c.l.b16 %v4173
        %v4206 = vunpack.c.l.b16 %v4174
        %v4207 = vpack.c.b16 %v4192, %v4191
        %v4208 = vpack.c.b16 %v4194, %v4193
        %v4209 = vpack.c.b16 %v4196, %v4195
        %v4210 = vpack.c.b16 %v4198, %v4197
        %v4211 = vpack.c.b16 %v4200, %v4199
        %v4212 = vpack.c.b16 %v4202, %v4201
        %v4213 = vpack.c.b16 %v4204, %v4203
        %v4214 = vpack.c.b16 %v4206, %v4205
        %4223 = vmatprep.subr.bf16.mxu0 0
        %4224 = vmatpush1.bf16.msra.mxu0 %v4207
        %4225 = vmatprep.subr.bf16.mxu0 0
        %4226 = vmatpush1.bf16.msra.mxu0 %v4208
        %4227 = vmatprep.subr.bf16.mxu0 0
        %4228 = vmatpush1.bf16.msra.mxu0 %v4209
        %4229 = vmatprep.subr.bf16.mxu0 0
        %4230 = vmatpush1.bf16.msra.mxu0 %v4210
        %4231 = vmatprep.subr.bf16.mxu0 0
        %4232 = vmatpush1.bf16.msra.mxu0 %v4211
        %4233 = vmatprep.subr.bf16.mxu0 0
        %4234 = vmatpush1.bf16.msra.mxu0 %v4212
        %4235 = vmatprep.subr.bf16.mxu0 0
        %4236 = vmatpush1.bf16.msra.mxu0 %v4213
        %4237 = vmatprep.subr.bf16.mxu0 0
        %4238 = vmatpush1.bf16.msra.mxu0 %v4214
        %4239 = vmatprep.subr.bf16.mxu0 0
        %4240 = vmatpush1.bf16.msra.mxu0 0
        %4241 = vmatprep.subr.bf16.mxu0 0
        %4242 = vmatpush1.bf16.msra.mxu0 0
        %4243 = vmatprep.subr.bf16.mxu0 0
        %4244 = vmatpush1.bf16.msra.mxu0 0
        %4245 = vmatprep.subr.bf16.mxu0 0
        %4246 = vmatpush1.bf16.msra.mxu0 0
        %4247 = vmatprep.subr.bf16.mxu0 0
        %4248 = vmatpush1.bf16.msra.mxu0 0
        %4249 = vmatprep.subr.bf16.mxu0 0
        %4250 = vmatpush1.bf16.msra.mxu0 0
        %4251 = vmatprep.subr.bf16.mxu0 0
        %4252 = vmatpush1.bf16.msra.mxu0 0
        %4253 = vmatprep.subr.bf16.mxu0 0
        %4254 = vmatpush1.bf16.msra.mxu0 0
        %4255 = vmatprep.mubr.bf16.mxu0 0
        %4256 = vmatmul.mubr.bf16.gmra.mrb[0].mxu0 %v666
        %v4257 = vpop.f32.mrb[0].mxu0
        %v4258 = vadd.f32 0.0, %v4257
        %v4259 = vpop.f32.mrb[0].mxu0
        %v4260 = vpop.f32.mrb[0].mxu0
        %v4261 = vadd.f32 0.0, %v4260
        %v4262 = vpop.f32.mrb[0].mxu0
        %4263 = vmatprep.mubr.bf16.mxu0 0
        %4264 = vmatmul.mubr.bf16.gmra.mrb[0].mxu0 %v667
        %v4265 = vpop.f32.mrb[0].mxu0
        %v4266 = vadd.f32 0.0, %v4265
        %v4267 = vpop.f32.mrb[0].mxu0
        %v4268 = vpop.f32.mrb[0].mxu0
        %v4269 = vadd.f32 0.0, %v4268
        %v4270 = vpop.f32.mrb[0].mxu0
        %4271 = vmatprep.mubr.bf16.mxu0 0
        %4272 = vmatmul.mubr.bf16.gmra.mrb[0].mxu0 %v668
        %v4273 = vpop.f32.mrb[0].mxu0
        %v4274 = vadd.f32 0.0, %v4273
        %v4275 = vpop.f32.mrb[0].mxu0
        %v4276 = vpop.f32.mrb[0].mxu0
        %v4277 = vadd.f32 0.0, %v4276
        %v4278 = vpop.f32.mrb[0].mxu0
        %4279 = vmatprep.mubr.bf16.mxu0 0
        %4280 = vmatmul.mubr.bf16.gmra.mrb[0].mxu0 %v669
        %v4281 = vpop.f32.mrb[0].mxu0
        %v4282 = vadd.f32 0.0, %v4281
        %v4283 = vpop.f32.mrb[0].mxu0
        %v4284 = vpop.f32.mrb[0].mxu0
        %v4285 = vadd.f32 0.0, %v4284
        %v4286 = vpop.f32.mrb[0].mxu0
        %4287 = vmatprep.mubr.bf16.mxu0 0
        %4288 = vmatmul.mubr.bf16.gmra.mrb[0].mxu0 %v670
        %v4289 = vpop.f32.mrb[0].mxu0
        %v4290 = vadd.f32 0.0, %v4289
        %v4291 = vpop.f32.mrb[0].mxu0
        %v4292 = vpop.f32.mrb[0].mxu0
        %v4293 = vadd.f32 0.0, %v4292
        %v4294 = vpop.f32.mrb[0].mxu0
        %4295 = vmatprep.mubr.bf16.mxu0 0
        %4296 = vmatmul.mubr.bf16.gmra.mrb[0].mxu0 %v671
        %v4297 = vpop.f32.mrb[0].mxu0
        %v4298 = vadd.f32 0.0, %v4297
        %v4299 = vpop.f32.mrb[0].mxu0
        %v4300 = vpop.f32.mrb[0].mxu0
        %v4301 = vadd.f32 0.0, %v4300
        %v4302 = vpop.f32.mrb[0].mxu0
        %4303 = vmatprep.mubr.bf16.mxu0 0
        %4304 = vmatmul.mubr.bf16.gmra.mrb[0].mxu0 %v672
        %v4305 = vpop.f32.mrb[0].mxu0
        %v4306 = vadd.f32 0.0, %v4305
        %v4307 = vpop.f32.mrb[0].mxu0
        %v4308 = vpop.f32.mrb[0].mxu0
        %v4309 = vadd.f32 0.0, %v4308
        %v4310 = vpop.f32.mrb[0].mxu0
        %4311 = vmatprep.mubr.bf16.mxu0 0
        %4312 = vmatmul.mubr.bf16.gmra.mrb[0].mxu0 %v673
        %v4313 = vpop.f32.mrb[0].mxu0
        %v4314 = vadd.f32 0.0, %v4313
        %v4315 = vpop.f32.mrb[0].mxu0
        %v4316 = vpop.f32.mrb[0].mxu0
        %v4317 = vadd.f32 0.0, %v4316
        %v4318 = vpop.f32.mrb[0].mxu0
        %4319 = vmatprep.mubr.bf16.mxu0 0
        %4320 = vmatmul.mubr.bf16.gmra.mrb[0].mxu0 %v674
        %v4321 = vpop.f32.mrb[0].mxu0
        %v4322 = vadd.f32 0.0, %v4321
        %v4323 = vpop.f32.mrb[0].mxu0
        %v4324 = vpop.f32.mrb[0].mxu0
        %v4325 = vadd.f32 0.0, %v4324
        %v4326 = vpop.f32.mrb[0].mxu0
        %4327 = vmatprep.mubr.bf16.mxu0 0
        %4328 = vmatmul.mubr.bf16.gmra.mrb[0].mxu0 %v675
        %v4329 = vpop.f32.mrb[0].mxu0
        %v4330 = vadd.f32 0.0, %v4329
        %v4331 = vpop.f32.mrb[0].mxu0
        %v4332 = vpop.f32.mrb[0].mxu0
        %v4333 = vadd.f32 0.0, %v4332
        %v4334 = vpop.f32.mrb[0].mxu0
        %4335 = vmatprep.mubr.bf16.mxu0 0
        %4336 = vmatmul.mubr.bf16.gmra.mrb[0].mxu0 %v676
        %v4337 = vpop.f32.mrb[0].mxu0
        %v4338 = vadd.f32 0.0, %v4337
        %v4339 = vpop.f32.mrb[0].mxu0
        %v4340 = vpop.f32.mrb[0].mxu0
        %v4341 = vadd.f32 0.0, %v4340
        %v4342 = vpop.f32.mrb[0].mxu0
        %4343 = vmatprep.mubr.bf16.mxu0 0
        %4344 = vmatmul.mubr.bf16.gmra.mrb[0].mxu0 %v677
        %v4345 = vpop.f32.mrb[0].mxu0
        %v4346 = vadd.f32 0.0, %v4345
        %v4347 = vpop.f32.mrb[0].mxu0
        %v4348 = vpop.f32.mrb[0].mxu0
        %v4349 = vadd.f32 0.0, %v4348
        %v4350 = vpop.f32.mrb[0].mxu0
        %4351 = vmatprep.mubr.bf16.mxu0 0
        %4352 = vmatmul.mubr.bf16.gmra.mrb[0].mxu0 %v678
        %v4353 = vpop.f32.mrb[0].mxu0
        %v4354 = vadd.f32 0.0, %v4353
        %v4355 = vpop.f32.mrb[0].mxu0
        %v4356 = vpop.f32.mrb[0].mxu0
        %v4357 = vadd.f32 0.0, %v4356
        %v4358 = vpop.f32.mrb[0].mxu0
        %4359 = vmatprep.mubr.bf16.mxu0 0
        %4360 = vmatmul.mubr.bf16.gmra.mrb[0].mxu0 %v679
        %v4361 = vpop.f32.mrb[0].mxu0
        %v4362 = vadd.f32 0.0, %v4361
        %v4363 = vpop.f32.mrb[0].mxu0
        %v4364 = vpop.f32.mrb[0].mxu0
        %v4365 = vadd.f32 0.0, %v4364
        %v4366 = vpop.f32.mrb[0].mxu0
        %4367 = vmatprep.mubr.bf16.mxu0 0
        %4368 = vmatmul.mubr.bf16.gmra.mrb[0].mxu0 %v680
        %v4369 = vpop.f32.mrb[0].mxu0
        %v4370 = vadd.f32 0.0, %v4369
        %v4371 = vpop.f32.mrb[0].mxu0
        %v4372 = vpop.f32.mrb[0].mxu0
        %v4373 = vadd.f32 0.0, %v4372
        %v4374 = vpop.f32.mrb[0].mxu0
        %4375 = vmatprep.mubr.bf16.mxu0 0
        %4376 = vmatmul.mubr.bf16.gmra.mrb[0].mxu0 %v681
        %v4377 = vpop.f32.mrb[0].mxu0
        %v4378 = vadd.f32 0.0, %v4377
        %v4379 = vpop.f32.mrb[0].mxu0
        %v4380 = vpop.f32.mrb[0].mxu0
        %v4381 = vadd.f32 0.0, %v4380
        %v4382 = vpop.f32.mrb[0].mxu0
        %4383 = vdwg.mxu0
        %v4384 = vmul.f32 %v3870, %v3870
        %v4385 = vmul.f32 %v3873, %v3873
        %v4386 = vmul.f32 %v3878, %v3878
        %v4387 = vmul.f32 %v3881, %v3881
        %v4388 = vmul.f32 %v3886, %v3886
        %v4389 = vmul.f32 %v3889, %v3889
        %v4390 = vmul.f32 %v3894, %v3894
        %v4391 = vmul.f32 %v3897, %v3897
        %v4392 = vmul.f32 %v3902, %v3902
        %v4393 = vmul.f32 %v3905, %v3905
        %v4394 = vmul.f32 %v3910, %v3910
        %v4395 = vmul.f32 %v3913, %v3913
        %v4396 = vmul.f32 %v3918, %v3918
        %v4397 = vmul.f32 %v3921, %v3921
        %v4398 = vmul.f32 %v3926, %v3926
        %v4399 = vmul.f32 %v3929, %v3929
        %v4400 = vsel %vm1148, %v4384, 0.0
        %4401 = vadd.xlane.f32.xlu0 %v4400
        %v4402 = vpop.xlane.xlu0 %4401
        %v4403 = vsel %vm1148, %v4385, 0.0
        %4404 = vadd.xlane.f32.xlu0 %v4403
        %v4405 = vpop.xlane.xlu0 %4404
        %v4406 = vsel %vm1148, %v4386, 0.0
        %4407 = vadd.xlane.f32.xlu0 %v4406
        %v4408 = vpop.xlane.xlu0 %4407
        %v4409 = vsel %vm1148, %v4387, 0.0
        %4410 = vadd.xlane.f32.xlu0 %v4409
        %v4411 = vpop.xlane.xlu0 %4410
        %v4412 = vsel %vm1148, %v4388, 0.0
        %4413 = vadd.xlane.f32.xlu0 %v4412
        %v4414 = vpop.xlane.xlu0 %4413
        %v4415 = vsel %vm1148, %v4389, 0.0
        %4416 = vadd.xlane.f32.xlu0 %v4415
        %v4417 = vpop.xlane.xlu0 %4416
        %v4418 = vsel %vm1148, %v4390, 0.0
        %4419 = vadd.xlane.f32.xlu0 %v4418
        %v4420 = vpop.xlane.xlu0 %4419
        %v4421 = vsel %vm1148, %v4391, 0.0
        %4422 = vadd.xlane.f32.xlu0 %v4421
        %v4423 = vpop.xlane.xlu0 %4422
        %v4424 = vsel %vm1148, %v4392, 0.0
        %4425 = vadd.xlane.f32.xlu0 %v4424
        %v4426 = vpop.xlane.xlu0 %4425
        %v4427 = vsel %vm1148, %v4393, 0.0
        %4428 = vadd.xlane.f32.xlu0 %v4427
        %v4429 = vpop.xlane.xlu0 %4428
        %v4430 = vsel %vm1148, %v4394, 0.0
        %4431 = vadd.xlane.f32.xlu0 %v4430
        %v4432 = vpop.xlane.xlu0 %4431
        %v4433 = vsel %vm1148, %v4395, 0.0
        %4434 = vadd.xlane.f32.xlu0 %v4433
        %v4435 = vpop.xlane.xlu0 %4434
        %v4436 = vsel %vm1148, %v4396, 0.0
        %4437 = vadd.xlane.f32.xlu0 %v4436
        %v4438 = vpop.xlane.xlu0 %4437
        %v4439 = vsel %vm1148, %v4397, 0.0
        %4440 = vadd.xlane.f32.xlu0 %v4439
        %v4441 = vpop.xlane.xlu0 %4440
        %v4442 = vsel %vm1148, %v4398, 0.0
        %4443 = vadd.xlane.f32.xlu0 %v4442
        %v4444 = vpop.xlane.xlu0 %4443
        %v4445 = vsel %vm1148, %v4399, 0.0
        %4446 = vadd.xlane.f32.xlu0 %v4445
        %v4447 = vpop.xlane.xlu0 %4446
        %v4448 = vmax.f32 %v4402, 1e-24
        %v4449 = vmax.f32 %v4405, 1e-24
        %v4450 = vmax.f32 %v4408, 1e-24
        %v4451 = vmax.f32 %v4411, 1e-24
        %v4452 = vmax.f32 %v4414, 1e-24
        %v4453 = vmax.f32 %v4417, 1e-24
        %v4454 = vmax.f32 %v4420, 1e-24
        %v4455 = vmax.f32 %v4423, 1e-24
        %v4456 = vmax.f32 %v4426, 1e-24
        %v4457 = vmax.f32 %v4429, 1e-24
        %v4458 = vmax.f32 %v4432, 1e-24
        %v4459 = vmax.f32 %v4435, 1e-24
        %v4460 = vmax.f32 %v4438, 1e-24
        %v4461 = vmax.f32 %v4441, 1e-24
        %v4462 = vmax.f32 %v4444, 1e-24
        %v4463 = vmax.f32 %v4447, 1e-24
        %v4464 = vrsqrt.pop %v4448
        %v4465 = vrsqrt.pop %v4449
        %v4466 = vrsqrt.pop %v4450
        %v4467 = vrsqrt.pop %v4451
        %v4468 = vrsqrt.pop %v4452
        %v4469 = vrsqrt.pop %v4453
        %v4470 = vrsqrt.pop %v4454
        %v4471 = vrsqrt.pop %v4455
        %v4472 = vrsqrt.pop %v4456
        %v4473 = vrsqrt.pop %v4457
        %v4474 = vrsqrt.pop %v4458
        %v4475 = vrsqrt.pop %v4459
        %v4476 = vrsqrt.pop %v4460
        %v4477 = vrsqrt.pop %v4461
        %v4478 = vrsqrt.pop %v4462
        %v4479 = vrsqrt.pop %v4463
        %v4480 = vmul.f32 %v4464, 10.0
        %v4481 = vmul.f32 %v4465, 10.0
        %v4482 = vmul.f32 %v4466, 10.0
        %v4483 = vmul.f32 %v4467, 10.0
        %v4484 = vmul.f32 %v4468, 10.0
        %v4485 = vmul.f32 %v4469, 10.0
        %v4486 = vmul.f32 %v4470, 10.0
        %v4487 = vmul.f32 %v4471, 10.0
        %v4488 = vmul.f32 %v4472, 10.0
        %v4489 = vmul.f32 %v4473, 10.0
        %v4490 = vmul.f32 %v4474, 10.0
        %v4491 = vmul.f32 %v4475, 10.0
        %v4492 = vmul.f32 %v4476, 10.0
        %v4493 = vmul.f32 %v4477, 10.0
        %v4494 = vmul.f32 %v4478, 10.0
        %v4495 = vmul.f32 %v4479, 10.0
        %v4496 = vmul.f32 %v3870, %v4480
        %v4497 = vmul.f32 %v3873, %v4481
        %v4498 = vmul.f32 %v3878, %v4482
        %v4499 = vmul.f32 %v3881, %v4483
        %v4500 = vmul.f32 %v3886, %v4484
        %v4501 = vmul.f32 %v3889, %v4485
        %v4502 = vmul.f32 %v3894, %v4486
        %v4503 = vmul.f32 %v3897, %v4487
        %v4504 = vmul.f32 %v3902, %v4488
        %v4505 = vmul.f32 %v3905, %v4489
        %v4506 = vmul.f32 %v3910, %v4490
        %v4507 = vmul.f32 %v3913, %v4491
        %v4508 = vmul.f32 %v3918, %v4492
        %v4509 = vmul.f32 %v3921, %v4493
        %v4510 = vmul.f32 %v3926, %v4494
        %v4511 = vmul.f32 %v3929, %v4495
        %v4512 = vmul.f32 %v4032, %v4032
        %v4513 = vmul.f32 %v4035, %v4035
        %v4514 = vmul.f32 %v4040, %v4040
        %v4515 = vmul.f32 %v4043, %v4043
        %v4516 = vmul.f32 %v4048, %v4048
        %v4517 = vmul.f32 %v4051, %v4051
        %v4518 = vmul.f32 %v4056, %v4056
        %v4519 = vmul.f32 %v4059, %v4059
        %v4520 = vmul.f32 %v4064, %v4064
        %v4521 = vmul.f32 %v4067, %v4067
        %v4522 = vmul.f32 %v4072, %v4072
        %v4523 = vmul.f32 %v4075, %v4075
        %v4524 = vmul.f32 %v4080, %v4080
        %v4525 = vmul.f32 %v4083, %v4083
        %v4526 = vmul.f32 %v4088, %v4088
        %v4527 = vmul.f32 %v4091, %v4091
        %v4528 = vmul.f32 %v4096, %v4096
        %v4529 = vmul.f32 %v4099, %v4099
        %v4530 = vmul.f32 %v4104, %v4104
        %v4531 = vmul.f32 %v4107, %v4107
        %v4532 = vmul.f32 %v4112, %v4112
        %v4533 = vmul.f32 %v4115, %v4115
        %v4534 = vmul.f32 %v4120, %v4120
        %v4535 = vmul.f32 %v4123, %v4123
        %v4536 = vmul.f32 %v4128, %v4128
        %v4537 = vmul.f32 %v4131, %v4131
        %v4538 = vmul.f32 %v4136, %v4136
        %v4539 = vmul.f32 %v4139, %v4139
        %v4540 = vmul.f32 %v4144, %v4144
        %v4541 = vmul.f32 %v4147, %v4147
        %v4542 = vmul.f32 %v4152, %v4152
        %v4543 = vmul.f32 %v4155, %v4155
        %v4544 = vsel %vm1148, %v4512, 0.0
        %4545 = vadd.xlane.f32.xlu0 %v4544
        %v4546 = vpop.xlane.xlu0 %4545
        %v4547 = vsel %vm1148, %v4513, 0.0
        %4548 = vadd.xlane.f32.xlu0 %v4547
        %v4549 = vpop.xlane.xlu0 %4548
        %v4550 = vsel %vm1148, %v4514, 0.0
        %4551 = vadd.xlane.f32.xlu0 %v4550
        %v4552 = vpop.xlane.xlu0 %4551
        %v4553 = vsel %vm1148, %v4515, 0.0
        %4554 = vadd.xlane.f32.xlu0 %v4553
        %v4555 = vpop.xlane.xlu0 %4554
        %v4556 = vsel %vm1148, %v4516, 0.0
        %4557 = vadd.xlane.f32.xlu0 %v4556
        %v4558 = vpop.xlane.xlu0 %4557
        %v4559 = vsel %vm1148, %v4517, 0.0
        %4560 = vadd.xlane.f32.xlu0 %v4559
        %v4561 = vpop.xlane.xlu0 %4560
        %v4562 = vsel %vm1148, %v4518, 0.0
        %4563 = vadd.xlane.f32.xlu0 %v4562
        %v4564 = vpop.xlane.xlu0 %4563
        %v4565 = vsel %vm1148, %v4519, 0.0
        %4566 = vadd.xlane.f32.xlu0 %v4565
        %v4567 = vpop.xlane.xlu0 %4566
        %v4568 = vsel %vm1148, %v4520, 0.0
        %4569 = vadd.xlane.f32.xlu0 %v4568
        %v4570 = vpop.xlane.xlu0 %4569
        %v4571 = vsel %vm1148, %v4521, 0.0
        %4572 = vadd.xlane.f32.xlu0 %v4571
        %v4573 = vpop.xlane.xlu0 %4572
        %v4574 = vsel %vm1148, %v4522, 0.0
        %4575 = vadd.xlane.f32.xlu0 %v4574
        %v4576 = vpop.xlane.xlu0 %4575
        %v4577 = vsel %vm1148, %v4523, 0.0
        %4578 = vadd.xlane.f32.xlu0 %v4577
        %v4579 = vpop.xlane.xlu0 %4578
        %v4580 = vsel %vm1148, %v4524, 0.0
        %4581 = vadd.xlane.f32.xlu0 %v4580
        %v4582 = vpop.xlane.xlu0 %4581
        %v4583 = vsel %vm1148, %v4525, 0.0
        %4584 = vadd.xlane.f32.xlu0 %v4583
        %v4585 = vpop.xlane.xlu0 %4584
        %v4586 = vsel %vm1148, %v4526, 0.0
        %4587 = vadd.xlane.f32.xlu0 %v4586
        %v4588 = vpop.xlane.xlu0 %4587
        %v4589 = vsel %vm1148, %v4527, 0.0
        %4590 = vadd.xlane.f32.xlu0 %v4589
        %v4591 = vpop.xlane.xlu0 %4590
        %v4592 = vsel %vm1148, %v4528, 0.0
        %4593 = vadd.xlane.f32.xlu0 %v4592
        %v4594 = vpop.xlane.xlu0 %4593
        %v4595 = vsel %vm1148, %v4529, 0.0
        %4596 = vadd.xlane.f32.xlu0 %v4595
        %v4597 = vpop.xlane.xlu0 %4596
        %v4598 = vsel %vm1148, %v4530, 0.0
        %4599 = vadd.xlane.f32.xlu0 %v4598
        %v4600 = vpop.xlane.xlu0 %4599
        %v4601 = vsel %vm1148, %v4531, 0.0
        %4602 = vadd.xlane.f32.xlu0 %v4601
        %v4603 = vpop.xlane.xlu0 %4602
        %v4604 = vsel %vm1148, %v4532, 0.0
        %4605 = vadd.xlane.f32.xlu0 %v4604
        %v4606 = vpop.xlane.xlu0 %4605
        %v4607 = vsel %vm1148, %v4533, 0.0
        %4608 = vadd.xlane.f32.xlu0 %v4607
        %v4609 = vpop.xlane.xlu0 %4608
        %v4610 = vsel %vm1148, %v4534, 0.0
        %4611 = vadd.xlane.f32.xlu0 %v4610
        %v4612 = vpop.xlane.xlu0 %4611
        %v4613 = vsel %vm1148, %v4535, 0.0
        %4614 = vadd.xlane.f32.xlu0 %v4613
        %v4615 = vpop.xlane.xlu0 %4614
        %v4616 = vsel %vm1148, %v4536, 0.0
        %4617 = vadd.xlane.f32.xlu0 %v4616
        %v4618 = vpop.xlane.xlu0 %4617
        %v4619 = vsel %vm1148, %v4537, 0.0
        %4620 = vadd.xlane.f32.xlu0 %v4619
        %v4621 = vpop.xlane.xlu0 %4620
        %v4622 = vsel %vm1148, %v4538, 0.0
        %4623 = vadd.xlane.f32.xlu0 %v4622
        %v4624 = vpop.xlane.xlu0 %4623
        %v4625 = vsel %vm1148, %v4539, 0.0
        %4626 = vadd.xlane.f32.xlu0 %v4625
        %v4627 = vpop.xlane.xlu0 %4626
        %v4628 = vsel %vm1148, %v4540, 0.0
        %4629 = vadd.xlane.f32.xlu0 %v4628
        %v4630 = vpop.xlane.xlu0 %4629
        %v4631 = vsel %vm1148, %v4541, 0.0
        %4632 = vadd.xlane.f32.xlu0 %v4631
        %v4633 = vpop.xlane.xlu0 %4632
        %v4634 = vsel %vm1148, %v4542, 0.0
        %4635 = vadd.xlane.f32.xlu0 %v4634
        %v4636 = vpop.xlane.xlu0 %4635
        %v4637 = vsel %vm1148, %v4543, 0.0
        %4638 = vadd.xlane.f32.xlu0 %v4637
        %v4639 = vpop.xlane.xlu0 %4638
        %v4640 = vmax.f32 %v4546, 1e-24
        %v4641 = vmax.f32 %v4549, 1e-24
        %v4642 = vmax.f32 %v4552, 1e-24
        %v4643 = vmax.f32 %v4555, 1e-24
        %v4644 = vmax.f32 %v4558, 1e-24
        %v4645 = vmax.f32 %v4561, 1e-24
        %v4646 = vmax.f32 %v4564, 1e-24
        %v4647 = vmax.f32 %v4567, 1e-24
        %v4648 = vmax.f32 %v4570, 1e-24
        %v4649 = vmax.f32 %v4573, 1e-24
        %v4650 = vmax.f32 %v4576, 1e-24
        %v4651 = vmax.f32 %v4579, 1e-24
        %v4652 = vmax.f32 %v4582, 1e-24
        %v4653 = vmax.f32 %v4585, 1e-24
        %v4654 = vmax.f32 %v4588, 1e-24
        %v4655 = vmax.f32 %v4591, 1e-24
        %v4656 = vmax.f32 %v4594, 1e-24
        %v4657 = vmax.f32 %v4597, 1e-24
        %v4658 = vmax.f32 %v4600, 1e-24
        %v4659 = vmax.f32 %v4603, 1e-24
        %v4660 = vmax.f32 %v4606, 1e-24
        %v4661 = vmax.f32 %v4609, 1e-24
        %v4662 = vmax.f32 %v4612, 1e-24
        %v4663 = vmax.f32 %v4615, 1e-24
        %v4664 = vmax.f32 %v4618, 1e-24
        %v4665 = vmax.f32 %v4621, 1e-24
        %v4666 = vmax.f32 %v4624, 1e-24
        %v4667 = vmax.f32 %v4627, 1e-24
        %v4668 = vmax.f32 %v4630, 1e-24
        %v4669 = vmax.f32 %v4633, 1e-24
        %v4670 = vmax.f32 %v4636, 1e-24
        %v4671 = vmax.f32 %v4639, 1e-24
        %v4672 = vrsqrt.pop %v4640
        %v4673 = vrsqrt.pop %v4641
        %v4674 = vrsqrt.pop %v4642
        %v4675 = vrsqrt.pop %v4643
        %v4676 = vrsqrt.pop %v4644
        %v4677 = vrsqrt.pop %v4645
        %v4678 = vrsqrt.pop %v4646
        %v4679 = vrsqrt.pop %v4647
        %v4680 = vrsqrt.pop %v4648
        %v4681 = vrsqrt.pop %v4649
        %v4682 = vrsqrt.pop %v4650
        %v4683 = vrsqrt.pop %v4651
        %v4684 = vrsqrt.pop %v4652
        %v4685 = vrsqrt.pop %v4653
        %v4686 = vrsqrt.pop %v4654
        %v4687 = vrsqrt.pop %v4655
        %v4688 = vrsqrt.pop %v4656
        %v4689 = vrsqrt.pop %v4657
        %v4690 = vrsqrt.pop %v4658
        %v4691 = vrsqrt.pop %v4659
        %v4692 = vrsqrt.pop %v4660
        %v4693 = vrsqrt.pop %v4661
        %v4694 = vrsqrt.pop %v4662
        %v4695 = vrsqrt.pop %v4663
        %v4696 = vrsqrt.pop %v4664
        %v4697 = vrsqrt.pop %v4665
        %v4698 = vrsqrt.pop %v4666
        %v4699 = vrsqrt.pop %v4667
        %v4700 = vrsqrt.pop %v4668
        %v4701 = vrsqrt.pop %v4669
        %v4702 = vrsqrt.pop %v4670
        %v4703 = vrsqrt.pop %v4671
        %v4704 = vmul.f32 %v4032, %v4672
        %v4705 = vmul.f32 %v4035, %v4673
        %v4706 = vmul.f32 %v4040, %v4674
        %v4707 = vmul.f32 %v4043, %v4675
        %v4708 = vmul.f32 %v4048, %v4676
        %v4709 = vmul.f32 %v4051, %v4677
        %v4710 = vmul.f32 %v4056, %v4678
        %v4711 = vmul.f32 %v4059, %v4679
        %v4712 = vmul.f32 %v4064, %v4680
        %v4713 = vmul.f32 %v4067, %v4681
        %v4714 = vmul.f32 %v4072, %v4682
        %v4715 = vmul.f32 %v4075, %v4683
        %v4716 = vmul.f32 %v4080, %v4684
        %v4717 = vmul.f32 %v4083, %v4685
        %v4718 = vmul.f32 %v4088, %v4686
        %v4719 = vmul.f32 %v4091, %v4687
        %v4720 = vmul.f32 %v4096, %v4688
        %v4721 = vmul.f32 %v4099, %v4689
        %v4722 = vmul.f32 %v4104, %v4690
        %v4723 = vmul.f32 %v4107, %v4691
        %v4724 = vmul.f32 %v4112, %v4692
        %v4725 = vmul.f32 %v4115, %v4693
        %v4726 = vmul.f32 %v4120, %v4694
        %v4727 = vmul.f32 %v4123, %v4695
        %v4728 = vmul.f32 %v4128, %v4696
        %v4729 = vmul.f32 %v4131, %v4697
        %v4730 = vmul.f32 %v4136, %v4698
        %v4731 = vmul.f32 %v4139, %v4699
        %v4732 = vmul.f32 %v4144, %v4700
        %v4733 = vmul.f32 %v4147, %v4701
        %v4734 = vmul.f32 %v4152, %v4702
        %v4735 = vmul.f32 %v4155, %v4703
        %v4736 = vpack.c.bf16 %v4497, %v4496
        %v4737 = vpack.c.bf16 %v4499, %v4498
        %v4738 = vpack.c.bf16 %v4501, %v4500
        %v4739 = vpack.c.bf16 %v4503, %v4502
        %v4740 = vpack.c.bf16 %v4505, %v4504
        %v4741 = vpack.c.bf16 %v4507, %v4506
        %v4742 = vpack.c.bf16 %v4509, %v4508
        %v4743 = vpack.c.bf16 %v4511, %v4510
        %v4744 = vpack.c.bf16 %v4705, %v4704
        %v4745 = vpack.c.bf16 %v4707, %v4706
        %v4746 = vpack.c.bf16 %v4709, %v4708
        %v4747 = vpack.c.bf16 %v4711, %v4710
        %v4748 = vpack.c.bf16 %v4713, %v4712
        %v4749 = vpack.c.bf16 %v4715, %v4714
        %v4750 = vpack.c.bf16 %v4717, %v4716
        %v4751 = vpack.c.bf16 %v4719, %v4718
        %v4752 = vpack.c.bf16 %v4721, %v4720
        %v4753 = vpack.c.bf16 %v4723, %v4722
        %v4754 = vpack.c.bf16 %v4725, %v4724
        %v4755 = vpack.c.bf16 %v4727, %v4726
        %v4756 = vpack.c.bf16 %v4729, %v4728
        %v4757 = vpack.c.bf16 %v4731, %v4730
        %v4758 = vpack.c.bf16 %v4733, %v4732
        %v4759 = vpack.c.bf16 %v4735, %v4734
        %v4761 = vsel %vm1148, %v4736, 0
        %v4764 = vsel %vm1148, %v4737, 0
        %v4767 = vsel %vm1148, %v4738, 0
        %v4770 = vsel %vm1148, %v4739, 0
        %v4773 = vsel %vm1148, %v4740, 0
        %v4776 = vsel %vm1148, %v4741, 0
        %v4779 = vsel %vm1148, %v4742, 0
        %v4782 = vsel %vm1148, %v4743, 0
        %v4785 = vsel %vm1148, %v4744, 0
        %v4788 = vsel %vm1148, %v4745, 0
        %v4791 = vsel %vm1148, %v4746, 0
        %v4794 = vsel %vm1148, %v4747, 0
        %v4797 = vsel %vm1148, %v4748, 0
        %v4800 = vsel %vm1148, %v4749, 0
        %v4803 = vsel %vm1148, %v4750, 0
        %v4806 = vsel %vm1148, %v4751, 0
        %v4809 = vsel %vm1148, %v4752, 0
        %v4812 = vsel %vm1148, %v4753, 0
        %v4815 = vsel %vm1148, %v4754, 0
        %v4818 = vsel %vm1148, %v4755, 0
        %v4821 = vsel %vm1148, %v4756, 0
        %v4824 = vsel %vm1148, %v4757, 0
        %v4827 = vsel %vm1148, %v4758, 0
        %v4830 = vsel %vm1148, %v4759, 0
        %4832 = vmatprep.subr.bf16.mxu0 0
        %4833 = vmatpush1.bf16.xpose.msra.mxu0 %v4785
        %4834 = vmatprep.subr.bf16.mxu0 0
        %4835 = vmatpush1.bf16.xpose.msra.mxu0 %v4788
        %4836 = vmatprep.subr.bf16.mxu0 0
        %4837 = vmatpush1.bf16.xpose.msra.mxu0 %v4791
        %4838 = vmatprep.subr.bf16.mxu0 0
        %4839 = vmatpush1.bf16.xpose.msra.mxu0 %v4794
        %4840 = vmatprep.subr.bf16.mxu0 0
        %4841 = vmatpush1.bf16.xpose.msra.mxu0 %v4797
        %4842 = vmatprep.subr.bf16.mxu0 0
        %4843 = vmatpush1.bf16.xpose.msra.mxu0 %v4800
        %4844 = vmatprep.subr.bf16.mxu0 0
        %4845 = vmatpush1.bf16.xpose.msra.mxu0 %v4803
        %4846 = vmatprep.subr.bf16.mxu0 0
        %4847 = vmatpush1.bf16.xpose.msra.mxu0 %v4806
        %4848 = vmatprep.subr.bf16.mxu0 0
        %4849 = vmatpush1.bf16.xpose.msra.mxu0 %v4809
        %4850 = vmatprep.subr.bf16.mxu0 0
        %4851 = vmatpush1.bf16.xpose.msra.mxu0 %v4812
        %4852 = vmatprep.subr.bf16.mxu0 0
        %4853 = vmatpush1.bf16.xpose.msra.mxu0 %v4815
        %4854 = vmatprep.subr.bf16.mxu0 0
        %4855 = vmatpush1.bf16.xpose.msra.mxu0 %v4818
        %4856 = vmatprep.subr.bf16.mxu0 0
        %4857 = vmatpush1.bf16.xpose.msra.mxu0 %v4821
        %4858 = vmatprep.subr.bf16.mxu0 0
        %4859 = vmatpush1.bf16.xpose.msra.mxu0 %v4824
        %4860 = vmatprep.subr.bf16.mxu0 0
        %4861 = vmatpush1.bf16.xpose.msra.mxu0 %v4827
        %4862 = vmatprep.subr.bf16.mxu0 0
        %4863 = vmatpush1.bf16.xpose.msra.mxu0 %v4830
        %4864 = vmatprep.mubr.bf16.mxu0 0
        %4865 = vmatmul.mubr.bf16.gmra.mrb[0].mxu0 %v4761
        %v4866 = vpop.f32.mrb[0].mxu0
        %v4867 = vadd.f32 0.0, %v4866
        %v4868 = vpop.f32.mrb[0].mxu0
        %v4869 = vadd.f32 0.0, %v4868
        %v4870 = vpop.f32.mrb[0].mxu0
        %v4871 = vadd.f32 0.0, %v4870
        %v4872 = vpop.f32.mrb[0].mxu0
        %v4873 = vadd.f32 0.0, %v4872
        %4874 = vmatprep.mubr.bf16.mxu0 0
        %4875 = vmatmul.mubr.bf16.gmra.mrb[0].mxu0 %v4764
        %v4876 = vpop.f32.mrb[0].mxu0
        %v4877 = vadd.f32 0.0, %v4876
        %v4878 = vpop.f32.mrb[0].mxu0
        %v4879 = vadd.f32 0.0, %v4878
        %v4880 = vpop.f32.mrb[0].mxu0
        %v4881 = vadd.f32 0.0, %v4880
        %v4882 = vpop.f32.mrb[0].mxu0
        %v4883 = vadd.f32 0.0, %v4882
        %4884 = vmatprep.mubr.bf16.mxu0 0
        %4885 = vmatmul.mubr.bf16.gmra.mrb[0].mxu0 %v4767
        %v4886 = vpop.f32.mrb[0].mxu0
        %v4887 = vadd.f32 0.0, %v4886
        %v4888 = vpop.f32.mrb[0].mxu0
        %v4889 = vadd.f32 0.0, %v4888
        %v4890 = vpop.f32.mrb[0].mxu0
        %v4891 = vadd.f32 0.0, %v4890
        %v4892 = vpop.f32.mrb[0].mxu0
        %v4893 = vadd.f32 0.0, %v4892
        %4894 = vmatprep.mubr.bf16.mxu0 0
        %4895 = vmatmul.mubr.bf16.gmra.mrb[0].mxu0 %v4770
        %v4896 = vpop.f32.mrb[0].mxu0
        %v4897 = vadd.f32 0.0, %v4896
        %v4898 = vpop.f32.mrb[0].mxu0
        %v4899 = vadd.f32 0.0, %v4898
        %v4900 = vpop.f32.mrb[0].mxu0
        %v4901 = vadd.f32 0.0, %v4900
        %v4902 = vpop.f32.mrb[0].mxu0
        %v4903 = vadd.f32 0.0, %v4902
        %4904 = vmatprep.mubr.bf16.mxu0 0
        %4905 = vmatmul.mubr.bf16.gmra.mrb[0].mxu0 %v4773
        %v4906 = vpop.f32.mrb[0].mxu0
        %v4907 = vadd.f32 0.0, %v4906
        %v4908 = vpop.f32.mrb[0].mxu0
        %v4909 = vadd.f32 0.0, %v4908
        %v4910 = vpop.f32.mrb[0].mxu0
        %v4911 = vadd.f32 0.0, %v4910
        %v4912 = vpop.f32.mrb[0].mxu0
        %v4913 = vadd.f32 0.0, %v4912
        %4914 = vmatprep.mubr.bf16.mxu0 0
        %4915 = vmatmul.mubr.bf16.gmra.mrb[0].mxu0 %v4776
        %v4916 = vpop.f32.mrb[0].mxu0
        %v4917 = vadd.f32 0.0, %v4916
        %v4918 = vpop.f32.mrb[0].mxu0
        %v4919 = vadd.f32 0.0, %v4918
        %v4920 = vpop.f32.mrb[0].mxu0
        %v4921 = vadd.f32 0.0, %v4920
        %v4922 = vpop.f32.mrb[0].mxu0
        %v4923 = vadd.f32 0.0, %v4922
        %4924 = vmatprep.mubr.bf16.mxu0 0
        %4925 = vmatmul.mubr.bf16.gmra.mrb[0].mxu0 %v4779
        %v4926 = vpop.f32.mrb[0].mxu0
        %v4927 = vadd.f32 0.0, %v4926
        %v4928 = vpop.f32.mrb[0].mxu0
        %v4929 = vadd.f32 0.0, %v4928
        %v4930 = vpop.f32.mrb[0].mxu0
        %v4931 = vadd.f32 0.0, %v4930
        %v4932 = vpop.f32.mrb[0].mxu0
        %v4933 = vadd.f32 0.0, %v4932
        %4934 = vmatprep.mubr.bf16.mxu0 0
        %4935 = vmatmul.mubr.bf16.gmra.mrb[0].mxu0 %v4782
        %v4936 = vpop.f32.mrb[0].mxu0
        %v4937 = vadd.f32 0.0, %v4936
        %v4938 = vpop.f32.mrb[0].mxu0
        %v4939 = vadd.f32 0.0, %v4938
        %v4940 = vpop.f32.mrb[0].mxu0
        %v4941 = vadd.f32 0.0, %v4940
        %v4942 = vpop.f32.mrb[0].mxu0
        %v4943 = vadd.f32 0.0, %v4942
        %4944 = vdwg.mxu0
        %v4945 = vsub.f32 %v4867, 10.0
        %v4946 = vsub.f32 %v4869, 10.0
        %v4947 = vsub.f32 %v4871, 10.0
        %v4948 = vsub.f32 %v4873, 10.0
        %v4949 = vsub.f32 %v4877, 10.0
        %v4950 = vsub.f32 %v4879, 10.0
        %v4951 = vsub.f32 %v4881, 10.0
        %v4952 = vsub.f32 %v4883, 10.0
        %v4953 = vsub.f32 %v4887, 10.0
        %v4954 = vsub.f32 %v4889, 10.0
        %v4955 = vsub.f32 %v4891, 10.0
        %v4956 = vsub.f32 %v4893, 10.0
        %v4957 = vsub.f32 %v4897, 10.0
        %v4958 = vsub.f32 %v4899, 10.0
        %v4959 = vsub.f32 %v4901, 10.0
        %v4960 = vsub.f32 %v4903, 10.0
        %v4961 = vsub.f32 %v4907, 10.0
        %v4962 = vsub.f32 %v4909, 10.0
        %v4963 = vsub.f32 %v4911, 10.0
        %v4964 = vsub.f32 %v4913, 10.0
        %v4965 = vsub.f32 %v4917, 10.0
        %v4966 = vsub.f32 %v4919, 10.0
        %v4967 = vsub.f32 %v4921, 10.0
        %v4968 = vsub.f32 %v4923, 10.0
        %v4969 = vsub.f32 %v4927, 10.0
        %v4970 = vsub.f32 %v4929, 10.0
        %v4971 = vsub.f32 %v4931, 10.0
        %v4972 = vsub.f32 %v4933, 10.0
        %v4973 = vsub.f32 %v4937, 10.0
        %v4974 = vsub.f32 %v4939, 10.0
        %v4975 = vsub.f32 %v4941, 10.0
        %v4976 = vsub.f32 %v4943, 10.0
        %v4977 = vmul.f32 %v4945, 1.442695
        %v4978 = vpow.pop %v4977
        %v4979 = vmul.f32 %v4946, 1.442695
        %v4980 = vpow.pop %v4979
        %v4981 = vmul.f32 %v4947, 1.442695
        %v4982 = vpow.pop %v4981
        %v4983 = vmul.f32 %v4948, 1.442695
        %v4984 = vpow.pop %v4983
        %v4985 = vmul.f32 %v4949, 1.442695
        %v4986 = vpow.pop %v4985
        %v4987 = vmul.f32 %v4950, 1.442695
        %v4988 = vpow.pop %v4987
        %v4989 = vmul.f32 %v4951, 1.442695
        %v4990 = vpow.pop %v4989
        %v4991 = vmul.f32 %v4952, 1.442695
        %v4992 = vpow.pop %v4991
        %v4993 = vmul.f32 %v4953, 1.442695
        %v4994 = vpow.pop %v4993
        %v4995 = vmul.f32 %v4954, 1.442695
        %v4996 = vpow.pop %v4995
        %v4997 = vmul.f32 %v4955, 1.442695
        %v4998 = vpow.pop %v4997
        %v4999 = vmul.f32 %v4956, 1.442695
        %v5000 = vpow.pop %v4999
        %v5001 = vmul.f32 %v4957, 1.442695
        %v5002 = vpow.pop %v5001
        %v5003 = vmul.f32 %v4958, 1.442695
        %v5004 = vpow.pop %v5003
        %v5005 = vmul.f32 %v4959, 1.442695
        %v5006 = vpow.pop %v5005
        %v5007 = vmul.f32 %v4960, 1.442695
        %v5008 = vpow.pop %v5007
        %v5009 = vmul.f32 %v4961, 1.442695
        %v5010 = vpow.pop %v5009
        %v5011 = vmul.f32 %v4962, 1.442695
        %v5012 = vpow.pop %v5011
        %v5013 = vmul.f32 %v4963, 1.442695
        %v5014 = vpow.pop %v5013
        %v5015 = vmul.f32 %v4964, 1.442695
        %v5016 = vpow.pop %v5015
        %v5017 = vmul.f32 %v4965, 1.442695
        %v5018 = vpow.pop %v5017
        %v5019 = vmul.f32 %v4966, 1.442695
        %v5020 = vpow.pop %v5019
        %v5021 = vmul.f32 %v4967, 1.442695
        %v5022 = vpow.pop %v5021
        %v5023 = vmul.f32 %v4968, 1.442695
        %v5024 = vpow.pop %v5023
        %v5025 = vmul.f32 %v4969, 1.442695
        %v5026 = vpow.pop %v5025
        %v5027 = vmul.f32 %v4970, 1.442695
        %v5028 = vpow.pop %v5027
        %v5029 = vmul.f32 %v4971, 1.442695
        %v5030 = vpow.pop %v5029
        %v5031 = vmul.f32 %v4972, 1.442695
        %v5032 = vpow.pop %v5031
        %v5033 = vmul.f32 %v4973, 1.442695
        %v5034 = vpow.pop %v5033
        %v5035 = vmul.f32 %v4974, 1.442695
        %v5036 = vpow.pop %v5035
        %v5037 = vmul.f32 %v4975, 1.442695
        %v5038 = vpow.pop %v5037
        %v5039 = vmul.f32 %v4976, 1.442695
        %v5040 = vpow.pop %v5039
        %v5041 = vadd.f32 %v4978, %v4980
        %5042 = vadd.xlane.f32.xlu0 %v5041
        %v5043 = vpop.xlane.xlu0 %5042
        %v5044 = vadd.f32 %v4982, %v4984
        %5045 = vadd.xlane.f32.xlu0 %v5044
        %v5046 = vpop.xlane.xlu0 %5045
        %v5047 = vadd.f32 %v4986, %v4988
        %5048 = vadd.xlane.f32.xlu0 %v5047
        %v5049 = vpop.xlane.xlu0 %5048
        %v5050 = vadd.f32 %v4990, %v4992
        %5051 = vadd.xlane.f32.xlu0 %v5050
        %v5052 = vpop.xlane.xlu0 %5051
        %v5053 = vadd.f32 %v4994, %v4996
        %5054 = vadd.xlane.f32.xlu0 %v5053
        %v5055 = vpop.xlane.xlu0 %5054
        %v5056 = vadd.f32 %v4998, %v5000
        %5057 = vadd.xlane.f32.xlu0 %v5056
        %v5058 = vpop.xlane.xlu0 %5057
        %v5059 = vadd.f32 %v5002, %v5004
        %5060 = vadd.xlane.f32.xlu0 %v5059
        %v5061 = vpop.xlane.xlu0 %5060
        %v5062 = vadd.f32 %v5006, %v5008
        %5063 = vadd.xlane.f32.xlu0 %v5062
        %v5064 = vpop.xlane.xlu0 %5063
        %v5065 = vadd.f32 %v5010, %v5012
        %5066 = vadd.xlane.f32.xlu0 %v5065
        %v5067 = vpop.xlane.xlu0 %5066
        %v5068 = vadd.f32 %v5014, %v5016
        %5069 = vadd.xlane.f32.xlu0 %v5068
        %v5070 = vpop.xlane.xlu0 %5069
        %v5071 = vadd.f32 %v5018, %v5020
        %5072 = vadd.xlane.f32.xlu0 %v5071
        %v5073 = vpop.xlane.xlu0 %5072
        %v5074 = vadd.f32 %v5022, %v5024
        %5075 = vadd.xlane.f32.xlu0 %v5074
        %v5076 = vpop.xlane.xlu0 %5075
        %v5077 = vadd.f32 %v5026, %v5028
        %5078 = vadd.xlane.f32.xlu0 %v5077
        %v5079 = vpop.xlane.xlu0 %5078
        %v5080 = vadd.f32 %v5030, %v5032
        %5081 = vadd.xlane.f32.xlu0 %v5080
        %v5082 = vpop.xlane.xlu0 %5081
        %v5083 = vadd.f32 %v5034, %v5036
        %5084 = vadd.xlane.f32.xlu0 %v5083
        %v5085 = vpop.xlane.xlu0 %5084
        %v5086 = vadd.f32 %v5038, %v5040
        %5087 = vadd.xlane.f32.xlu0 %v5086
        %v5088 = vpop.xlane.xlu0 %5087
        %v5089 = vpack.c.bf16 %v4982, %v4978
        %v5090 = vpack.c.bf16 %v4984, %v4980
        %v5091 = vpack.c.bf16 %v4990, %v4986
        %v5092 = vpack.c.bf16 %v4992, %v4988
        %v5093 = vpack.c.bf16 %v4998, %v4994
        %v5094 = vpack.c.bf16 %v5000, %v4996
        %v5095 = vpack.c.bf16 %v5006, %v5002
        %v5096 = vpack.c.bf16 %v5008, %v5004
        %v5097 = vpack.c.bf16 %v5014, %v5010
        %v5098 = vpack.c.bf16 %v5016, %v5012
        %v5099 = vpack.c.bf16 %v5022, %v5018
        %v5100 = vpack.c.bf16 %v5024, %v5020
        %v5101 = vpack.c.bf16 %v5030, %v5026
        %v5102 = vpack.c.bf16 %v5032, %v5028
        %v5103 = vpack.c.bf16 %v5038, %v5034
        %v5104 = vpack.c.bf16 %v5040, %v5036
        %v5105 = vpack.c.bf16 %v4261, %v4258
        %v5106 = vpack.c.bf16 %v4269, %v4266
        %v5107 = vpack.c.bf16 %v4277, %v4274
        %v5108 = vpack.c.bf16 %v4285, %v4282
        %v5109 = vpack.c.bf16 %v4293, %v4290
        %v5110 = vpack.c.bf16 %v4301, %v4298
        %v5111 = vpack.c.bf16 %v4309, %v4306
        %v5112 = vpack.c.bf16 %v4317, %v4314
        %v5113 = vpack.c.bf16 %v4325, %v4322
        %v5114 = vpack.c.bf16 %v4333, %v4330
        %v5115 = vpack.c.bf16 %v4341, %v4338
        %v5116 = vpack.c.bf16 %v4349, %v4346
        %v5117 = vpack.c.bf16 %v4357, %v4354
        %v5118 = vpack.c.bf16 %v4365, %v4362
        %v5119 = vpack.c.bf16 %v4373, %v4370
        %v5120 = vpack.c.bf16 %v4381, %v4378
        %5121 = vmatprep.subr.bf16.mxu0 0
        %5122 = vmatpush1.bf16.msra.mxu0 %v5105
        %5123 = vmatprep.subr.bf16.mxu0 0
        %5124 = vmatpush1.bf16.msra.mxu0 %v5106
        %5125 = vmatprep.subr.bf16.mxu0 0
        %5126 = vmatpush1.bf16.msra.mxu0 %v5107
        %5127 = vmatprep.subr.bf16.mxu0 0
        %5128 = vmatpush1.bf16.msra.mxu0 %v5108
        %5129 = vmatprep.subr.bf16.mxu0 0
        %5130 = vmatpush1.bf16.msra.mxu0 %v5109
        %5131 = vmatprep.subr.bf16.mxu0 0
        %5132 = vmatpush1.bf16.msra.mxu0 %v5110
        %5133 = vmatprep.subr.bf16.mxu0 0
        %5134 = vmatpush1.bf16.msra.mxu0 %v5111
        %5135 = vmatprep.subr.bf16.mxu0 0
        %5136 = vmatpush1.bf16.msra.mxu0 %v5112
        %5137 = vmatprep.subr.bf16.mxu0 0
        %5138 = vmatpush1.bf16.msra.mxu0 %v5113
        %5139 = vmatprep.subr.bf16.mxu0 0
        %5140 = vmatpush1.bf16.msra.mxu0 %v5114
        %5141 = vmatprep.subr.bf16.mxu0 0
        %5142 = vmatpush1.bf16.msra.mxu0 %v5115
        %5143 = vmatprep.subr.bf16.mxu0 0
        %5144 = vmatpush1.bf16.msra.mxu0 %v5116
        %5145 = vmatprep.subr.bf16.mxu0 0
        %5146 = vmatpush1.bf16.msra.mxu0 %v5117
        %5147 = vmatprep.subr.bf16.mxu0 0
        %5148 = vmatpush1.bf16.msra.mxu0 %v5118
        %5149 = vmatprep.subr.bf16.mxu0 0
        %5150 = vmatpush1.bf16.msra.mxu0 %v5119
        %5151 = vmatprep.subr.bf16.mxu0 0
        %5152 = vmatpush1.bf16.msra.mxu0 %v5120
        %5153 = vmatprep.mubr.bf16.mxu0 %v5090
        %5154 = vmatmul.mubr.bf16.gmra.mrb[0].mxu0 %v5089
        %v5155 = vpop.f32.mrb[0].mxu0
        %v5156 = vadd.f32 0.0, %v5155
        %v5157 = vpop.f32.mrb[0].mxu0
        %v5158 = vpop.f32.mrb[0].mxu0
        %v5159 = vadd.f32 0.0, %v5158
        %v5160 = vpop.f32.mrb[0].mxu0
        %5161 = vmatprep.mubr.bf16.mxu0 %v5092
        %5162 = vmatmul.mubr.bf16.gmra.mrb[0].mxu0 %v5091
        %v5163 = vpop.f32.mrb[0].mxu0
        %v5164 = vadd.f32 0.0, %v5163
        %v5165 = vpop.f32.mrb[0].mxu0
        %v5166 = vpop.f32.mrb[0].mxu0
        %v5167 = vadd.f32 0.0, %v5166
        %v5168 = vpop.f32.mrb[0].mxu0
        %5169 = vmatprep.mubr.bf16.mxu0 %v5094
        %5170 = vmatmul.mubr.bf16.gmra.mrb[0].mxu0 %v5093
        %v5171 = vpop.f32.mrb[0].mxu0
        %v5172 = vadd.f32 0.0, %v5171
        %v5173 = vpop.f32.mrb[0].mxu0
        %v5174 = vpop.f32.mrb[0].mxu0
        %v5175 = vadd.f32 0.0, %v5174
        %v5176 = vpop.f32.mrb[0].mxu0
        %5177 = vmatprep.mubr.bf16.mxu0 %v5096
        %5178 = vmatmul.mubr.bf16.gmra.mrb[0].mxu0 %v5095
        %v5179 = vpop.f32.mrb[0].mxu0
        %v5180 = vadd.f32 0.0, %v5179
        %v5181 = vpop.f32.mrb[0].mxu0
        %v5182 = vpop.f32.mrb[0].mxu0
        %v5183 = vadd.f32 0.0, %v5182
        %v5184 = vpop.f32.mrb[0].mxu0
        %5185 = vmatprep.mubr.bf16.mxu0 %v5098
        %5186 = vmatmul.mubr.bf16.gmra.mrb[0].mxu0 %v5097
        %v5187 = vpop.f32.mrb[0].mxu0
        %v5188 = vadd.f32 0.0, %v5187
        %v5189 = vpop.f32.mrb[0].mxu0
        %v5190 = vpop.f32.mrb[0].mxu0
        %v5191 = vadd.f32 0.0, %v5190
        %v5192 = vpop.f32.mrb[0].mxu0
        %5193 = vmatprep.mubr.bf16.mxu0 %v5100
        %5194 = vmatmul.mubr.bf16.gmra.mrb[0].mxu0 %v5099
        %v5195 = vpop.f32.mrb[0].mxu0
        %v5196 = vadd.f32 0.0, %v5195
        %v5197 = vpop.f32.mrb[0].mxu0
        %v5198 = vpop.f32.mrb[0].mxu0
        %v5199 = vadd.f32 0.0, %v5198
        %v5200 = vpop.f32.mrb[0].mxu0
        %5201 = vmatprep.mubr.bf16.mxu0 %v5102
        %5202 = vmatmul.mubr.bf16.gmra.mrb[0].mxu0 %v5101
        %v5203 = vpop.f32.mrb[0].mxu0
        %v5204 = vadd.f32 0.0, %v5203
        %v5205 = vpop.f32.mrb[0].mxu0
        %v5206 = vpop.f32.mrb[0].mxu0
        %v5207 = vadd.f32 0.0, %v5206
        %v5208 = vpop.f32.mrb[0].mxu0
        %5209 = vmatprep.mubr.bf16.mxu0 %v5104
        %5210 = vmatmul.mubr.bf16.gmra.mrb[0].mxu0 %v5103
        %v5211 = vpop.f32.mrb[0].mxu0
        %v5212 = vadd.f32 0.0, %v5211
        %v5213 = vpop.f32.mrb[0].mxu0
        %v5214 = vpop.f32.mrb[0].mxu0
        %v5215 = vadd.f32 0.0, %v5214
        %v5216 = vpop.f32.mrb[0].mxu0
        %5217 = vdwg.mxu0
        %v5218 = vrcp.pop %v5043
        %v5219 = vrcp.pop %v5046
        %v5220 = vrcp.pop %v5049
        %v5221 = vrcp.pop %v5052
        %v5222 = vrcp.pop %v5055
        %v5223 = vrcp.pop %v5058
        %v5224 = vrcp.pop %v5061
        %v5225 = vrcp.pop %v5064
        %v5226 = vrcp.pop %v5067
        %v5227 = vrcp.pop %v5070
        %v5228 = vrcp.pop %v5073
        %v5229 = vrcp.pop %v5076
        %v5230 = vrcp.pop %v5079
        %v5231 = vrcp.pop %v5082
        %v5232 = vrcp.pop %v5085
        %v5233 = vrcp.pop %v5088
        %v5234 = vmul.f32 %v5156, %v5218
        %v5235 = vmul.f32 %v5159, %v5219
        %v5236 = vmul.f32 %v5164, %v5220
        %v5237 = vmul.f32 %v5167, %v5221
        %v5238 = vmul.f32 %v5172, %v5222
        %v5239 = vmul.f32 %v5175, %v5223
        %v5240 = vmul.f32 %v5180, %v5224
        %v5241 = vmul.f32 %v5183, %v5225
        %v5242 = vmul.f32 %v5188, %v5226
        %v5243 = vmul.f32 %v5191, %v5227
        %v5244 = vmul.f32 %v5196, %v5228
        %v5245 = vmul.f32 %v5199, %v5229
        %v5246 = vmul.f32 %v5204, %v5230
        %v5247 = vmul.f32 %v5207, %v5231
        %v5248 = vmul.f32 %v5212, %v5232
        %v5249 = vmul.f32 %v5215, %v5233
        %v5250 = vpack.c.bf16 %v5235, %v5234
        %v5251 = vpack.c.bf16 %v5237, %v5236
        %v5252 = vpack.c.bf16 %v5239, %v5238
        %v5253 = vpack.c.bf16 %v5241, %v5240
        %v5254 = vpack.c.bf16 %v5243, %v5242
        %v5255 = vpack.c.bf16 %v5245, %v5244
        %v5256 = vpack.c.bf16 %v5247, %v5246
        %v5257 = vpack.c.bf16 %v5249, %v5248
        %s5258 = scalar_lea.vmem %s5, 32
        %v5259 = vld [vmem:[%s5258] sm:$0xf]
        %v5260 = vld [vmem:[%s5258 + $0x4] sm:$0xf]
        %v5261 = vld [vmem:[%s5258 + $0x8] sm:$0xf]
        %v5262 = vld [vmem:[%s5258 + $0xc] sm:$0xf]
        %v5267 = vunpack.c.l.b16 %v5259
        %v5268 = vunpack.c.l.b16 %v5260
        %v5269 = vunpack.c.l.b16 %v5261
        %v5270 = vunpack.c.l.b16 %v5262
        %v5271 = vpack.c.b16 %v5268, %v5267
        %v5272 = vpack.c.b16 %v5270, %v5269
        %v5276 = vsel %vm1148, %v5250, 0
        %v5279 = vsel %vm1148, %v5251, 0
        %v5282 = vsel %vm1148, %v5252, 0
        %v5285 = vsel %vm1148, %v5253, 0
        %v5288 = vsel %vm1148, %v5254, 0
        %v5291 = vsel %vm1148, %v5255, 0
        %v5294 = vsel %vm1148, %v5256, 0
        %v5297 = vsel %vm1148, %v5257, 0
        %5299 = vmatprep.subr.bf16.mxu0 0
        %5300 = vmatpush1.bf16.msra.mxu0 %v5271
        %5301 = vmatprep.subr.bf16.mxu0 0
        %5302 = vmatpush1.bf16.msra.mxu0 %v5272
        %5303 = vmatprep.subr.bf16.mxu0 0
        %5304 = vmatpush1.bf16.msra.mxu0 0
        %5305 = vmatprep.subr.bf16.mxu0 0
        %5306 = vmatpush1.bf16.msra.mxu0 0
        %5307 = vmatprep.subr.bf16.mxu0 0
        %5308 = vmatpush1.bf16.msra.mxu0 0
        %5309 = vmatprep.subr.bf16.mxu0 0
        %5310 = vmatpush1.bf16.msra.mxu0 0
        %5311 = vmatprep.subr.bf16.mxu0 0
        %5312 = vmatpush1.bf16.msra.mxu0 0
        %5313 = vmatprep.subr.bf16.mxu0 0
        %5314 = vmatpush1.bf16.msra.mxu0 0
        %5315 = vmatprep.subr.bf16.mxu0 0
        %5316 = vmatpush1.bf16.msra.mxu0 0
        %5317 = vmatprep.subr.bf16.mxu0 0
        %5318 = vmatpush1.bf16.msra.mxu0 0
        %5319 = vmatprep.subr.bf16.mxu0 0
        %5320 = vmatpush1.bf16.msra.mxu0 0
        %5321 = vmatprep.subr.bf16.mxu0 0
        %5322 = vmatpush1.bf16.msra.mxu0 0
        %5323 = vmatprep.subr.bf16.mxu0 0
        %5324 = vmatpush1.bf16.msra.mxu0 0
        %5325 = vmatprep.subr.bf16.mxu0 0
        %5326 = vmatpush1.bf16.msra.mxu0 0
        %5327 = vmatprep.subr.bf16.mxu0 0
        %5328 = vmatpush1.bf16.msra.mxu0 0
        %5329 = vmatprep.subr.bf16.mxu0 0
        %5330 = vmatpush1.bf16.msra.mxu0 0
        %5331 = vmatprep.mubr.bf16.mxu0 0
        %5332 = vmatmul.mubr.bf16.gmra.mrb[0].mxu0 %v5276
        %v5333 = vpop.f32.mrb[0].mxu0
        %v5334 = vadd.f32 0.0, %v5333
        %v5335 = vpop.f32.mrb[0].mxu0
        %v5336 = vpop.f32.mrb[0].mxu0
        %v5337 = vadd.f32 0.0, %v5336
        %v5338 = vpop.f32.mrb[0].mxu0
        %5339 = vmatprep.mubr.bf16.mxu0 0
        %5340 = vmatmul.mubr.bf16.gmra.mrb[0].mxu0 %v5279
        %v5341 = vpop.f32.mrb[0].mxu0
        %v5342 = vadd.f32 0.0, %v5341
        %v5343 = vpop.f32.mrb[0].mxu0
        %v5344 = vpop.f32.mrb[0].mxu0
        %v5345 = vadd.f32 0.0, %v5344
        %v5346 = vpop.f32.mrb[0].mxu0
        %5347 = vmatprep.mubr.bf16.mxu0 0
        %5348 = vmatmul.mubr.bf16.gmra.mrb[0].mxu0 %v5282
        %v5349 = vpop.f32.mrb[0].mxu0
        %v5350 = vadd.f32 0.0, %v5349
        %v5351 = vpop.f32.mrb[0].mxu0
        %v5352 = vpop.f32.mrb[0].mxu0
        %v5353 = vadd.f32 0.0, %v5352
        %v5354 = vpop.f32.mrb[0].mxu0
        %5355 = vmatprep.mubr.bf16.mxu0 0
        %5356 = vmatmul.mubr.bf16.gmra.mrb[0].mxu0 %v5285
        %v5357 = vpop.f32.mrb[0].mxu0
        %v5358 = vadd.f32 0.0, %v5357
        %v5359 = vpop.f32.mrb[0].mxu0
        %v5360 = vpop.f32.mrb[0].mxu0
        %v5361 = vadd.f32 0.0, %v5360
        %v5362 = vpop.f32.mrb[0].mxu0
        %5363 = vmatprep.mubr.bf16.mxu0 0
        %5364 = vmatmul.mubr.bf16.gmra.mrb[0].mxu0 %v5288
        %v5365 = vpop.f32.mrb[0].mxu0
        %v5366 = vadd.f32 0.0, %v5365
        %v5367 = vpop.f32.mrb[0].mxu0
        %v5368 = vpop.f32.mrb[0].mxu0
        %v5369 = vadd.f32 0.0, %v5368
        %v5370 = vpop.f32.mrb[0].mxu0
        %5371 = vmatprep.mubr.bf16.mxu0 0
        %5372 = vmatmul.mubr.bf16.gmra.mrb[0].mxu0 %v5291
        %v5373 = vpop.f32.mrb[0].mxu0
        %v5374 = vadd.f32 0.0, %v5373
        %v5375 = vpop.f32.mrb[0].mxu0
        %v5376 = vpop.f32.mrb[0].mxu0
        %v5377 = vadd.f32 0.0, %v5376
        %v5378 = vpop.f32.mrb[0].mxu0
        %5379 = vmatprep.mubr.bf16.mxu0 0
        %5380 = vmatmul.mubr.bf16.gmra.mrb[0].mxu0 %v5294
        %v5381 = vpop.f32.mrb[0].mxu0
        %v5382 = vadd.f32 0.0, %v5381
        %v5383 = vpop.f32.mrb[0].mxu0
        %v5384 = vpop.f32.mrb[0].mxu0
        %v5385 = vadd.f32 0.0, %v5384
        %v5386 = vpop.f32.mrb[0].mxu0
        %5387 = vmatprep.mubr.bf16.mxu0 0
        %5388 = vmatmul.mubr.bf16.gmra.mrb[0].mxu0 %v5297
        %v5389 = vpop.f32.mrb[0].mxu0
        %v5390 = vadd.f32 0.0, %v5389
        %v5391 = vpop.f32.mrb[0].mxu0
        %v5392 = vpop.f32.mrb[0].mxu0
        %v5393 = vadd.f32 0.0, %v5392
        %v5394 = vpop.f32.mrb[0].mxu0
        %5395 = vdwg.mxu0
        %v5396 = vadd.f32 %v3708, %v5334
        %v5397 = vadd.f32 %v3711, %v5337
        %v5398 = vadd.f32 %v3716, %v5342
        %v5399 = vadd.f32 %v3719, %v5345
        %v5400 = vadd.f32 %v3724, %v5350
        %v5401 = vadd.f32 %v3727, %v5353
        %v5402 = vadd.f32 %v3732, %v5358
        %v5403 = vadd.f32 %v3735, %v5361
        %v5404 = vadd.f32 %v3740, %v5366
        %v5405 = vadd.f32 %v3743, %v5369
        %v5406 = vadd.f32 %v3748, %v5374
        %v5407 = vadd.f32 %v3751, %v5377
        %v5408 = vadd.f32 %v3756, %v5382
        %v5409 = vadd.f32 %v3759, %v5385
        %v5410 = vadd.f32 %v3764, %v5390
        %v5411 = vadd.f32 %v3767, %v5393
        %s5412 = scalar_lea.vmem %s2, 192
        %v5413 = vld [vmem:[%s5412] sm:$0xf]
        %v5414 = vld [vmem:[%s5412 + $0x4] sm:$0xf]
        %v5415 = vld [vmem:[%s5412 + $0x8] sm:$0xf]
        %v5416 = vld [vmem:[%s5412 + $0xc] sm:$0xf]
        %v5417 = vld [vmem:[%s5412 + $0x10] sm:$0xf]
        %v5418 = vld [vmem:[%s5412 + $0x14] sm:$0xf]
        %v5419 = vld [vmem:[%s5412 + $0x18] sm:$0xf]
        %v5420 = vld [vmem:[%s5412 + $0x1c] sm:$0xf]
        %v5421 = vld [vmem:[%s5412 + $0x20] sm:$0xf]
        %v5422 = vld [vmem:[%s5412 + $0x24] sm:$0xf]
        %v5423 = vld [vmem:[%s5412 + $0x28] sm:$0xf]
        %v5424 = vld [vmem:[%s5412 + $0x2c] sm:$0xf]
        %v5425 = vld [vmem:[%s5412 + $0x30] sm:$0xf]
        %v5426 = vld [vmem:[%s5412 + $0x34] sm:$0xf]
        %v5427 = vld [vmem:[%s5412 + $0x38] sm:$0xf]
        %v5428 = vld [vmem:[%s5412 + $0x3c] sm:$0xf]
        %v5445 = vunpack.c.l.b16 %v5413
        %v5446 = vunpack.c.l.b16 %v5414
        %v5447 = vunpack.c.l.b16 %v5415
        %v5448 = vunpack.c.l.b16 %v5416
        %v5449 = vunpack.c.l.b16 %v5417
        %v5450 = vunpack.c.l.b16 %v5418
        %v5451 = vunpack.c.l.b16 %v5419
        %v5452 = vunpack.c.l.b16 %v5420
        %v5453 = vunpack.c.l.b16 %v5421
        %v5454 = vunpack.c.l.b16 %v5422
        %v5455 = vunpack.c.l.b16 %v5423
        %v5456 = vunpack.c.l.b16 %v5424
        %v5457 = vunpack.c.l.b16 %v5425
        %v5458 = vunpack.c.l.b16 %v5426
        %v5459 = vunpack.c.l.b16 %v5427
        %v5460 = vunpack.c.l.b16 %v5428
        %v5461 = vpack.c.b16 %v5446, %v5445
        %v5462 = vpack.c.b16 %v5448, %v5447
        %v5463 = vpack.c.b16 %v5450, %v5449
        %v5464 = vpack.c.b16 %v5452, %v5451
        %v5465 = vpack.c.b16 %v5454, %v5453
        %v5466 = vpack.c.b16 %v5456, %v5455
        %v5467 = vpack.c.b16 %v5458, %v5457
        %v5468 = vpack.c.b16 %v5460, %v5459
        %5477 = vmatprep.subr.bf16.mxu0 0
        %5478 = vmatpush1.bf16.msra.mxu0 %v5461
        %5479 = vmatprep.subr.bf16.mxu0 0
        %5480 = vmatpush1.bf16.msra.mxu0 %v5462
        %5481 = vmatprep.subr.bf16.mxu0 0
        %5482 = vmatpush1.bf16.msra.mxu0 %v5463
        %5483 = vmatprep.subr.bf16.mxu0 0
        %5484 = vmatpush1.bf16.msra.mxu0 %v5464
        %5485 = vmatprep.subr.bf16.mxu0 0
        %5486 = vmatpush1.bf16.msra.mxu0 %v5465
        %5487 = vmatprep.subr.bf16.mxu0 0
        %5488 = vmatpush1.bf16.msra.mxu0 %v5466
        %5489 = vmatprep.subr.bf16.mxu0 0
        %5490 = vmatpush1.bf16.msra.mxu0 %v5467
        %5491 = vmatprep.subr.bf16.mxu0 0
        %5492 = vmatpush1.bf16.msra.mxu0 %v5468
        %5493 = vmatprep.subr.bf16.mxu0 0
        %5494 = vmatpush1.bf16.msra.mxu0 0
        %5495 = vmatprep.subr.bf16.mxu0 0
        %5496 = vmatpush1.bf16.msra.mxu0 0
        %5497 = vmatprep.subr.bf16.mxu0 0
        %5498 = vmatpush1.bf16.msra.mxu0 0
        %5499 = vmatprep.subr.bf16.mxu0 0
        %5500 = vmatpush1.bf16.msra.mxu0 0
        %5501 = vmatprep.subr.bf16.mxu0 0
        %5502 = vmatpush1.bf16.msra.mxu0 0
        %5503 = vmatprep.subr.bf16.mxu0 0
        %5504 = vmatpush1.bf16.msra.mxu0 0
        %5505 = vmatprep.subr.bf16.mxu0 0
        %5506 = vmatpush1.bf16.msra.mxu0 0
        %5507 = vmatprep.subr.bf16.mxu0 0
        %5508 = vmatpush1.bf16.msra.mxu0 0
        %5509 = vmatprep.mubr.bf16.mxu0 0
        %5510 = vmatmul.mubr.bf16.gmra.mrb[0].mxu0 %v425
        %v5511 = vpop.f32.mrb[0].mxu0
        %v5512 = vadd.f32 0.0, %v5511
        %v5513 = vpop.f32.mrb[0].mxu0
        %v5514 = vpop.f32.mrb[0].mxu0
        %v5515 = vadd.f32 0.0, %v5514
        %v5516 = vpop.f32.mrb[0].mxu0
        %5517 = vmatprep.mubr.bf16.mxu0 0
        %5518 = vmatmul.mubr.bf16.gmra.mrb[0].mxu0 %v426
        %v5519 = vpop.f32.mrb[0].mxu0
        %v5520 = vadd.f32 0.0, %v5519
        %v5521 = vpop.f32.mrb[0].mxu0
        %v5522 = vpop.f32.mrb[0].mxu0
        %v5523 = vadd.f32 0.0, %v5522
        %v5524 = vpop.f32.mrb[0].mxu0
        %5525 = vmatprep.mubr.bf16.mxu0 0
        %5526 = vmatmul.mubr.bf16.gmra.mrb[0].mxu0 %v427
        %v5527 = vpop.f32.mrb[0].mxu0
        %v5528 = vadd.f32 0.0, %v5527
        %v5529 = vpop.f32.mrb[0].mxu0
        %v5530 = vpop.f32.mrb[0].mxu0
        %v5531 = vadd.f32 0.0, %v5530
        %v5532 = vpop.f32.mrb[0].mxu0
        %5533 = vmatprep.mubr.bf16.mxu0 0
        %5534 = vmatmul.mubr.bf16.gmra.mrb[0].mxu0 %v428
        %v5535 = vpop.f32.mrb[0].mxu0
        %v5536 = vadd.f32 0.0, %v5535
        %v5537 = vpop.f32.mrb[0].mxu0
        %v5538 = vpop.f32.mrb[0].mxu0
        %v5539 = vadd.f32 0.0, %v5538
        %v5540 = vpop.f32.mrb[0].mxu0
        %5541 = vmatprep.mubr.bf16.mxu0 0
        %5542 = vmatmul.mubr.bf16.gmra.mrb[0].mxu0 %v429
        %v5543 = vpop.f32.mrb[0].mxu0
        %v5544 = vadd.f32 0.0, %v5543
        %v5545 = vpop.f32.mrb[0].mxu0
        %v5546 = vpop.f32.mrb[0].mxu0
        %v5547 = vadd.f32 0.0, %v5546
        %v5548 = vpop.f32.mrb[0].mxu0
        %5549 = vmatprep.mubr.bf16.mxu0 0
        %5550 = vmatmul.mubr.bf16.gmra.mrb[0].mxu0 %v430
        %v5551 = vpop.f32.mrb[0].mxu0
        %v5552 = vadd.f32 0.0, %v5551
        %v5553 = vpop.f32.mrb[0].mxu0
        %v5554 = vpop.f32.mrb[0].mxu0
        %v5555 = vadd.f32 0.0, %v5554
        %v5556 = vpop.f32.mrb[0].mxu0
        %5557 = vmatprep.mubr.bf16.mxu0 0
        %5558 = vmatmul.mubr.bf16.gmra.mrb[0].mxu0 %v431
        %v5559 = vpop.f32.mrb[0].mxu0
        %v5560 = vadd.f32 0.0, %v5559
        %v5561 = vpop.f32.mrb[0].mxu0
        %v5562 = vpop.f32.mrb[0].mxu0
        %v5563 = vadd.f32 0.0, %v5562
        %v5564 = vpop.f32.mrb[0].mxu0
        %5565 = vmatprep.mubr.bf16.mxu0 0
        %5566 = vmatmul.mubr.bf16.gmra.mrb[0].mxu0 %v432
        %v5567 = vpop.f32.mrb[0].mxu0
        %v5568 = vadd.f32 0.0, %v5567
        %v5569 = vpop.f32.mrb[0].mxu0
        %v5570 = vpop.f32.mrb[0].mxu0
        %v5571 = vadd.f32 0.0, %v5570
        %v5572 = vpop.f32.mrb[0].mxu0
        %5573 = vdwg.mxu0
        %s5574 = scalar_lea.vmem %s3, 192
        %v5575 = vld [vmem:[%s5574] sm:$0xf]
        %v5576 = vld [vmem:[%s5574 + $0x4] sm:$0xf]
        %v5577 = vld [vmem:[%s5574 + $0x8] sm:$0xf]
        %v5578 = vld [vmem:[%s5574 + $0xc] sm:$0xf]
        %v5579 = vld [vmem:[%s5574 + $0x10] sm:$0xf]
        %v5580 = vld [vmem:[%s5574 + $0x14] sm:$0xf]
        %v5581 = vld [vmem:[%s5574 + $0x18] sm:$0xf]
        %v5582 = vld [vmem:[%s5574 + $0x1c] sm:$0xf]
        %v5583 = vld [vmem:[%s5574 + $0x20] sm:$0xf]
        %v5584 = vld [vmem:[%s5574 + $0x24] sm:$0xf]
        %v5585 = vld [vmem:[%s5574 + $0x28] sm:$0xf]
        %v5586 = vld [vmem:[%s5574 + $0x2c] sm:$0xf]
        %v5587 = vld [vmem:[%s5574 + $0x30] sm:$0xf]
        %v5588 = vld [vmem:[%s5574 + $0x34] sm:$0xf]
        %v5589 = vld [vmem:[%s5574 + $0x38] sm:$0xf]
        %v5590 = vld [vmem:[%s5574 + $0x3c] sm:$0xf]
        %v5607 = vunpack.c.l.b16 %v5575
        %v5608 = vunpack.c.l.b16 %v5576
        %v5609 = vunpack.c.l.b16 %v5577
        %v5610 = vunpack.c.l.b16 %v5578
        %v5611 = vunpack.c.l.b16 %v5579
        %v5612 = vunpack.c.l.b16 %v5580
        %v5613 = vunpack.c.l.b16 %v5581
        %v5614 = vunpack.c.l.b16 %v5582
        %v5615 = vunpack.c.l.b16 %v5583
        %v5616 = vunpack.c.l.b16 %v5584
        %v5617 = vunpack.c.l.b16 %v5585
        %v5618 = vunpack.c.l.b16 %v5586
        %v5619 = vunpack.c.l.b16 %v5587
        %v5620 = vunpack.c.l.b16 %v5588
        %v5621 = vunpack.c.l.b16 %v5589
        %v5622 = vunpack.c.l.b16 %v5590
        %v5623 = vpack.c.b16 %v5608, %v5607
        %v5624 = vpack.c.b16 %v5610, %v5609
        %v5625 = vpack.c.b16 %v5612, %v5611
        %v5626 = vpack.c.b16 %v5614, %v5613
        %v5627 = vpack.c.b16 %v5616, %v5615
        %v5628 = vpack.c.b16 %v5618, %v5617
        %v5629 = vpack.c.b16 %v5620, %v5619
        %v5630 = vpack.c.b16 %v5622, %v5621
        %5639 = vmatprep.subr.bf16.mxu0 0
        %5640 = vmatpush1.bf16.msra.mxu0 %v5623
        %5641 = vmatprep.subr.bf16.mxu0 0
        %5642 = vmatpush1.bf16.msra.mxu0 %v5624
        %5643 = vmatprep.subr.bf16.mxu0 0
        %5644 = vmatpush1.bf16.msra.mxu0 %v5625
        %5645 = vmatprep.subr.bf16.mxu0 0
        %5646 = vmatpush1.bf16.msra.mxu0 %v5626
        %5647 = vmatprep.subr.bf16.mxu0 0
        %5648 = vmatpush1.bf16.msra.mxu0 %v5627
        %5649 = vmatprep.subr.bf16.mxu0 0
        %5650 = vmatpush1.bf16.msra.mxu0 %v5628
        %5651 = vmatprep.subr.bf16.mxu0 0
        %5652 = vmatpush1.bf16.msra.mxu0 %v5629
        %5653 = vmatprep.subr.bf16.mxu0 0
        %5654 = vmatpush1.bf16.msra.mxu0 %v5630
        %5655 = vmatprep.subr.bf16.mxu0 0
        %5656 = vmatpush1.bf16.msra.mxu0 0
        %5657 = vmatprep.subr.bf16.mxu0 0
        %5658 = vmatpush1.bf16.msra.mxu0 0
        %5659 = vmatprep.subr.bf16.mxu0 0
        %5660 = vmatpush1.bf16.msra.mxu0 0
        %5661 = vmatprep.subr.bf16.mxu0 0
        %5662 = vmatpush1.bf16.msra.mxu0 0
        %5663 = vmatprep.subr.bf16.mxu0 0
        %5664 = vmatpush1.bf16.msra.mxu0 0
        %5665 = vmatprep.subr.bf16.mxu0 0
        %5666 = vmatpush1.bf16.msra.mxu0 0
        %5667 = vmatprep.subr.bf16.mxu0 0
        %5668 = vmatpush1.bf16.msra.mxu0 0
        %5669 = vmatprep.subr.bf16.mxu0 0
        %5670 = vmatpush1.bf16.msra.mxu0 0
        %5671 = vmatprep.mubr.bf16.mxu0 0
        %5672 = vmatmul.mubr.bf16.gmra.mrb[0].mxu0 %v666
        %v5673 = vpop.f32.mrb[0].mxu0
        %v5674 = vadd.f32 0.0, %v5673
        %v5675 = vpop.f32.mrb[0].mxu0
        %v5676 = vpop.f32.mrb[0].mxu0
        %v5677 = vadd.f32 0.0, %v5676
        %v5678 = vpop.f32.mrb[0].mxu0
        %5679 = vmatprep.mubr.bf16.mxu0 0
        %5680 = vmatmul.mubr.bf16.gmra.mrb[0].mxu0 %v667
        %v5681 = vpop.f32.mrb[0].mxu0
        %v5682 = vadd.f32 0.0, %v5681
        %v5683 = vpop.f32.mrb[0].mxu0
        %v5684 = vpop.f32.mrb[0].mxu0
        %v5685 = vadd.f32 0.0, %v5684
        %v5686 = vpop.f32.mrb[0].mxu0
        %5687 = vmatprep.mubr.bf16.mxu0 0
        %5688 = vmatmul.mubr.bf16.gmra.mrb[0].mxu0 %v668
        %v5689 = vpop.f32.mrb[0].mxu0
        %v5690 = vadd.f32 0.0, %v5689
        %v5691 = vpop.f32.mrb[0].mxu0
        %v5692 = vpop.f32.mrb[0].mxu0
        %v5693 = vadd.f32 0.0, %v5692
        %v5694 = vpop.f32.mrb[0].mxu0
        %5695 = vmatprep.mubr.bf16.mxu0 0
        %5696 = vmatmul.mubr.bf16.gmra.mrb[0].mxu0 %v669
        %v5697 = vpop.f32.mrb[0].mxu0
        %v5698 = vadd.f32 0.0, %v5697
        %v5699 = vpop.f32.mrb[0].mxu0
        %v5700 = vpop.f32.mrb[0].mxu0
        %v5701 = vadd.f32 0.0, %v5700
        %v5702 = vpop.f32.mrb[0].mxu0
        %5703 = vmatprep.mubr.bf16.mxu0 0
        %5704 = vmatmul.mubr.bf16.gmra.mrb[0].mxu0 %v670
        %v5705 = vpop.f32.mrb[0].mxu0
        %v5706 = vadd.f32 0.0, %v5705
        %v5707 = vpop.f32.mrb[0].mxu0
        %v5708 = vpop.f32.mrb[0].mxu0
        %v5709 = vadd.f32 0.0, %v5708
        %v5710 = vpop.f32.mrb[0].mxu0
        %5711 = vmatprep.mubr.bf16.mxu0 0
        %5712 = vmatmul.mubr.bf16.gmra.mrb[0].mxu0 %v671
        %v5713 = vpop.f32.mrb[0].mxu0
        %v5714 = vadd.f32 0.0, %v5713
        %v5715 = vpop.f32.mrb[0].mxu0
        %v5716 = vpop.f32.mrb[0].mxu0
        %v5717 = vadd.f32 0.0, %v5716
        %v5718 = vpop.f32.mrb[0].mxu0
        %5719 = vmatprep.mubr.bf16.mxu0 0
        %5720 = vmatmul.mubr.bf16.gmra.mrb[0].mxu0 %v672
        %v5721 = vpop.f32.mrb[0].mxu0
        %v5722 = vadd.f32 0.0, %v5721
        %v5723 = vpop.f32.mrb[0].mxu0
        %v5724 = vpop.f32.mrb[0].mxu0
        %v5725 = vadd.f32 0.0, %v5724
        %v5726 = vpop.f32.mrb[0].mxu0
        %5727 = vmatprep.mubr.bf16.mxu0 0
        %5728 = vmatmul.mubr.bf16.gmra.mrb[0].mxu0 %v673
        %v5729 = vpop.f32.mrb[0].mxu0
        %v5730 = vadd.f32 0.0, %v5729
        %v5731 = vpop.f32.mrb[0].mxu0
        %v5732 = vpop.f32.mrb[0].mxu0
        %v5733 = vadd.f32 0.0, %v5732
        %v5734 = vpop.f32.mrb[0].mxu0
        %5735 = vmatprep.mubr.bf16.mxu0 0
        %5736 = vmatmul.mubr.bf16.gmra.mrb[0].mxu0 %v674
        %v5737 = vpop.f32.mrb[0].mxu0
        %v5738 = vadd.f32 0.0, %v5737
        %v5739 = vpop.f32.mrb[0].mxu0
        %v5740 = vpop.f32.mrb[0].mxu0
        %v5741 = vadd.f32 0.0, %v5740
        %v5742 = vpop.f32.mrb[0].mxu0
        %5743 = vmatprep.mubr.bf16.mxu0 0
        %5744 = vmatmul.mubr.bf16.gmra.mrb[0].mxu0 %v675
        %v5745 = vpop.f32.mrb[0].mxu0
        %v5746 = vadd.f32 0.0, %v5745
        %v5747 = vpop.f32.mrb[0].mxu0
        %v5748 = vpop.f32.mrb[0].mxu0
        %v5749 = vadd.f32 0.0, %v5748
        %v5750 = vpop.f32.mrb[0].mxu0
        %5751 = vmatprep.mubr.bf16.mxu0 0
        %5752 = vmatmul.mubr.bf16.gmra.mrb[0].mxu0 %v676
        %v5753 = vpop.f32.mrb[0].mxu0
        %v5754 = vadd.f32 0.0, %v5753
        %v5755 = vpop.f32.mrb[0].mxu0
        %v5756 = vpop.f32.mrb[0].mxu0
        %v5757 = vadd.f32 0.0, %v5756
        %v5758 = vpop.f32.mrb[0].mxu0
        %5759 = vmatprep.mubr.bf16.mxu0 0
        %5760 = vmatmul.mubr.bf16.gmra.mrb[0].mxu0 %v677
        %v5761 = vpop.f32.mrb[0].mxu0
        %v5762 = vadd.f32 0.0, %v5761
        %v5763 = vpop.f32.mrb[0].mxu0
        %v5764 = vpop.f32.mrb[0].mxu0
        %v5765 = vadd.f32 0.0, %v5764
        %v5766 = vpop.f32.mrb[0].mxu0
        %5767 = vmatprep.mubr.bf16.mxu0 0
        %5768 = vmatmul.mubr.bf16.gmra.mrb[0].mxu0 %v678
        %v5769 = vpop.f32.mrb[0].mxu0
        %v5770 = vadd.f32 0.0, %v5769
        %v5771 = vpop.f32.mrb[0].mxu0
        %v5772 = vpop.f32.mrb[0].mxu0
        %v5773 = vadd.f32 0.0, %v5772
        %v5774 = vpop.f32.mrb[0].mxu0
        %5775 = vmatprep.mubr.bf16.mxu0 0
        %5776 = vmatmul.mubr.bf16.gmra.mrb[0].mxu0 %v679
        %v5777 = vpop.f32.mrb[0].mxu0
        %v5778 = vadd.f32 0.0, %v5777
        %v5779 = vpop.f32.mrb[0].mxu0
        %v5780 = vpop.f32.mrb[0].mxu0
        %v5781 = vadd.f32 0.0, %v5780
        %v5782 = vpop.f32.mrb[0].mxu0
        %5783 = vmatprep.mubr.bf16.mxu0 0
        %5784 = vmatmul.mubr.bf16.gmra.mrb[0].mxu0 %v680
        %v5785 = vpop.f32.mrb[0].mxu0
        %v5786 = vadd.f32 0.0, %v5785
        %v5787 = vpop.f32.mrb[0].mxu0
        %v5788 = vpop.f32.mrb[0].mxu0
        %v5789 = vadd.f32 0.0, %v5788
        %v5790 = vpop.f32.mrb[0].mxu0
        %5791 = vmatprep.mubr.bf16.mxu0 0
        %5792 = vmatmul.mubr.bf16.gmra.mrb[0].mxu0 %v681
        %v5793 = vpop.f32.mrb[0].mxu0
        %v5794 = vadd.f32 0.0, %v5793
        %v5795 = vpop.f32.mrb[0].mxu0
        %v5796 = vpop.f32.mrb[0].mxu0
        %v5797 = vadd.f32 0.0, %v5796
        %v5798 = vpop.f32.mrb[0].mxu0
        %5799 = vdwg.mxu0
        %s5800 = scalar_lea.vmem %s4, 192
        %v5801 = vld [vmem:[%s5800] sm:$0xf]
        %v5802 = vld [vmem:[%s5800 + $0x4] sm:$0xf]
        %v5803 = vld [vmem:[%s5800 + $0x8] sm:$0xf]
        %v5804 = vld [vmem:[%s5800 + $0xc] sm:$0xf]
        %v5805 = vld [vmem:[%s5800 + $0x10] sm:$0xf]
        %v5806 = vld [vmem:[%s5800 + $0x14] sm:$0xf]
        %v5807 = vld [vmem:[%s5800 + $0x18] sm:$0xf]
        %v5808 = vld [vmem:[%s5800 + $0x1c] sm:$0xf]
        %v5809 = vld [vmem:[%s5800 + $0x20] sm:$0xf]
        %v5810 = vld [vmem:[%s5800 + $0x24] sm:$0xf]
        %v5811 = vld [vmem:[%s5800 + $0x28] sm:$0xf]
        %v5812 = vld [vmem:[%s5800 + $0x2c] sm:$0xf]
        %v5813 = vld [vmem:[%s5800 + $0x30] sm:$0xf]
        %v5814 = vld [vmem:[%s5800 + $0x34] sm:$0xf]
        %v5815 = vld [vmem:[%s5800 + $0x38] sm:$0xf]
        %v5816 = vld [vmem:[%s5800 + $0x3c] sm:$0xf]
        %v5833 = vunpack.c.l.b16 %v5801
        %v5834 = vunpack.c.l.b16 %v5802
        %v5835 = vunpack.c.l.b16 %v5803
        %v5836 = vunpack.c.l.b16 %v5804
        %v5837 = vunpack.c.l.b16 %v5805
        %v5838 = vunpack.c.l.b16 %v5806
        %v5839 = vunpack.c.l.b16 %v5807
        %v5840 = vunpack.c.l.b16 %v5808
        %v5841 = vunpack.c.l.b16 %v5809
        %v5842 = vunpack.c.l.b16 %v5810
        %v5843 = vunpack.c.l.b16 %v5811
        %v5844 = vunpack.c.l.b16 %v5812
        %v5845 = vunpack.c.l.b16 %v5813
        %v5846 = vunpack.c.l.b16 %v5814
        %v5847 = vunpack.c.l.b16 %v5815
        %v5848 = vunpack.c.l.b16 %v5816
        %v5849 = vpack.c.b16 %v5834, %v5833
        %v5850 = vpack.c.b16 %v5836, %v5835
        %v5851 = vpack.c.b16 %v5838, %v5837
        %v5852 = vpack.c.b16 %v5840, %v5839
        %v5853 = vpack.c.b16 %v5842, %v5841
        %v5854 = vpack.c.b16 %v5844, %v5843
        %v5855 = vpack.c.b16 %v5846, %v5845
        %v5856 = vpack.c.b16 %v5848, %v5847
        %5865 = vmatprep.subr.bf16.mxu0 0
        %5866 = vmatpush1.bf16.msra.mxu0 %v5849
        %5867 = vmatprep.subr.bf16.mxu0 0
        %5868 = vmatpush1.bf16.msra.mxu0 %v5850
        %5869 = vmatprep.subr.bf16.mxu0 0
        %5870 = vmatpush1.bf16.msra.mxu0 %v5851
        %5871 = vmatprep.subr.bf16.mxu0 0
        %5872 = vmatpush1.bf16.msra.mxu0 %v5852
        %5873 = vmatprep.subr.bf16.mxu0 0
        %5874 = vmatpush1.bf16.msra.mxu0 %v5853
        %5875 = vmatprep.subr.bf16.mxu0 0
        %5876 = vmatpush1.bf16.msra.mxu0 %v5854
        %5877 = vmatprep.subr.bf16.mxu0 0
        %5878 = vmatpush1.bf16.msra.mxu0 %v5855
        %5879 = vmatprep.subr.bf16.mxu0 0
        %5880 = vmatpush1.bf16.msra.mxu0 %v5856
        %5881 = vmatprep.subr.bf16.mxu0 0
        %5882 = vmatpush1.bf16.msra.mxu0 0
        %5883 = vmatprep.subr.bf16.mxu0 0
        %5884 = vmatpush1.bf16.msra.mxu0 0
        %5885 = vmatprep.subr.bf16.mxu0 0
        %5886 = vmatpush1.bf16.msra.mxu0 0
        %5887 = vmatprep.subr.bf16.mxu0 0
        %5888 = vmatpush1.bf16.msra.mxu0 0
        %5889 = vmatprep.subr.bf16.mxu0 0
        %5890 = vmatpush1.bf16.msra.mxu0 0
        %5891 = vmatprep.subr.bf16.mxu0 0
        %5892 = vmatpush1.bf16.msra.mxu0 0
        %5893 = vmatprep.subr.bf16.mxu0 0
        %5894 = vmatpush1.bf16.msra.mxu0 0
        %5895 = vmatprep.subr.bf16.mxu0 0
        %5896 = vmatpush1.bf16.msra.mxu0 0
        %5897 = vmatprep.mubr.bf16.mxu0 0
        %5898 = vmatmul.mubr.bf16.gmra.mrb[0].mxu0 %v666
        %v5899 = vpop.f32.mrb[0].mxu0
        %v5900 = vadd.f32 0.0, %v5899
        %v5901 = vpop.f32.mrb[0].mxu0
        %v5902 = vpop.f32.mrb[0].mxu0
        %v5903 = vadd.f32 0.0, %v5902
        %v5904 = vpop.f32.mrb[0].mxu0
        %5905 = vmatprep.mubr.bf16.mxu0 0
        %5906 = vmatmul.mubr.bf16.gmra.mrb[0].mxu0 %v667
        %v5907 = vpop.f32.mrb[0].mxu0
        %v5908 = vadd.f32 0.0, %v5907
        %v5909 = vpop.f32.mrb[0].mxu0
        %v5910 = vpop.f32.mrb[0].mxu0
        %v5911 = vadd.f32 0.0, %v5910
        %v5912 = vpop.f32.mrb[0].mxu0
        %5913 = vmatprep.mubr.bf16.mxu0 0
        %5914 = vmatmul.mubr.bf16.gmra.mrb[0].mxu0 %v668
        %v5915 = vpop.f32.mrb[0].mxu0
        %v5916 = vadd.f32 0.0, %v5915
        %v5917 = vpop.f32.mrb[0].mxu0
        %v5918 = vpop.f32.mrb[0].mxu0
        %v5919 = vadd.f32 0.0, %v5918
        %v5920 = vpop.f32.mrb[0].mxu0
        %5921 = vmatprep.mubr.bf16.mxu0 0
        %5922 = vmatmul.mubr.bf16.gmra.mrb[0].mxu0 %v669
        %v5923 = vpop.f32.mrb[0].mxu0
        %v5924 = vadd.f32 0.0, %v5923
        %v5925 = vpop.f32.mrb[0].mxu0
        %v5926 = vpop.f32.mrb[0].mxu0
        %v5927 = vadd.f32 0.0, %v5926
        %v5928 = vpop.f32.mrb[0].mxu0
        %5929 = vmatprep.mubr.bf16.mxu0 0
        %5930 = vmatmul.mubr.bf16.gmra.mrb[0].mxu0 %v670
        %v5931 = vpop.f32.mrb[0].mxu0
        %v5932 = vadd.f32 0.0, %v5931
        %v5933 = vpop.f32.mrb[0].mxu0
        %v5934 = vpop.f32.mrb[0].mxu0
        %v5935 = vadd.f32 0.0, %v5934
        %v5936 = vpop.f32.mrb[0].mxu0
        %5937 = vmatprep.mubr.bf16.mxu0 0
        %5938 = vmatmul.mubr.bf16.gmra.mrb[0].mxu0 %v671
        %v5939 = vpop.f32.mrb[0].mxu0
        %v5940 = vadd.f32 0.0, %v5939
        %v5941 = vpop.f32.mrb[0].mxu0
        %v5942 = vpop.f32.mrb[0].mxu0
        %v5943 = vadd.f32 0.0, %v5942
        %v5944 = vpop.f32.mrb[0].mxu0
        %5945 = vmatprep.mubr.bf16.mxu0 0
        %5946 = vmatmul.mubr.bf16.gmra.mrb[0].mxu0 %v672
        %v5947 = vpop.f32.mrb[0].mxu0
        %v5948 = vadd.f32 0.0, %v5947
        %v5949 = vpop.f32.mrb[0].mxu0
        %v5950 = vpop.f32.mrb[0].mxu0
        %v5951 = vadd.f32 0.0, %v5950
        %v5952 = vpop.f32.mrb[0].mxu0
        %5953 = vmatprep.mubr.bf16.mxu0 0
        %5954 = vmatmul.mubr.bf16.gmra.mrb[0].mxu0 %v673
        %v5955 = vpop.f32.mrb[0].mxu0
        %v5956 = vadd.f32 0.0, %v5955
        %v5957 = vpop.f32.mrb[0].mxu0
        %v5958 = vpop.f32.mrb[0].mxu0
        %v5959 = vadd.f32 0.0, %v5958
        %v5960 = vpop.f32.mrb[0].mxu0
        %5961 = vmatprep.mubr.bf16.mxu0 0
        %5962 = vmatmul.mubr.bf16.gmra.mrb[0].mxu0 %v674
        %v5963 = vpop.f32.mrb[0].mxu0
        %v5964 = vadd.f32 0.0, %v5963
        %v5965 = vpop.f32.mrb[0].mxu0
        %v5966 = vpop.f32.mrb[0].mxu0
        %v5967 = vadd.f32 0.0, %v5966
        %v5968 = vpop.f32.mrb[0].mxu0
        %5969 = vmatprep.mubr.bf16.mxu0 0
        %5970 = vmatmul.mubr.bf16.gmra.mrb[0].mxu0 %v675
        %v5971 = vpop.f32.mrb[0].mxu0
        %v5972 = vadd.f32 0.0, %v5971
        %v5973 = vpop.f32.mrb[0].mxu0
        %v5974 = vpop.f32.mrb[0].mxu0
        %v5975 = vadd.f32 0.0, %v5974
        %v5976 = vpop.f32.mrb[0].mxu0
        %5977 = vmatprep.mubr.bf16.mxu0 0
        %5978 = vmatmul.mubr.bf16.gmra.mrb[0].mxu0 %v676
        %v5979 = vpop.f32.mrb[0].mxu0
        %v5980 = vadd.f32 0.0, %v5979
        %v5981 = vpop.f32.mrb[0].mxu0
        %v5982 = vpop.f32.mrb[0].mxu0
        %v5983 = vadd.f32 0.0, %v5982
        %v5984 = vpop.f32.mrb[0].mxu0
        %5985 = vmatprep.mubr.bf16.mxu0 0
        %5986 = vmatmul.mubr.bf16.gmra.mrb[0].mxu0 %v677
        %v5987 = vpop.f32.mrb[0].mxu0
        %v5988 = vadd.f32 0.0, %v5987
        %v5989 = vpop.f32.mrb[0].mxu0
        %v5990 = vpop.f32.mrb[0].mxu0
        %v5991 = vadd.f32 0.0, %v5990
        %v5992 = vpop.f32.mrb[0].mxu0
        %5993 = vmatprep.mubr.bf16.mxu0 0
        %5994 = vmatmul.mubr.bf16.gmra.mrb[0].mxu0 %v678
        %v5995 = vpop.f32.mrb[0].mxu0
        %v5996 = vadd.f32 0.0, %v5995
        %v5997 = vpop.f32.mrb[0].mxu0
        %v5998 = vpop.f32.mrb[0].mxu0
        %v5999 = vadd.f32 0.0, %v5998
        %v6000 = vpop.f32.mrb[0].mxu0
        %6001 = vmatprep.mubr.bf16.mxu0 0
        %6002 = vmatmul.mubr.bf16.gmra.mrb[0].mxu0 %v679
        %v6003 = vpop.f32.mrb[0].mxu0
        %v6004 = vadd.f32 0.0, %v6003
        %v6005 = vpop.f32.mrb[0].mxu0
        %v6006 = vpop.f32.mrb[0].mxu0
        %v6007 = vadd.f32 0.0, %v6006
        %v6008 = vpop.f32.mrb[0].mxu0
        %6009 = vmatprep.mubr.bf16.mxu0 0
        %6010 = vmatmul.mubr.bf16.gmra.mrb[0].mxu0 %v680
        %v6011 = vpop.f32.mrb[0].mxu0
        %v6012 = vadd.f32 0.0, %v6011
        %v6013 = vpop.f32.mrb[0].mxu0
        %v6014 = vpop.f32.mrb[0].mxu0
        %v6015 = vadd.f32 0.0, %v6014
        %v6016 = vpop.f32.mrb[0].mxu0
        %6017 = vmatprep.mubr.bf16.mxu0 0
        %6018 = vmatmul.mubr.bf16.gmra.mrb[0].mxu0 %v681
        %v6019 = vpop.f32.mrb[0].mxu0
        %v6020 = vadd.f32 0.0, %v6019
        %v6021 = vpop.f32.mrb[0].mxu0
        %v6022 = vpop.f32.mrb[0].mxu0
        %v6023 = vadd.f32 0.0, %v6022
        %v6024 = vpop.f32.mrb[0].mxu0
        %6025 = vdwg.mxu0
        %v6026 = vmul.f32 %v5512, %v5512
        %v6027 = vmul.f32 %v5515, %v5515
        %v6028 = vmul.f32 %v5520, %v5520
        %v6029 = vmul.f32 %v5523, %v5523
        %v6030 = vmul.f32 %v5528, %v5528
        %v6031 = vmul.f32 %v5531, %v5531
        %v6032 = vmul.f32 %v5536, %v5536
        %v6033 = vmul.f32 %v5539, %v5539
        %v6034 = vmul.f32 %v5544, %v5544
        %v6035 = vmul.f32 %v5547, %v5547
        %v6036 = vmul.f32 %v5552, %v5552
        %v6037 = vmul.f32 %v5555, %v5555
        %v6038 = vmul.f32 %v5560, %v5560
        %v6039 = vmul.f32 %v5563, %v5563
        %v6040 = vmul.f32 %v5568, %v5568
        %v6041 = vmul.f32 %v5571, %v5571
        %v6042 = vsel %vm1148, %v6026, 0.0
        %6043 = vadd.xlane.f32.xlu0 %v6042
        %v6044 = vpop.xlane.xlu0 %6043
        %v6045 = vsel %vm1148, %v6027, 0.0
        %6046 = vadd.xlane.f32.xlu0 %v6045
        %v6047 = vpop.xlane.xlu0 %6046
        %v6048 = vsel %vm1148, %v6028, 0.0
        %6049 = vadd.xlane.f32.xlu0 %v6048
        %v6050 = vpop.xlane.xlu0 %6049
        %v6051 = vsel %vm1148, %v6029, 0.0
        %6052 = vadd.xlane.f32.xlu0 %v6051
        %v6053 = vpop.xlane.xlu0 %6052
        %v6054 = vsel %vm1148, %v6030, 0.0
        %6055 = vadd.xlane.f32.xlu0 %v6054
        %v6056 = vpop.xlane.xlu0 %6055
        %v6057 = vsel %vm1148, %v6031, 0.0
        %6058 = vadd.xlane.f32.xlu0 %v6057
        %v6059 = vpop.xlane.xlu0 %6058
        %v6060 = vsel %vm1148, %v6032, 0.0
        %6061 = vadd.xlane.f32.xlu0 %v6060
        %v6062 = vpop.xlane.xlu0 %6061
        %v6063 = vsel %vm1148, %v6033, 0.0
        %6064 = vadd.xlane.f32.xlu0 %v6063
        %v6065 = vpop.xlane.xlu0 %6064
        %v6066 = vsel %vm1148, %v6034, 0.0
        %6067 = vadd.xlane.f32.xlu0 %v6066
        %v6068 = vpop.xlane.xlu0 %6067
        %v6069 = vsel %vm1148, %v6035, 0.0
        %6070 = vadd.xlane.f32.xlu0 %v6069
        %v6071 = vpop.xlane.xlu0 %6070
        %v6072 = vsel %vm1148, %v6036, 0.0
        %6073 = vadd.xlane.f32.xlu0 %v6072
        %v6074 = vpop.xlane.xlu0 %6073
        %v6075 = vsel %vm1148, %v6037, 0.0
        %6076 = vadd.xlane.f32.xlu0 %v6075
        %v6077 = vpop.xlane.xlu0 %6076
        %v6078 = vsel %vm1148, %v6038, 0.0
        %6079 = vadd.xlane.f32.xlu0 %v6078
        %v6080 = vpop.xlane.xlu0 %6079
        %v6081 = vsel %vm1148, %v6039, 0.0
        %6082 = vadd.xlane.f32.xlu0 %v6081
        %v6083 = vpop.xlane.xlu0 %6082
        %v6084 = vsel %vm1148, %v6040, 0.0
        %6085 = vadd.xlane.f32.xlu0 %v6084
        %v6086 = vpop.xlane.xlu0 %6085
        %v6087 = vsel %vm1148, %v6041, 0.0
        %6088 = vadd.xlane.f32.xlu0 %v6087
        %v6089 = vpop.xlane.xlu0 %6088
        %v6090 = vmax.f32 %v6044, 1e-24
        %v6091 = vmax.f32 %v6047, 1e-24
        %v6092 = vmax.f32 %v6050, 1e-24
        %v6093 = vmax.f32 %v6053, 1e-24
        %v6094 = vmax.f32 %v6056, 1e-24
        %v6095 = vmax.f32 %v6059, 1e-24
        %v6096 = vmax.f32 %v6062, 1e-24
        %v6097 = vmax.f32 %v6065, 1e-24
        %v6098 = vmax.f32 %v6068, 1e-24
        %v6099 = vmax.f32 %v6071, 1e-24
        %v6100 = vmax.f32 %v6074, 1e-24
        %v6101 = vmax.f32 %v6077, 1e-24
        %v6102 = vmax.f32 %v6080, 1e-24
        %v6103 = vmax.f32 %v6083, 1e-24
        %v6104 = vmax.f32 %v6086, 1e-24
        %v6105 = vmax.f32 %v6089, 1e-24
        %v6106 = vrsqrt.pop %v6090
        %v6107 = vrsqrt.pop %v6091
        %v6108 = vrsqrt.pop %v6092
        %v6109 = vrsqrt.pop %v6093
        %v6110 = vrsqrt.pop %v6094
        %v6111 = vrsqrt.pop %v6095
        %v6112 = vrsqrt.pop %v6096
        %v6113 = vrsqrt.pop %v6097
        %v6114 = vrsqrt.pop %v6098
        %v6115 = vrsqrt.pop %v6099
        %v6116 = vrsqrt.pop %v6100
        %v6117 = vrsqrt.pop %v6101
        %v6118 = vrsqrt.pop %v6102
        %v6119 = vrsqrt.pop %v6103
        %v6120 = vrsqrt.pop %v6104
        %v6121 = vrsqrt.pop %v6105
        %v6122 = vmul.f32 %v6106, 10.0
        %v6123 = vmul.f32 %v6107, 10.0
        %v6124 = vmul.f32 %v6108, 10.0
        %v6125 = vmul.f32 %v6109, 10.0
        %v6126 = vmul.f32 %v6110, 10.0
        %v6127 = vmul.f32 %v6111, 10.0
        %v6128 = vmul.f32 %v6112, 10.0
        %v6129 = vmul.f32 %v6113, 10.0
        %v6130 = vmul.f32 %v6114, 10.0
        %v6131 = vmul.f32 %v6115, 10.0
        %v6132 = vmul.f32 %v6116, 10.0
        %v6133 = vmul.f32 %v6117, 10.0
        %v6134 = vmul.f32 %v6118, 10.0
        %v6135 = vmul.f32 %v6119, 10.0
        %v6136 = vmul.f32 %v6120, 10.0
        %v6137 = vmul.f32 %v6121, 10.0
        %v6138 = vmul.f32 %v5512, %v6122
        %v6139 = vmul.f32 %v5515, %v6123
        %v6140 = vmul.f32 %v5520, %v6124
        %v6141 = vmul.f32 %v5523, %v6125
        %v6142 = vmul.f32 %v5528, %v6126
        %v6143 = vmul.f32 %v5531, %v6127
        %v6144 = vmul.f32 %v5536, %v6128
        %v6145 = vmul.f32 %v5539, %v6129
        %v6146 = vmul.f32 %v5544, %v6130
        %v6147 = vmul.f32 %v5547, %v6131
        %v6148 = vmul.f32 %v5552, %v6132
        %v6149 = vmul.f32 %v5555, %v6133
        %v6150 = vmul.f32 %v5560, %v6134
        %v6151 = vmul.f32 %v5563, %v6135
        %v6152 = vmul.f32 %v5568, %v6136
        %v6153 = vmul.f32 %v5571, %v6137
        %v6154 = vmul.f32 %v5674, %v5674
        %v6155 = vmul.f32 %v5677, %v5677
        %v6156 = vmul.f32 %v5682, %v5682
        %v6157 = vmul.f32 %v5685, %v5685
        %v6158 = vmul.f32 %v5690, %v5690
        %v6159 = vmul.f32 %v5693, %v5693
        %v6160 = vmul.f32 %v5698, %v5698
        %v6161 = vmul.f32 %v5701, %v5701
        %v6162 = vmul.f32 %v5706, %v5706
        %v6163 = vmul.f32 %v5709, %v5709
        %v6164 = vmul.f32 %v5714, %v5714
        %v6165 = vmul.f32 %v5717, %v5717
        %v6166 = vmul.f32 %v5722, %v5722
        %v6167 = vmul.f32 %v5725, %v5725
        %v6168 = vmul.f32 %v5730, %v5730
        %v6169 = vmul.f32 %v5733, %v5733
        %v6170 = vmul.f32 %v5738, %v5738
        %v6171 = vmul.f32 %v5741, %v5741
        %v6172 = vmul.f32 %v5746, %v5746
        %v6173 = vmul.f32 %v5749, %v5749
        %v6174 = vmul.f32 %v5754, %v5754
        %v6175 = vmul.f32 %v5757, %v5757
        %v6176 = vmul.f32 %v5762, %v5762
        %v6177 = vmul.f32 %v5765, %v5765
        %v6178 = vmul.f32 %v5770, %v5770
        %v6179 = vmul.f32 %v5773, %v5773
        %v6180 = vmul.f32 %v5778, %v5778
        %v6181 = vmul.f32 %v5781, %v5781
        %v6182 = vmul.f32 %v5786, %v5786
        %v6183 = vmul.f32 %v5789, %v5789
        %v6184 = vmul.f32 %v5794, %v5794
        %v6185 = vmul.f32 %v5797, %v5797
        %v6186 = vsel %vm1148, %v6154, 0.0
        %6187 = vadd.xlane.f32.xlu0 %v6186
        %v6188 = vpop.xlane.xlu0 %6187
        %v6189 = vsel %vm1148, %v6155, 0.0
        %6190 = vadd.xlane.f32.xlu0 %v6189
        %v6191 = vpop.xlane.xlu0 %6190
        %v6192 = vsel %vm1148, %v6156, 0.0
        %6193 = vadd.xlane.f32.xlu0 %v6192
        %v6194 = vpop.xlane.xlu0 %6193
        %v6195 = vsel %vm1148, %v6157, 0.0
        %6196 = vadd.xlane.f32.xlu0 %v6195
        %v6197 = vpop.xlane.xlu0 %6196
        %v6198 = vsel %vm1148, %v6158, 0.0
        %6199 = vadd.xlane.f32.xlu0 %v6198
        %v6200 = vpop.xlane.xlu0 %6199
        %v6201 = vsel %vm1148, %v6159, 0.0
        %6202 = vadd.xlane.f32.xlu0 %v6201
        %v6203 = vpop.xlane.xlu0 %6202
        %v6204 = vsel %vm1148, %v6160, 0.0
        %6205 = vadd.xlane.f32.xlu0 %v6204
        %v6206 = vpop.xlane.xlu0 %6205
        %v6207 = vsel %vm1148, %v6161, 0.0
        %6208 = vadd.xlane.f32.xlu0 %v6207
        %v6209 = vpop.xlane.xlu0 %6208
        %v6210 = vsel %vm1148, %v6162, 0.0
        %6211 = vadd.xlane.f32.xlu0 %v6210
        %v6212 = vpop.xlane.xlu0 %6211
        %v6213 = vsel %vm1148, %v6163, 0.0
        %6214 = vadd.xlane.f32.xlu0 %v6213
        %v6215 = vpop.xlane.xlu0 %6214
        %v6216 = vsel %vm1148, %v6164, 0.0
        %6217 = vadd.xlane.f32.xlu0 %v6216
        %v6218 = vpop.xlane.xlu0 %6217
        %v6219 = vsel %vm1148, %v6165, 0.0
        %6220 = vadd.xlane.f32.xlu0 %v6219
        %v6221 = vpop.xlane.xlu0 %6220
        %v6222 = vsel %vm1148, %v6166, 0.0
        %6223 = vadd.xlane.f32.xlu0 %v6222
        %v6224 = vpop.xlane.xlu0 %6223
        %v6225 = vsel %vm1148, %v6167, 0.0
        %6226 = vadd.xlane.f32.xlu0 %v6225
        %v6227 = vpop.xlane.xlu0 %6226
        %v6228 = vsel %vm1148, %v6168, 0.0
        %6229 = vadd.xlane.f32.xlu0 %v6228
        %v6230 = vpop.xlane.xlu0 %6229
        %v6231 = vsel %vm1148, %v6169, 0.0
        %6232 = vadd.xlane.f32.xlu0 %v6231
        %v6233 = vpop.xlane.xlu0 %6232
        %v6234 = vsel %vm1148, %v6170, 0.0
        %6235 = vadd.xlane.f32.xlu0 %v6234
        %v6236 = vpop.xlane.xlu0 %6235
        %v6237 = vsel %vm1148, %v6171, 0.0
        %6238 = vadd.xlane.f32.xlu0 %v6237
        %v6239 = vpop.xlane.xlu0 %6238
        %v6240 = vsel %vm1148, %v6172, 0.0
        %6241 = vadd.xlane.f32.xlu0 %v6240
        %v6242 = vpop.xlane.xlu0 %6241
        %v6243 = vsel %vm1148, %v6173, 0.0
        %6244 = vadd.xlane.f32.xlu0 %v6243
        %v6245 = vpop.xlane.xlu0 %6244
        %v6246 = vsel %vm1148, %v6174, 0.0
        %6247 = vadd.xlane.f32.xlu0 %v6246
        %v6248 = vpop.xlane.xlu0 %6247
        %v6249 = vsel %vm1148, %v6175, 0.0
        %6250 = vadd.xlane.f32.xlu0 %v6249
        %v6251 = vpop.xlane.xlu0 %6250
        %v6252 = vsel %vm1148, %v6176, 0.0
        %6253 = vadd.xlane.f32.xlu0 %v6252
        %v6254 = vpop.xlane.xlu0 %6253
        %v6255 = vsel %vm1148, %v6177, 0.0
        %6256 = vadd.xlane.f32.xlu0 %v6255
        %v6257 = vpop.xlane.xlu0 %6256
        %v6258 = vsel %vm1148, %v6178, 0.0
        %6259 = vadd.xlane.f32.xlu0 %v6258
        %v6260 = vpop.xlane.xlu0 %6259
        %v6261 = vsel %vm1148, %v6179, 0.0
        %6262 = vadd.xlane.f32.xlu0 %v6261
        %v6263 = vpop.xlane.xlu0 %6262
        %v6264 = vsel %vm1148, %v6180, 0.0
        %6265 = vadd.xlane.f32.xlu0 %v6264
        %v6266 = vpop.xlane.xlu0 %6265
        %v6267 = vsel %vm1148, %v6181, 0.0
        %6268 = vadd.xlane.f32.xlu0 %v6267
        %v6269 = vpop.xlane.xlu0 %6268
        %v6270 = vsel %vm1148, %v6182, 0.0
        %6271 = vadd.xlane.f32.xlu0 %v6270
        %v6272 = vpop.xlane.xlu0 %6271
        %v6273 = vsel %vm1148, %v6183, 0.0
        %6274 = vadd.xlane.f32.xlu0 %v6273
        %v6275 = vpop.xlane.xlu0 %6274
        %v6276 = vsel %vm1148, %v6184, 0.0
        %6277 = vadd.xlane.f32.xlu0 %v6276
        %v6278 = vpop.xlane.xlu0 %6277
        %v6279 = vsel %vm1148, %v6185, 0.0
        %6280 = vadd.xlane.f32.xlu0 %v6279
        %v6281 = vpop.xlane.xlu0 %6280
        %v6282 = vmax.f32 %v6188, 1e-24
        %v6283 = vmax.f32 %v6191, 1e-24
        %v6284 = vmax.f32 %v6194, 1e-24
        %v6285 = vmax.f32 %v6197, 1e-24
        %v6286 = vmax.f32 %v6200, 1e-24
        %v6287 = vmax.f32 %v6203, 1e-24
        %v6288 = vmax.f32 %v6206, 1e-24
        %v6289 = vmax.f32 %v6209, 1e-24
        %v6290 = vmax.f32 %v6212, 1e-24
        %v6291 = vmax.f32 %v6215, 1e-24
        %v6292 = vmax.f32 %v6218, 1e-24
        %v6293 = vmax.f32 %v6221, 1e-24
        %v6294 = vmax.f32 %v6224, 1e-24
        %v6295 = vmax.f32 %v6227, 1e-24
        %v6296 = vmax.f32 %v6230, 1e-24
        %v6297 = vmax.f32 %v6233, 1e-24
        %v6298 = vmax.f32 %v6236, 1e-24
        %v6299 = vmax.f32 %v6239, 1e-24
        %v6300 = vmax.f32 %v6242, 1e-24
        %v6301 = vmax.f32 %v6245, 1e-24
        %v6302 = vmax.f32 %v6248, 1e-24
        %v6303 = vmax.f32 %v6251, 1e-24
        %v6304 = vmax.f32 %v6254, 1e-24
        %v6305 = vmax.f32 %v6257, 1e-24
        %v6306 = vmax.f32 %v6260, 1e-24
        %v6307 = vmax.f32 %v6263, 1e-24
        %v6308 = vmax.f32 %v6266, 1e-24
        %v6309 = vmax.f32 %v6269, 1e-24
        %v6310 = vmax.f32 %v6272, 1e-24
        %v6311 = vmax.f32 %v6275, 1e-24
        %v6312 = vmax.f32 %v6278, 1e-24
        %v6313 = vmax.f32 %v6281, 1e-24
        %v6314 = vrsqrt.pop %v6282
        %v6315 = vrsqrt.pop %v6283
        %v6316 = vrsqrt.pop %v6284
        %v6317 = vrsqrt.pop %v6285
        %v6318 = vrsqrt.pop %v6286
        %v6319 = vrsqrt.pop %v6287
        %v6320 = vrsqrt.pop %v6288
        %v6321 = vrsqrt.pop %v6289
        %v6322 = vrsqrt.pop %v6290
        %v6323 = vrsqrt.pop %v6291
        %v6324 = vrsqrt.pop %v6292
        %v6325 = vrsqrt.pop %v6293
        %v6326 = vrsqrt.pop %v6294
        %v6327 = vrsqrt.pop %v6295
        %v6328 = vrsqrt.pop %v6296
        %v6329 = vrsqrt.pop %v6297
        %v6330 = vrsqrt.pop %v6298
        %v6331 = vrsqrt.pop %v6299
        %v6332 = vrsqrt.pop %v6300
        %v6333 = vrsqrt.pop %v6301
        %v6334 = vrsqrt.pop %v6302
        %v6335 = vrsqrt.pop %v6303
        %v6336 = vrsqrt.pop %v6304
        %v6337 = vrsqrt.pop %v6305
        %v6338 = vrsqrt.pop %v6306
        %v6339 = vrsqrt.pop %v6307
        %v6340 = vrsqrt.pop %v6308
        %v6341 = vrsqrt.pop %v6309
        %v6342 = vrsqrt.pop %v6310
        %v6343 = vrsqrt.pop %v6311
        %v6344 = vrsqrt.pop %v6312
        %v6345 = vrsqrt.pop %v6313
        %v6346 = vmul.f32 %v5674, %v6314
        %v6347 = vmul.f32 %v5677, %v6315
        %v6348 = vmul.f32 %v5682, %v6316
        %v6349 = vmul.f32 %v5685, %v6317
        %v6350 = vmul.f32 %v5690, %v6318
        %v6351 = vmul.f32 %v5693, %v6319
        %v6352 = vmul.f32 %v5698, %v6320
        %v6353 = vmul.f32 %v5701, %v6321
        %v6354 = vmul.f32 %v5706, %v6322
        %v6355 = vmul.f32 %v5709, %v6323
        %v6356 = vmul.f32 %v5714, %v6324
        %v6357 = vmul.f32 %v5717, %v6325
        %v6358 = vmul.f32 %v5722, %v6326
        %v6359 = vmul.f32 %v5725, %v6327
        %v6360 = vmul.f32 %v5730, %v6328
        %v6361 = vmul.f32 %v5733, %v6329
        %v6362 = vmul.f32 %v5738, %v6330
        %v6363 = vmul.f32 %v5741, %v6331
        %v6364 = vmul.f32 %v5746, %v6332
        %v6365 = vmul.f32 %v5749, %v6333
        %v6366 = vmul.f32 %v5754, %v6334
        %v6367 = vmul.f32 %v5757, %v6335
        %v6368 = vmul.f32 %v5762, %v6336
        %v6369 = vmul.f32 %v5765, %v6337
        %v6370 = vmul.f32 %v5770, %v6338
        %v6371 = vmul.f32 %v5773, %v6339
        %v6372 = vmul.f32 %v5778, %v6340
        %v6373 = vmul.f32 %v5781, %v6341
        %v6374 = vmul.f32 %v5786, %v6342
        %v6375 = vmul.f32 %v5789, %v6343
        %v6376 = vmul.f32 %v5794, %v6344
        %v6377 = vmul.f32 %v5797, %v6345
        %v6378 = vpack.c.bf16 %v6139, %v6138
        %v6379 = vpack.c.bf16 %v6141, %v6140
        %v6380 = vpack.c.bf16 %v6143, %v6142
        %v6381 = vpack.c.bf16 %v6145, %v6144
        %v6382 = vpack.c.bf16 %v6147, %v6146
        %v6383 = vpack.c.bf16 %v6149, %v6148
        %v6384 = vpack.c.bf16 %v6151, %v6150
        %v6385 = vpack.c.bf16 %v6153, %v6152
        %v6386 = vpack.c.bf16 %v6347, %v6346
        %v6387 = vpack.c.bf16 %v6349, %v6348
        %v6388 = vpack.c.bf16 %v6351, %v6350
        %v6389 = vpack.c.bf16 %v6353, %v6352
        %v6390 = vpack.c.bf16 %v6355, %v6354
        %v6391 = vpack.c.bf16 %v6357, %v6356
        %v6392 = vpack.c.bf16 %v6359, %v6358
        %v6393 = vpack.c.bf16 %v6361, %v6360
        %v6394 = vpack.c.bf16 %v6363, %v6362
        %v6395 = vpack.c.bf16 %v6365, %v6364
        %v6396 = vpack.c.bf16 %v6367, %v6366
        %v6397 = vpack.c.bf16 %v6369, %v6368
        %v6398 = vpack.c.bf16 %v6371, %v6370
        %v6399 = vpack.c.bf16 %v6373, %v6372
        %v6400 = vpack.c.bf16 %v6375, %v6374
        %v6401 = vpack.c.bf16 %v6377, %v6376
        %v6403 = vsel %vm1148, %v6378, 0
        %v6406 = vsel %vm1148, %v6379, 0
        %v6409 = vsel %vm1148, %v6380, 0
        %v6412 = vsel %vm1148, %v6381, 0
        %v6415 = vsel %vm1148, %v6382, 0
        %v6418 = vsel %vm1148, %v6383, 0
        %v6421 = vsel %vm1148, %v6384, 0
        %v6424 = vsel %vm1148, %v6385, 0
        %v6427 = vsel %vm1148, %v6386, 0
        %v6430 = vsel %vm1148, %v6387, 0
        %v6433 = vsel %vm1148, %v6388, 0
        %v6436 = vsel %vm1148, %v6389, 0
        %v6439 = vsel %vm1148, %v6390, 0
        %v6442 = vsel %vm1148, %v6391, 0
        %v6445 = vsel %vm1148, %v6392, 0
        %v6448 = vsel %vm1148, %v6393, 0
        %v6451 = vsel %vm1148, %v6394, 0
        %v6454 = vsel %vm1148, %v6395, 0
        %v6457 = vsel %vm1148, %v6396, 0
        %v6460 = vsel %vm1148, %v6397, 0
        %v6463 = vsel %vm1148, %v6398, 0
        %v6466 = vsel %vm1148, %v6399, 0
        %v6469 = vsel %vm1148, %v6400, 0
        %v6472 = vsel %vm1148, %v6401, 0
        %6474 = vmatprep.subr.bf16.mxu0 0
        %6475 = vmatpush1.bf16.xpose.msra.mxu0 %v6427
        %6476 = vmatprep.subr.bf16.mxu0 0
        %6477 = vmatpush1.bf16.xpose.msra.mxu0 %v6430
        %6478 = vmatprep.subr.bf16.mxu0 0
        %6479 = vmatpush1.bf16.xpose.msra.mxu0 %v6433
        %6480 = vmatprep.subr.bf16.mxu0 0
        %6481 = vmatpush1.bf16.xpose.msra.mxu0 %v6436
        %6482 = vmatprep.subr.bf16.mxu0 0
        %6483 = vmatpush1.bf16.xpose.msra.mxu0 %v6439
        %6484 = vmatprep.subr.bf16.mxu0 0
        %6485 = vmatpush1.bf16.xpose.msra.mxu0 %v6442
        %6486 = vmatprep.subr.bf16.mxu0 0
        %6487 = vmatpush1.bf16.xpose.msra.mxu0 %v6445
        %6488 = vmatprep.subr.bf16.mxu0 0
        %6489 = vmatpush1.bf16.xpose.msra.mxu0 %v6448
        %6490 = vmatprep.subr.bf16.mxu0 0
        %6491 = vmatpush1.bf16.xpose.msra.mxu0 %v6451
        %6492 = vmatprep.subr.bf16.mxu0 0
        %6493 = vmatpush1.bf16.xpose.msra.mxu0 %v6454
        %6494 = vmatprep.subr.bf16.mxu0 0
        %6495 = vmatpush1.bf16.xpose.msra.mxu0 %v6457
        %6496 = vmatprep.subr.bf16.mxu0 0
        %6497 = vmatpush1.bf16.xpose.msra.mxu0 %v6460
        %6498 = vmatprep.subr.bf16.mxu0 0
        %6499 = vmatpush1.bf16.xpose.msra.mxu0 %v6463
        %6500 = vmatprep.subr.bf16.mxu0 0
        %6501 = vmatpush1.bf16.xpose.msra.mxu0 %v6466
        %6502 = vmatprep.subr.bf16.mxu0 0
        %6503 = vmatpush1.bf16.xpose.msra.mxu0 %v6469
        %6504 = vmatprep.subr.bf16.mxu0 0
        %6505 = vmatpush1.bf16.xpose.msra.mxu0 %v6472
        %6506 = vmatprep.mubr.bf16.mxu0 0
        %6507 = vmatmul.mubr.bf16.gmra.mrb[0].mxu0 %v6403
        %v6508 = vpop.f32.mrb[0].mxu0
        %v6509 = vadd.f32 0.0, %v6508
        %v6510 = vpop.f32.mrb[0].mxu0
        %v6511 = vadd.f32 0.0, %v6510
        %v6512 = vpop.f32.mrb[0].mxu0
        %v6513 = vadd.f32 0.0, %v6512
        %v6514 = vpop.f32.mrb[0].mxu0
        %v6515 = vadd.f32 0.0, %v6514
        %6516 = vmatprep.mubr.bf16.mxu0 0
        %6517 = vmatmul.mubr.bf16.gmra.mrb[0].mxu0 %v6406
        %v6518 = vpop.f32.mrb[0].mxu0
        %v6519 = vadd.f32 0.0, %v6518
        %v6520 = vpop.f32.mrb[0].mxu0
        %v6521 = vadd.f32 0.0, %v6520
        %v6522 = vpop.f32.mrb[0].mxu0
        %v6523 = vadd.f32 0.0, %v6522
        %v6524 = vpop.f32.mrb[0].mxu0
        %v6525 = vadd.f32 0.0, %v6524
        %6526 = vmatprep.mubr.bf16.mxu0 0
        %6527 = vmatmul.mubr.bf16.gmra.mrb[0].mxu0 %v6409
        %v6528 = vpop.f32.mrb[0].mxu0
        %v6529 = vadd.f32 0.0, %v6528
        %v6530 = vpop.f32.mrb[0].mxu0
        %v6531 = vadd.f32 0.0, %v6530
        %v6532 = vpop.f32.mrb[0].mxu0
        %v6533 = vadd.f32 0.0, %v6532
        %v6534 = vpop.f32.mrb[0].mxu0
        %v6535 = vadd.f32 0.0, %v6534
        %6536 = vmatprep.mubr.bf16.mxu0 0
        %6537 = vmatmul.mubr.bf16.gmra.mrb[0].mxu0 %v6412
        %v6538 = vpop.f32.mrb[0].mxu0
        %v6539 = vadd.f32 0.0, %v6538
        %v6540 = vpop.f32.mrb[0].mxu0
        %v6541 = vadd.f32 0.0, %v6540
        %v6542 = vpop.f32.mrb[0].mxu0
        %v6543 = vadd.f32 0.0, %v6542
        %v6544 = vpop.f32.mrb[0].mxu0
        %v6545 = vadd.f32 0.0, %v6544
        %6546 = vmatprep.mubr.bf16.mxu0 0
        %6547 = vmatmul.mubr.bf16.gmra.mrb[0].mxu0 %v6415
        %v6548 = vpop.f32.mrb[0].mxu0
        %v6549 = vadd.f32 0.0, %v6548
        %v6550 = vpop.f32.mrb[0].mxu0
        %v6551 = vadd.f32 0.0, %v6550
        %v6552 = vpop.f32.mrb[0].mxu0
        %v6553 = vadd.f32 0.0, %v6552
        %v6554 = vpop.f32.mrb[0].mxu0
        %v6555 = vadd.f32 0.0, %v6554
        %6556 = vmatprep.mubr.bf16.mxu0 0
        %6557 = vmatmul.mubr.bf16.gmra.mrb[0].mxu0 %v6418
        %v6558 = vpop.f32.mrb[0].mxu0
        %v6559 = vadd.f32 0.0, %v6558
        %v6560 = vpop.f32.mrb[0].mxu0
        %v6561 = vadd.f32 0.0, %v6560
        %v6562 = vpop.f32.mrb[0].mxu0
        %v6563 = vadd.f32 0.0, %v6562
        %v6564 = vpop.f32.mrb[0].mxu0
        %v6565 = vadd.f32 0.0, %v6564
        %6566 = vmatprep.mubr.bf16.mxu0 0
        %6567 = vmatmul.mubr.bf16.gmra.mrb[0].mxu0 %v6421
        %v6568 = vpop.f32.mrb[0].mxu0
        %v6569 = vadd.f32 0.0, %v6568
        %v6570 = vpop.f32.mrb[0].mxu0
        %v6571 = vadd.f32 0.0, %v6570
        %v6572 = vpop.f32.mrb[0].mxu0
        %v6573 = vadd.f32 0.0, %v6572
        %v6574 = vpop.f32.mrb[0].mxu0
        %v6575 = vadd.f32 0.0, %v6574
        %6576 = vmatprep.mubr.bf16.mxu0 0
        %6577 = vmatmul.mubr.bf16.gmra.mrb[0].mxu0 %v6424
        %v6578 = vpop.f32.mrb[0].mxu0
        %v6579 = vadd.f32 0.0, %v6578
        %v6580 = vpop.f32.mrb[0].mxu0
        %v6581 = vadd.f32 0.0, %v6580
        %v6582 = vpop.f32.mrb[0].mxu0
        %v6583 = vadd.f32 0.0, %v6582
        %v6584 = vpop.f32.mrb[0].mxu0
        %v6585 = vadd.f32 0.0, %v6584
        %6586 = vdwg.mxu0
        %v6587 = vsub.f32 %v6509, 10.0
        %v6588 = vsub.f32 %v6511, 10.0
        %v6589 = vsub.f32 %v6513, 10.0
        %v6590 = vsub.f32 %v6515, 10.0
        %v6591 = vsub.f32 %v6519, 10.0
        %v6592 = vsub.f32 %v6521, 10.0
        %v6593 = vsub.f32 %v6523, 10.0
        %v6594 = vsub.f32 %v6525, 10.0
        %v6595 = vsub.f32 %v6529, 10.0
        %v6596 = vsub.f32 %v6531, 10.0
        %v6597 = vsub.f32 %v6533, 10.0
        %v6598 = vsub.f32 %v6535, 10.0
        %v6599 = vsub.f32 %v6539, 10.0
        %v6600 = vsub.f32 %v6541, 10.0
        %v6601 = vsub.f32 %v6543, 10.0
        %v6602 = vsub.f32 %v6545, 10.0
        %v6603 = vsub.f32 %v6549, 10.0
        %v6604 = vsub.f32 %v6551, 10.0
        %v6605 = vsub.f32 %v6553, 10.0
        %v6606 = vsub.f32 %v6555, 10.0
        %v6607 = vsub.f32 %v6559, 10.0
        %v6608 = vsub.f32 %v6561, 10.0
        %v6609 = vsub.f32 %v6563, 10.0
        %v6610 = vsub.f32 %v6565, 10.0
        %v6611 = vsub.f32 %v6569, 10.0
        %v6612 = vsub.f32 %v6571, 10.0
        %v6613 = vsub.f32 %v6573, 10.0
        %v6614 = vsub.f32 %v6575, 10.0
        %v6615 = vsub.f32 %v6579, 10.0
        %v6616 = vsub.f32 %v6581, 10.0
        %v6617 = vsub.f32 %v6583, 10.0
        %v6618 = vsub.f32 %v6585, 10.0
        %v6619 = vmul.f32 %v6587, 1.442695
        %v6620 = vpow.pop %v6619
        %v6621 = vmul.f32 %v6588, 1.442695
        %v6622 = vpow.pop %v6621
        %v6623 = vmul.f32 %v6589, 1.442695
        %v6624 = vpow.pop %v6623
        %v6625 = vmul.f32 %v6590, 1.442695
        %v6626 = vpow.pop %v6625
        %v6627 = vmul.f32 %v6591, 1.442695
        %v6628 = vpow.pop %v6627
        %v6629 = vmul.f32 %v6592, 1.442695
        %v6630 = vpow.pop %v6629
        %v6631 = vmul.f32 %v6593, 1.442695
        %v6632 = vpow.pop %v6631
        %v6633 = vmul.f32 %v6594, 1.442695
        %v6634 = vpow.pop %v6633
        %v6635 = vmul.f32 %v6595, 1.442695
        %v6636 = vpow.pop %v6635
        %v6637 = vmul.f32 %v6596, 1.442695
        %v6638 = vpow.pop %v6637
        %v6639 = vmul.f32 %v6597, 1.442695
        %v6640 = vpow.pop %v6639
        %v6641 = vmul.f32 %v6598, 1.442695
        %v6642 = vpow.pop %v6641
        %v6643 = vmul.f32 %v6599, 1.442695
        %v6644 = vpow.pop %v6643
        %v6645 = vmul.f32 %v6600, 1.442695
        %v6646 = vpow.pop %v6645
        %v6647 = vmul.f32 %v6601, 1.442695
        %v6648 = vpow.pop %v6647
        %v6649 = vmul.f32 %v6602, 1.442695
        %v6650 = vpow.pop %v6649
        %v6651 = vmul.f32 %v6603, 1.442695
        %v6652 = vpow.pop %v6651
        %v6653 = vmul.f32 %v6604, 1.442695
        %v6654 = vpow.pop %v6653
        %v6655 = vmul.f32 %v6605, 1.442695
        %v6656 = vpow.pop %v6655
        %v6657 = vmul.f32 %v6606, 1.442695
        %v6658 = vpow.pop %v6657
        %v6659 = vmul.f32 %v6607, 1.442695
        %v6660 = vpow.pop %v6659
        %v6661 = vmul.f32 %v6608, 1.442695
        %v6662 = vpow.pop %v6661
        %v6663 = vmul.f32 %v6609, 1.442695
        %v6664 = vpow.pop %v6663
        %v6665 = vmul.f32 %v6610, 1.442695
        %v6666 = vpow.pop %v6665
        %v6667 = vmul.f32 %v6611, 1.442695
        %v6668 = vpow.pop %v6667
        %v6669 = vmul.f32 %v6612, 1.442695
        %v6670 = vpow.pop %v6669
        %v6671 = vmul.f32 %v6613, 1.442695
        %v6672 = vpow.pop %v6671
        %v6673 = vmul.f32 %v6614, 1.442695
        %v6674 = vpow.pop %v6673
        %v6675 = vmul.f32 %v6615, 1.442695
        %v6676 = vpow.pop %v6675
        %v6677 = vmul.f32 %v6616, 1.442695
        %v6678 = vpow.pop %v6677
        %v6679 = vmul.f32 %v6617, 1.442695
        %v6680 = vpow.pop %v6679
        %v6681 = vmul.f32 %v6618, 1.442695
        %v6682 = vpow.pop %v6681
        %v6683 = vadd.f32 %v6620, %v6622
        %6684 = vadd.xlane.f32.xlu0 %v6683
        %v6685 = vpop.xlane.xlu0 %6684
        %v6686 = vadd.f32 %v6624, %v6626
        %6687 = vadd.xlane.f32.xlu0 %v6686
        %v6688 = vpop.xlane.xlu0 %6687
        %v6689 = vadd.f32 %v6628, %v6630
        %6690 = vadd.xlane.f32.xlu0 %v6689
        %v6691 = vpop.xlane.xlu0 %6690
        %v6692 = vadd.f32 %v6632, %v6634
        %6693 = vadd.xlane.f32.xlu0 %v6692
        %v6694 = vpop.xlane.xlu0 %6693
        %v6695 = vadd.f32 %v6636, %v6638
        %6696 = vadd.xlane.f32.xlu0 %v6695
        %v6697 = vpop.xlane.xlu0 %6696
        %v6698 = vadd.f32 %v6640, %v6642
        %6699 = vadd.xlane.f32.xlu0 %v6698
        %v6700 = vpop.xlane.xlu0 %6699
        %v6701 = vadd.f32 %v6644, %v6646
        %6702 = vadd.xlane.f32.xlu0 %v6701
        %v6703 = vpop.xlane.xlu0 %6702
        %v6704 = vadd.f32 %v6648, %v6650
        %6705 = vadd.xlane.f32.xlu0 %v6704
        %v6706 = vpop.xlane.xlu0 %6705
        %v6707 = vadd.f32 %v6652, %v6654
        %6708 = vadd.xlane.f32.xlu0 %v6707
        %v6709 = vpop.xlane.xlu0 %6708
        %v6710 = vadd.f32 %v6656, %v6658
        %6711 = vadd.xlane.f32.xlu0 %v6710
        %v6712 = vpop.xlane.xlu0 %6711
        %v6713 = vadd.f32 %v6660, %v6662
        %6714 = vadd.xlane.f32.xlu0 %v6713
        %v6715 = vpop.xlane.xlu0 %6714
        %v6716 = vadd.f32 %v6664, %v6666
        %6717 = vadd.xlane.f32.xlu0 %v6716
        %v6718 = vpop.xlane.xlu0 %6717
        %v6719 = vadd.f32 %v6668, %v6670
        %6720 = vadd.xlane.f32.xlu0 %v6719
        %v6721 = vpop.xlane.xlu0 %6720
        %v6722 = vadd.f32 %v6672, %v6674
        %6723 = vadd.xlane.f32.xlu0 %v6722
        %v6724 = vpop.xlane.xlu0 %6723
        %v6725 = vadd.f32 %v6676, %v6678
        %6726 = vadd.xlane.f32.xlu0 %v6725
        %v6727 = vpop.xlane.xlu0 %6726
        %v6728 = vadd.f32 %v6680, %v6682
        %6729 = vadd.xlane.f32.xlu0 %v6728
        %v6730 = vpop.xlane.xlu0 %6729
        %v6731 = vpack.c.bf16 %v6624, %v6620
        %v6732 = vpack.c.bf16 %v6626, %v6622
        %v6733 = vpack.c.bf16 %v6632, %v6628
        %v6734 = vpack.c.bf16 %v6634, %v6630
        %v6735 = vpack.c.bf16 %v6640, %v6636
        %v6736 = vpack.c.bf16 %v6642, %v6638
        %v6737 = vpack.c.bf16 %v6648, %v6644
        %v6738 = vpack.c.bf16 %v6650, %v6646
        %v6739 = vpack.c.bf16 %v6656, %v6652
        %v6740 = vpack.c.bf16 %v6658, %v6654
        %v6741 = vpack.c.bf16 %v6664, %v6660
        %v6742 = vpack.c.bf16 %v6666, %v6662
        %v6743 = vpack.c.bf16 %v6672, %v6668
        %v6744 = vpack.c.bf16 %v6674, %v6670
        %v6745 = vpack.c.bf16 %v6680, %v6676
        %v6746 = vpack.c.bf16 %v6682, %v6678
        %v6747 = vpack.c.bf16 %v5903, %v5900
        %v6748 = vpack.c.bf16 %v5911, %v5908
        %v6749 = vpack.c.bf16 %v5919, %v5916
        %v6750 = vpack.c.bf16 %v5927, %v5924
        %v6751 = vpack.c.bf16 %v5935, %v5932
        %v6752 = vpack.c.bf16 %v5943, %v5940
        %v6753 = vpack.c.bf16 %v5951, %v5948
        %v6754 = vpack.c.bf16 %v5959, %v5956
        %v6755 = vpack.c.bf16 %v5967, %v5964
        %v6756 = vpack.c.bf16 %v5975, %v5972
        %v6757 = vpack.c.bf16 %v5983, %v5980
        %v6758 = vpack.c.bf16 %v5991, %v5988
        %v6759 = vpack.c.bf16 %v5999, %v5996
        %v6760 = vpack.c.bf16 %v6007, %v6004
        %v6761 = vpack.c.bf16 %v6015, %v6012
        %v6762 = vpack.c.bf16 %v6023, %v6020
        %6763 = vmatprep.subr.bf16.mxu0 0
        %6764 = vmatpush1.bf16.msra.mxu0 %v6747
        %6765 = vmatprep.subr.bf16.mxu0 0
        %6766 = vmatpush1.bf16.msra.mxu0 %v6748
        %6767 = vmatprep.subr.bf16.mxu0 0
        %6768 = vmatpush1.bf16.msra.mxu0 %v6749
        %6769 = vmatprep.subr.bf16.mxu0 0
        %6770 = vmatpush1.bf16.msra.mxu0 %v6750
        %6771 = vmatprep.subr.bf16.mxu0 0
        %6772 = vmatpush1.bf16.msra.mxu0 %v6751
        %6773 = vmatprep.subr.bf16.mxu0 0
        %6774 = vmatpush1.bf16.msra.mxu0 %v6752
        %6775 = vmatprep.subr.bf16.mxu0 0
        %6776 = vmatpush1.bf16.msra.mxu0 %v6753
        %6777 = vmatprep.subr.bf16.mxu0 0
        %6778 = vmatpush1.bf16.msra.mxu0 %v6754
        %6779 = vmatprep.subr.bf16.mxu0 0
        %6780 = vmatpush1.bf16.msra.mxu0 %v6755
        %6781 = vmatprep.subr.bf16.mxu0 0
        %6782 = vmatpush1.bf16.msra.mxu0 %v6756
        %6783 = vmatprep.subr.bf16.mxu0 0
        %6784 = vmatpush1.bf16.msra.mxu0 %v6757
        %6785 = vmatprep.subr.bf16.mxu0 0
        %6786 = vmatpush1.bf16.msra.mxu0 %v6758
        %6787 = vmatprep.subr.bf16.mxu0 0
        %6788 = vmatpush1.bf16.msra.mxu0 %v6759
        %6789 = vmatprep.subr.bf16.mxu0 0
        %6790 = vmatpush1.bf16.msra.mxu0 %v6760
        %6791 = vmatprep.subr.bf16.mxu0 0
        %6792 = vmatpush1.bf16.msra.mxu0 %v6761
        %6793 = vmatprep.subr.bf16.mxu0 0
        %6794 = vmatpush1.bf16.msra.mxu0 %v6762
        %6795 = vmatprep.mubr.bf16.mxu0 %v6732
        %6796 = vmatmul.mubr.bf16.gmra.mrb[0].mxu0 %v6731
        %v6797 = vpop.f32.mrb[0].mxu0
        %v6798 = vadd.f32 0.0, %v6797
        %v6799 = vpop.f32.mrb[0].mxu0
        %v6800 = vpop.f32.mrb[0].mxu0
        %v6801 = vadd.f32 0.0, %v6800
        %v6802 = vpop.f32.mrb[0].mxu0
        %6803 = vmatprep.mubr.bf16.mxu0 %v6734
        %6804 = vmatmul.mubr.bf16.gmra.mrb[0].mxu0 %v6733
        %v6805 = vpop.f32.mrb[0].mxu0
        %v6806 = vadd.f32 0.0, %v6805
        %v6807 = vpop.f32.mrb[0].mxu0
        %v6808 = vpop.f32.mrb[0].mxu0
        %v6809 = vadd.f32 0.0, %v6808
        %v6810 = vpop.f32.mrb[0].mxu0
        %6811 = vmatprep.mubr.bf16.mxu0 %v6736
        %6812 = vmatmul.mubr.bf16.gmra.mrb[0].mxu0 %v6735
        %v6813 = vpop.f32.mrb[0].mxu0
        %v6814 = vadd.f32 0.0, %v6813
        %v6815 = vpop.f32.mrb[0].mxu0
        %v6816 = vpop.f32.mrb[0].mxu0
        %v6817 = vadd.f32 0.0, %v6816
        %v6818 = vpop.f32.mrb[0].mxu0
        %6819 = vmatprep.mubr.bf16.mxu0 %v6738
        %6820 = vmatmul.mubr.bf16.gmra.mrb[0].mxu0 %v6737
        %v6821 = vpop.f32.mrb[0].mxu0
        %v6822 = vadd.f32 0.0, %v6821
        %v6823 = vpop.f32.mrb[0].mxu0
        %v6824 = vpop.f32.mrb[0].mxu0
        %v6825 = vadd.f32 0.0, %v6824
        %v6826 = vpop.f32.mrb[0].mxu0
        %6827 = vmatprep.mubr.bf16.mxu0 %v6740
        %6828 = vmatmul.mubr.bf16.gmra.mrb[0].mxu0 %v6739
        %v6829 = vpop.f32.mrb[0].mxu0
        %v6830 = vadd.f32 0.0, %v6829
        %v6831 = vpop.f32.mrb[0].mxu0
        %v6832 = vpop.f32.mrb[0].mxu0
        %v6833 = vadd.f32 0.0, %v6832
        %v6834 = vpop.f32.mrb[0].mxu0
        %6835 = vmatprep.mubr.bf16.mxu0 %v6742
        %6836 = vmatmul.mubr.bf16.gmra.mrb[0].mxu0 %v6741
        %v6837 = vpop.f32.mrb[0].mxu0
        %v6838 = vadd.f32 0.0, %v6837
        %v6839 = vpop.f32.mrb[0].mxu0
        %v6840 = vpop.f32.mrb[0].mxu0
        %v6841 = vadd.f32 0.0, %v6840
        %v6842 = vpop.f32.mrb[0].mxu0
        %6843 = vmatprep.mubr.bf16.mxu0 %v6744
        %6844 = vmatmul.mubr.bf16.gmra.mrb[0].mxu0 %v6743
        %v6845 = vpop.f32.mrb[0].mxu0
        %v6846 = vadd.f32 0.0, %v6845
        %v6847 = vpop.f32.mrb[0].mxu0
        %v6848 = vpop.f32.mrb[0].mxu0
        %v6849 = vadd.f32 0.0, %v6848
        %v6850 = vpop.f32.mrb[0].mxu0
        %6851 = vmatprep.mubr.bf16.mxu0 %v6746
        %6852 = vmatmul.mubr.bf16.gmra.mrb[0].mxu0 %v6745
        %v6853 = vpop.f32.mrb[0].mxu0
        %v6854 = vadd.f32 0.0, %v6853
        %v6855 = vpop.f32.mrb[0].mxu0
        %v6856 = vpop.f32.mrb[0].mxu0
        %v6857 = vadd.f32 0.0, %v6856
        %v6858 = vpop.f32.mrb[0].mxu0
        %6859 = vdwg.mxu0
        %v6860 = vrcp.pop %v6685
        %v6861 = vrcp.pop %v6688
        %v6862 = vrcp.pop %v6691
        %v6863 = vrcp.pop %v6694
        %v6864 = vrcp.pop %v6697
        %v6865 = vrcp.pop %v6700
        %v6866 = vrcp.pop %v6703
        %v6867 = vrcp.pop %v6706
        %v6868 = vrcp.pop %v6709
        %v6869 = vrcp.pop %v6712
        %v6870 = vrcp.pop %v6715
        %v6871 = vrcp.pop %v6718
        %v6872 = vrcp.pop %v6721
        %v6873 = vrcp.pop %v6724
        %v6874 = vrcp.pop %v6727
        %v6875 = vrcp.pop %v6730
        %v6876 = vmul.f32 %v6798, %v6860
        %v6877 = vmul.f32 %v6801, %v6861
        %v6878 = vmul.f32 %v6806, %v6862
        %v6879 = vmul.f32 %v6809, %v6863
        %v6880 = vmul.f32 %v6814, %v6864
        %v6881 = vmul.f32 %v6817, %v6865
        %v6882 = vmul.f32 %v6822, %v6866
        %v6883 = vmul.f32 %v6825, %v6867
        %v6884 = vmul.f32 %v6830, %v6868
        %v6885 = vmul.f32 %v6833, %v6869
        %v6886 = vmul.f32 %v6838, %v6870
        %v6887 = vmul.f32 %v6841, %v6871
        %v6888 = vmul.f32 %v6846, %v6872
        %v6889 = vmul.f32 %v6849, %v6873
        %v6890 = vmul.f32 %v6854, %v6874
        %v6891 = vmul.f32 %v6857, %v6875
        %v6892 = vpack.c.bf16 %v6877, %v6876
        %v6893 = vpack.c.bf16 %v6879, %v6878
        %v6894 = vpack.c.bf16 %v6881, %v6880
        %v6895 = vpack.c.bf16 %v6883, %v6882
        %v6896 = vpack.c.bf16 %v6885, %v6884
        %v6897 = vpack.c.bf16 %v6887, %v6886
        %v6898 = vpack.c.bf16 %v6889, %v6888
        %v6899 = vpack.c.bf16 %v6891, %v6890
        %s6900 = scalar_lea.vmem %s5, 48
        %v6901 = vld [vmem:[%s6900] sm:$0xf]
        %v6902 = vld [vmem:[%s6900 + $0x4] sm:$0xf]
        %v6903 = vld [vmem:[%s6900 + $0x8] sm:$0xf]
        %v6904 = vld [vmem:[%s6900 + $0xc] sm:$0xf]
        %v6909 = vunpack.c.l.b16 %v6901
        %v6910 = vunpack.c.l.b16 %v6902
        %v6911 = vunpack.c.l.b16 %v6903
        %v6912 = vunpack.c.l.b16 %v6904
        %v6913 = vpack.c.b16 %v6910, %v6909
        %v6914 = vpack.c.b16 %v6912, %v6911
        %v6918 = vsel %vm1148, %v6892, 0
        %v6921 = vsel %vm1148, %v6893, 0
        %v6924 = vsel %vm1148, %v6894, 0
        %v6927 = vsel %vm1148, %v6895, 0
        %v6930 = vsel %vm1148, %v6896, 0
        %v6933 = vsel %vm1148, %v6897, 0
        %v6936 = vsel %vm1148, %v6898, 0
        %v6939 = vsel %vm1148, %v6899, 0
        %6941 = vmatprep.subr.bf16.mxu0 0
        %6942 = vmatpush1.bf16.msra.mxu0 %v6913
        %6943 = vmatprep.subr.bf16.mxu0 0
        %6944 = vmatpush1.bf16.msra.mxu0 %v6914
        %6945 = vmatprep.subr.bf16.mxu0 0
        %6946 = vmatpush1.bf16.msra.mxu0 0
        %6947 = vmatprep.subr.bf16.mxu0 0
        %6948 = vmatpush1.bf16.msra.mxu0 0
        %6949 = vmatprep.subr.bf16.mxu0 0
        %6950 = vmatpush1.bf16.msra.mxu0 0
        %6951 = vmatprep.subr.bf16.mxu0 0
        %6952 = vmatpush1.bf16.msra.mxu0 0
        %6953 = vmatprep.subr.bf16.mxu0 0
        %6954 = vmatpush1.bf16.msra.mxu0 0
        %6955 = vmatprep.subr.bf16.mxu0 0
        %6956 = vmatpush1.bf16.msra.mxu0 0
        %6957 = vmatprep.subr.bf16.mxu0 0
        %6958 = vmatpush1.bf16.msra.mxu0 0
        %6959 = vmatprep.subr.bf16.mxu0 0
        %6960 = vmatpush1.bf16.msra.mxu0 0
        %6961 = vmatprep.subr.bf16.mxu0 0
        %6962 = vmatpush1.bf16.msra.mxu0 0
        %6963 = vmatprep.subr.bf16.mxu0 0
        %6964 = vmatpush1.bf16.msra.mxu0 0
        %6965 = vmatprep.subr.bf16.mxu0 0
        %6966 = vmatpush1.bf16.msra.mxu0 0
        %6967 = vmatprep.subr.bf16.mxu0 0
        %6968 = vmatpush1.bf16.msra.mxu0 0
        %6969 = vmatprep.subr.bf16.mxu0 0
        %6970 = vmatpush1.bf16.msra.mxu0 0
        %6971 = vmatprep.subr.bf16.mxu0 0
        %6972 = vmatpush1.bf16.msra.mxu0 0
        %6973 = vmatprep.mubr.bf16.mxu0 0
        %6974 = vmatmul.mubr.bf16.gmra.mrb[0].mxu0 %v6918
        %v6975 = vpop.f32.mrb[0].mxu0
        %v6976 = vadd.f32 0.0, %v6975
        %v6977 = vpop.f32.mrb[0].mxu0
        %v6978 = vpop.f32.mrb[0].mxu0
        %v6979 = vadd.f32 0.0, %v6978
        %v6980 = vpop.f32.mrb[0].mxu0
        %6981 = vmatprep.mubr.bf16.mxu0 0
        %6982 = vmatmul.mubr.bf16.gmra.mrb[0].mxu0 %v6921
        %v6983 = vpop.f32.mrb[0].mxu0
        %v6984 = vadd.f32 0.0, %v6983
        %v6985 = vpop.f32.mrb[0].mxu0
        %v6986 = vpop.f32.mrb[0].mxu0
        %v6987 = vadd.f32 0.0, %v6986
        %v6988 = vpop.f32.mrb[0].mxu0
        %6989 = vmatprep.mubr.bf16.mxu0 0
        %6990 = vmatmul.mubr.bf16.gmra.mrb[0].mxu0 %v6924
        %v6991 = vpop.f32.mrb[0].mxu0
        %v6992 = vadd.f32 0.0, %v6991
        %v6993 = vpop.f32.mrb[0].mxu0
        %v6994 = vpop.f32.mrb[0].mxu0
        %v6995 = vadd.f32 0.0, %v6994
        %v6996 = vpop.f32.mrb[0].mxu0
        %6997 = vmatprep.mubr.bf16.mxu0 0
        %6998 = vmatmul.mubr.bf16.gmra.mrb[0].mxu0 %v6927
        %v6999 = vpop.f32.mrb[0].mxu0
        %v7000 = vadd.f32 0.0, %v6999
        %v7001 = vpop.f32.mrb[0].mxu0
        %v7002 = vpop.f32.mrb[0].mxu0
        %v7003 = vadd.f32 0.0, %v7002
        %v7004 = vpop.f32.mrb[0].mxu0
        %7005 = vmatprep.mubr.bf16.mxu0 0
        %7006 = vmatmul.mubr.bf16.gmra.mrb[0].mxu0 %v6930
        %v7007 = vpop.f32.mrb[0].mxu0
        %v7008 = vadd.f32 0.0, %v7007
        %v7009 = vpop.f32.mrb[0].mxu0
        %v7010 = vpop.f32.mrb[0].mxu0
        %v7011 = vadd.f32 0.0, %v7010
        %v7012 = vpop.f32.mrb[0].mxu0
        %7013 = vmatprep.mubr.bf16.mxu0 0
        %7014 = vmatmul.mubr.bf16.gmra.mrb[0].mxu0 %v6933
        %v7015 = vpop.f32.mrb[0].mxu0
        %v7016 = vadd.f32 0.0, %v7015
        %v7017 = vpop.f32.mrb[0].mxu0
        %v7018 = vpop.f32.mrb[0].mxu0
        %v7019 = vadd.f32 0.0, %v7018
        %v7020 = vpop.f32.mrb[0].mxu0
        %7021 = vmatprep.mubr.bf16.mxu0 0
        %7022 = vmatmul.mubr.bf16.gmra.mrb[0].mxu0 %v6936
        %v7023 = vpop.f32.mrb[0].mxu0
        %v7024 = vadd.f32 0.0, %v7023
        %v7025 = vpop.f32.mrb[0].mxu0
        %v7026 = vpop.f32.mrb[0].mxu0
        %v7027 = vadd.f32 0.0, %v7026
        %v7028 = vpop.f32.mrb[0].mxu0
        %7029 = vmatprep.mubr.bf16.mxu0 0
        %7030 = vmatmul.mubr.bf16.gmra.mrb[0].mxu0 %v6939
        %v7031 = vpop.f32.mrb[0].mxu0
        %v7032 = vadd.f32 0.0, %v7031
        %v7033 = vpop.f32.mrb[0].mxu0
        %v7034 = vpop.f32.mrb[0].mxu0
        %v7035 = vadd.f32 0.0, %v7034
        %v7036 = vpop.f32.mrb[0].mxu0
        %7037 = vdwg.mxu0
        %v7038 = vadd.f32 %v5396, %v6976
        %v7039 = vadd.f32 %v5397, %v6979
        %v7040 = vadd.f32 %v5398, %v6984
        %v7041 = vadd.f32 %v5399, %v6987
        %v7042 = vadd.f32 %v5400, %v6992
        %v7043 = vadd.f32 %v5401, %v6995
        %v7044 = vadd.f32 %v5402, %v7000
        %v7045 = vadd.f32 %v5403, %v7003
        %v7046 = vadd.f32 %v5404, %v7008
        %v7047 = vadd.f32 %v5405, %v7011
        %v7048 = vadd.f32 %v5406, %v7016
        %v7049 = vadd.f32 %v5407, %v7019
        %v7050 = vadd.f32 %v5408, %v7024
        %v7051 = vadd.f32 %v5409, %v7027
        %v7052 = vadd.f32 %v5410, %v7032
        %v7053 = vadd.f32 %v5411, %v7035
        %v7054 = vld [vmem:[%s6] sm:$0x1]
        %v7056 = vlaneseq
        %v7057 = vshrl.u32 %v7056, 7
        %v7058 = vsub.s32 0, %v7057
        %v7059 = vrot.slane %v7054, %v7058
        %v7061 = vadd.f32 %v7038, %v7059
        %v7062 = vadd.f32 %v7039, %v7059
        %v7063 = vadd.f32 %v7040, %v7059
        %v7064 = vadd.f32 %v7041, %v7059
        %v7065 = vadd.f32 %v7042, %v7059
        %v7066 = vadd.f32 %v7043, %v7059
        %v7067 = vadd.f32 %v7044, %v7059
        %v7068 = vadd.f32 %v7045, %v7059
        %v7069 = vadd.f32 %v7046, %v7059
        %v7070 = vadd.f32 %v7047, %v7059
        %v7071 = vadd.f32 %v7048, %v7059
        %v7072 = vadd.f32 %v7049, %v7059
        %v7073 = vadd.f32 %v7050, %v7059
        %v7074 = vadd.f32 %v7051, %v7059
        %v7075 = vadd.f32 %v7052, %v7059
        %v7076 = vadd.f32 %v7053, %v7059
        %7077 = vst [vmem:[%s311] sm:$0xff] %v7061
        %7078 = vst [vmem:[%s311 + $0x8] sm:$0xff] %v7062
        %7079 = vst [vmem:[%s311 + $0x10] sm:$0xff] %v7063
        %7080 = vst [vmem:[%s311 + $0x18] sm:$0xff] %v7064
        %7081 = vst [vmem:[%s311 + $0x20] sm:$0xff] %v7065
        %7082 = vst [vmem:[%s311 + $0x28] sm:$0xff] %v7066
        %7083 = vst [vmem:[%s311 + $0x30] sm:$0xff] %v7067
        %7084 = vst [vmem:[%s311 + $0x38] sm:$0xff] %v7068
        %7085 = vst [vmem:[%s311 + $0x40] sm:$0xff] %v7069
        %7086 = vst [vmem:[%s311 + $0x48] sm:$0xff] %v7070
        %7087 = vst [vmem:[%s311 + $0x50] sm:$0xff] %v7071
        %7088 = vst [vmem:[%s311 + $0x58] sm:$0xff] %v7072
        %7089 = vst [vmem:[%s311 + $0x60] sm:$0xff] %v7073
        %7090 = vst [vmem:[%s311 + $0x68] sm:$0xff] %v7074
        %7091 = vst [vmem:[%s311 + $0x70] sm:$0xff] %v7075
        %7092 = vst [vmem:[%s311 + $0x78] sm:$0xff] %v7076
        %s7093 = sand.u32 %s202, 1
        %s7094 = scalar_lea.sflag [#allocation3], %s7093
        %s7095 = sand.u32 %s202, 1
        %s7096 = smul.addr %s7095, 128
        %s7097 = scalar_lea.vmem [#allocation2], %s7096
        // Predicated region
        $region49: #{tpu_custom_call.1} parent=47 // pred_check
          %p7098 = pneg %p212
        $region50: #{tpu_custom_call.1} parent=47 // pred_check_branch
          %7100 = sbr.rel (%p7098) target = $region52
        $region51: #{tpu_custom_call.1} parent=47 // pred_region
          %s7101 = smul.u32 16, %s26
          %s7103 = ssub.s32 2048, 2048
          %7104 = vsyncadd %s7094, %s7103
          %s7105 = smul.addr %s25, 32
          %s7106 = sadd.s32 %s7101, %s7105
          %s7107 = smul.addr %s7106, 128
          %s7108 = scalar_lea.hbm %s7, %s7107
          %s7109 = sshll.u32 %s7097, 4
          %s7110 = int_to_ptr.vmem [resolvable:$true] %s7109
          %7115 = dma.vmem_to_hbm [thread:$0]  %s7110, 2048, %s7108, %s7094, 128, 128, 8
        $region52: #{tpu_custom_call.1} parent=47 // pred_fallthru
          _
      $region48: #{tpu_custom_call.1} parent=5 // pred_fallthru
        _
      %p7116 = scmp.le.s32.totalorder 2, %s16
      // Predicated region
      $region53: #{tpu_custom_call.1} parent=5 // pred_check
        %p7117 = pneg %p7116
      $region54: #{tpu_custom_call.1} parent=5 // pred_check_branch
        %7119 = sbr.rel (%p7117) target = $region56
      $region55: #{tpu_custom_call.1} parent=5 // pred_region
        %s7120 = ssub.s32 %s16, 2
        // Predicated region
        $region57: #{tpu_custom_call.1} parent=55 // pred_check
          %p7121 = pneg %p218
        $region58: #{tpu_custom_call.1} parent=55 // pred_check_branch
          %7123 = sbr.rel (%p7121) target = $region60
        $region59: #{tpu_custom_call.1} parent=55 // pred_region
          %s7124 = sand.u32 %s203, 1
          %s7125 = scalar_lea.sflag [#allocation3], %s7124
          %s7126 = sand.u32 %s203, 1
          %s7127 = smul.addr %s7126, 128
          %s7128 = scalar_lea.vmem [#allocation2], %s7127
          %7129 = dma.done %s7125, 2048
        $region60: #{tpu_custom_call.1} parent=55 // pred_fallthru
          _
      $region56: #{tpu_custom_call.1} parent=5 // pred_fallthru
        _
    $region6: #{tpu_custom_call.1} parent=1 // loop_footer
      %s20 = sadd.s32 1, %s16
    $region7: #{tpu_custom_call.1} parent=1 // loop_footer_branch
      %15 = sbr.rel target = $region3
    $region8: #{tpu_custom_call.1} parent=1 // loop_exit
      _
    %7130 = vsyncpa [#allocation3], 1
    %s7131 = scalar_lea.sflag [#allocation3], 1
    %7132 = vsyncpa %s7131, 1

</llo_original>
